<compile_context>
chip_gen: v5e
topology: v5e:2x2
jax: 0.10.0
libtpu: 0.0.40
codegen_flags: <defaults>
</compile_context>

<pallas_src>
import jax
import jax.numpy as jnp
from jax.experimental import pallas as pl
from jax.experimental.pallas import tpu as pltpu

_EPS = 1e-5


def _round_up(n, m):
    return ((n + m - 1) // m) * m


def _fused_bridge_kernel(x_ref, w1_ref, g1_ref, be1_ref,
                         w2_ref, g2_ref, be2_ref,
                         o_ref, xp1_ref, xp2_ref):
    """Fused ConvBlock x2.

    x_ref:   (N, H, W, Cin_p)        channel-padded input (lane dense)
    w*_ref:  (9*Cin_p, Cout_p)       im2col-flattened conv weights
    g*,be*:  (1, Cout_p)             BN scale / shift
    o_ref:   (N, H, W, Cout_p)       output (lane dense; sliced outside)
    xp1_ref: (N, H+2, W+2, Cin_p)    VMEM scratch: halo-padded input
    xp2_ref: (N, H+2, W+2, Cout_p)   VMEM scratch: halo-padded intermediate
    """
    N, H, W, _ = x_ref.shape
    C2 = o_ref.shape[-1]
    M = N * H * W
    inv_m = 1.0 / M

    def conv_bn_relu(xp_ref, w_flat, gamma, beta):
        xp = xp_ref[...]
        # im2col: 9 shifted (M, C) windows concatenated on the lane axis,
        # then a single MXU matmul with K = 9*C.
        taps = [xp[:, dy:dy + H, dx:dx + W, :].reshape(M, -1)
                for dy in range(3) for dx in range(3)]
        patches = jnp.concatenate(taps, axis=-1)                 # (M, 9*C)
        acc = jnp.dot(patches, w_flat,
                      preferred_element_type=jnp.float32)        # (M, Cout_p)
        # One-pass BatchNorm statistics (training mode, biased variance).
        s = jnp.sum(acc, axis=0, keepdims=True)
        ss = jnp.sum(acc * acc, axis=0, keepdims=True)
        mean = s * inv_m
        var = ss * inv_m - mean * mean
        scale = gamma * jax.lax.rsqrt(var + _EPS)
        shift = beta - mean * scale
        # Single fused scale/shift + ReLU pass over the accumulator.
        return jnp.maximum(acc * scale + shift, 0.0)

    # ---- Block 1: halo-pad the input entirely in VMEM -----------------------
    xp1_ref[...] = jnp.zeros_like(xp1_ref)
    xp1_ref[:, 1:H + 1, 1:W + 1, :] = x_ref[...]
    y1 = conv_bn_relu(xp1_ref, w1_ref[...], g1_ref[...], be1_ref[...])

    # ---- Block 2: intermediate stays in VMEM, halo-pad it and repeat --------
    xp2_ref[...] = jnp.zeros_like(xp2_ref)
    xp2_ref[:, 1:H + 1, 1:W + 1, :] = y1.reshape(N, H, W, C2)
    y2 = conv_bn_relu(xp2_ref, w2_ref[...], g2_ref[...], be2_ref[...])

    o_ref[...] = y2.reshape(N, H, W, C2)


def bridge_pallas(x_nhwc, w1, g1, be1, w2, g2, be2):
    """x_nhwc: (N, H, W, Cin) f32; conv weights in (kh, kw, cin, cout) layout."""
    N, H, W, Cin = x_nhwc.shape
    Cout = w1.shape[-1]
    cin_p = _round_up(Cin, 128)
    cout_p = _round_up(Cout, 128)

    # Lane-dense channel padding (zero-width, i.e. free, for realistic bridge
    # channel counts that are already multiples of 128).
    x_p = jnp.pad(x_nhwc, ((0, 0), (0, 0), (0, 0), (0, cin_p - Cin)))
    w1_p = jnp.pad(w1, ((0, 0), (0, 0), (0, cin_p - Cin), (0, cout_p - Cout)))
    w2_p = jnp.pad(w2, ((0, 0), (0, 0), (0, cout_p - Cout), (0, cout_p - Cout)))
    w1_f = w1_p.reshape(9 * cin_p, cout_p)   # im2col weight layout
    w2_f = w2_p.reshape(9 * cout_p, cout_p)
    pad_c = ((0, 0), (0, cout_p - Cout))
    g1_p, be1_p = jnp.pad(g1, pad_c), jnp.pad(be1, pad_c)
    g2_p, be2_p = jnp.pad(g2, pad_c), jnp.pad(be2, pad_c)

    flops = 2 * N * H * W * (9 * cin_p * cout_p + 9 * cout_p * cout_p)
    bytes_accessed = 4 * (x_p.size + w1_f.size + w2_f.size
                          + 4 * cout_p + N * H * W * cout_p)

    vmem = pl.BlockSpec(memory_space=pltpu.MemorySpace.VMEM)
    out = pl.pallas_call(
        _fused_bridge_kernel,
        out_shape=jax.ShapeDtypeStruct((N, H, W, cout_p), jnp.float32),
        in_specs=[vmem] * 7,
        out_specs=vmem,
        scratch_shapes=[
            pltpu.VMEM((N, H + 2, W + 2, cin_p), jnp.float32),   # padded x
            pltpu.VMEM((N, H + 2, W + 2, cout_p), jnp.float32),  # padded y1
        ],
        compiler_params=pltpu.CompilerParams(
            vmem_limit_bytes=32 * 1024 * 1024),
        cost_estimate=pl.CostEstimate(flops=flops,
                                      transcendentals=2 * cout_p,
                                      bytes_accessed=bytes_accessed),
    )(x_p, w1_f, g1_p, be1_p, w2_f, g2_p, be2_p)
    return out[..., :Cout]


def make_bridge_params(key, in_channels, out_channels):
    """Deterministic synthetic parameters for the two ConvBlocks."""
    keys = jax.random.split(key, 8)
    p = {}
    # Block 1: Cin -> Cout.  (b1/b2 are kept to mirror the PyTorch module, but
    # the kernel omits them: BN mean subtraction cancels a constant bias.)
    p["w1"] = 0.1 * jax.random.normal(keys[0], (3, 3, in_channels, out_channels), jnp.float32)
    p["b1"] = 0.05 * jax.random.normal(keys[1], (1, out_channels), jnp.float32)
    p["g1"] = 1.0 + 0.1 * jax.random.normal(keys[2], (1, out_channels), jnp.float32)
    p["be1"] = 0.1 * jax.random.normal(keys[3], (1, out_channels), jnp.float32)
    # Block 2: Cout -> Cout
    p["w2"] = 0.1 * jax.random.normal(keys[4], (3, 3, out_channels, out_channels), jnp.float32)
    p["b2"] = 0.05 * jax.random.normal(keys[5], (1, out_channels), jnp.float32)
    p["g2"] = 1.0 + 0.1 * jax.random.normal(keys[6], (1, out_channels), jnp.float32)
    p["be2"] = 0.1 * jax.random.normal(keys[7], (1, out_channels), jnp.float32)
    return p


@jax.jit
def bridge_forward(x_nchw, params):
    x = jnp.transpose(x_nchw, (0, 2, 3, 1))                       # NCHW -> NHWC
    y = bridge_pallas(x, params["w1"], params["g1"], params["be1"],
                      params["w2"], params["g2"], params["be2"])
    return jnp.transpose(y, (0, 3, 1, 2))                         # back to NCHW


# ---------- pure-JAX reference (models the PyTorch module exactly) ----------
def _conv_block_ref(x, w, b, gamma, beta):
    y = jax.lax.conv_general_dilated(
        x, w, window_strides=(1, 1), padding=((1, 1), (1, 1)),
        dimension_numbers=("NHWC", "HWIO", "NHWC"),
        precision=jax.lax.Precision.HIGHEST) + b
    mean = jnp.mean(y, axis=(0, 1, 2), keepdims=True)
    var = jnp.mean(jnp.square(y - mean), axis=(0, 1, 2), keepdims=True)
    y = (y - mean) * jax.lax.rsqrt(var + _EPS) * gamma + beta
    return jnp.maximum(y, 0.0)


@jax.jit
def bridge_reference(x_nchw, params):
    x = jnp.transpose(x_nchw, (0, 2, 3, 1))
    x = _conv_block_ref(x, params["w1"], params["b1"], params["g1"], params["be1"])
    x = _conv_block_ref(x, params["w2"], params["b2"], params["g2"], params["be2"])
    return jnp.transpose(x, (0, 3, 1, 2))


if __name__ == "__main__":
    key = jax.random.PRNGKey(0)
    k_x, k_p = jax.random.split(key)

    N, Cin, H, W = 2, 4, 16, 16
    Cout = 8
    x = jax.random.normal(k_x, (N, Cin, H, W), jnp.float32)
    params = make_bridge_params(k_p, Cin, Cout)

    out = bridge_forward(x, params)
    jax.block_until_ready(out)
    assert out.shape == (N, Cout, H, W), out.shape

    # Structural sanity check (loose tolerance so it only trips on real bugs,
    # not on MXU f32 pass-decomposition differences vs the XLA reference).
    ref = bridge_reference(x, params)
    max_err = float(jnp.max(jnp.abs(out - ref)))
    assert max_err < 0.1, max_err

    print("KERNEL_OK")
</pallas_src>

<mosaic_0001>
module attributes {stable_mosaic.version = 11 : i64} {
  func.func @_fused_bridge_kernel(%arg0: memref<2x16x16x128xf32, #tpu.memory_space<vmem>>, %arg1: memref<1152x128xf32, #tpu.memory_space<vmem>>, %arg2: memref<1x128xf32, #tpu.memory_space<vmem>>, %arg3: memref<1x128xf32, #tpu.memory_space<vmem>>, %arg4: memref<1152x128xf32, #tpu.memory_space<vmem>>, %arg5: memref<1x128xf32, #tpu.memory_space<vmem>>, %arg6: memref<1x128xf32, #tpu.memory_space<vmem>>, %arg7: memref<2x16x16x128xf32, #tpu.memory_space<vmem>>, %arg8: memref<2x18x18x128xf32, #tpu.memory_space<vmem>>, %arg9: memref<2x18x18x128xf32, #tpu.memory_space<vmem>>) attributes {dimension_semantics = [], scalar_prefetch = 0 : i64, scratch_operands = 2 : i64, tpu.core_type = #tpu.core_type<tc>} {
    %cst = arith.constant 0.000000e+00 : f32
    %0 = vector.broadcast %cst : f32 to vector<2x18x18x128xf32>
    %c0 = arith.constant 0 : index
    %c0_0 = arith.constant 0 : index
    %c0_1 = arith.constant 0 : index
    %c0_2 = arith.constant 0 : index
    %1 = vector.load %arg8[%c0, %c0_0, %c0_1, %c0_2] : memref<2x18x18x128xf32, #tpu.memory_space<vmem>>, vector<2x18x18x128xf32>
    tpu.vector_store %arg8[%c0, %c0_0, %c0_1, %c0_2], %0 {strides = array<i32>} : memref<2x18x18x128xf32, #tpu.memory_space<vmem>>, vector<2x18x18x128xf32>,
    %c0_3 = arith.constant 0 : index
    %c0_4 = arith.constant 0 : index
    %c0_5 = arith.constant 0 : index
    %c0_6 = arith.constant 0 : index
    %2 = vector.load %arg0[%c0_3, %c0_4, %c0_5, %c0_6] : memref<2x16x16x128xf32, #tpu.memory_space<vmem>>, vector<2x16x16x128xf32>
    %c0_7 = arith.constant 0 : index
    %c1 = arith.constant 1 : index
    %c1_8 = arith.constant 1 : index
    %c0_9 = arith.constant 0 : index
    %3 = vector.load %arg8[%c0_7, %c1, %c1_8, %c0_9] : memref<2x18x18x128xf32, #tpu.memory_space<vmem>>, vector<2x16x16x128xf32>
    tpu.vector_store %arg8[%c0_7, %c1, %c1_8, %c0_9], %2 {strides = array<i32>} : memref<2x18x18x128xf32, #tpu.memory_space<vmem>>, vector<2x16x16x128xf32>,
    %c0_10 = arith.constant 0 : index
    %c0_11 = arith.constant 0 : index
    %4 = vector.load %arg1[%c0_10, %c0_11] : memref<1152x128xf32, #tpu.memory_space<vmem>>, vector<1152x128xf32>
    %c0_12 = arith.constant 0 : index
    %c0_13 = arith.constant 0 : index
    %5 = vector.load %arg2[%c0_12, %c0_13] : memref<1x128xf32, #tpu.memory_space<vmem>>, vector<1x128xf32>
    %c0_14 = arith.constant 0 : index
    %c0_15 = arith.constant 0 : index
    %6 = vector.load %arg3[%c0_14, %c0_15] : memref<1x128xf32, #tpu.memory_space<vmem>>, vector<1x128xf32>
    %c0_16 = arith.constant 0 : index
    %c0_17 = arith.constant 0 : index
    %c0_18 = arith.constant 0 : index
    %c0_19 = arith.constant 0 : index
    %7 = vector.load %arg8[%c0_16, %c0_17, %c0_18, %c0_19] : memref<2x18x18x128xf32, #tpu.memory_space<vmem>>, vector<2x18x18x128xf32>
    %8 = vector.extract_strided_slice %7 {offsets = [0, 0, 0, 0], sizes = [2, 16, 16, 128], strides = [1, 1, 1, 1]} : vector<2x18x18x128xf32> to vector<2x16x16x128xf32>
    %9 = vector.shape_cast %8 : vector<2x16x16x128xf32> to vector<512x128xf32>
    %10 = vector.extract_strided_slice %7 {offsets = [0, 0, 1, 0], sizes = [2, 16, 16, 128], strides = [1, 1, 1, 1]} : vector<2x18x18x128xf32> to vector<2x16x16x128xf32>
    %11 = vector.shape_cast %10 : vector<2x16x16x128xf32> to vector<512x128xf32>
    %12 = vector.extract_strided_slice %7 {offsets = [0, 0, 2, 0], sizes = [2, 16, 16, 128], strides = [1, 1, 1, 1]} : vector<2x18x18x128xf32> to vector<2x16x16x128xf32>
    %13 = vector.shape_cast %12 : vector<2x16x16x128xf32> to vector<512x128xf32>
    %14 = vector.extract_strided_slice %7 {offsets = [0, 1, 0, 0], sizes = [2, 16, 16, 128], strides = [1, 1, 1, 1]} : vector<2x18x18x128xf32> to vector<2x16x16x128xf32>
    %15 = vector.shape_cast %14 : vector<2x16x16x128xf32> to vector<512x128xf32>
    %16 = vector.extract_strided_slice %7 {offsets = [0, 1, 1, 0], sizes = [2, 16, 16, 128], strides = [1, 1, 1, 1]} : vector<2x18x18x128xf32> to vector<2x16x16x128xf32>
    %17 = vector.shape_cast %16 : vector<2x16x16x128xf32> to vector<512x128xf32>
    %18 = vector.extract_strided_slice %7 {offsets = [0, 1, 2, 0], sizes = [2, 16, 16, 128], strides = [1, 1, 1, 1]} : vector<2x18x18x128xf32> to vector<2x16x16x128xf32>
    %19 = vector.shape_cast %18 : vector<2x16x16x128xf32> to vector<512x128xf32>
    %20 = vector.extract_strided_slice %7 {offsets = [0, 2, 0, 0], sizes = [2, 16, 16, 128], strides = [1, 1, 1, 1]} : vector<2x18x18x128xf32> to vector<2x16x16x128xf32>
    %21 = vector.shape_cast %20 : vector<2x16x16x128xf32> to vector<512x128xf32>
    %22 = vector.extract_strided_slice %7 {offsets = [0, 2, 1, 0], sizes = [2, 16, 16, 128], strides = [1, 1, 1, 1]} : vector<2x18x18x128xf32> to vector<2x16x16x128xf32>
    %23 = vector.shape_cast %22 : vector<2x16x16x128xf32> to vector<512x128xf32>
    %24 = vector.extract_strided_slice %7 {offsets = [0, 2, 2, 0], sizes = [2, 16, 16, 128], strides = [1, 1, 1, 1]} : vector<2x18x18x128xf32> to vector<2x16x16x128xf32>
    %25 = vector.shape_cast %24 : vector<2x16x16x128xf32> to vector<512x128xf32>
    %26 = tpu.concatenate %9, %11, %13, %15, %17, %19, %21, %23, %25 in 1 : vector<512x128xf32>, vector<512x128xf32>, vector<512x128xf32>, vector<512x128xf32>, vector<512x128xf32>, vector<512x128xf32>, vector<512x128xf32>, vector<512x128xf32>, vector<512x128xf32> -> vector<512x1152xf32>
    %cst_20 = arith.constant dense<0.000000e+00> : vector<512x128xf32>
    %27 = tpu.matmul %26, %4, %cst_20 {dimension_numbers = #tpu.dot_dimension_numbers<[1], [0], [0], [1], [0, 0, 1, 1], [], []>} : vector<512x1152xf32>, vector<1152x128xf32>, vector<512x128xf32> -> vector<512x128xf32>
    %cst_21 = arith.constant dense<0.000000e+00> : vector<128xf32>
    %28 = vector.multi_reduction <add>, %27, %cst_21 [0] : vector<512x128xf32> to vector<128xf32>
    %29 = vector.shape_cast %28 : vector<128xf32> to vector<1x128xf32>
    %30 = arith.mulf %27, %27 : vector<512x128xf32>
    %cst_22 = arith.constant dense<0.000000e+00> : vector<128xf32>
    %31 = vector.multi_reduction <add>, %30, %cst_22 [0] : vector<512x128xf32> to vector<128xf32>
    %32 = vector.shape_cast %31 : vector<128xf32> to vector<1x128xf32>
    %cst_23 = arith.constant 0.001953125 : f32
    %33 = vector.broadcast %cst_23 : f32 to vector<1x128xf32>
    %34 = arith.mulf %29, %33 : vector<1x128xf32>
    %cst_24 = arith.constant 0.001953125 : f32
    %35 = vector.broadcast %cst_24 : f32 to vector<1x128xf32>
    %36 = arith.mulf %32, %35 : vector<1x128xf32>
    %37 = arith.mulf %34, %34 : vector<1x128xf32>
    %38 = arith.subf %36, %37 : vector<1x128xf32>
    %cst_25 = arith.constant 9.99999974E-6 : f32
    %39 = vector.broadcast %cst_25 : f32 to vector<1x128xf32>
    %40 = arith.addf %38, %39 : vector<1x128xf32>
    %41 = math.rsqrt %40 : vector<1x128xf32>
    %42 = arith.mulf %5, %41 : vector<1x128xf32>
    %43 = arith.mulf %34, %42 : vector<1x128xf32>
    %44 = arith.subf %6, %43 : vector<1x128xf32>
    %45 = vector.broadcast %42 : vector<1x128xf32> to vector<512x128xf32>
    %46 = arith.mulf %27, %45 : vector<512x128xf32>
    %47 = vector.broadcast %44 : vector<1x128xf32> to vector<512x128xf32>
    %48 = arith.addf %46, %47 : vector<512x128xf32>
    %cst_26 = arith.constant 0.000000e+00 : f32
    %49 = vector.broadcast %cst_26 : f32 to vector<512x128xf32>
    %50 = arith.maximumf %48, %49 : vector<512x128xf32>
    %cst_27 = arith.constant 0.000000e+00 : f32
    %51 = vector.broadcast %cst_27 : f32 to vector<2x18x18x128xf32>
    %c0_28 = arith.constant 0 : index
    %c0_29 = arith.constant 0 : index
    %c0_30 = arith.constant 0 : index
    %c0_31 = arith.constant 0 : index
    %52 = vector.load %arg9[%c0_28, %c0_29, %c0_30, %c0_31] : memref<2x18x18x128xf32, #tpu.memory_space<vmem>>, vector<2x18x18x128xf32>
    tpu.vector_store %arg9[%c0_28, %c0_29, %c0_30, %c0_31], %51 {strides = array<i32>} : memref<2x18x18x128xf32, #tpu.memory_space<vmem>>, vector<2x18x18x128xf32>,
    %53 = vector.shape_cast %50 : vector<512x128xf32> to vector<2x16x16x128xf32>
    %c0_32 = arith.constant 0 : index
    %c1_33 = arith.constant 1 : index
    %c1_34 = arith.constant 1 : index
    %c0_35 = arith.constant 0 : index
    %54 = vector.load %arg9[%c0_32, %c1_33, %c1_34, %c0_35] : memref<2x18x18x128xf32, #tpu.memory_space<vmem>>, vector<2x16x16x128xf32>
    tpu.vector_store %arg9[%c0_32, %c1_33, %c1_34, %c0_35], %53 {strides = array<i32>} : memref<2x18x18x128xf32, #tpu.memory_space<vmem>>, vector<2x16x16x128xf32>,
    %c0_36 = arith.constant 0 : index
    %c0_37 = arith.constant 0 : index
    %55 = vector.load %arg4[%c0_36, %c0_37] : memref<1152x128xf32, #tpu.memory_space<vmem>>, vector<1152x128xf32>
    %c0_38 = arith.constant 0 : index
    %c0_39 = arith.constant 0 : index
    %56 = vector.load %arg5[%c0_38, %c0_39] : memref<1x128xf32, #tpu.memory_space<vmem>>, vector<1x128xf32>
    %c0_40 = arith.constant 0 : index
    %c0_41 = arith.constant 0 : index
    %57 = vector.load %arg6[%c0_40, %c0_41] : memref<1x128xf32, #tpu.memory_space<vmem>>, vector<1x128xf32>
    %c0_42 = arith.constant 0 : index
    %c0_43 = arith.constant 0 : index
    %c0_44 = arith.constant 0 : index
    %c0_45 = arith.constant 0 : index
    %58 = vector.load %arg9[%c0_42, %c0_43, %c0_44, %c0_45] : memref<2x18x18x128xf32, #tpu.memory_space<vmem>>, vector<2x18x18x128xf32>
    %59 = vector.extract_strided_slice %58 {offsets = [0, 0, 0, 0], sizes = [2, 16, 16, 128], strides = [1, 1, 1, 1]} : vector<2x18x18x128xf32> to vector<2x16x16x128xf32>
    %60 = vector.shape_cast %59 : vector<2x16x16x128xf32> to vector<512x128xf32>
    %61 = vector.extract_strided_slice %58 {offsets = [0, 0, 1, 0], sizes = [2, 16, 16, 128], strides = [1, 1, 1, 1]} : vector<2x18x18x128xf32> to vector<2x16x16x128xf32>
    %62 = vector.shape_cast %61 : vector<2x16x16x128xf32> to vector<512x128xf32>
    %63 = vector.extract_strided_slice %58 {offsets = [0, 0, 2, 0], sizes = [2, 16, 16, 128], strides = [1, 1, 1, 1]} : vector<2x18x18x128xf32> to vector<2x16x16x128xf32>
    %64 = vector.shape_cast %63 : vector<2x16x16x128xf32> to vector<512x128xf32>
    %65 = vector.extract_strided_slice %58 {offsets = [0, 1, 0, 0], sizes = [2, 16, 16, 128], strides = [1, 1, 1, 1]} : vector<2x18x18x128xf32> to vector<2x16x16x128xf32>
    %66 = vector.shape_cast %65 : vector<2x16x16x128xf32> to vector<512x128xf32>
    %67 = vector.extract_strided_slice %58 {offsets = [0, 1, 1, 0], sizes = [2, 16, 16, 128], strides = [1, 1, 1, 1]} : vector<2x18x18x128xf32> to vector<2x16x16x128xf32>
    %68 = vector.shape_cast %67 : vector<2x16x16x128xf32> to vector<512x128xf32>
    %69 = vector.extract_strided_slice %58 {offsets = [0, 1, 2, 0], sizes = [2, 16, 16, 128], strides = [1, 1, 1, 1]} : vector<2x18x18x128xf32> to vector<2x16x16x128xf32>
    %70 = vector.shape_cast %69 : vector<2x16x16x128xf32> to vector<512x128xf32>
    %71 = vector.extract_strided_slice %58 {offsets = [0, 2, 0, 0], sizes = [2, 16, 16, 128], strides = [1, 1, 1, 1]} : vector<2x18x18x128xf32> to vector<2x16x16x128xf32>
    %72 = vector.shape_cast %71 : vector<2x16x16x128xf32> to vector<512x128xf32>
    %73 = vector.extract_strided_slice %58 {offsets = [0, 2, 1, 0], sizes = [2, 16, 16, 128], strides = [1, 1, 1, 1]} : vector<2x18x18x128xf32> to vector<2x16x16x128xf32>
    %74 = vector.shape_cast %73 : vector<2x16x16x128xf32> to vector<512x128xf32>
    %75 = vector.extract_strided_slice %58 {offsets = [0, 2, 2, 0], sizes = [2, 16, 16, 128], strides = [1, 1, 1, 1]} : vector<2x18x18x128xf32> to vector<2x16x16x128xf32>
    %76 = vector.shape_cast %75 : vector<2x16x16x128xf32> to vector<512x128xf32>
    %77 = tpu.concatenate %60, %62, %64, %66, %68, %70, %72, %74, %76 in 1 : vector<512x128xf32>, vector<512x128xf32>, vector<512x128xf32>, vector<512x128xf32>, vector<512x128xf32>, vector<512x128xf32>, vector<512x128xf32>, vector<512x128xf32>, vector<512x128xf32> -> vector<512x1152xf32>
    %cst_46 = arith.constant dense<0.000000e+00> : vector<512x128xf32>
    %78 = tpu.matmul %77, %55, %cst_46 {dimension_numbers = #tpu.dot_dimension_numbers<[1], [0], [0], [1], [0, 0, 1, 1], [], []>} : vector<512x1152xf32>, vector<1152x128xf32>, vector<512x128xf32> -> vector<512x128xf32>
    %cst_47 = arith.constant dense<0.000000e+00> : vector<128xf32>
    %79 = vector.multi_reduction <add>, %78, %cst_47 [0] : vector<512x128xf32> to vector<128xf32>
    %80 = vector.shape_cast %79 : vector<128xf32> to vector<1x128xf32>
    %81 = arith.mulf %78, %78 : vector<512x128xf32>
    %cst_48 = arith.constant dense<0.000000e+00> : vector<128xf32>
    %82 = vector.multi_reduction <add>, %81, %cst_48 [0] : vector<512x128xf32> to vector<128xf32>
    %83 = vector.shape_cast %82 : vector<128xf32> to vector<1x128xf32>
    %cst_49 = arith.constant 0.001953125 : f32
    %84 = vector.broadcast %cst_49 : f32 to vector<1x128xf32>
    %85 = arith.mulf %80, %84 : vector<1x128xf32>
    %cst_50 = arith.constant 0.001953125 : f32
    %86 = vector.broadcast %cst_50 : f32 to vector<1x128xf32>
    %87 = arith.mulf %83, %86 : vector<1x128xf32>
    %88 = arith.mulf %85, %85 : vector<1x128xf32>
    %89 = arith.subf %87, %88 : vector<1x128xf32>
    %cst_51 = arith.constant 9.99999974E-6 : f32
    %90 = vector.broadcast %cst_51 : f32 to vector<1x128xf32>
    %91 = arith.addf %89, %90 : vector<1x128xf32>
    %92 = math.rsqrt %91 : vector<1x128xf32>
    %93 = arith.mulf %56, %92 : vector<1x128xf32>
    %94 = arith.mulf %85, %93 : vector<1x128xf32>
    %95 = arith.subf %57, %94 : vector<1x128xf32>
    %96 = vector.broadcast %93 : vector<1x128xf32> to vector<512x128xf32>
    %97 = arith.mulf %78, %96 : vector<512x128xf32>
    %98 = vector.broadcast %95 : vector<1x128xf32> to vector<512x128xf32>
    %99 = arith.addf %97, %98 : vector<512x128xf32>
    %cst_52 = arith.constant 0.000000e+00 : f32
    %100 = vector.broadcast %cst_52 : f32 to vector<512x128xf32>
    %101 = arith.maximumf %99, %100 : vector<512x128xf32>
    %102 = vector.shape_cast %101 : vector<512x128xf32> to vector<2x16x16x128xf32>
    %c0_53 = arith.constant 0 : index
    %c0_54 = arith.constant 0 : index
    %c0_55 = arith.constant 0 : index
    %c0_56 = arith.constant 0 : index
    %103 = vector.load %arg7[%c0_53, %c0_54, %c0_55, %c0_56] : memref<2x16x16x128xf32, #tpu.memory_space<vmem>>, vector<2x16x16x128xf32>
    tpu.vector_store %arg7[%c0_53, %c0_54, %c0_55, %c0_56], %102 {strides = array<i32>} : memref<2x16x16x128xf32, #tpu.memory_space<vmem>>, vector<2x16x16x128xf32>,
    return
  }
}

</mosaic_0001>

<llo_original>
// kernel: bridge_forward.1
$region0: #{bridge_forward.1}
  #allocation0 [shape = 'u32[]', space=smem, size = 0x4, offset = 0x4, fixed_abs, tag = 'smem constant byte address 0x4 - core index']
  #allocation1 [shape = 'u32[72,128]{1,0:T(1,128)}', space=vmem, size = 0x9000, scoped, tag = 'internal scratch']
  #allocation2 [shape = 'f32[2,18,18,128]{3,2,1,0:T(8,128)}', space=vmem, size = 0x6c000, scoped, tag = 'scratch operand']
  #allocation3 [shape = 'f32[2,18,18,128]{3,2,1,0:T(8,128)}', space=vmem, size = 0x6c000, scoped, tag = 'scratch operand']
  %s0 = inlined_call_operand.vmem [shape: f32[2,16,16,128], index: 0, kind: input, shape index: {}]
  %s1 = inlined_call_operand.vmem [shape: f32[1152,128], index: 1, kind: input, shape index: {}]
  %s2 = inlined_call_operand.vmem [shape: f32[1,128], index: 2, kind: input, shape index: {}]
  %s3 = inlined_call_operand.vmem [shape: f32[1,128], index: 3, kind: input, shape index: {}]
  %s4 = inlined_call_operand.vmem [shape: f32[1152,128], index: 4, kind: input, shape index: {}]
  %s5 = inlined_call_operand.vmem [shape: f32[1,128], index: 5, kind: input, shape index: {}]
  %s6 = inlined_call_operand.vmem [shape: f32[1,128], index: 6, kind: input, shape index: {}]
  %s7 = inlined_call_operand.vmem [shape: f32[2,16,16,128], index: 7, kind: output, shape index: {}]
  %s8 = sld [smem:[#allocation0]]
  $region38: #{bridge_forward.1} parent=0
    _
  %s10 = ssub.s32 1, %s8
  %s11 = scalar_select 0, %s10, %s8
  // Predicated region
  $region2: #{bridge_forward.1} parent=0 // pred_check
    _
  $region3: #{bridge_forward.1} parent=0 // pred_check_branch
    %13 = sbr.rel (0) target = $region5
  $region4: #{bridge_forward.1} parent=0 // pred_region
    _
  $region5: #{bridge_forward.1} parent=0 // pred_fallthru
    _
  // Predicated region
  $region6: #{bridge_forward.1} parent=0 // pred_check
    _
  $region7: #{bridge_forward.1} parent=0 // pred_check_branch
    %15 = sbr.rel (0) target = $region9
  $region8: #{bridge_forward.1} parent=0 // pred_region
    _
  $region9: #{bridge_forward.1} parent=0 // pred_fallthru
    _
  // Predicated region
  $region10: #{bridge_forward.1} parent=0 // pred_check
    _
  $region11: #{bridge_forward.1} parent=0 // pred_check_branch
    %17 = sbr.rel (0) target = $region13
  $region12: #{bridge_forward.1} parent=0 // pred_region
    _
  $region13: #{bridge_forward.1} parent=0 // pred_fallthru
    _
  // Predicated region
  $region14: #{bridge_forward.1} parent=0 // pred_check
    _
  $region15: #{bridge_forward.1} parent=0 // pred_check_branch
    %19 = sbr.rel (0) target = $region17
  $region16: #{bridge_forward.1} parent=0 // pred_region
    _
  $region17: #{bridge_forward.1} parent=0 // pred_fallthru
    _
  // Predicated region
  $region18: #{bridge_forward.1} parent=0 // pred_check
    _
  $region19: #{bridge_forward.1} parent=0 // pred_check_branch
    %21 = sbr.rel (0) target = $region21
  $region20: #{bridge_forward.1} parent=0 // pred_region
    _
  $region21: #{bridge_forward.1} parent=0 // pred_fallthru
    _
  // Predicated region
  $region22: #{bridge_forward.1} parent=0 // pred_check
    _
  $region23: #{bridge_forward.1} parent=0 // pred_check_branch
    %23 = sbr.rel (0) target = $region25
  $region24: #{bridge_forward.1} parent=0 // pred_region
    _
  $region25: #{bridge_forward.1} parent=0 // pred_fallthru
    _
  // Predicated region
  $region26: #{bridge_forward.1} parent=0 // pred_check
    _
  $region27: #{bridge_forward.1} parent=0 // pred_check_branch
    %25 = sbr.rel (0) target = $region29
  $region28: #{bridge_forward.1} parent=0 // pred_region
    _
  $region29: #{bridge_forward.1} parent=0 // pred_fallthru
    _
  %26 = vst [vmem:[#allocation2] sm:$0xff] 0.0
  %27 = vst [vmem:[#allocation2 + $0x8] sm:$0xff] 0.0
  %28 = vst [vmem:[#allocation2 + $0x10] sm:$0x3] 0.0
  %29 = vst [vmem:[#allocation2 + $0x18] sm:$0xff] 0.0
  %30 = vst [vmem:[#allocation2 + $0x20] sm:$0xff] 0.0
  %31 = vst [vmem:[#allocation2 + $0x28] sm:$0x3] 0.0
  %32 = vst [vmem:[#allocation2 + $0x30] sm:$0xff] 0.0
  %33 = vst [vmem:[#allocation2 + $0x38] sm:$0xff] 0.0
  %34 = vst [vmem:[#allocation2 + $0x40] sm:$0x3] 0.0
  %35 = vst [vmem:[#allocation2 + $0x48] sm:$0xff] 0.0
  %36 = vst [vmem:[#allocation2 + $0x50] sm:$0xff] 0.0
  %37 = vst [vmem:[#allocation2 + $0x58] sm:$0x3] 0.0
  %38 = vst [vmem:[#allocation2 + $0x60] sm:$0xff] 0.0
  %39 = vst [vmem:[#allocation2 + $0x68] sm:$0xff] 0.0
  %40 = vst [vmem:[#allocation2 + $0x70] sm:$0x3] 0.0
  %41 = vst [vmem:[#allocation2 + $0x78] sm:$0xff] 0.0
  %42 = vst [vmem:[#allocation2 + $0x80] sm:$0xff] 0.0
  %43 = vst [vmem:[#allocation2 + $0x88] sm:$0x3] 0.0
  %44 = vst [vmem:[#allocation2 + $0x90] sm:$0xff] 0.0
  %45 = vst [vmem:[#allocation2 + $0x98] sm:$0xff] 0.0
  %46 = vst [vmem:[#allocation2 + $0xa0] sm:$0x3] 0.0
  %47 = vst [vmem:[#allocation2 + $0xa8] sm:$0xff] 0.0
  %48 = vst [vmem:[#allocation2 + $0xb0] sm:$0xff] 0.0
  %49 = vst [vmem:[#allocation2 + $0xb8] sm:$0x3] 0.0
  %50 = vst [vmem:[#allocation2 + $0xc0] sm:$0xff] 0.0
  %51 = vst [vmem:[#allocation2 + $0xc8] sm:$0xff] 0.0
  %52 = vst [vmem:[#allocation2 + $0xd0] sm:$0x3] 0.0
  %53 = vst [vmem:[#allocation2 + $0xd8] sm:$0xff] 0.0
  %54 = vst [vmem:[#allocation2 + $0xe0] sm:$0xff] 0.0
  %55 = vst [vmem:[#allocation2 + $0xe8] sm:$0x3] 0.0
  %56 = vst [vmem:[#allocation2 + $0xf0] sm:$0xff] 0.0
  %57 = vst [vmem:[#allocation2 + $0xf8] sm:$0xff] 0.0
  %58 = vst [vmem:[#allocation2 + $0x100] sm:$0x3] 0.0
  %59 = vst [vmem:[#allocation2 + $0x108] sm:$0xff] 0.0
  %60 = vst [vmem:[#allocation2 + $0x110] sm:$0xff] 0.0
  %61 = vst [vmem:[#allocation2 + $0x118] sm:$0x3] 0.0
  %62 = vst [vmem:[#allocation2 + $0x120] sm:$0xff] 0.0
  %63 = vst [vmem:[#allocation2 + $0x128] sm:$0xff] 0.0
  %64 = vst [vmem:[#allocation2 + $0x130] sm:$0x3] 0.0
  %65 = vst [vmem:[#allocation2 + $0x138] sm:$0xff] 0.0
  %66 = vst [vmem:[#allocation2 + $0x140] sm:$0xff] 0.0
  %67 = vst [vmem:[#allocation2 + $0x148] sm:$0x3] 0.0
  %68 = vst [vmem:[#allocation2 + $0x150] sm:$0xff] 0.0
  %69 = vst [vmem:[#allocation2 + $0x158] sm:$0xff] 0.0
  %70 = vst [vmem:[#allocation2 + $0x160] sm:$0x3] 0.0
  %71 = vst [vmem:[#allocation2 + $0x168] sm:$0xff] 0.0
  %72 = vst [vmem:[#allocation2 + $0x170] sm:$0xff] 0.0
  %73 = vst [vmem:[#allocation2 + $0x178] sm:$0x3] 0.0
  %74 = vst [vmem:[#allocation2 + $0x180] sm:$0xff] 0.0
  %75 = vst [vmem:[#allocation2 + $0x188] sm:$0xff] 0.0
  %76 = vst [vmem:[#allocation2 + $0x190] sm:$0x3] 0.0
  %77 = vst [vmem:[#allocation2 + $0x198] sm:$0xff] 0.0
  %78 = vst [vmem:[#allocation2 + $0x1a0] sm:$0xff] 0.0
  %79 = vst [vmem:[#allocation2 + $0x1a8] sm:$0x3] 0.0
  %80 = vst [vmem:[#allocation2 + $0x1b0] sm:$0xff] 0.0
  %81 = vst [vmem:[#allocation2 + $0x1b8] sm:$0xff] 0.0
  %82 = vst [vmem:[#allocation2 + $0x1c0] sm:$0x3] 0.0
  %83 = vst [vmem:[#allocation2 + $0x1c8] sm:$0xff] 0.0
  %84 = vst [vmem:[#allocation2 + $0x1d0] sm:$0xff] 0.0
  %85 = vst [vmem:[#allocation2 + $0x1d8] sm:$0x3] 0.0
  %86 = vst [vmem:[#allocation2 + $0x1e0] sm:$0xff] 0.0
  %87 = vst [vmem:[#allocation2 + $0x1e8] sm:$0xff] 0.0
  %88 = vst [vmem:[#allocation2 + $0x1f0] sm:$0x3] 0.0
  %89 = vst [vmem:[#allocation2 + $0x1f8] sm:$0xff] 0.0
  %90 = vst [vmem:[#allocation2 + $0x200] sm:$0xff] 0.0
  %91 = vst [vmem:[#allocation2 + $0x208] sm:$0x3] 0.0
  %92 = vst [vmem:[#allocation2 + $0x210] sm:$0xff] 0.0
  %93 = vst [vmem:[#allocation2 + $0x218] sm:$0xff] 0.0
  %94 = vst [vmem:[#allocation2 + $0x220] sm:$0x3] 0.0
  %95 = vst [vmem:[#allocation2 + $0x228] sm:$0xff] 0.0
  %96 = vst [vmem:[#allocation2 + $0x230] sm:$0xff] 0.0
  %97 = vst [vmem:[#allocation2 + $0x238] sm:$0x3] 0.0
  %98 = vst [vmem:[#allocation2 + $0x240] sm:$0xff] 0.0
  %99 = vst [vmem:[#allocation2 + $0x248] sm:$0xff] 0.0
  %100 = vst [vmem:[#allocation2 + $0x250] sm:$0x3] 0.0
  %101 = vst [vmem:[#allocation2 + $0x258] sm:$0xff] 0.0
  %102 = vst [vmem:[#allocation2 + $0x260] sm:$0xff] 0.0
  %103 = vst [vmem:[#allocation2 + $0x268] sm:$0x3] 0.0
  %104 = vst [vmem:[#allocation2 + $0x270] sm:$0xff] 0.0
  %105 = vst [vmem:[#allocation2 + $0x278] sm:$0xff] 0.0
  %106 = vst [vmem:[#allocation2 + $0x280] sm:$0x3] 0.0
  %107 = vst [vmem:[#allocation2 + $0x288] sm:$0xff] 0.0
  %108 = vst [vmem:[#allocation2 + $0x290] sm:$0xff] 0.0
  %109 = vst [vmem:[#allocation2 + $0x298] sm:$0x3] 0.0
  %110 = vst [vmem:[#allocation2 + $0x2a0] sm:$0xff] 0.0
  %111 = vst [vmem:[#allocation2 + $0x2a8] sm:$0xff] 0.0
  %112 = vst [vmem:[#allocation2 + $0x2b0] sm:$0x3] 0.0
  %113 = vst [vmem:[#allocation2 + $0x2b8] sm:$0xff] 0.0
  %114 = vst [vmem:[#allocation2 + $0x2c0] sm:$0xff] 0.0
  %115 = vst [vmem:[#allocation2 + $0x2c8] sm:$0x3] 0.0
  %116 = vst [vmem:[#allocation2 + $0x2d0] sm:$0xff] 0.0
  %117 = vst [vmem:[#allocation2 + $0x2d8] sm:$0xff] 0.0
  %118 = vst [vmem:[#allocation2 + $0x2e0] sm:$0x3] 0.0
  %119 = vst [vmem:[#allocation2 + $0x2e8] sm:$0xff] 0.0
  %120 = vst [vmem:[#allocation2 + $0x2f0] sm:$0xff] 0.0
  %121 = vst [vmem:[#allocation2 + $0x2f8] sm:$0x3] 0.0
  %122 = vst [vmem:[#allocation2 + $0x300] sm:$0xff] 0.0
  %123 = vst [vmem:[#allocation2 + $0x308] sm:$0xff] 0.0
  %124 = vst [vmem:[#allocation2 + $0x310] sm:$0x3] 0.0
  %125 = vst [vmem:[#allocation2 + $0x318] sm:$0xff] 0.0
  %126 = vst [vmem:[#allocation2 + $0x320] sm:$0xff] 0.0
  %127 = vst [vmem:[#allocation2 + $0x328] sm:$0x3] 0.0
  %128 = vst [vmem:[#allocation2 + $0x330] sm:$0xff] 0.0
  %129 = vst [vmem:[#allocation2 + $0x338] sm:$0xff] 0.0
  %130 = vst [vmem:[#allocation2 + $0x340] sm:$0x3] 0.0
  %131 = vst [vmem:[#allocation2 + $0x348] sm:$0xff] 0.0
  %132 = vst [vmem:[#allocation2 + $0x350] sm:$0xff] 0.0
  %133 = vst [vmem:[#allocation2 + $0x358] sm:$0x3] 0.0
  %v134 = vld [vmem:[%s0] sm:$0xff]
  %v135 = vld [vmem:[%s0 + $0x8] sm:$0xff]
  %v136 = vld [vmem:[%s0 + $0x10] sm:$0xff]
  %v137 = vld [vmem:[%s0 + $0x18] sm:$0xff]
  %v138 = vld [vmem:[%s0 + $0x20] sm:$0xff]
  %v139 = vld [vmem:[%s0 + $0x28] sm:$0xff]
  %v140 = vld [vmem:[%s0 + $0x30] sm:$0xff]
  %v141 = vld [vmem:[%s0 + $0x38] sm:$0xff]
  %v142 = vld [vmem:[%s0 + $0x40] sm:$0xff]
  %v143 = vld [vmem:[%s0 + $0x48] sm:$0xff]
  %v144 = vld [vmem:[%s0 + $0x50] sm:$0xff]
  %v145 = vld [vmem:[%s0 + $0x58] sm:$0xff]
  %v146 = vld [vmem:[%s0 + $0x60] sm:$0xff]
  %v147 = vld [vmem:[%s0 + $0x68] sm:$0xff]
  %v148 = vld [vmem:[%s0 + $0x70] sm:$0xff]
  %v149 = vld [vmem:[%s0 + $0x78] sm:$0xff]
  %v150 = vld [vmem:[%s0 + $0x80] sm:$0xff]
  %v151 = vld [vmem:[%s0 + $0x88] sm:$0xff]
  %v152 = vld [vmem:[%s0 + $0x90] sm:$0xff]
  %v153 = vld [vmem:[%s0 + $0x98] sm:$0xff]
  %v154 = vld [vmem:[%s0 + $0xa0] sm:$0xff]
  %v155 = vld [vmem:[%s0 + $0xa8] sm:$0xff]
  %v156 = vld [vmem:[%s0 + $0xb0] sm:$0xff]
  %v157 = vld [vmem:[%s0 + $0xb8] sm:$0xff]
  %v158 = vld [vmem:[%s0 + $0xc0] sm:$0xff]
  %v159 = vld [vmem:[%s0 + $0xc8] sm:$0xff]
  %v160 = vld [vmem:[%s0 + $0xd0] sm:$0xff]
  %v161 = vld [vmem:[%s0 + $0xd8] sm:$0xff]
  %v162 = vld [vmem:[%s0 + $0xe0] sm:$0xff]
  %v163 = vld [vmem:[%s0 + $0xe8] sm:$0xff]
  %v164 = vld [vmem:[%s0 + $0xf0] sm:$0xff]
  %v165 = vld [vmem:[%s0 + $0xf8] sm:$0xff]
  %v166 = vld [vmem:[%s0 + $0x100] sm:$0xff]
  %v167 = vld [vmem:[%s0 + $0x108] sm:$0xff]
  %v168 = vld [vmem:[%s0 + $0x110] sm:$0xff]
  %v169 = vld [vmem:[%s0 + $0x118] sm:$0xff]
  %v170 = vld [vmem:[%s0 + $0x120] sm:$0xff]
  %v171 = vld [vmem:[%s0 + $0x128] sm:$0xff]
  %v172 = vld [vmem:[%s0 + $0x130] sm:$0xff]
  %v173 = vld [vmem:[%s0 + $0x138] sm:$0xff]
  %v174 = vld [vmem:[%s0 + $0x140] sm:$0xff]
  %v175 = vld [vmem:[%s0 + $0x148] sm:$0xff]
  %v176 = vld [vmem:[%s0 + $0x150] sm:$0xff]
  %v177 = vld [vmem:[%s0 + $0x158] sm:$0xff]
  %v178 = vld [vmem:[%s0 + $0x160] sm:$0xff]
  %v179 = vld [vmem:[%s0 + $0x168] sm:$0xff]
  %v180 = vld [vmem:[%s0 + $0x170] sm:$0xff]
  %v181 = vld [vmem:[%s0 + $0x178] sm:$0xff]
  %v182 = vld [vmem:[%s0 + $0x180] sm:$0xff]
  %v183 = vld [vmem:[%s0 + $0x188] sm:$0xff]
  %v184 = vld [vmem:[%s0 + $0x190] sm:$0xff]
  %v185 = vld [vmem:[%s0 + $0x198] sm:$0xff]
  %v186 = vld [vmem:[%s0 + $0x1a0] sm:$0xff]
  %v187 = vld [vmem:[%s0 + $0x1a8] sm:$0xff]
  %v188 = vld [vmem:[%s0 + $0x1b0] sm:$0xff]
  %v189 = vld [vmem:[%s0 + $0x1b8] sm:$0xff]
  %v190 = vld [vmem:[%s0 + $0x1c0] sm:$0xff]
  %v191 = vld [vmem:[%s0 + $0x1c8] sm:$0xff]
  %v192 = vld [vmem:[%s0 + $0x1d0] sm:$0xff]
  %v193 = vld [vmem:[%s0 + $0x1d8] sm:$0xff]
  %v194 = vld [vmem:[%s0 + $0x1e0] sm:$0xff]
  %v195 = vld [vmem:[%s0 + $0x1e8] sm:$0xff]
  %v196 = vld [vmem:[%s0 + $0x1f0] sm:$0xff]
  %v197 = vld [vmem:[%s0 + $0x1f8] sm:$0xff]
  %s198 = scalar_lea.vmem [#allocation2], 24
  %199 = vst [vmem:[%s198 + $0x1] sm:$0xff] %v134
  %200 = vst [vmem:[%s198 + $0x9] sm:$0xff] %v135
  %201 = vst [vmem:[%s198 + $0x19] sm:$0xff] %v136
  %202 = vst [vmem:[%s198 + $0x21] sm:$0xff] %v137
  %203 = vst [vmem:[%s198 + $0x31] sm:$0xff] %v138
  %204 = vst [vmem:[%s198 + $0x39] sm:$0xff] %v139
  %205 = vst [vmem:[%s198 + $0x49] sm:$0xff] %v140
  %206 = vst [vmem:[%s198 + $0x51] sm:$0xff] %v141
  %207 = vst [vmem:[%s198 + $0x61] sm:$0xff] %v142
  %208 = vst [vmem:[%s198 + $0x69] sm:$0xff] %v143
  %209 = vst [vmem:[%s198 + $0x79] sm:$0xff] %v144
  %210 = vst [vmem:[%s198 + $0x81] sm:$0xff] %v145
  %211 = vst [vmem:[%s198 + $0x91] sm:$0xff] %v146
  %212 = vst [vmem:[%s198 + $0x99] sm:$0xff] %v147
  %213 = vst [vmem:[%s198 + $0xa9] sm:$0xff] %v148
  %214 = vst [vmem:[%s198 + $0xb1] sm:$0xff] %v149
  %215 = vst [vmem:[%s198 + $0xc1] sm:$0xff] %v150
  %216 = vst [vmem:[%s198 + $0xc9] sm:$0xff] %v151
  %217 = vst [vmem:[%s198 + $0xd9] sm:$0xff] %v152
  %218 = vst [vmem:[%s198 + $0xe1] sm:$0xff] %v153
  %219 = vst [vmem:[%s198 + $0xf1] sm:$0xff] %v154
  %220 = vst [vmem:[%s198 + $0xf9] sm:$0xff] %v155
  %221 = vst [vmem:[%s198 + $0x109] sm:$0xff] %v156
  %222 = vst [vmem:[%s198 + $0x111] sm:$0xff] %v157
  %223 = vst [vmem:[%s198 + $0x121] sm:$0xff] %v158
  %224 = vst [vmem:[%s198 + $0x129] sm:$0xff] %v159
  %225 = vst [vmem:[%s198 + $0x139] sm:$0xff] %v160
  %226 = vst [vmem:[%s198 + $0x141] sm:$0xff] %v161
  %227 = vst [vmem:[%s198 + $0x151] sm:$0xff] %v162
  %228 = vst [vmem:[%s198 + $0x159] sm:$0xff] %v163
  %229 = vst [vmem:[%s198 + $0x169] sm:$0xff] %v164
  %230 = vst [vmem:[%s198 + $0x171] sm:$0xff] %v165
  %231 = vst [vmem:[%s198 + $0x1b1] sm:$0xff] %v166
  %232 = vst [vmem:[%s198 + $0x1b9] sm:$0xff] %v167
  %233 = vst [vmem:[%s198 + $0x1c9] sm:$0xff] %v168
  %234 = vst [vmem:[%s198 + $0x1d1] sm:$0xff] %v169
  %235 = vst [vmem:[%s198 + $0x1e1] sm:$0xff] %v170
  %236 = vst [vmem:[%s198 + $0x1e9] sm:$0xff] %v171
  %237 = vst [vmem:[%s198 + $0x1f9] sm:$0xff] %v172
  %238 = vst [vmem:[%s198 + $0x201] sm:$0xff] %v173
  %239 = vst [vmem:[%s198 + $0x211] sm:$0xff] %v174
  %240 = vst [vmem:[%s198 + $0x219] sm:$0xff] %v175
  %241 = vst [vmem:[%s198 + $0x229] sm:$0xff] %v176
  %242 = vst [vmem:[%s198 + $0x231] sm:$0xff] %v177
  %243 = vst [vmem:[%s198 + $0x241] sm:$0xff] %v178
  %244 = vst [vmem:[%s198 + $0x249] sm:$0xff] %v179
  %245 = vst [vmem:[%s198 + $0x259] sm:$0xff] %v180
  %246 = vst [vmem:[%s198 + $0x261] sm:$0xff] %v181
  %247 = vst [vmem:[%s198 + $0x271] sm:$0xff] %v182
  %248 = vst [vmem:[%s198 + $0x279] sm:$0xff] %v183
  %249 = vst [vmem:[%s198 + $0x289] sm:$0xff] %v184
  %250 = vst [vmem:[%s198 + $0x291] sm:$0xff] %v185
  %251 = vst [vmem:[%s198 + $0x2a1] sm:$0xff] %v186
  %252 = vst [vmem:[%s198 + $0x2a9] sm:$0xff] %v187
  %253 = vst [vmem:[%s198 + $0x2b9] sm:$0xff] %v188
  %254 = vst [vmem:[%s198 + $0x2c1] sm:$0xff] %v189
  %255 = vst [vmem:[%s198 + $0x2d1] sm:$0xff] %v190
  %256 = vst [vmem:[%s198 + $0x2d9] sm:$0xff] %v191
  %257 = vst [vmem:[%s198 + $0x2e9] sm:$0xff] %v192
  %258 = vst [vmem:[%s198 + $0x2f1] sm:$0xff] %v193
  %259 = vst [vmem:[%s198 + $0x301] sm:$0xff] %v194
  %260 = vst [vmem:[%s198 + $0x309] sm:$0xff] %v195
  %261 = vst [vmem:[%s198 + $0x319] sm:$0xff] %v196
  %262 = vst [vmem:[%s198 + $0x321] sm:$0xff] %v197
  %v263 = vld [vmem:[%s1] sm:$0xff]
  %v264 = vld [vmem:[%s1 + $0x8] sm:$0xff]
  %v265 = vld [vmem:[%s1 + $0x10] sm:$0xff]
  %v266 = vld [vmem:[%s1 + $0x18] sm:$0xff]
  %v267 = vld [vmem:[%s1 + $0x20] sm:$0xff]
  %v268 = vld [vmem:[%s1 + $0x28] sm:$0xff]
  %v269 = vld [vmem:[%s1 + $0x30] sm:$0xff]
  %v270 = vld [vmem:[%s1 + $0x38] sm:$0xff]
  %v271 = vld [vmem:[%s1 + $0x40] sm:$0xff]
  %v272 = vld [vmem:[%s1 + $0x48] sm:$0xff]
  %v273 = vld [vmem:[%s1 + $0x50] sm:$0xff]
  %v274 = vld [vmem:[%s1 + $0x58] sm:$0xff]
  %v275 = vld [vmem:[%s1 + $0x60] sm:$0xff]
  %v276 = vld [vmem:[%s1 + $0x68] sm:$0xff]
  %v277 = vld [vmem:[%s1 + $0x70] sm:$0xff]
  %v278 = vld [vmem:[%s1 + $0x78] sm:$0xff]
  %v279 = vld [vmem:[%s1 + $0x80] sm:$0xff]
  %v280 = vld [vmem:[%s1 + $0x88] sm:$0xff]
  %v281 = vld [vmem:[%s1 + $0x90] sm:$0xff]
  %v282 = vld [vmem:[%s1 + $0x98] sm:$0xff]
  %v283 = vld [vmem:[%s1 + $0xa0] sm:$0xff]
  %v284 = vld [vmem:[%s1 + $0xa8] sm:$0xff]
  %v285 = vld [vmem:[%s1 + $0xb0] sm:$0xff]
  %v286 = vld [vmem:[%s1 + $0xb8] sm:$0xff]
  %v287 = vld [vmem:[%s1 + $0xc0] sm:$0xff]
  %v288 = vld [vmem:[%s1 + $0xc8] sm:$0xff]
  %v289 = vld [vmem:[%s1 + $0xd0] sm:$0xff]
  %v290 = vld [vmem:[%s1 + $0xd8] sm:$0xff]
  %v291 = vld [vmem:[%s1 + $0xe0] sm:$0xff]
  %v292 = vld [vmem:[%s1 + $0xe8] sm:$0xff]
  %v293 = vld [vmem:[%s1 + $0xf0] sm:$0xff]
  %v294 = vld [vmem:[%s1 + $0xf8] sm:$0xff]
  %v295 = vld [vmem:[%s1 + $0x100] sm:$0xff]
  %v296 = vld [vmem:[%s1 + $0x108] sm:$0xff]
  %v297 = vld [vmem:[%s1 + $0x110] sm:$0xff]
  %v298 = vld [vmem:[%s1 + $0x118] sm:$0xff]
  %v299 = vld [vmem:[%s1 + $0x120] sm:$0xff]
  %v300 = vld [vmem:[%s1 + $0x128] sm:$0xff]
  %v301 = vld [vmem:[%s1 + $0x130] sm:$0xff]
  %v302 = vld [vmem:[%s1 + $0x138] sm:$0xff]
  %v303 = vld [vmem:[%s1 + $0x140] sm:$0xff]
  %v304 = vld [vmem:[%s1 + $0x148] sm:$0xff]
  %v305 = vld [vmem:[%s1 + $0x150] sm:$0xff]
  %v306 = vld [vmem:[%s1 + $0x158] sm:$0xff]
  %v307 = vld [vmem:[%s1 + $0x160] sm:$0xff]
  %v308 = vld [vmem:[%s1 + $0x168] sm:$0xff]
  %v309 = vld [vmem:[%s1 + $0x170] sm:$0xff]
  %v310 = vld [vmem:[%s1 + $0x178] sm:$0xff]
  %v311 = vld [vmem:[%s1 + $0x180] sm:$0xff]
  %v312 = vld [vmem:[%s1 + $0x188] sm:$0xff]
  %v313 = vld [vmem:[%s1 + $0x190] sm:$0xff]
  %v314 = vld [vmem:[%s1 + $0x198] sm:$0xff]
  %v315 = vld [vmem:[%s1 + $0x1a0] sm:$0xff]
  %v316 = vld [vmem:[%s1 + $0x1a8] sm:$0xff]
  %v317 = vld [vmem:[%s1 + $0x1b0] sm:$0xff]
  %v318 = vld [vmem:[%s1 + $0x1b8] sm:$0xff]
  %v319 = vld [vmem:[%s1 + $0x1c0] sm:$0xff]
  %v320 = vld [vmem:[%s1 + $0x1c8] sm:$0xff]
  %v321 = vld [vmem:[%s1 + $0x1d0] sm:$0xff]
  %v322 = vld [vmem:[%s1 + $0x1d8] sm:$0xff]
  %v323 = vld [vmem:[%s1 + $0x1e0] sm:$0xff]
  %v324 = vld [vmem:[%s1 + $0x1e8] sm:$0xff]
  %v325 = vld [vmem:[%s1 + $0x1f0] sm:$0xff]
  %v326 = vld [vmem:[%s1 + $0x1f8] sm:$0xff]
  %v327 = vld [vmem:[%s1 + $0x200] sm:$0xff]
  %v328 = vld [vmem:[%s1 + $0x208] sm:$0xff]
  %v329 = vld [vmem:[%s1 + $0x210] sm:$0xff]
  %v330 = vld [vmem:[%s1 + $0x218] sm:$0xff]
  %v331 = vld [vmem:[%s1 + $0x220] sm:$0xff]
  %v332 = vld [vmem:[%s1 + $0x228] sm:$0xff]
  %v333 = vld [vmem:[%s1 + $0x230] sm:$0xff]
  %v334 = vld [vmem:[%s1 + $0x238] sm:$0xff]
  %v335 = vld [vmem:[%s1 + $0x240] sm:$0xff]
  %v336 = vld [vmem:[%s1 + $0x248] sm:$0xff]
  %v337 = vld [vmem:[%s1 + $0x250] sm:$0xff]
  %v338 = vld [vmem:[%s1 + $0x258] sm:$0xff]
  %v339 = vld [vmem:[%s1 + $0x260] sm:$0xff]
  %v340 = vld [vmem:[%s1 + $0x268] sm:$0xff]
  %v341 = vld [vmem:[%s1 + $0x270] sm:$0xff]
  %v342 = vld [vmem:[%s1 + $0x278] sm:$0xff]
  %v343 = vld [vmem:[%s1 + $0x280] sm:$0xff]
  %v344 = vld [vmem:[%s1 + $0x288] sm:$0xff]
  %v345 = vld [vmem:[%s1 + $0x290] sm:$0xff]
  %v346 = vld [vmem:[%s1 + $0x298] sm:$0xff]
  %v347 = vld [vmem:[%s1 + $0x2a0] sm:$0xff]
  %v348 = vld [vmem:[%s1 + $0x2a8] sm:$0xff]
  %v349 = vld [vmem:[%s1 + $0x2b0] sm:$0xff]
  %v350 = vld [vmem:[%s1 + $0x2b8] sm:$0xff]
  %v351 = vld [vmem:[%s1 + $0x2c0] sm:$0xff]
  %v352 = vld [vmem:[%s1 + $0x2c8] sm:$0xff]
  %v353 = vld [vmem:[%s1 + $0x2d0] sm:$0xff]
  %v354 = vld [vmem:[%s1 + $0x2d8] sm:$0xff]
  %v355 = vld [vmem:[%s1 + $0x2e0] sm:$0xff]
  %v356 = vld [vmem:[%s1 + $0x2e8] sm:$0xff]
  %v357 = vld [vmem:[%s1 + $0x2f0] sm:$0xff]
  %v358 = vld [vmem:[%s1 + $0x2f8] sm:$0xff]
  %v359 = vld [vmem:[%s1 + $0x300] sm:$0xff]
  %v360 = vld [vmem:[%s1 + $0x308] sm:$0xff]
  %v361 = vld [vmem:[%s1 + $0x310] sm:$0xff]
  %v362 = vld [vmem:[%s1 + $0x318] sm:$0xff]
  %v363 = vld [vmem:[%s1 + $0x320] sm:$0xff]
  %v364 = vld [vmem:[%s1 + $0x328] sm:$0xff]
  %v365 = vld [vmem:[%s1 + $0x330] sm:$0xff]
  %v366 = vld [vmem:[%s1 + $0x338] sm:$0xff]
  %v367 = vld [vmem:[%s1 + $0x340] sm:$0xff]
  %v368 = vld [vmem:[%s1 + $0x348] sm:$0xff]
  %v369 = vld [vmem:[%s1 + $0x350] sm:$0xff]
  %v370 = vld [vmem:[%s1 + $0x358] sm:$0xff]
  %v371 = vld [vmem:[%s1 + $0x360] sm:$0xff]
  %v372 = vld [vmem:[%s1 + $0x368] sm:$0xff]
  %v373 = vld [vmem:[%s1 + $0x370] sm:$0xff]
  %v374 = vld [vmem:[%s1 + $0x378] sm:$0xff]
  %v375 = vld [vmem:[%s1 + $0x380] sm:$0xff]
  %v376 = vld [vmem:[%s1 + $0x388] sm:$0xff]
  %v377 = vld [vmem:[%s1 + $0x390] sm:$0xff]
  %v378 = vld [vmem:[%s1 + $0x398] sm:$0xff]
  %v379 = vld [vmem:[%s1 + $0x3a0] sm:$0xff]
  %v380 = vld [vmem:[%s1 + $0x3a8] sm:$0xff]
  %v381 = vld [vmem:[%s1 + $0x3b0] sm:$0xff]
  %v382 = vld [vmem:[%s1 + $0x3b8] sm:$0xff]
  %v383 = vld [vmem:[%s1 + $0x3c0] sm:$0xff]
  %v384 = vld [vmem:[%s1 + $0x3c8] sm:$0xff]
  %v385 = vld [vmem:[%s1 + $0x3d0] sm:$0xff]
  %v386 = vld [vmem:[%s1 + $0x3d8] sm:$0xff]
  %v387 = vld [vmem:[%s1 + $0x3e0] sm:$0xff]
  %v388 = vld [vmem:[%s1 + $0x3e8] sm:$0xff]
  %v389 = vld [vmem:[%s1 + $0x3f0] sm:$0xff]
  %v390 = vld [vmem:[%s1 + $0x3f8] sm:$0xff]
  %v391 = vld [vmem:[%s1 + $0x400] sm:$0xff]
  %v392 = vld [vmem:[%s1 + $0x408] sm:$0xff]
  %v393 = vld [vmem:[%s1 + $0x410] sm:$0xff]
  %v394 = vld [vmem:[%s1 + $0x418] sm:$0xff]
  %v395 = vld [vmem:[%s1 + $0x420] sm:$0xff]
  %v396 = vld [vmem:[%s1 + $0x428] sm:$0xff]
  %v397 = vld [vmem:[%s1 + $0x430] sm:$0xff]
  %v398 = vld [vmem:[%s1 + $0x438] sm:$0xff]
  %v399 = vld [vmem:[%s1 + $0x440] sm:$0xff]
  %v400 = vld [vmem:[%s1 + $0x448] sm:$0xff]
  %v401 = vld [vmem:[%s1 + $0x450] sm:$0xff]
  %v402 = vld [vmem:[%s1 + $0x458] sm:$0xff]
  %v403 = vld [vmem:[%s1 + $0x460] sm:$0xff]
  %v404 = vld [vmem:[%s1 + $0x468] sm:$0xff]
  %v405 = vld [vmem:[%s1 + $0x470] sm:$0xff]
  %v406 = vld [vmem:[%s1 + $0x478] sm:$0xff]
  %v407 = vld [vmem:[%s2] sm:$0x1]
  %v408 = vld [vmem:[%s3] sm:$0x1]
  %v409 = vld [vmem:[#allocation2] sm:$0xff]
  %v410 = vld [vmem:[#allocation2 + $0x8] sm:$0xff]
  %v411 = vld [vmem:[#allocation2 + $0x10] sm:$0x3]
  %v412 = vld [vmem:[#allocation2 + $0x18] sm:$0xff]
  %v413 = vld [vmem:[#allocation2 + $0x20] sm:$0xff]
  %v414 = vld [vmem:[#allocation2 + $0x28] sm:$0x3]
  %v415 = vld [vmem:[#allocation2 + $0x30] sm:$0xff]
  %v416 = vld [vmem:[#allocation2 + $0x38] sm:$0xff]
  %v417 = vld [vmem:[#allocation2 + $0x40] sm:$0x3]
  %v418 = vld [vmem:[#allocation2 + $0x48] sm:$0xff]
  %v419 = vld [vmem:[#allocation2 + $0x50] sm:$0xff]
  %v420 = vld [vmem:[#allocation2 + $0x58] sm:$0x3]
  %v421 = vld [vmem:[#allocation2 + $0x60] sm:$0xff]
  %v422 = vld [vmem:[#allocation2 + $0x68] sm:$0xff]
  %v423 = vld [vmem:[#allocation2 + $0x70] sm:$0x3]
  %v424 = vld [vmem:[#allocation2 + $0x78] sm:$0xff]
  %v425 = vld [vmem:[#allocation2 + $0x80] sm:$0xff]
  %v426 = vld [vmem:[#allocation2 + $0x88] sm:$0x3]
  %v427 = vld [vmem:[#allocation2 + $0x90] sm:$0xff]
  %v428 = vld [vmem:[#allocation2 + $0x98] sm:$0xff]
  %v429 = vld [vmem:[#allocation2 + $0xa0] sm:$0x3]
  %v430 = vld [vmem:[#allocation2 + $0xa8] sm:$0xff]
  %v431 = vld [vmem:[#allocation2 + $0xb0] sm:$0xff]
  %v432 = vld [vmem:[#allocation2 + $0xb8] sm:$0x3]
  %v433 = vld [vmem:[#allocation2 + $0xc0] sm:$0xff]
  %v434 = vld [vmem:[#allocation2 + $0xc8] sm:$0xff]
  %v435 = vld [vmem:[#allocation2 + $0xd0] sm:$0x3]
  %v436 = vld [vmem:[#allocation2 + $0xd8] sm:$0xff]
  %v437 = vld [vmem:[#allocation2 + $0xe0] sm:$0xff]
  %v438 = vld [vmem:[#allocation2 + $0xe8] sm:$0x3]
  %v439 = vld [vmem:[#allocation2 + $0xf0] sm:$0xff]
  %v440 = vld [vmem:[#allocation2 + $0xf8] sm:$0xff]
  %v441 = vld [vmem:[#allocation2 + $0x100] sm:$0x3]
  %v442 = vld [vmem:[#allocation2 + $0x108] sm:$0xff]
  %v443 = vld [vmem:[#allocation2 + $0x110] sm:$0xff]
  %v444 = vld [vmem:[#allocation2 + $0x118] sm:$0x3]
  %v445 = vld [vmem:[#allocation2 + $0x120] sm:$0xff]
  %v446 = vld [vmem:[#allocation2 + $0x128] sm:$0xff]
  %v447 = vld [vmem:[#allocation2 + $0x130] sm:$0x3]
  %v448 = vld [vmem:[#allocation2 + $0x138] sm:$0xff]
  %v449 = vld [vmem:[#allocation2 + $0x140] sm:$0xff]
  %v450 = vld [vmem:[#allocation2 + $0x148] sm:$0x3]
  %v451 = vld [vmem:[#allocation2 + $0x150] sm:$0xff]
  %v452 = vld [vmem:[#allocation2 + $0x158] sm:$0xff]
  %v453 = vld [vmem:[#allocation2 + $0x160] sm:$0x3]
  %v454 = vld [vmem:[#allocation2 + $0x168] sm:$0xff]
  %v455 = vld [vmem:[#allocation2 + $0x170] sm:$0xff]
  %v456 = vld [vmem:[#allocation2 + $0x178] sm:$0x3]
  %v457 = vld [vmem:[#allocation2 + $0x180] sm:$0xff]
  %v458 = vld [vmem:[#allocation2 + $0x188] sm:$0xff]
  %v459 = vld [vmem:[#allocation2 + $0x190] sm:$0x3]
  %v460 = vld [vmem:[#allocation2 + $0x198] sm:$0xff]
  %v461 = vld [vmem:[#allocation2 + $0x1a0] sm:$0xff]
  %v462 = vld [vmem:[#allocation2 + $0x1a8] sm:$0x3]
  %v463 = vld [vmem:[#allocation2 + $0x1b0] sm:$0xff]
  %v464 = vld [vmem:[#allocation2 + $0x1b8] sm:$0xff]
  %v465 = vld [vmem:[#allocation2 + $0x1c0] sm:$0x3]
  %v466 = vld [vmem:[#allocation2 + $0x1c8] sm:$0xff]
  %v467 = vld [vmem:[#allocation2 + $0x1d0] sm:$0xff]
  %v468 = vld [vmem:[#allocation2 + $0x1d8] sm:$0x3]
  %v469 = vld [vmem:[#allocation2 + $0x1e0] sm:$0xff]
  %v470 = vld [vmem:[#allocation2 + $0x1e8] sm:$0xff]
  %v471 = vld [vmem:[#allocation2 + $0x1f0] sm:$0x3]
  %v472 = vld [vmem:[#allocation2 + $0x1f8] sm:$0xff]
  %v473 = vld [vmem:[#allocation2 + $0x200] sm:$0xff]
  %v474 = vld [vmem:[#allocation2 + $0x208] sm:$0x3]
  %v475 = vld [vmem:[#allocation2 + $0x210] sm:$0xff]
  %v476 = vld [vmem:[#allocation2 + $0x218] sm:$0xff]
  %v477 = vld [vmem:[#allocation2 + $0x220] sm:$0x3]
  %v478 = vld [vmem:[#allocation2 + $0x228] sm:$0xff]
  %v479 = vld [vmem:[#allocation2 + $0x230] sm:$0xff]
  %v480 = vld [vmem:[#allocation2 + $0x238] sm:$0x3]
  %v481 = vld [vmem:[#allocation2 + $0x240] sm:$0xff]
  %v482 = vld [vmem:[#allocation2 + $0x248] sm:$0xff]
  %v483 = vld [vmem:[#allocation2 + $0x250] sm:$0x3]
  %v484 = vld [vmem:[#allocation2 + $0x258] sm:$0xff]
  %v485 = vld [vmem:[#allocation2 + $0x260] sm:$0xff]
  %v486 = vld [vmem:[#allocation2 + $0x268] sm:$0x3]
  %v487 = vld [vmem:[#allocation2 + $0x270] sm:$0xff]
  %v488 = vld [vmem:[#allocation2 + $0x278] sm:$0xff]
  %v489 = vld [vmem:[#allocation2 + $0x280] sm:$0x3]
  %v490 = vld [vmem:[#allocation2 + $0x288] sm:$0xff]
  %v491 = vld [vmem:[#allocation2 + $0x290] sm:$0xff]
  %v492 = vld [vmem:[#allocation2 + $0x298] sm:$0x3]
  %v493 = vld [vmem:[#allocation2 + $0x2a0] sm:$0xff]
  %v494 = vld [vmem:[#allocation2 + $0x2a8] sm:$0xff]
  %v495 = vld [vmem:[#allocation2 + $0x2b0] sm:$0x3]
  %v496 = vld [vmem:[#allocation2 + $0x2b8] sm:$0xff]
  %v497 = vld [vmem:[#allocation2 + $0x2c0] sm:$0xff]
  %v498 = vld [vmem:[#allocation2 + $0x2c8] sm:$0x3]
  %v499 = vld [vmem:[#allocation2 + $0x2d0] sm:$0xff]
  %v500 = vld [vmem:[#allocation2 + $0x2d8] sm:$0xff]
  %v501 = vld [vmem:[#allocation2 + $0x2e0] sm:$0x3]
  %v502 = vld [vmem:[#allocation2 + $0x2e8] sm:$0xff]
  %v503 = vld [vmem:[#allocation2 + $0x2f0] sm:$0xff]
  %v504 = vld [vmem:[#allocation2 + $0x2f8] sm:$0x3]
  %v505 = vld [vmem:[#allocation2 + $0x300] sm:$0xff]
  %v506 = vld [vmem:[#allocation2 + $0x308] sm:$0xff]
  %v507 = vld [vmem:[#allocation2 + $0x310] sm:$0x3]
  %v508 = vld [vmem:[#allocation2 + $0x318] sm:$0xff]
  %v509 = vld [vmem:[#allocation2 + $0x320] sm:$0xff]
  %v510 = vld [vmem:[#allocation2 + $0x328] sm:$0x3]
  %v511 = vld [vmem:[#allocation2 + $0x330] sm:$0xff]
  %v512 = vld [vmem:[#allocation2 + $0x338] sm:$0xff]
  %v513 = vld [vmem:[#allocation2 + $0x340] sm:$0x3]
  %v514 = vld [vmem:[#allocation2 + $0x348] sm:$0xff]
  %v515 = vld [vmem:[#allocation2 + $0x350] sm:$0xff]
  %v516 = vld [vmem:[#allocation2 + $0x358] sm:$0x3]
  %vm613 = vcmask 1046528
  %v614 = vrot.slane %v409, 1
  %v615 = vrot.slane %v410, 1
  %v616 = vsel %vm613, %v614, %v615
  %v617 = vrot.slane %v411, 1
  %v618 = vsel %vm613, %v615, %v617
  %v619 = vrot.slane %v412, 1
  %v620 = vrot.slane %v413, 1
  %v621 = vsel %vm613, %v619, %v620
  %v622 = vrot.slane %v414, 1
  %v623 = vsel %vm613, %v620, %v622
  %v624 = vrot.slane %v415, 1
  %v625 = vrot.slane %v416, 1
  %v626 = vsel %vm613, %v624, %v625
  %v627 = vrot.slane %v417, 1
  %v628 = vsel %vm613, %v625, %v627
  %v629 = vrot.slane %v418, 1
  %v630 = vrot.slane %v419, 1
  %v631 = vsel %vm613, %v629, %v630
  %v632 = vrot.slane %v420, 1
  %v633 = vsel %vm613, %v630, %v632
  %v634 = vrot.slane %v421, 1
  %v635 = vrot.slane %v422, 1
  %v636 = vsel %vm613, %v634, %v635
  %v637 = vrot.slane %v423, 1
  %v638 = vsel %vm613, %v635, %v637
  %v639 = vrot.slane %v424, 1
  %v640 = vrot.slane %v425, 1
  %v641 = vsel %vm613, %v639, %v640
  %v642 = vrot.slane %v426, 1
  %v643 = vsel %vm613, %v640, %v642
  %v644 = vrot.slane %v427, 1
  %v645 = vrot.slane %v428, 1
  %v646 = vsel %vm613, %v644, %v645
  %v647 = vrot.slane %v429, 1
  %v648 = vsel %vm613, %v645, %v647
  %v649 = vrot.slane %v430, 1
  %v650 = vrot.slane %v431, 1
  %v651 = vsel %vm613, %v649, %v650
  %v652 = vrot.slane %v432, 1
  %v653 = vsel %vm613, %v650, %v652
  %v654 = vrot.slane %v433, 1
  %v655 = vrot.slane %v434, 1
  %v656 = vsel %vm613, %v654, %v655
  %v657 = vrot.slane %v435, 1
  %v658 = vsel %vm613, %v655, %v657
  %v659 = vrot.slane %v436, 1
  %v660 = vrot.slane %v437, 1
  %v661 = vsel %vm613, %v659, %v660
  %v662 = vrot.slane %v438, 1
  %v663 = vsel %vm613, %v660, %v662
  %v664 = vrot.slane %v439, 1
  %v665 = vrot.slane %v440, 1
  %v666 = vsel %vm613, %v664, %v665
  %v667 = vrot.slane %v441, 1
  %v668 = vsel %vm613, %v665, %v667
  %v669 = vrot.slane %v442, 1
  %v670 = vrot.slane %v443, 1
  %v671 = vsel %vm613, %v669, %v670
  %v672 = vrot.slane %v444, 1
  %v673 = vsel %vm613, %v670, %v672
  %v674 = vrot.slane %v445, 1
  %v675 = vrot.slane %v446, 1
  %v676 = vsel %vm613, %v674, %v675
  %v677 = vrot.slane %v447, 1
  %v678 = vsel %vm613, %v675, %v677
  %v679 = vrot.slane %v448, 1
  %v680 = vrot.slane %v449, 1
  %v681 = vsel %vm613, %v679, %v680
  %v682 = vrot.slane %v450, 1
  %v683 = vsel %vm613, %v680, %v682
  %v684 = vrot.slane %v451, 1
  %v685 = vrot.slane %v452, 1
  %v686 = vsel %vm613, %v684, %v685
  %v687 = vrot.slane %v453, 1
  %v688 = vsel %vm613, %v685, %v687
  %v689 = vrot.slane %v454, 1
  %v690 = vrot.slane %v455, 1
  %v691 = vsel %vm613, %v689, %v690
  %v692 = vrot.slane %v456, 1
  %v693 = vsel %vm613, %v690, %v692
  %v694 = vrot.slane %v463, 1
  %v695 = vrot.slane %v464, 1
  %v696 = vsel %vm613, %v694, %v695
  %v697 = vrot.slane %v465, 1
  %v698 = vsel %vm613, %v695, %v697
  %v699 = vrot.slane %v466, 1
  %v700 = vrot.slane %v467, 1
  %v701 = vsel %vm613, %v699, %v700
  %v702 = vrot.slane %v468, 1
  %v703 = vsel %vm613, %v700, %v702
  %v704 = vrot.slane %v469, 1
  %v705 = vrot.slane %v470, 1
  %v706 = vsel %vm613, %v704, %v705
  %v707 = vrot.slane %v471, 1
  %v708 = vsel %vm613, %v705, %v707
  %v709 = vrot.slane %v472, 1
  %v710 = vrot.slane %v473, 1
  %v711 = vsel %vm613, %v709, %v710
  %v712 = vrot.slane %v474, 1
  %v713 = vsel %vm613, %v710, %v712
  %v714 = vrot.slane %v475, 1
  %v715 = vrot.slane %v476, 1
  %v716 = vsel %vm613, %v714, %v715
  %v717 = vrot.slane %v477, 1
  %v718 = vsel %vm613, %v715, %v717
  %v719 = vrot.slane %v478, 1
  %v720 = vrot.slane %v479, 1
  %v721 = vsel %vm613, %v719, %v720
  %v722 = vrot.slane %v480, 1
  %v723 = vsel %vm613, %v720, %v722
  %v724 = vrot.slane %v481, 1
  %v725 = vrot.slane %v482, 1
  %v726 = vsel %vm613, %v724, %v725
  %v727 = vrot.slane %v483, 1
  %v728 = vsel %vm613, %v725, %v727
  %v729 = vrot.slane %v484, 1
  %v730 = vrot.slane %v485, 1
  %v731 = vsel %vm613, %v729, %v730
  %v732 = vrot.slane %v486, 1
  %v733 = vsel %vm613, %v730, %v732
  %v734 = vrot.slane %v487, 1
  %v735 = vrot.slane %v488, 1
  %v736 = vsel %vm613, %v734, %v735
  %v737 = vrot.slane %v489, 1
  %v738 = vsel %vm613, %v735, %v737
  %v739 = vrot.slane %v490, 1
  %v740 = vrot.slane %v491, 1
  %v741 = vsel %vm613, %v739, %v740
  %v742 = vrot.slane %v492, 1
  %v743 = vsel %vm613, %v740, %v742
  %v744 = vrot.slane %v493, 1
  %v745 = vrot.slane %v494, 1
  %v746 = vsel %vm613, %v744, %v745
  %v747 = vrot.slane %v495, 1
  %v748 = vsel %vm613, %v745, %v747
  %v749 = vrot.slane %v496, 1
  %v750 = vrot.slane %v497, 1
  %v751 = vsel %vm613, %v749, %v750
  %v752 = vrot.slane %v498, 1
  %v753 = vsel %vm613, %v750, %v752
  %v754 = vrot.slane %v499, 1
  %v755 = vrot.slane %v500, 1
  %v756 = vsel %vm613, %v754, %v755
  %v757 = vrot.slane %v501, 1
  %v758 = vsel %vm613, %v755, %v757
  %v759 = vrot.slane %v502, 1
  %v760 = vrot.slane %v503, 1
  %v761 = vsel %vm613, %v759, %v760
  %v762 = vrot.slane %v504, 1
  %v763 = vsel %vm613, %v760, %v762
  %v764 = vrot.slane %v505, 1
  %v765 = vrot.slane %v506, 1
  %v766 = vsel %vm613, %v764, %v765
  %v767 = vrot.slane %v507, 1
  %v768 = vsel %vm613, %v765, %v767
  %v769 = vrot.slane %v508, 1
  %v770 = vrot.slane %v509, 1
  %v771 = vsel %vm613, %v769, %v770
  %v772 = vrot.slane %v510, 1
  %v773 = vsel %vm613, %v770, %v772
  %vm838 = vcmask 1045504
  %v839 = vrot.slane %v409, 2
  %v840 = vrot.slane %v410, 2
  %v841 = vsel %vm838, %v839, %v840
  %v842 = vrot.slane %v411, 2
  %v843 = vsel %vm838, %v840, %v842
  %v844 = vrot.slane %v412, 2
  %v845 = vrot.slane %v413, 2
  %v846 = vsel %vm838, %v844, %v845
  %v847 = vrot.slane %v414, 2
  %v848 = vsel %vm838, %v845, %v847
  %v849 = vrot.slane %v415, 2
  %v850 = vrot.slane %v416, 2
  %v851 = vsel %vm838, %v849, %v850
  %v852 = vrot.slane %v417, 2
  %v853 = vsel %vm838, %v850, %v852
  %v854 = vrot.slane %v418, 2
  %v855 = vrot.slane %v419, 2
  %v856 = vsel %vm838, %v854, %v855
  %v857 = vrot.slane %v420, 2
  %v858 = vsel %vm838, %v855, %v857
  %v859 = vrot.slane %v421, 2
  %v860 = vrot.slane %v422, 2
  %v861 = vsel %vm838, %v859, %v860
  %v862 = vrot.slane %v423, 2
  %v863 = vsel %vm838, %v860, %v862
  %v864 = vrot.slane %v424, 2
  %v865 = vrot.slane %v425, 2
  %v866 = vsel %vm838, %v864, %v865
  %v867 = vrot.slane %v426, 2
  %v868 = vsel %vm838, %v865, %v867
  %v869 = vrot.slane %v427, 2
  %v870 = vrot.slane %v428, 2
  %v871 = vsel %vm838, %v869, %v870
  %v872 = vrot.slane %v429, 2
  %v873 = vsel %vm838, %v870, %v872
  %v874 = vrot.slane %v430, 2
  %v875 = vrot.slane %v431, 2
  %v876 = vsel %vm838, %v874, %v875
  %v877 = vrot.slane %v432, 2
  %v878 = vsel %vm838, %v875, %v877
  %v879 = vrot.slane %v433, 2
  %v880 = vrot.slane %v434, 2
  %v881 = vsel %vm838, %v879, %v880
  %v882 = vrot.slane %v435, 2
  %v883 = vsel %vm838, %v880, %v882
  %v884 = vrot.slane %v436, 2
  %v885 = vrot.slane %v437, 2
  %v886 = vsel %vm838, %v884, %v885
  %v887 = vrot.slane %v438, 2
  %v888 = vsel %vm838, %v885, %v887
  %v889 = vrot.slane %v439, 2
  %v890 = vrot.slane %v440, 2
  %v891 = vsel %vm838, %v889, %v890
  %v892 = vrot.slane %v441, 2
  %v893 = vsel %vm838, %v890, %v892
  %v894 = vrot.slane %v442, 2
  %v895 = vrot.slane %v443, 2
  %v896 = vsel %vm838, %v894, %v895
  %v897 = vrot.slane %v444, 2
  %v898 = vsel %vm838, %v895, %v897
  %v899 = vrot.slane %v445, 2
  %v900 = vrot.slane %v446, 2
  %v901 = vsel %vm838, %v899, %v900
  %v902 = vrot.slane %v447, 2
  %v903 = vsel %vm838, %v900, %v902
  %v904 = vrot.slane %v448, 2
  %v905 = vrot.slane %v449, 2
  %v906 = vsel %vm838, %v904, %v905
  %v907 = vrot.slane %v450, 2
  %v908 = vsel %vm838, %v905, %v907
  %v909 = vrot.slane %v451, 2
  %v910 = vrot.slane %v452, 2
  %v911 = vsel %vm838, %v909, %v910
  %v912 = vrot.slane %v453, 2
  %v913 = vsel %vm838, %v910, %v912
  %v914 = vrot.slane %v454, 2
  %v915 = vrot.slane %v455, 2
  %v916 = vsel %vm838, %v914, %v915
  %v917 = vrot.slane %v456, 2
  %v918 = vsel %vm838, %v915, %v917
  %v919 = vrot.slane %v463, 2
  %v920 = vrot.slane %v464, 2
  %v921 = vsel %vm838, %v919, %v920
  %v922 = vrot.slane %v465, 2
  %v923 = vsel %vm838, %v920, %v922
  %v924 = vrot.slane %v466, 2
  %v925 = vrot.slane %v467, 2
  %v926 = vsel %vm838, %v924, %v925
  %v927 = vrot.slane %v468, 2
  %v928 = vsel %vm838, %v925, %v927
  %v929 = vrot.slane %v469, 2
  %v930 = vrot.slane %v470, 2
  %v931 = vsel %vm838, %v929, %v930
  %v932 = vrot.slane %v471, 2
  %v933 = vsel %vm838, %v930, %v932
  %v934 = vrot.slane %v472, 2
  %v935 = vrot.slane %v473, 2
  %v936 = vsel %vm838, %v934, %v935
  %v937 = vrot.slane %v474, 2
  %v938 = vsel %vm838, %v935, %v937
  %v939 = vrot.slane %v475, 2
  %v940 = vrot.slane %v476, 2
  %v941 = vsel %vm838, %v939, %v940
  %v942 = vrot.slane %v477, 2
  %v943 = vsel %vm838, %v940, %v942
  %v944 = vrot.slane %v478, 2
  %v945 = vrot.slane %v479, 2
  %v946 = vsel %vm838, %v944, %v945
  %v947 = vrot.slane %v480, 2
  %v948 = vsel %vm838, %v945, %v947
  %v949 = vrot.slane %v481, 2
  %v950 = vrot.slane %v482, 2
  %v951 = vsel %vm838, %v949, %v950
  %v952 = vrot.slane %v483, 2
  %v953 = vsel %vm838, %v950, %v952
  %v954 = vrot.slane %v484, 2
  %v955 = vrot.slane %v485, 2
  %v956 = vsel %vm838, %v954, %v955
  %v957 = vrot.slane %v486, 2
  %v958 = vsel %vm838, %v955, %v957
  %v959 = vrot.slane %v487, 2
  %v960 = vrot.slane %v488, 2
  %v961 = vsel %vm838, %v959, %v960
  %v962 = vrot.slane %v489, 2
  %v963 = vsel %vm838, %v960, %v962
  %v964 = vrot.slane %v490, 2
  %v965 = vrot.slane %v491, 2
  %v966 = vsel %vm838, %v964, %v965
  %v967 = vrot.slane %v492, 2
  %v968 = vsel %vm838, %v965, %v967
  %v969 = vrot.slane %v493, 2
  %v970 = vrot.slane %v494, 2
  %v971 = vsel %vm838, %v969, %v970
  %v972 = vrot.slane %v495, 2
  %v973 = vsel %vm838, %v970, %v972
  %v974 = vrot.slane %v496, 2
  %v975 = vrot.slane %v497, 2
  %v976 = vsel %vm838, %v974, %v975
  %v977 = vrot.slane %v498, 2
  %v978 = vsel %vm838, %v975, %v977
  %v979 = vrot.slane %v499, 2
  %v980 = vrot.slane %v500, 2
  %v981 = vsel %vm838, %v979, %v980
  %v982 = vrot.slane %v501, 2
  %v983 = vsel %vm838, %v980, %v982
  %v984 = vrot.slane %v502, 2
  %v985 = vrot.slane %v503, 2
  %v986 = vsel %vm838, %v984, %v985
  %v987 = vrot.slane %v504, 2
  %v988 = vsel %vm838, %v985, %v987
  %v989 = vrot.slane %v505, 2
  %v990 = vrot.slane %v506, 2
  %v991 = vsel %vm838, %v989, %v990
  %v992 = vrot.slane %v507, 2
  %v993 = vsel %vm838, %v990, %v992
  %v994 = vrot.slane %v508, 2
  %v995 = vrot.slane %v509, 2
  %v996 = vsel %vm838, %v994, %v995
  %v997 = vrot.slane %v510, 2
  %v998 = vsel %vm838, %v995, %v997
  %v1069 = vrot.slane %v457, 1
  %v1070 = vrot.slane %v458, 1
  %v1071 = vsel %vm613, %v1069, %v1070
  %v1072 = vrot.slane %v459, 1
  %v1073 = vsel %vm613, %v1070, %v1072
  %v1074 = vrot.slane %v511, 1
  %v1075 = vrot.slane %v512, 1
  %v1076 = vsel %vm613, %v1074, %v1075
  %v1077 = vrot.slane %v513, 1
  %v1078 = vsel %vm613, %v1075, %v1077
  %v1083 = vrot.slane %v457, 2
  %v1084 = vrot.slane %v458, 2
  %v1085 = vsel %vm838, %v1083, %v1084
  %v1086 = vrot.slane %v459, 2
  %v1087 = vsel %vm838, %v1084, %v1086
  %v1088 = vrot.slane %v511, 2
  %v1089 = vrot.slane %v512, 2
  %v1090 = vsel %vm838, %v1088, %v1089
  %v1091 = vrot.slane %v513, 2
  %v1092 = vsel %vm838, %v1089, %v1091
  %v1103 = vrot.slane %v460, 1
  %v1104 = vrot.slane %v461, 1
  %v1105 = vsel %vm613, %v1103, %v1104
  %v1106 = vrot.slane %v462, 1
  %v1107 = vsel %vm613, %v1104, %v1106
  %v1108 = vrot.slane %v514, 1
  %v1109 = vrot.slane %v515, 1
  %v1110 = vsel %vm613, %v1108, %v1109
  %v1111 = vrot.slane %v516, 1
  %v1112 = vsel %vm613, %v1109, %v1111
  %v1117 = vrot.slane %v460, 2
  %v1118 = vrot.slane %v461, 2
  %v1119 = vsel %vm838, %v1117, %v1118
  %v1120 = vrot.slane %v462, 2
  %v1121 = vsel %vm838, %v1118, %v1120
  %v1122 = vrot.slane %v514, 2
  %v1123 = vrot.slane %v515, 2
  %v1124 = vsel %vm838, %v1122, %v1123
  %v1125 = vrot.slane %v516, 2
  %v1126 = vsel %vm838, %v1123, %v1125
  %1131 = vmatpush.msra.mxu0 %v278
  %1132 = vmatpush.msra.mxu0 %v277
  %1133 = vmatpush.msra.mxu0 %v276
  %1134 = vmatpush.msra.mxu0 %v275
  %1135 = vmatpush.msra.mxu0 %v274
  %1136 = vmatpush.msra.mxu0 %v273
  %1137 = vmatpush.msra.mxu0 %v272
  %1138 = vmatpush.msra.mxu0 %v271
  %1139 = vmatpush.msra.mxu0 %v270
  %1140 = vmatpush.msra.mxu0 %v269
  %1141 = vmatpush.msra.mxu0 %v268
  %1142 = vmatpush.msra.mxu0 %v267
  %1143 = vmatpush.msra.mxu0 %v266
  %1144 = vmatpush.msra.mxu0 %v265
  %1145 = vmatpush.msra.mxu0 %v264
  %1146 = vmatpush.msra.mxu0 %v263
  %1147 = vmatmul.f32.gmra.mxu0 %v409
  %v1148 = vpop.f32.mrf.mxu0
  %v1149 = vadd.f32 0.0, %v1148
  %1150 = vmatmul.f32.gmra.mxu0 %v410
  %v1151 = vpop.f32.mrf.mxu0
  %v1152 = vadd.f32 0.0, %v1151
  %1153 = vmatmul.f32.gmra.mxu0 %v412
  %v1154 = vpop.f32.mrf.mxu0
  %v1155 = vadd.f32 0.0, %v1154
  %1156 = vmatmul.f32.gmra.mxu0 %v413
  %v1157 = vpop.f32.mrf.mxu0
  %v1158 = vadd.f32 0.0, %v1157
  %1159 = vmatmul.f32.gmra.mxu0 %v415
  %v1160 = vpop.f32.mrf.mxu0
  %v1161 = vadd.f32 0.0, %v1160
  %1162 = vmatmul.f32.gmra.mxu0 %v416
  %v1163 = vpop.f32.mrf.mxu0
  %v1164 = vadd.f32 0.0, %v1163
  %1165 = vmatmul.f32.gmra.mxu0 %v418
  %v1166 = vpop.f32.mrf.mxu0
  %v1167 = vadd.f32 0.0, %v1166
  %1168 = vmatmul.f32.gmra.mxu0 %v419
  %v1169 = vpop.f32.mrf.mxu0
  %v1170 = vadd.f32 0.0, %v1169
  %1171 = vmatmul.f32.gmra.mxu0 %v421
  %v1172 = vpop.f32.mrf.mxu0
  %v1173 = vadd.f32 0.0, %v1172
  %1174 = vmatmul.f32.gmra.mxu0 %v422
  %v1175 = vpop.f32.mrf.mxu0
  %v1176 = vadd.f32 0.0, %v1175
  %1177 = vmatmul.f32.gmra.mxu0 %v424
  %v1178 = vpop.f32.mrf.mxu0
  %v1179 = vadd.f32 0.0, %v1178
  %1180 = vmatmul.f32.gmra.mxu0 %v425
  %v1181 = vpop.f32.mrf.mxu0
  %v1182 = vadd.f32 0.0, %v1181
  %1183 = vmatmul.f32.gmra.mxu0 %v427
  %v1184 = vpop.f32.mrf.mxu0
  %v1185 = vadd.f32 0.0, %v1184
  %1186 = vmatmul.f32.gmra.mxu0 %v428
  %v1187 = vpop.f32.mrf.mxu0
  %v1188 = vadd.f32 0.0, %v1187
  %1189 = vmatmul.f32.gmra.mxu0 %v430
  %v1190 = vpop.f32.mrf.mxu0
  %v1191 = vadd.f32 0.0, %v1190
  %1192 = vmatmul.f32.gmra.mxu0 %v431
  %v1193 = vpop.f32.mrf.mxu0
  %v1194 = vadd.f32 0.0, %v1193
  %1195 = vmatmul.f32.gmra.mxu0 %v433
  %v1196 = vpop.f32.mrf.mxu0
  %v1197 = vadd.f32 0.0, %v1196
  %1198 = vmatmul.f32.gmra.mxu0 %v434
  %v1199 = vpop.f32.mrf.mxu0
  %v1200 = vadd.f32 0.0, %v1199
  %1201 = vmatmul.f32.gmra.mxu0 %v436
  %v1202 = vpop.f32.mrf.mxu0
  %v1203 = vadd.f32 0.0, %v1202
  %1204 = vmatmul.f32.gmra.mxu0 %v437
  %v1205 = vpop.f32.mrf.mxu0
  %v1206 = vadd.f32 0.0, %v1205
  %1207 = vmatmul.f32.gmra.mxu0 %v439
  %v1208 = vpop.f32.mrf.mxu0
  %v1209 = vadd.f32 0.0, %v1208
  %1210 = vmatmul.f32.gmra.mxu0 %v440
  %v1211 = vpop.f32.mrf.mxu0
  %v1212 = vadd.f32 0.0, %v1211
  %1213 = vmatmul.f32.gmra.mxu0 %v442
  %v1214 = vpop.f32.mrf.mxu0
  %v1215 = vadd.f32 0.0, %v1214
  %1216 = vmatmul.f32.gmra.mxu0 %v443
  %v1217 = vpop.f32.mrf.mxu0
  %v1218 = vadd.f32 0.0, %v1217
  %1219 = vmatmul.f32.gmra.mxu0 %v445
  %v1220 = vpop.f32.mrf.mxu0
  %v1221 = vadd.f32 0.0, %v1220
  %1222 = vmatmul.f32.gmra.mxu0 %v446
  %v1223 = vpop.f32.mrf.mxu0
  %v1224 = vadd.f32 0.0, %v1223
  %1225 = vmatmul.f32.gmra.mxu0 %v448
  %v1226 = vpop.f32.mrf.mxu0
  %v1227 = vadd.f32 0.0, %v1226
  %1228 = vmatmul.f32.gmra.mxu0 %v449
  %v1229 = vpop.f32.mrf.mxu0
  %v1230 = vadd.f32 0.0, %v1229
  %1231 = vmatmul.f32.gmra.mxu0 %v451
  %v1232 = vpop.f32.mrf.mxu0
  %v1233 = vadd.f32 0.0, %v1232
  %1234 = vmatmul.f32.gmra.mxu0 %v452
  %v1235 = vpop.f32.mrf.mxu0
  %v1236 = vadd.f32 0.0, %v1235
  %1237 = vmatmul.f32.gmra.mxu0 %v454
  %v1238 = vpop.f32.mrf.mxu0
  %v1239 = vadd.f32 0.0, %v1238
  %1240 = vmatmul.f32.gmra.mxu0 %v455
  %v1241 = vpop.f32.mrf.mxu0
  %v1242 = vadd.f32 0.0, %v1241
  %1243 = vmatmul.f32.gmra.mxu0 %v463
  %v1244 = vpop.f32.mrf.mxu0
  %v1245 = vadd.f32 0.0, %v1244
  %1246 = vmatmul.f32.gmra.mxu0 %v464
  %v1247 = vpop.f32.mrf.mxu0
  %v1248 = vadd.f32 0.0, %v1247
  %1249 = vmatmul.f32.gmra.mxu0 %v466
  %v1250 = vpop.f32.mrf.mxu0
  %v1251 = vadd.f32 0.0, %v1250
  %1252 = vmatmul.f32.gmra.mxu0 %v467
  %v1253 = vpop.f32.mrf.mxu0
  %v1254 = vadd.f32 0.0, %v1253
  %1255 = vmatmul.f32.gmra.mxu0 %v469
  %v1256 = vpop.f32.mrf.mxu0
  %v1257 = vadd.f32 0.0, %v1256
  %1258 = vmatmul.f32.gmra.mxu0 %v470
  %v1259 = vpop.f32.mrf.mxu0
  %v1260 = vadd.f32 0.0, %v1259
  %1261 = vmatmul.f32.gmra.mxu0 %v472
  %v1262 = vpop.f32.mrf.mxu0
  %v1263 = vadd.f32 0.0, %v1262
  %1264 = vmatmul.f32.gmra.mxu0 %v473
  %v1265 = vpop.f32.mrf.mxu0
  %v1266 = vadd.f32 0.0, %v1265
  %1267 = vmatmul.f32.gmra.mxu0 %v475
  %v1268 = vpop.f32.mrf.mxu0
  %v1269 = vadd.f32 0.0, %v1268
  %1270 = vmatmul.f32.gmra.mxu0 %v476
  %v1271 = vpop.f32.mrf.mxu0
  %v1272 = vadd.f32 0.0, %v1271
  %1273 = vmatmul.f32.gmra.mxu0 %v478
  %v1274 = vpop.f32.mrf.mxu0
  %v1275 = vadd.f32 0.0, %v1274
  %1276 = vmatmul.f32.gmra.mxu0 %v479
  %v1277 = vpop.f32.mrf.mxu0
  %v1278 = vadd.f32 0.0, %v1277
  %1279 = vmatmul.f32.gmra.mxu0 %v481
  %v1280 = vpop.f32.mrf.mxu0
  %v1281 = vadd.f32 0.0, %v1280
  %1282 = vmatmul.f32.gmra.mxu0 %v482
  %v1283 = vpop.f32.mrf.mxu0
  %v1284 = vadd.f32 0.0, %v1283
  %1285 = vmatmul.f32.gmra.mxu0 %v484
  %v1286 = vpop.f32.mrf.mxu0
  %v1287 = vadd.f32 0.0, %v1286
  %1288 = vmatmul.f32.gmra.mxu0 %v485
  %v1289 = vpop.f32.mrf.mxu0
  %v1290 = vadd.f32 0.0, %v1289
  %1291 = vmatmul.f32.gmra.mxu0 %v487
  %v1292 = vpop.f32.mrf.mxu0
  %v1293 = vadd.f32 0.0, %v1292
  %1294 = vmatmul.f32.gmra.mxu0 %v488
  %v1295 = vpop.f32.mrf.mxu0
  %v1296 = vadd.f32 0.0, %v1295
  %1297 = vmatmul.f32.gmra.mxu0 %v490
  %v1298 = vpop.f32.mrf.mxu0
  %v1299 = vadd.f32 0.0, %v1298
  %1300 = vmatmul.f32.gmra.mxu0 %v491
  %v1301 = vpop.f32.mrf.mxu0
  %v1302 = vadd.f32 0.0, %v1301
  %1303 = vmatmul.f32.gmra.mxu0 %v493
  %v1304 = vpop.f32.mrf.mxu0
  %v1305 = vadd.f32 0.0, %v1304
  %1306 = vmatmul.f32.gmra.mxu0 %v494
  %v1307 = vpop.f32.mrf.mxu0
  %v1308 = vadd.f32 0.0, %v1307
  %1309 = vmatmul.f32.gmra.mxu0 %v496
  %v1310 = vpop.f32.mrf.mxu0
  %v1311 = vadd.f32 0.0, %v1310
  %1312 = vmatmul.f32.gmra.mxu0 %v497
  %v1313 = vpop.f32.mrf.mxu0
  %v1314 = vadd.f32 0.0, %v1313
  %1315 = vmatmul.f32.gmra.mxu0 %v499
  %v1316 = vpop.f32.mrf.mxu0
  %v1317 = vadd.f32 0.0, %v1316
  %1318 = vmatmul.f32.gmra.mxu0 %v500
  %v1319 = vpop.f32.mrf.mxu0
  %v1320 = vadd.f32 0.0, %v1319
  %1321 = vmatmul.f32.gmra.mxu0 %v502
  %v1322 = vpop.f32.mrf.mxu0
  %v1323 = vadd.f32 0.0, %v1322
  %1324 = vmatmul.f32.gmra.mxu0 %v503
  %v1325 = vpop.f32.mrf.mxu0
  %v1326 = vadd.f32 0.0, %v1325
  %1327 = vmatmul.f32.gmra.mxu0 %v505
  %v1328 = vpop.f32.mrf.mxu0
  %v1329 = vadd.f32 0.0, %v1328
  %1330 = vmatmul.f32.gmra.mxu0 %v506
  %v1331 = vpop.f32.mrf.mxu0
  %v1332 = vadd.f32 0.0, %v1331
  %1333 = vmatmul.f32.gmra.mxu0 %v508
  %v1334 = vpop.f32.mrf.mxu0
  %v1335 = vadd.f32 0.0, %v1334
  %1336 = vmatmul.f32.gmra.mxu0 %v509
  %v1337 = vpop.f32.mrf.mxu0
  %v1338 = vadd.f32 0.0, %v1337
  %1339 = vdwg.mxu0
  %1340 = vmatpush.msra.mxu0 %v294
  %1341 = vmatpush.msra.mxu0 %v293
  %1342 = vmatpush.msra.mxu0 %v292
  %1343 = vmatpush.msra.mxu0 %v291
  %1344 = vmatpush.msra.mxu0 %v290
  %1345 = vmatpush.msra.mxu0 %v289
  %1346 = vmatpush.msra.mxu0 %v288
  %1347 = vmatpush.msra.mxu0 %v287
  %1348 = vmatpush.msra.mxu0 %v286
  %1349 = vmatpush.msra.mxu0 %v285
  %1350 = vmatpush.msra.mxu0 %v284
  %1351 = vmatpush.msra.mxu0 %v283
  %1352 = vmatpush.msra.mxu0 %v282
  %1353 = vmatpush.msra.mxu0 %v281
  %1354 = vmatpush.msra.mxu0 %v280
  %1355 = vmatpush.msra.mxu0 %v279
  %1356 = vmatmul.f32.gmra.mxu0 %v616
  %v1357 = vpop.f32.mrf.mxu0
  %v1358 = vadd.f32 %v1149, %v1357
  %1359 = vmatmul.f32.gmra.mxu0 %v618
  %v1360 = vpop.f32.mrf.mxu0
  %v1361 = vadd.f32 %v1152, %v1360
  %1362 = vmatmul.f32.gmra.mxu0 %v621
  %v1363 = vpop.f32.mrf.mxu0
  %v1364 = vadd.f32 %v1155, %v1363
  %1365 = vmatmul.f32.gmra.mxu0 %v623
  %v1366 = vpop.f32.mrf.mxu0
  %v1367 = vadd.f32 %v1158, %v1366
  %1368 = vmatmul.f32.gmra.mxu0 %v626
  %v1369 = vpop.f32.mrf.mxu0
  %v1370 = vadd.f32 %v1161, %v1369
  %1371 = vmatmul.f32.gmra.mxu0 %v628
  %v1372 = vpop.f32.mrf.mxu0
  %v1373 = vadd.f32 %v1164, %v1372
  %1374 = vmatmul.f32.gmra.mxu0 %v631
  %v1375 = vpop.f32.mrf.mxu0
  %v1376 = vadd.f32 %v1167, %v1375
  %1377 = vmatmul.f32.gmra.mxu0 %v633
  %v1378 = vpop.f32.mrf.mxu0
  %v1379 = vadd.f32 %v1170, %v1378
  %1380 = vmatmul.f32.gmra.mxu0 %v636
  %v1381 = vpop.f32.mrf.mxu0
  %v1382 = vadd.f32 %v1173, %v1381
  %1383 = vmatmul.f32.gmra.mxu0 %v638
  %v1384 = vpop.f32.mrf.mxu0
  %v1385 = vadd.f32 %v1176, %v1384
  %1386 = vmatmul.f32.gmra.mxu0 %v641
  %v1387 = vpop.f32.mrf.mxu0
  %v1388 = vadd.f32 %v1179, %v1387
  %1389 = vmatmul.f32.gmra.mxu0 %v643
  %v1390 = vpop.f32.mrf.mxu0
  %v1391 = vadd.f32 %v1182, %v1390
  %1392 = vmatmul.f32.gmra.mxu0 %v646
  %v1393 = vpop.f32.mrf.mxu0
  %v1394 = vadd.f32 %v1185, %v1393
  %1395 = vmatmul.f32.gmra.mxu0 %v648
  %v1396 = vpop.f32.mrf.mxu0
  %v1397 = vadd.f32 %v1188, %v1396
  %1398 = vmatmul.f32.gmra.mxu0 %v651
  %v1399 = vpop.f32.mrf.mxu0
  %v1400 = vadd.f32 %v1191, %v1399
  %1401 = vmatmul.f32.gmra.mxu0 %v653
  %v1402 = vpop.f32.mrf.mxu0
  %v1403 = vadd.f32 %v1194, %v1402
  %1404 = vmatmul.f32.gmra.mxu0 %v656
  %v1405 = vpop.f32.mrf.mxu0
  %v1406 = vadd.f32 %v1197, %v1405
  %1407 = vmatmul.f32.gmra.mxu0 %v658
  %v1408 = vpop.f32.mrf.mxu0
  %v1409 = vadd.f32 %v1200, %v1408
  %1410 = vmatmul.f32.gmra.mxu0 %v661
  %v1411 = vpop.f32.mrf.mxu0
  %v1412 = vadd.f32 %v1203, %v1411
  %1413 = vmatmul.f32.gmra.mxu0 %v663
  %v1414 = vpop.f32.mrf.mxu0
  %v1415 = vadd.f32 %v1206, %v1414
  %1416 = vmatmul.f32.gmra.mxu0 %v666
  %v1417 = vpop.f32.mrf.mxu0
  %v1418 = vadd.f32 %v1209, %v1417
  %1419 = vmatmul.f32.gmra.mxu0 %v668
  %v1420 = vpop.f32.mrf.mxu0
  %v1421 = vadd.f32 %v1212, %v1420
  %1422 = vmatmul.f32.gmra.mxu0 %v671
  %v1423 = vpop.f32.mrf.mxu0
  %v1424 = vadd.f32 %v1215, %v1423
  %1425 = vmatmul.f32.gmra.mxu0 %v673
  %v1426 = vpop.f32.mrf.mxu0
  %v1427 = vadd.f32 %v1218, %v1426
  %1428 = vmatmul.f32.gmra.mxu0 %v676
  %v1429 = vpop.f32.mrf.mxu0
  %v1430 = vadd.f32 %v1221, %v1429
  %1431 = vmatmul.f32.gmra.mxu0 %v678
  %v1432 = vpop.f32.mrf.mxu0
  %v1433 = vadd.f32 %v1224, %v1432
  %1434 = vmatmul.f32.gmra.mxu0 %v681
  %v1435 = vpop.f32.mrf.mxu0
  %v1436 = vadd.f32 %v1227, %v1435
  %1437 = vmatmul.f32.gmra.mxu0 %v683
  %v1438 = vpop.f32.mrf.mxu0
  %v1439 = vadd.f32 %v1230, %v1438
  %1440 = vmatmul.f32.gmra.mxu0 %v686
  %v1441 = vpop.f32.mrf.mxu0
  %v1442 = vadd.f32 %v1233, %v1441
  %1443 = vmatmul.f32.gmra.mxu0 %v688
  %v1444 = vpop.f32.mrf.mxu0
  %v1445 = vadd.f32 %v1236, %v1444
  %1446 = vmatmul.f32.gmra.mxu0 %v691
  %v1447 = vpop.f32.mrf.mxu0
  %v1448 = vadd.f32 %v1239, %v1447
  %1449 = vmatmul.f32.gmra.mxu0 %v693
  %v1450 = vpop.f32.mrf.mxu0
  %v1451 = vadd.f32 %v1242, %v1450
  %1452 = vmatmul.f32.gmra.mxu0 %v696
  %v1453 = vpop.f32.mrf.mxu0
  %v1454 = vadd.f32 %v1245, %v1453
  %1455 = vmatmul.f32.gmra.mxu0 %v698
  %v1456 = vpop.f32.mrf.mxu0
  %v1457 = vadd.f32 %v1248, %v1456
  %1458 = vmatmul.f32.gmra.mxu0 %v701
  %v1459 = vpop.f32.mrf.mxu0
  %v1460 = vadd.f32 %v1251, %v1459
  %1461 = vmatmul.f32.gmra.mxu0 %v703
  %v1462 = vpop.f32.mrf.mxu0
  %v1463 = vadd.f32 %v1254, %v1462
  %1464 = vmatmul.f32.gmra.mxu0 %v706
  %v1465 = vpop.f32.mrf.mxu0
  %v1466 = vadd.f32 %v1257, %v1465
  %1467 = vmatmul.f32.gmra.mxu0 %v708
  %v1468 = vpop.f32.mrf.mxu0
  %v1469 = vadd.f32 %v1260, %v1468
  %1470 = vmatmul.f32.gmra.mxu0 %v711
  %v1471 = vpop.f32.mrf.mxu0
  %v1472 = vadd.f32 %v1263, %v1471
  %1473 = vmatmul.f32.gmra.mxu0 %v713
  %v1474 = vpop.f32.mrf.mxu0
  %v1475 = vadd.f32 %v1266, %v1474
  %1476 = vmatmul.f32.gmra.mxu0 %v716
  %v1477 = vpop.f32.mrf.mxu0
  %v1478 = vadd.f32 %v1269, %v1477
  %1479 = vmatmul.f32.gmra.mxu0 %v718
  %v1480 = vpop.f32.mrf.mxu0
  %v1481 = vadd.f32 %v1272, %v1480
  %1482 = vmatmul.f32.gmra.mxu0 %v721
  %v1483 = vpop.f32.mrf.mxu0
  %v1484 = vadd.f32 %v1275, %v1483
  %1485 = vmatmul.f32.gmra.mxu0 %v723
  %v1486 = vpop.f32.mrf.mxu0
  %v1487 = vadd.f32 %v1278, %v1486
  %1488 = vmatmul.f32.gmra.mxu0 %v726
  %v1489 = vpop.f32.mrf.mxu0
  %v1490 = vadd.f32 %v1281, %v1489
  %1491 = vmatmul.f32.gmra.mxu0 %v728
  %v1492 = vpop.f32.mrf.mxu0
  %v1493 = vadd.f32 %v1284, %v1492
  %1494 = vmatmul.f32.gmra.mxu0 %v731
  %v1495 = vpop.f32.mrf.mxu0
  %v1496 = vadd.f32 %v1287, %v1495
  %1497 = vmatmul.f32.gmra.mxu0 %v733
  %v1498 = vpop.f32.mrf.mxu0
  %v1499 = vadd.f32 %v1290, %v1498
  %1500 = vmatmul.f32.gmra.mxu0 %v736
  %v1501 = vpop.f32.mrf.mxu0
  %v1502 = vadd.f32 %v1293, %v1501
  %1503 = vmatmul.f32.gmra.mxu0 %v738
  %v1504 = vpop.f32.mrf.mxu0
  %v1505 = vadd.f32 %v1296, %v1504
  %1506 = vmatmul.f32.gmra.mxu0 %v741
  %v1507 = vpop.f32.mrf.mxu0
  %v1508 = vadd.f32 %v1299, %v1507
  %1509 = vmatmul.f32.gmra.mxu0 %v743
  %v1510 = vpop.f32.mrf.mxu0
  %v1511 = vadd.f32 %v1302, %v1510
  %1512 = vmatmul.f32.gmra.mxu0 %v746
  %v1513 = vpop.f32.mrf.mxu0
  %v1514 = vadd.f32 %v1305, %v1513
  %1515 = vmatmul.f32.gmra.mxu0 %v748
  %v1516 = vpop.f32.mrf.mxu0
  %v1517 = vadd.f32 %v1308, %v1516
  %1518 = vmatmul.f32.gmra.mxu0 %v751
  %v1519 = vpop.f32.mrf.mxu0
  %v1520 = vadd.f32 %v1311, %v1519
  %1521 = vmatmul.f32.gmra.mxu0 %v753
  %v1522 = vpop.f32.mrf.mxu0
  %v1523 = vadd.f32 %v1314, %v1522
  %1524 = vmatmul.f32.gmra.mxu0 %v756
  %v1525 = vpop.f32.mrf.mxu0
  %v1526 = vadd.f32 %v1317, %v1525
  %1527 = vmatmul.f32.gmra.mxu0 %v758
  %v1528 = vpop.f32.mrf.mxu0
  %v1529 = vadd.f32 %v1320, %v1528
  %1530 = vmatmul.f32.gmra.mxu0 %v761
  %v1531 = vpop.f32.mrf.mxu0
  %v1532 = vadd.f32 %v1323, %v1531
  %1533 = vmatmul.f32.gmra.mxu0 %v763
  %v1534 = vpop.f32.mrf.mxu0
  %v1535 = vadd.f32 %v1326, %v1534
  %1536 = vmatmul.f32.gmra.mxu0 %v766
  %v1537 = vpop.f32.mrf.mxu0
  %v1538 = vadd.f32 %v1329, %v1537
  %1539 = vmatmul.f32.gmra.mxu0 %v768
  %v1540 = vpop.f32.mrf.mxu0
  %v1541 = vadd.f32 %v1332, %v1540
  %1542 = vmatmul.f32.gmra.mxu0 %v771
  %v1543 = vpop.f32.mrf.mxu0
  %v1544 = vadd.f32 %v1335, %v1543
  %1545 = vmatmul.f32.gmra.mxu0 %v773
  %v1546 = vpop.f32.mrf.mxu0
  %v1547 = vadd.f32 %v1338, %v1546
  %1548 = vdwg.mxu0
  %1549 = vmatpush.msra.mxu0 %v310
  %1550 = vmatpush.msra.mxu0 %v309
  %1551 = vmatpush.msra.mxu0 %v308
  %1552 = vmatpush.msra.mxu0 %v307
  %1553 = vmatpush.msra.mxu0 %v306
  %1554 = vmatpush.msra.mxu0 %v305
  %1555 = vmatpush.msra.mxu0 %v304
  %1556 = vmatpush.msra.mxu0 %v303
  %1557 = vmatpush.msra.mxu0 %v302
  %1558 = vmatpush.msra.mxu0 %v301
  %1559 = vmatpush.msra.mxu0 %v300
  %1560 = vmatpush.msra.mxu0 %v299
  %1561 = vmatpush.msra.mxu0 %v298
  %1562 = vmatpush.msra.mxu0 %v297
  %1563 = vmatpush.msra.mxu0 %v296
  %1564 = vmatpush.msra.mxu0 %v295
  %1565 = vmatmul.f32.gmra.mxu0 %v841
  %v1566 = vpop.f32.mrf.mxu0
  %v1567 = vadd.f32 %v1358, %v1566
  %1568 = vmatmul.f32.gmra.mxu0 %v843
  %v1569 = vpop.f32.mrf.mxu0
  %v1570 = vadd.f32 %v1361, %v1569
  %1571 = vmatmul.f32.gmra.mxu0 %v846
  %v1572 = vpop.f32.mrf.mxu0
  %v1573 = vadd.f32 %v1364, %v1572
  %1574 = vmatmul.f32.gmra.mxu0 %v848
  %v1575 = vpop.f32.mrf.mxu0
  %v1576 = vadd.f32 %v1367, %v1575
  %1577 = vmatmul.f32.gmra.mxu0 %v851
  %v1578 = vpop.f32.mrf.mxu0
  %v1579 = vadd.f32 %v1370, %v1578
  %1580 = vmatmul.f32.gmra.mxu0 %v853
  %v1581 = vpop.f32.mrf.mxu0
  %v1582 = vadd.f32 %v1373, %v1581
  %1583 = vmatmul.f32.gmra.mxu0 %v856
  %v1584 = vpop.f32.mrf.mxu0
  %v1585 = vadd.f32 %v1376, %v1584
  %1586 = vmatmul.f32.gmra.mxu0 %v858
  %v1587 = vpop.f32.mrf.mxu0
  %v1588 = vadd.f32 %v1379, %v1587
  %1589 = vmatmul.f32.gmra.mxu0 %v861
  %v1590 = vpop.f32.mrf.mxu0
  %v1591 = vadd.f32 %v1382, %v1590
  %1592 = vmatmul.f32.gmra.mxu0 %v863
  %v1593 = vpop.f32.mrf.mxu0
  %v1594 = vadd.f32 %v1385, %v1593
  %1595 = vmatmul.f32.gmra.mxu0 %v866
  %v1596 = vpop.f32.mrf.mxu0
  %v1597 = vadd.f32 %v1388, %v1596
  %1598 = vmatmul.f32.gmra.mxu0 %v868
  %v1599 = vpop.f32.mrf.mxu0
  %v1600 = vadd.f32 %v1391, %v1599
  %1601 = vmatmul.f32.gmra.mxu0 %v871
  %v1602 = vpop.f32.mrf.mxu0
  %v1603 = vadd.f32 %v1394, %v1602
  %1604 = vmatmul.f32.gmra.mxu0 %v873
  %v1605 = vpop.f32.mrf.mxu0
  %v1606 = vadd.f32 %v1397, %v1605
  %1607 = vmatmul.f32.gmra.mxu0 %v876
  %v1608 = vpop.f32.mrf.mxu0
  %v1609 = vadd.f32 %v1400, %v1608
  %1610 = vmatmul.f32.gmra.mxu0 %v878
  %v1611 = vpop.f32.mrf.mxu0
  %v1612 = vadd.f32 %v1403, %v1611
  %1613 = vmatmul.f32.gmra.mxu0 %v881
  %v1614 = vpop.f32.mrf.mxu0
  %v1615 = vadd.f32 %v1406, %v1614
  %1616 = vmatmul.f32.gmra.mxu0 %v883
  %v1617 = vpop.f32.mrf.mxu0
  %v1618 = vadd.f32 %v1409, %v1617
  %1619 = vmatmul.f32.gmra.mxu0 %v886
  %v1620 = vpop.f32.mrf.mxu0
  %v1621 = vadd.f32 %v1412, %v1620
  %1622 = vmatmul.f32.gmra.mxu0 %v888
  %v1623 = vpop.f32.mrf.mxu0
  %v1624 = vadd.f32 %v1415, %v1623
  %1625 = vmatmul.f32.gmra.mxu0 %v891
  %v1626 = vpop.f32.mrf.mxu0
  %v1627 = vadd.f32 %v1418, %v1626
  %1628 = vmatmul.f32.gmra.mxu0 %v893
  %v1629 = vpop.f32.mrf.mxu0
  %v1630 = vadd.f32 %v1421, %v1629
  %1631 = vmatmul.f32.gmra.mxu0 %v896
  %v1632 = vpop.f32.mrf.mxu0
  %v1633 = vadd.f32 %v1424, %v1632
  %1634 = vmatmul.f32.gmra.mxu0 %v898
  %v1635 = vpop.f32.mrf.mxu0
  %v1636 = vadd.f32 %v1427, %v1635
  %1637 = vmatmul.f32.gmra.mxu0 %v901
  %v1638 = vpop.f32.mrf.mxu0
  %v1639 = vadd.f32 %v1430, %v1638
  %1640 = vmatmul.f32.gmra.mxu0 %v903
  %v1641 = vpop.f32.mrf.mxu0
  %v1642 = vadd.f32 %v1433, %v1641
  %1643 = vmatmul.f32.gmra.mxu0 %v906
  %v1644 = vpop.f32.mrf.mxu0
  %v1645 = vadd.f32 %v1436, %v1644
  %1646 = vmatmul.f32.gmra.mxu0 %v908
  %v1647 = vpop.f32.mrf.mxu0
  %v1648 = vadd.f32 %v1439, %v1647
  %1649 = vmatmul.f32.gmra.mxu0 %v911
  %v1650 = vpop.f32.mrf.mxu0
  %v1651 = vadd.f32 %v1442, %v1650
  %1652 = vmatmul.f32.gmra.mxu0 %v913
  %v1653 = vpop.f32.mrf.mxu0
  %v1654 = vadd.f32 %v1445, %v1653
  %1655 = vmatmul.f32.gmra.mxu0 %v916
  %v1656 = vpop.f32.mrf.mxu0
  %v1657 = vadd.f32 %v1448, %v1656
  %1658 = vmatmul.f32.gmra.mxu0 %v918
  %v1659 = vpop.f32.mrf.mxu0
  %v1660 = vadd.f32 %v1451, %v1659
  %1661 = vmatmul.f32.gmra.mxu0 %v921
  %v1662 = vpop.f32.mrf.mxu0
  %v1663 = vadd.f32 %v1454, %v1662
  %1664 = vmatmul.f32.gmra.mxu0 %v923
  %v1665 = vpop.f32.mrf.mxu0
  %v1666 = vadd.f32 %v1457, %v1665
  %1667 = vmatmul.f32.gmra.mxu0 %v926
  %v1668 = vpop.f32.mrf.mxu0
  %v1669 = vadd.f32 %v1460, %v1668
  %1670 = vmatmul.f32.gmra.mxu0 %v928
  %v1671 = vpop.f32.mrf.mxu0
  %v1672 = vadd.f32 %v1463, %v1671
  %1673 = vmatmul.f32.gmra.mxu0 %v931
  %v1674 = vpop.f32.mrf.mxu0
  %v1675 = vadd.f32 %v1466, %v1674
  %1676 = vmatmul.f32.gmra.mxu0 %v933
  %v1677 = vpop.f32.mrf.mxu0
  %v1678 = vadd.f32 %v1469, %v1677
  %1679 = vmatmul.f32.gmra.mxu0 %v936
  %v1680 = vpop.f32.mrf.mxu0
  %v1681 = vadd.f32 %v1472, %v1680
  %1682 = vmatmul.f32.gmra.mxu0 %v938
  %v1683 = vpop.f32.mrf.mxu0
  %v1684 = vadd.f32 %v1475, %v1683
  %1685 = vmatmul.f32.gmra.mxu0 %v941
  %v1686 = vpop.f32.mrf.mxu0
  %v1687 = vadd.f32 %v1478, %v1686
  %1688 = vmatmul.f32.gmra.mxu0 %v943
  %v1689 = vpop.f32.mrf.mxu0
  %v1690 = vadd.f32 %v1481, %v1689
  %1691 = vmatmul.f32.gmra.mxu0 %v946
  %v1692 = vpop.f32.mrf.mxu0
  %v1693 = vadd.f32 %v1484, %v1692
  %1694 = vmatmul.f32.gmra.mxu0 %v948
  %v1695 = vpop.f32.mrf.mxu0
  %v1696 = vadd.f32 %v1487, %v1695
  %1697 = vmatmul.f32.gmra.mxu0 %v951
  %v1698 = vpop.f32.mrf.mxu0
  %v1699 = vadd.f32 %v1490, %v1698
  %1700 = vmatmul.f32.gmra.mxu0 %v953
  %v1701 = vpop.f32.mrf.mxu0
  %v1702 = vadd.f32 %v1493, %v1701
  %1703 = vmatmul.f32.gmra.mxu0 %v956
  %v1704 = vpop.f32.mrf.mxu0
  %v1705 = vadd.f32 %v1496, %v1704
  %1706 = vmatmul.f32.gmra.mxu0 %v958
  %v1707 = vpop.f32.mrf.mxu0
  %v1708 = vadd.f32 %v1499, %v1707
  %1709 = vmatmul.f32.gmra.mxu0 %v961
  %v1710 = vpop.f32.mrf.mxu0
  %v1711 = vadd.f32 %v1502, %v1710
  %1712 = vmatmul.f32.gmra.mxu0 %v963
  %v1713 = vpop.f32.mrf.mxu0
  %v1714 = vadd.f32 %v1505, %v1713
  %1715 = vmatmul.f32.gmra.mxu0 %v966
  %v1716 = vpop.f32.mrf.mxu0
  %v1717 = vadd.f32 %v1508, %v1716
  %1718 = vmatmul.f32.gmra.mxu0 %v968
  %v1719 = vpop.f32.mrf.mxu0
  %v1720 = vadd.f32 %v1511, %v1719
  %1721 = vmatmul.f32.gmra.mxu0 %v971
  %v1722 = vpop.f32.mrf.mxu0
  %v1723 = vadd.f32 %v1514, %v1722
  %1724 = vmatmul.f32.gmra.mxu0 %v973
  %v1725 = vpop.f32.mrf.mxu0
  %v1726 = vadd.f32 %v1517, %v1725
  %1727 = vmatmul.f32.gmra.mxu0 %v976
  %v1728 = vpop.f32.mrf.mxu0
  %v1729 = vadd.f32 %v1520, %v1728
  %1730 = vmatmul.f32.gmra.mxu0 %v978
  %v1731 = vpop.f32.mrf.mxu0
  %v1732 = vadd.f32 %v1523, %v1731
  %1733 = vmatmul.f32.gmra.mxu0 %v981
  %v1734 = vpop.f32.mrf.mxu0
  %v1735 = vadd.f32 %v1526, %v1734
  %1736 = vmatmul.f32.gmra.mxu0 %v983
  %v1737 = vpop.f32.mrf.mxu0
  %v1738 = vadd.f32 %v1529, %v1737
  %1739 = vmatmul.f32.gmra.mxu0 %v986
  %v1740 = vpop.f32.mrf.mxu0
  %v1741 = vadd.f32 %v1532, %v1740
  %1742 = vmatmul.f32.gmra.mxu0 %v988
  %v1743 = vpop.f32.mrf.mxu0
  %v1744 = vadd.f32 %v1535, %v1743
  %1745 = vmatmul.f32.gmra.mxu0 %v991
  %v1746 = vpop.f32.mrf.mxu0
  %v1747 = vadd.f32 %v1538, %v1746
  %1748 = vmatmul.f32.gmra.mxu0 %v993
  %v1749 = vpop.f32.mrf.mxu0
  %v1750 = vadd.f32 %v1541, %v1749
  %1751 = vmatmul.f32.gmra.mxu0 %v996
  %v1752 = vpop.f32.mrf.mxu0
  %v1753 = vadd.f32 %v1544, %v1752
  %1754 = vmatmul.f32.gmra.mxu0 %v998
  %v1755 = vpop.f32.mrf.mxu0
  %v1756 = vadd.f32 %v1547, %v1755
  %1757 = vdwg.mxu0
  %1758 = vmatpush.msra.mxu0 %v326
  %1759 = vmatpush.msra.mxu0 %v325
  %1760 = vmatpush.msra.mxu0 %v324
  %1761 = vmatpush.msra.mxu0 %v323
  %1762 = vmatpush.msra.mxu0 %v322
  %1763 = vmatpush.msra.mxu0 %v321
  %1764 = vmatpush.msra.mxu0 %v320
  %1765 = vmatpush.msra.mxu0 %v319
  %1766 = vmatpush.msra.mxu0 %v318
  %1767 = vmatpush.msra.mxu0 %v317
  %1768 = vmatpush.msra.mxu0 %v316
  %1769 = vmatpush.msra.mxu0 %v315
  %1770 = vmatpush.msra.mxu0 %v314
  %1771 = vmatpush.msra.mxu0 %v313
  %1772 = vmatpush.msra.mxu0 %v312
  %1773 = vmatpush.msra.mxu0 %v311
  %1774 = vmatmul.f32.gmra.mxu0 %v412
  %v1775 = vpop.f32.mrf.mxu0
  %v1776 = vadd.f32 %v1567, %v1775
  %1777 = vmatmul.f32.gmra.mxu0 %v413
  %v1778 = vpop.f32.mrf.mxu0
  %v1779 = vadd.f32 %v1570, %v1778
  %1780 = vmatmul.f32.gmra.mxu0 %v415
  %v1781 = vpop.f32.mrf.mxu0
  %v1782 = vadd.f32 %v1573, %v1781
  %1783 = vmatmul.f32.gmra.mxu0 %v416
  %v1784 = vpop.f32.mrf.mxu0
  %v1785 = vadd.f32 %v1576, %v1784
  %1786 = vmatmul.f32.gmra.mxu0 %v418
  %v1787 = vpop.f32.mrf.mxu0
  %v1788 = vadd.f32 %v1579, %v1787
  %1789 = vmatmul.f32.gmra.mxu0 %v419
  %v1790 = vpop.f32.mrf.mxu0
  %v1791 = vadd.f32 %v1582, %v1790
  %1792 = vmatmul.f32.gmra.mxu0 %v421
  %v1793 = vpop.f32.mrf.mxu0
  %v1794 = vadd.f32 %v1585, %v1793
  %1795 = vmatmul.f32.gmra.mxu0 %v422
  %v1796 = vpop.f32.mrf.mxu0
  %v1797 = vadd.f32 %v1588, %v1796
  %1798 = vmatmul.f32.gmra.mxu0 %v424
  %v1799 = vpop.f32.mrf.mxu0
  %v1800 = vadd.f32 %v1591, %v1799
  %1801 = vmatmul.f32.gmra.mxu0 %v425
  %v1802 = vpop.f32.mrf.mxu0
  %v1803 = vadd.f32 %v1594, %v1802
  %1804 = vmatmul.f32.gmra.mxu0 %v427
  %v1805 = vpop.f32.mrf.mxu0
  %v1806 = vadd.f32 %v1597, %v1805
  %1807 = vmatmul.f32.gmra.mxu0 %v428
  %v1808 = vpop.f32.mrf.mxu0
  %v1809 = vadd.f32 %v1600, %v1808
  %1810 = vmatmul.f32.gmra.mxu0 %v430
  %v1811 = vpop.f32.mrf.mxu0
  %v1812 = vadd.f32 %v1603, %v1811
  %1813 = vmatmul.f32.gmra.mxu0 %v431
  %v1814 = vpop.f32.mrf.mxu0
  %v1815 = vadd.f32 %v1606, %v1814
  %1816 = vmatmul.f32.gmra.mxu0 %v433
  %v1817 = vpop.f32.mrf.mxu0
  %v1818 = vadd.f32 %v1609, %v1817
  %1819 = vmatmul.f32.gmra.mxu0 %v434
  %v1820 = vpop.f32.mrf.mxu0
  %v1821 = vadd.f32 %v1612, %v1820
  %1822 = vmatmul.f32.gmra.mxu0 %v436
  %v1823 = vpop.f32.mrf.mxu0
  %v1824 = vadd.f32 %v1615, %v1823
  %1825 = vmatmul.f32.gmra.mxu0 %v437
  %v1826 = vpop.f32.mrf.mxu0
  %v1827 = vadd.f32 %v1618, %v1826
  %1828 = vmatmul.f32.gmra.mxu0 %v439
  %v1829 = vpop.f32.mrf.mxu0
  %v1830 = vadd.f32 %v1621, %v1829
  %1831 = vmatmul.f32.gmra.mxu0 %v440
  %v1832 = vpop.f32.mrf.mxu0
  %v1833 = vadd.f32 %v1624, %v1832
  %1834 = vmatmul.f32.gmra.mxu0 %v442
  %v1835 = vpop.f32.mrf.mxu0
  %v1836 = vadd.f32 %v1627, %v1835
  %1837 = vmatmul.f32.gmra.mxu0 %v443
  %v1838 = vpop.f32.mrf.mxu0
  %v1839 = vadd.f32 %v1630, %v1838
  %1840 = vmatmul.f32.gmra.mxu0 %v445
  %v1841 = vpop.f32.mrf.mxu0
  %v1842 = vadd.f32 %v1633, %v1841
  %1843 = vmatmul.f32.gmra.mxu0 %v446
  %v1844 = vpop.f32.mrf.mxu0
  %v1845 = vadd.f32 %v1636, %v1844
  %1846 = vmatmul.f32.gmra.mxu0 %v448
  %v1847 = vpop.f32.mrf.mxu0
  %v1848 = vadd.f32 %v1639, %v1847
  %1849 = vmatmul.f32.gmra.mxu0 %v449
  %v1850 = vpop.f32.mrf.mxu0
  %v1851 = vadd.f32 %v1642, %v1850
  %1852 = vmatmul.f32.gmra.mxu0 %v451
  %v1853 = vpop.f32.mrf.mxu0
  %v1854 = vadd.f32 %v1645, %v1853
  %1855 = vmatmul.f32.gmra.mxu0 %v452
  %v1856 = vpop.f32.mrf.mxu0
  %v1857 = vadd.f32 %v1648, %v1856
  %1858 = vmatmul.f32.gmra.mxu0 %v454
  %v1859 = vpop.f32.mrf.mxu0
  %v1860 = vadd.f32 %v1651, %v1859
  %1861 = vmatmul.f32.gmra.mxu0 %v455
  %v1862 = vpop.f32.mrf.mxu0
  %v1863 = vadd.f32 %v1654, %v1862
  %1864 = vmatmul.f32.gmra.mxu0 %v457
  %v1865 = vpop.f32.mrf.mxu0
  %v1866 = vadd.f32 %v1657, %v1865
  %1867 = vmatmul.f32.gmra.mxu0 %v458
  %v1868 = vpop.f32.mrf.mxu0
  %v1869 = vadd.f32 %v1660, %v1868
  %1870 = vmatmul.f32.gmra.mxu0 %v466
  %v1871 = vpop.f32.mrf.mxu0
  %v1872 = vadd.f32 %v1663, %v1871
  %1873 = vmatmul.f32.gmra.mxu0 %v467
  %v1874 = vpop.f32.mrf.mxu0
  %v1875 = vadd.f32 %v1666, %v1874
  %1876 = vmatmul.f32.gmra.mxu0 %v469
  %v1877 = vpop.f32.mrf.mxu0
  %v1878 = vadd.f32 %v1669, %v1877
  %1879 = vmatmul.f32.gmra.mxu0 %v470
  %v1880 = vpop.f32.mrf.mxu0
  %v1881 = vadd.f32 %v1672, %v1880
  %1882 = vmatmul.f32.gmra.mxu0 %v472
  %v1883 = vpop.f32.mrf.mxu0
  %v1884 = vadd.f32 %v1675, %v1883
  %1885 = vmatmul.f32.gmra.mxu0 %v473
  %v1886 = vpop.f32.mrf.mxu0
  %v1887 = vadd.f32 %v1678, %v1886
  %1888 = vmatmul.f32.gmra.mxu0 %v475
  %v1889 = vpop.f32.mrf.mxu0
  %v1890 = vadd.f32 %v1681, %v1889
  %1891 = vmatmul.f32.gmra.mxu0 %v476
  %v1892 = vpop.f32.mrf.mxu0
  %v1893 = vadd.f32 %v1684, %v1892
  %1894 = vmatmul.f32.gmra.mxu0 %v478
  %v1895 = vpop.f32.mrf.mxu0
  %v1896 = vadd.f32 %v1687, %v1895
  %1897 = vmatmul.f32.gmra.mxu0 %v479
  %v1898 = vpop.f32.mrf.mxu0
  %v1899 = vadd.f32 %v1690, %v1898
  %1900 = vmatmul.f32.gmra.mxu0 %v481
  %v1901 = vpop.f32.mrf.mxu0
  %v1902 = vadd.f32 %v1693, %v1901
  %1903 = vmatmul.f32.gmra.mxu0 %v482
  %v1904 = vpop.f32.mrf.mxu0
  %v1905 = vadd.f32 %v1696, %v1904
  %1906 = vmatmul.f32.gmra.mxu0 %v484
  %v1907 = vpop.f32.mrf.mxu0
  %v1908 = vadd.f32 %v1699, %v1907
  %1909 = vmatmul.f32.gmra.mxu0 %v485
  %v1910 = vpop.f32.mrf.mxu0
  %v1911 = vadd.f32 %v1702, %v1910
  %1912 = vmatmul.f32.gmra.mxu0 %v487
  %v1913 = vpop.f32.mrf.mxu0
  %v1914 = vadd.f32 %v1705, %v1913
  %1915 = vmatmul.f32.gmra.mxu0 %v488
  %v1916 = vpop.f32.mrf.mxu0
  %v1917 = vadd.f32 %v1708, %v1916
  %1918 = vmatmul.f32.gmra.mxu0 %v490
  %v1919 = vpop.f32.mrf.mxu0
  %v1920 = vadd.f32 %v1711, %v1919
  %1921 = vmatmul.f32.gmra.mxu0 %v491
  %v1922 = vpop.f32.mrf.mxu0
  %v1923 = vadd.f32 %v1714, %v1922
  %1924 = vmatmul.f32.gmra.mxu0 %v493
  %v1925 = vpop.f32.mrf.mxu0
  %v1926 = vadd.f32 %v1717, %v1925
  %1927 = vmatmul.f32.gmra.mxu0 %v494
  %v1928 = vpop.f32.mrf.mxu0
  %v1929 = vadd.f32 %v1720, %v1928
  %1930 = vmatmul.f32.gmra.mxu0 %v496
  %v1931 = vpop.f32.mrf.mxu0
  %v1932 = vadd.f32 %v1723, %v1931
  %1933 = vmatmul.f32.gmra.mxu0 %v497
  %v1934 = vpop.f32.mrf.mxu0
  %v1935 = vadd.f32 %v1726, %v1934
  %1936 = vmatmul.f32.gmra.mxu0 %v499
  %v1937 = vpop.f32.mrf.mxu0
  %v1938 = vadd.f32 %v1729, %v1937
  %1939 = vmatmul.f32.gmra.mxu0 %v500
  %v1940 = vpop.f32.mrf.mxu0
  %v1941 = vadd.f32 %v1732, %v1940
  %1942 = vmatmul.f32.gmra.mxu0 %v502
  %v1943 = vpop.f32.mrf.mxu0
  %v1944 = vadd.f32 %v1735, %v1943
  %1945 = vmatmul.f32.gmra.mxu0 %v503
  %v1946 = vpop.f32.mrf.mxu0
  %v1947 = vadd.f32 %v1738, %v1946
  %1948 = vmatmul.f32.gmra.mxu0 %v505
  %v1949 = vpop.f32.mrf.mxu0
  %v1950 = vadd.f32 %v1741, %v1949
  %1951 = vmatmul.f32.gmra.mxu0 %v506
  %v1952 = vpop.f32.mrf.mxu0
  %v1953 = vadd.f32 %v1744, %v1952
  %1954 = vmatmul.f32.gmra.mxu0 %v508
  %v1955 = vpop.f32.mrf.mxu0
  %v1956 = vadd.f32 %v1747, %v1955
  %1957 = vmatmul.f32.gmra.mxu0 %v509
  %v1958 = vpop.f32.mrf.mxu0
  %v1959 = vadd.f32 %v1750, %v1958
  %1960 = vmatmul.f32.gmra.mxu0 %v511
  %v1961 = vpop.f32.mrf.mxu0
  %v1962 = vadd.f32 %v1753, %v1961
  %1963 = vmatmul.f32.gmra.mxu0 %v512
  %v1964 = vpop.f32.mrf.mxu0
  %v1965 = vadd.f32 %v1756, %v1964
  %1966 = vdwg.mxu0
  %1967 = vmatpush.msra.mxu0 %v342
  %1968 = vmatpush.msra.mxu0 %v341
  %1969 = vmatpush.msra.mxu0 %v340
  %1970 = vmatpush.msra.mxu0 %v339
  %1971 = vmatpush.msra.mxu0 %v338
  %1972 = vmatpush.msra.mxu0 %v337
  %1973 = vmatpush.msra.mxu0 %v336
  %1974 = vmatpush.msra.mxu0 %v335
  %1975 = vmatpush.msra.mxu0 %v334
  %1976 = vmatpush.msra.mxu0 %v333
  %1977 = vmatpush.msra.mxu0 %v332
  %1978 = vmatpush.msra.mxu0 %v331
  %1979 = vmatpush.msra.mxu0 %v330
  %1980 = vmatpush.msra.mxu0 %v329
  %1981 = vmatpush.msra.mxu0 %v328
  %1982 = vmatpush.msra.mxu0 %v327
  %1983 = vmatmul.f32.gmra.mxu0 %v621
  %v1984 = vpop.f32.mrf.mxu0
  %v1985 = vadd.f32 %v1776, %v1984
  %1986 = vmatmul.f32.gmra.mxu0 %v623
  %v1987 = vpop.f32.mrf.mxu0
  %v1988 = vadd.f32 %v1779, %v1987
  %1989 = vmatmul.f32.gmra.mxu0 %v626
  %v1990 = vpop.f32.mrf.mxu0
  %v1991 = vadd.f32 %v1782, %v1990
  %1992 = vmatmul.f32.gmra.mxu0 %v628
  %v1993 = vpop.f32.mrf.mxu0
  %v1994 = vadd.f32 %v1785, %v1993
  %1995 = vmatmul.f32.gmra.mxu0 %v631
  %v1996 = vpop.f32.mrf.mxu0
  %v1997 = vadd.f32 %v1788, %v1996
  %1998 = vmatmul.f32.gmra.mxu0 %v633
  %v1999 = vpop.f32.mrf.mxu0
  %v2000 = vadd.f32 %v1791, %v1999
  %2001 = vmatmul.f32.gmra.mxu0 %v636
  %v2002 = vpop.f32.mrf.mxu0
  %v2003 = vadd.f32 %v1794, %v2002
  %2004 = vmatmul.f32.gmra.mxu0 %v638
  %v2005 = vpop.f32.mrf.mxu0
  %v2006 = vadd.f32 %v1797, %v2005
  %2007 = vmatmul.f32.gmra.mxu0 %v641
  %v2008 = vpop.f32.mrf.mxu0
  %v2009 = vadd.f32 %v1800, %v2008
  %2010 = vmatmul.f32.gmra.mxu0 %v643
  %v2011 = vpop.f32.mrf.mxu0
  %v2012 = vadd.f32 %v1803, %v2011
  %2013 = vmatmul.f32.gmra.mxu0 %v646
  %v2014 = vpop.f32.mrf.mxu0
  %v2015 = vadd.f32 %v1806, %v2014
  %2016 = vmatmul.f32.gmra.mxu0 %v648
  %v2017 = vpop.f32.mrf.mxu0
  %v2018 = vadd.f32 %v1809, %v2017
  %2019 = vmatmul.f32.gmra.mxu0 %v651
  %v2020 = vpop.f32.mrf.mxu0
  %v2021 = vadd.f32 %v1812, %v2020
  %2022 = vmatmul.f32.gmra.mxu0 %v653
  %v2023 = vpop.f32.mrf.mxu0
  %v2024 = vadd.f32 %v1815, %v2023
  %2025 = vmatmul.f32.gmra.mxu0 %v656
  %v2026 = vpop.f32.mrf.mxu0
  %v2027 = vadd.f32 %v1818, %v2026
  %2028 = vmatmul.f32.gmra.mxu0 %v658
  %v2029 = vpop.f32.mrf.mxu0
  %v2030 = vadd.f32 %v1821, %v2029
  %2031 = vmatmul.f32.gmra.mxu0 %v661
  %v2032 = vpop.f32.mrf.mxu0
  %v2033 = vadd.f32 %v1824, %v2032
  %2034 = vmatmul.f32.gmra.mxu0 %v663
  %v2035 = vpop.f32.mrf.mxu0
  %v2036 = vadd.f32 %v1827, %v2035
  %2037 = vmatmul.f32.gmra.mxu0 %v666
  %v2038 = vpop.f32.mrf.mxu0
  %v2039 = vadd.f32 %v1830, %v2038
  %2040 = vmatmul.f32.gmra.mxu0 %v668
  %v2041 = vpop.f32.mrf.mxu0
  %v2042 = vadd.f32 %v1833, %v2041
  %2043 = vmatmul.f32.gmra.mxu0 %v671
  %v2044 = vpop.f32.mrf.mxu0
  %v2045 = vadd.f32 %v1836, %v2044
  %2046 = vmatmul.f32.gmra.mxu0 %v673
  %v2047 = vpop.f32.mrf.mxu0
  %v2048 = vadd.f32 %v1839, %v2047
  %2049 = vmatmul.f32.gmra.mxu0 %v676
  %v2050 = vpop.f32.mrf.mxu0
  %v2051 = vadd.f32 %v1842, %v2050
  %2052 = vmatmul.f32.gmra.mxu0 %v678
  %v2053 = vpop.f32.mrf.mxu0
  %v2054 = vadd.f32 %v1845, %v2053
  %2055 = vmatmul.f32.gmra.mxu0 %v681
  %v2056 = vpop.f32.mrf.mxu0
  %v2057 = vadd.f32 %v1848, %v2056
  %2058 = vmatmul.f32.gmra.mxu0 %v683
  %v2059 = vpop.f32.mrf.mxu0
  %v2060 = vadd.f32 %v1851, %v2059
  %2061 = vmatmul.f32.gmra.mxu0 %v686
  %v2062 = vpop.f32.mrf.mxu0
  %v2063 = vadd.f32 %v1854, %v2062
  %2064 = vmatmul.f32.gmra.mxu0 %v688
  %v2065 = vpop.f32.mrf.mxu0
  %v2066 = vadd.f32 %v1857, %v2065
  %2067 = vmatmul.f32.gmra.mxu0 %v691
  %v2068 = vpop.f32.mrf.mxu0
  %v2069 = vadd.f32 %v1860, %v2068
  %2070 = vmatmul.f32.gmra.mxu0 %v693
  %v2071 = vpop.f32.mrf.mxu0
  %v2072 = vadd.f32 %v1863, %v2071
  %2073 = vmatmul.f32.gmra.mxu0 %v1071
  %v2074 = vpop.f32.mrf.mxu0
  %v2075 = vadd.f32 %v1866, %v2074
  %2076 = vmatmul.f32.gmra.mxu0 %v1073
  %v2077 = vpop.f32.mrf.mxu0
  %v2078 = vadd.f32 %v1869, %v2077
  %2079 = vmatmul.f32.gmra.mxu0 %v701
  %v2080 = vpop.f32.mrf.mxu0
  %v2081 = vadd.f32 %v1872, %v2080
  %2082 = vmatmul.f32.gmra.mxu0 %v703
  %v2083 = vpop.f32.mrf.mxu0
  %v2084 = vadd.f32 %v1875, %v2083
  %2085 = vmatmul.f32.gmra.mxu0 %v706
  %v2086 = vpop.f32.mrf.mxu0
  %v2087 = vadd.f32 %v1878, %v2086
  %2088 = vmatmul.f32.gmra.mxu0 %v708
  %v2089 = vpop.f32.mrf.mxu0
  %v2090 = vadd.f32 %v1881, %v2089
  %2091 = vmatmul.f32.gmra.mxu0 %v711
  %v2092 = vpop.f32.mrf.mxu0
  %v2093 = vadd.f32 %v1884, %v2092
  %2094 = vmatmul.f32.gmra.mxu0 %v713
  %v2095 = vpop.f32.mrf.mxu0
  %v2096 = vadd.f32 %v1887, %v2095
  %2097 = vmatmul.f32.gmra.mxu0 %v716
  %v2098 = vpop.f32.mrf.mxu0
  %v2099 = vadd.f32 %v1890, %v2098
  %2100 = vmatmul.f32.gmra.mxu0 %v718
  %v2101 = vpop.f32.mrf.mxu0
  %v2102 = vadd.f32 %v1893, %v2101
  %2103 = vmatmul.f32.gmra.mxu0 %v721
  %v2104 = vpop.f32.mrf.mxu0
  %v2105 = vadd.f32 %v1896, %v2104
  %2106 = vmatmul.f32.gmra.mxu0 %v723
  %v2107 = vpop.f32.mrf.mxu0
  %v2108 = vadd.f32 %v1899, %v2107
  %2109 = vmatmul.f32.gmra.mxu0 %v726
  %v2110 = vpop.f32.mrf.mxu0
  %v2111 = vadd.f32 %v1902, %v2110
  %2112 = vmatmul.f32.gmra.mxu0 %v728
  %v2113 = vpop.f32.mrf.mxu0
  %v2114 = vadd.f32 %v1905, %v2113
  %2115 = vmatmul.f32.gmra.mxu0 %v731
  %v2116 = vpop.f32.mrf.mxu0
  %v2117 = vadd.f32 %v1908, %v2116
  %2118 = vmatmul.f32.gmra.mxu0 %v733
  %v2119 = vpop.f32.mrf.mxu0
  %v2120 = vadd.f32 %v1911, %v2119
  %2121 = vmatmul.f32.gmra.mxu0 %v736
  %v2122 = vpop.f32.mrf.mxu0
  %v2123 = vadd.f32 %v1914, %v2122
  %2124 = vmatmul.f32.gmra.mxu0 %v738
  %v2125 = vpop.f32.mrf.mxu0
  %v2126 = vadd.f32 %v1917, %v2125
  %2127 = vmatmul.f32.gmra.mxu0 %v741
  %v2128 = vpop.f32.mrf.mxu0
  %v2129 = vadd.f32 %v1920, %v2128
  %2130 = vmatmul.f32.gmra.mxu0 %v743
  %v2131 = vpop.f32.mrf.mxu0
  %v2132 = vadd.f32 %v1923, %v2131
  %2133 = vmatmul.f32.gmra.mxu0 %v746
  %v2134 = vpop.f32.mrf.mxu0
  %v2135 = vadd.f32 %v1926, %v2134
  %2136 = vmatmul.f32.gmra.mxu0 %v748
  %v2137 = vpop.f32.mrf.mxu0
  %v2138 = vadd.f32 %v1929, %v2137
  %2139 = vmatmul.f32.gmra.mxu0 %v751
  %v2140 = vpop.f32.mrf.mxu0
  %v2141 = vadd.f32 %v1932, %v2140
  %2142 = vmatmul.f32.gmra.mxu0 %v753
  %v2143 = vpop.f32.mrf.mxu0
  %v2144 = vadd.f32 %v1935, %v2143
  %2145 = vmatmul.f32.gmra.mxu0 %v756
  %v2146 = vpop.f32.mrf.mxu0
  %v2147 = vadd.f32 %v1938, %v2146
  %2148 = vmatmul.f32.gmra.mxu0 %v758
  %v2149 = vpop.f32.mrf.mxu0
  %v2150 = vadd.f32 %v1941, %v2149
  %2151 = vmatmul.f32.gmra.mxu0 %v761
  %v2152 = vpop.f32.mrf.mxu0
  %v2153 = vadd.f32 %v1944, %v2152
  %2154 = vmatmul.f32.gmra.mxu0 %v763
  %v2155 = vpop.f32.mrf.mxu0
  %v2156 = vadd.f32 %v1947, %v2155
  %2157 = vmatmul.f32.gmra.mxu0 %v766
  %v2158 = vpop.f32.mrf.mxu0
  %v2159 = vadd.f32 %v1950, %v2158
  %2160 = vmatmul.f32.gmra.mxu0 %v768
  %v2161 = vpop.f32.mrf.mxu0
  %v2162 = vadd.f32 %v1953, %v2161
  %2163 = vmatmul.f32.gmra.mxu0 %v771
  %v2164 = vpop.f32.mrf.mxu0
  %v2165 = vadd.f32 %v1956, %v2164
  %2166 = vmatmul.f32.gmra.mxu0 %v773
  %v2167 = vpop.f32.mrf.mxu0
  %v2168 = vadd.f32 %v1959, %v2167
  %2169 = vmatmul.f32.gmra.mxu0 %v1076
  %v2170 = vpop.f32.mrf.mxu0
  %v2171 = vadd.f32 %v1962, %v2170
  %2172 = vmatmul.f32.gmra.mxu0 %v1078
  %v2173 = vpop.f32.mrf.mxu0
  %v2174 = vadd.f32 %v1965, %v2173
  %2175 = vdwg.mxu0
  %2176 = vmatpush.msra.mxu0 %v358
  %2177 = vmatpush.msra.mxu0 %v357
  %2178 = vmatpush.msra.mxu0 %v356
  %2179 = vmatpush.msra.mxu0 %v355
  %2180 = vmatpush.msra.mxu0 %v354
  %2181 = vmatpush.msra.mxu0 %v353
  %2182 = vmatpush.msra.mxu0 %v352
  %2183 = vmatpush.msra.mxu0 %v351
  %2184 = vmatpush.msra.mxu0 %v350
  %2185 = vmatpush.msra.mxu0 %v349
  %2186 = vmatpush.msra.mxu0 %v348
  %2187 = vmatpush.msra.mxu0 %v347
  %2188 = vmatpush.msra.mxu0 %v346
  %2189 = vmatpush.msra.mxu0 %v345
  %2190 = vmatpush.msra.mxu0 %v344
  %2191 = vmatpush.msra.mxu0 %v343
  %2192 = vmatmul.f32.gmra.mxu0 %v846
  %v2193 = vpop.f32.mrf.mxu0
  %v2194 = vadd.f32 %v1985, %v2193
  %2195 = vmatmul.f32.gmra.mxu0 %v848
  %v2196 = vpop.f32.mrf.mxu0
  %v2197 = vadd.f32 %v1988, %v2196
  %2198 = vmatmul.f32.gmra.mxu0 %v851
  %v2199 = vpop.f32.mrf.mxu0
  %v2200 = vadd.f32 %v1991, %v2199
  %2201 = vmatmul.f32.gmra.mxu0 %v853
  %v2202 = vpop.f32.mrf.mxu0
  %v2203 = vadd.f32 %v1994, %v2202
  %2204 = vmatmul.f32.gmra.mxu0 %v856
  %v2205 = vpop.f32.mrf.mxu0
  %v2206 = vadd.f32 %v1997, %v2205
  %2207 = vmatmul.f32.gmra.mxu0 %v858
  %v2208 = vpop.f32.mrf.mxu0
  %v2209 = vadd.f32 %v2000, %v2208
  %2210 = vmatmul.f32.gmra.mxu0 %v861
  %v2211 = vpop.f32.mrf.mxu0
  %v2212 = vadd.f32 %v2003, %v2211
  %2213 = vmatmul.f32.gmra.mxu0 %v863
  %v2214 = vpop.f32.mrf.mxu0
  %v2215 = vadd.f32 %v2006, %v2214
  %2216 = vmatmul.f32.gmra.mxu0 %v866
  %v2217 = vpop.f32.mrf.mxu0
  %v2218 = vadd.f32 %v2009, %v2217
  %2219 = vmatmul.f32.gmra.mxu0 %v868
  %v2220 = vpop.f32.mrf.mxu0
  %v2221 = vadd.f32 %v2012, %v2220
  %2222 = vmatmul.f32.gmra.mxu0 %v871
  %v2223 = vpop.f32.mrf.mxu0
  %v2224 = vadd.f32 %v2015, %v2223
  %2225 = vmatmul.f32.gmra.mxu0 %v873
  %v2226 = vpop.f32.mrf.mxu0
  %v2227 = vadd.f32 %v2018, %v2226
  %2228 = vmatmul.f32.gmra.mxu0 %v876
  %v2229 = vpop.f32.mrf.mxu0
  %v2230 = vadd.f32 %v2021, %v2229
  %2231 = vmatmul.f32.gmra.mxu0 %v878
  %v2232 = vpop.f32.mrf.mxu0
  %v2233 = vadd.f32 %v2024, %v2232
  %2234 = vmatmul.f32.gmra.mxu0 %v881
  %v2235 = vpop.f32.mrf.mxu0
  %v2236 = vadd.f32 %v2027, %v2235
  %2237 = vmatmul.f32.gmra.mxu0 %v883
  %v2238 = vpop.f32.mrf.mxu0
  %v2239 = vadd.f32 %v2030, %v2238
  %2240 = vmatmul.f32.gmra.mxu0 %v886
  %v2241 = vpop.f32.mrf.mxu0
  %v2242 = vadd.f32 %v2033, %v2241
  %2243 = vmatmul.f32.gmra.mxu0 %v888
  %v2244 = vpop.f32.mrf.mxu0
  %v2245 = vadd.f32 %v2036, %v2244
  %2246 = vmatmul.f32.gmra.mxu0 %v891
  %v2247 = vpop.f32.mrf.mxu0
  %v2248 = vadd.f32 %v2039, %v2247
  %2249 = vmatmul.f32.gmra.mxu0 %v893
  %v2250 = vpop.f32.mrf.mxu0
  %v2251 = vadd.f32 %v2042, %v2250
  %2252 = vmatmul.f32.gmra.mxu0 %v896
  %v2253 = vpop.f32.mrf.mxu0
  %v2254 = vadd.f32 %v2045, %v2253
  %2255 = vmatmul.f32.gmra.mxu0 %v898
  %v2256 = vpop.f32.mrf.mxu0
  %v2257 = vadd.f32 %v2048, %v2256
  %2258 = vmatmul.f32.gmra.mxu0 %v901
  %v2259 = vpop.f32.mrf.mxu0
  %v2260 = vadd.f32 %v2051, %v2259
  %2261 = vmatmul.f32.gmra.mxu0 %v903
  %v2262 = vpop.f32.mrf.mxu0
  %v2263 = vadd.f32 %v2054, %v2262
  %2264 = vmatmul.f32.gmra.mxu0 %v906
  %v2265 = vpop.f32.mrf.mxu0
  %v2266 = vadd.f32 %v2057, %v2265
  %2267 = vmatmul.f32.gmra.mxu0 %v908
  %v2268 = vpop.f32.mrf.mxu0
  %v2269 = vadd.f32 %v2060, %v2268
  %2270 = vmatmul.f32.gmra.mxu0 %v911
  %v2271 = vpop.f32.mrf.mxu0
  %v2272 = vadd.f32 %v2063, %v2271
  %2273 = vmatmul.f32.gmra.mxu0 %v913
  %v2274 = vpop.f32.mrf.mxu0
  %v2275 = vadd.f32 %v2066, %v2274
  %2276 = vmatmul.f32.gmra.mxu0 %v916
  %v2277 = vpop.f32.mrf.mxu0
  %v2278 = vadd.f32 %v2069, %v2277
  %2279 = vmatmul.f32.gmra.mxu0 %v918
  %v2280 = vpop.f32.mrf.mxu0
  %v2281 = vadd.f32 %v2072, %v2280
  %2282 = vmatmul.f32.gmra.mxu0 %v1085
  %v2283 = vpop.f32.mrf.mxu0
  %v2284 = vadd.f32 %v2075, %v2283
  %2285 = vmatmul.f32.gmra.mxu0 %v1087
  %v2286 = vpop.f32.mrf.mxu0
  %v2287 = vadd.f32 %v2078, %v2286
  %2288 = vmatmul.f32.gmra.mxu0 %v926
  %v2289 = vpop.f32.mrf.mxu0
  %v2290 = vadd.f32 %v2081, %v2289
  %2291 = vmatmul.f32.gmra.mxu0 %v928
  %v2292 = vpop.f32.mrf.mxu0
  %v2293 = vadd.f32 %v2084, %v2292
  %2294 = vmatmul.f32.gmra.mxu0 %v931
  %v2295 = vpop.f32.mrf.mxu0
  %v2296 = vadd.f32 %v2087, %v2295
  %2297 = vmatmul.f32.gmra.mxu0 %v933
  %v2298 = vpop.f32.mrf.mxu0
  %v2299 = vadd.f32 %v2090, %v2298
  %2300 = vmatmul.f32.gmra.mxu0 %v936
  %v2301 = vpop.f32.mrf.mxu0
  %v2302 = vadd.f32 %v2093, %v2301
  %2303 = vmatmul.f32.gmra.mxu0 %v938
  %v2304 = vpop.f32.mrf.mxu0
  %v2305 = vadd.f32 %v2096, %v2304
  %2306 = vmatmul.f32.gmra.mxu0 %v941
  %v2307 = vpop.f32.mrf.mxu0
  %v2308 = vadd.f32 %v2099, %v2307
  %2309 = vmatmul.f32.gmra.mxu0 %v943
  %v2310 = vpop.f32.mrf.mxu0
  %v2311 = vadd.f32 %v2102, %v2310
  %2312 = vmatmul.f32.gmra.mxu0 %v946
  %v2313 = vpop.f32.mrf.mxu0
  %v2314 = vadd.f32 %v2105, %v2313
  %2315 = vmatmul.f32.gmra.mxu0 %v948
  %v2316 = vpop.f32.mrf.mxu0
  %v2317 = vadd.f32 %v2108, %v2316
  %2318 = vmatmul.f32.gmra.mxu0 %v951
  %v2319 = vpop.f32.mrf.mxu0
  %v2320 = vadd.f32 %v2111, %v2319
  %2321 = vmatmul.f32.gmra.mxu0 %v953
  %v2322 = vpop.f32.mrf.mxu0
  %v2323 = vadd.f32 %v2114, %v2322
  %2324 = vmatmul.f32.gmra.mxu0 %v956
  %v2325 = vpop.f32.mrf.mxu0
  %v2326 = vadd.f32 %v2117, %v2325
  %2327 = vmatmul.f32.gmra.mxu0 %v958
  %v2328 = vpop.f32.mrf.mxu0
  %v2329 = vadd.f32 %v2120, %v2328
  %2330 = vmatmul.f32.gmra.mxu0 %v961
  %v2331 = vpop.f32.mrf.mxu0
  %v2332 = vadd.f32 %v2123, %v2331
  %2333 = vmatmul.f32.gmra.mxu0 %v963
  %v2334 = vpop.f32.mrf.mxu0
  %v2335 = vadd.f32 %v2126, %v2334
  %2336 = vmatmul.f32.gmra.mxu0 %v966
  %v2337 = vpop.f32.mrf.mxu0
  %v2338 = vadd.f32 %v2129, %v2337
  %2339 = vmatmul.f32.gmra.mxu0 %v968
  %v2340 = vpop.f32.mrf.mxu0
  %v2341 = vadd.f32 %v2132, %v2340
  %2342 = vmatmul.f32.gmra.mxu0 %v971
  %v2343 = vpop.f32.mrf.mxu0
  %v2344 = vadd.f32 %v2135, %v2343
  %2345 = vmatmul.f32.gmra.mxu0 %v973
  %v2346 = vpop.f32.mrf.mxu0
  %v2347 = vadd.f32 %v2138, %v2346
  %2348 = vmatmul.f32.gmra.mxu0 %v976
  %v2349 = vpop.f32.mrf.mxu0
  %v2350 = vadd.f32 %v2141, %v2349
  %2351 = vmatmul.f32.gmra.mxu0 %v978
  %v2352 = vpop.f32.mrf.mxu0
  %v2353 = vadd.f32 %v2144, %v2352
  %2354 = vmatmul.f32.gmra.mxu0 %v981
  %v2355 = vpop.f32.mrf.mxu0
  %v2356 = vadd.f32 %v2147, %v2355
  %2357 = vmatmul.f32.gmra.mxu0 %v983
  %v2358 = vpop.f32.mrf.mxu0
  %v2359 = vadd.f32 %v2150, %v2358
  %2360 = vmatmul.f32.gmra.mxu0 %v986
  %v2361 = vpop.f32.mrf.mxu0
  %v2362 = vadd.f32 %v2153, %v2361
  %2363 = vmatmul.f32.gmra.mxu0 %v988
  %v2364 = vpop.f32.mrf.mxu0
  %v2365 = vadd.f32 %v2156, %v2364
  %2366 = vmatmul.f32.gmra.mxu0 %v991
  %v2367 = vpop.f32.mrf.mxu0
  %v2368 = vadd.f32 %v2159, %v2367
  %2369 = vmatmul.f32.gmra.mxu0 %v993
  %v2370 = vpop.f32.mrf.mxu0
  %v2371 = vadd.f32 %v2162, %v2370
  %2372 = vmatmul.f32.gmra.mxu0 %v996
  %v2373 = vpop.f32.mrf.mxu0
  %v2374 = vadd.f32 %v2165, %v2373
  %2375 = vmatmul.f32.gmra.mxu0 %v998
  %v2376 = vpop.f32.mrf.mxu0
  %v2377 = vadd.f32 %v2168, %v2376
  %2378 = vmatmul.f32.gmra.mxu0 %v1090
  %v2379 = vpop.f32.mrf.mxu0
  %v2380 = vadd.f32 %v2171, %v2379
  %2381 = vmatmul.f32.gmra.mxu0 %v1092
  %v2382 = vpop.f32.mrf.mxu0
  %v2383 = vadd.f32 %v2174, %v2382
  %2384 = vdwg.mxu0
  %2385 = vmatpush.msra.mxu0 %v374
  %2386 = vmatpush.msra.mxu0 %v373
  %2387 = vmatpush.msra.mxu0 %v372
  %2388 = vmatpush.msra.mxu0 %v371
  %2389 = vmatpush.msra.mxu0 %v370
  %2390 = vmatpush.msra.mxu0 %v369
  %2391 = vmatpush.msra.mxu0 %v368
  %2392 = vmatpush.msra.mxu0 %v367
  %2393 = vmatpush.msra.mxu0 %v366
  %2394 = vmatpush.msra.mxu0 %v365
  %2395 = vmatpush.msra.mxu0 %v364
  %2396 = vmatpush.msra.mxu0 %v363
  %2397 = vmatpush.msra.mxu0 %v362
  %2398 = vmatpush.msra.mxu0 %v361
  %2399 = vmatpush.msra.mxu0 %v360
  %2400 = vmatpush.msra.mxu0 %v359
  %2401 = vmatmul.f32.gmra.mxu0 %v415
  %v2402 = vpop.f32.mrf.mxu0
  %v2403 = vadd.f32 %v2194, %v2402
  %2404 = vmatmul.f32.gmra.mxu0 %v416
  %v2405 = vpop.f32.mrf.mxu0
  %v2406 = vadd.f32 %v2197, %v2405
  %2407 = vmatmul.f32.gmra.mxu0 %v418
  %v2408 = vpop.f32.mrf.mxu0
  %v2409 = vadd.f32 %v2200, %v2408
  %2410 = vmatmul.f32.gmra.mxu0 %v419
  %v2411 = vpop.f32.mrf.mxu0
  %v2412 = vadd.f32 %v2203, %v2411
  %2413 = vmatmul.f32.gmra.mxu0 %v421
  %v2414 = vpop.f32.mrf.mxu0
  %v2415 = vadd.f32 %v2206, %v2414
  %2416 = vmatmul.f32.gmra.mxu0 %v422
  %v2417 = vpop.f32.mrf.mxu0
  %v2418 = vadd.f32 %v2209, %v2417
  %2419 = vmatmul.f32.gmra.mxu0 %v424
  %v2420 = vpop.f32.mrf.mxu0
  %v2421 = vadd.f32 %v2212, %v2420
  %2422 = vmatmul.f32.gmra.mxu0 %v425
  %v2423 = vpop.f32.mrf.mxu0
  %v2424 = vadd.f32 %v2215, %v2423
  %2425 = vmatmul.f32.gmra.mxu0 %v427
  %v2426 = vpop.f32.mrf.mxu0
  %v2427 = vadd.f32 %v2218, %v2426
  %2428 = vmatmul.f32.gmra.mxu0 %v428
  %v2429 = vpop.f32.mrf.mxu0
  %v2430 = vadd.f32 %v2221, %v2429
  %2431 = vmatmul.f32.gmra.mxu0 %v430
  %v2432 = vpop.f32.mrf.mxu0
  %v2433 = vadd.f32 %v2224, %v2432
  %2434 = vmatmul.f32.gmra.mxu0 %v431
  %v2435 = vpop.f32.mrf.mxu0
  %v2436 = vadd.f32 %v2227, %v2435
  %2437 = vmatmul.f32.gmra.mxu0 %v433
  %v2438 = vpop.f32.mrf.mxu0
  %v2439 = vadd.f32 %v2230, %v2438
  %2440 = vmatmul.f32.gmra.mxu0 %v434
  %v2441 = vpop.f32.mrf.mxu0
  %v2442 = vadd.f32 %v2233, %v2441
  %2443 = vmatmul.f32.gmra.mxu0 %v436
  %v2444 = vpop.f32.mrf.mxu0
  %v2445 = vadd.f32 %v2236, %v2444
  %2446 = vmatmul.f32.gmra.mxu0 %v437
  %v2447 = vpop.f32.mrf.mxu0
  %v2448 = vadd.f32 %v2239, %v2447
  %2449 = vmatmul.f32.gmra.mxu0 %v439
  %v2450 = vpop.f32.mrf.mxu0
  %v2451 = vadd.f32 %v2242, %v2450
  %2452 = vmatmul.f32.gmra.mxu0 %v440
  %v2453 = vpop.f32.mrf.mxu0
  %v2454 = vadd.f32 %v2245, %v2453
  %2455 = vmatmul.f32.gmra.mxu0 %v442
  %v2456 = vpop.f32.mrf.mxu0
  %v2457 = vadd.f32 %v2248, %v2456
  %2458 = vmatmul.f32.gmra.mxu0 %v443
  %v2459 = vpop.f32.mrf.mxu0
  %v2460 = vadd.f32 %v2251, %v2459
  %2461 = vmatmul.f32.gmra.mxu0 %v445
  %v2462 = vpop.f32.mrf.mxu0
  %v2463 = vadd.f32 %v2254, %v2462
  %2464 = vmatmul.f32.gmra.mxu0 %v446
  %v2465 = vpop.f32.mrf.mxu0
  %v2466 = vadd.f32 %v2257, %v2465
  %2467 = vmatmul.f32.gmra.mxu0 %v448
  %v2468 = vpop.f32.mrf.mxu0
  %v2469 = vadd.f32 %v2260, %v2468
  %2470 = vmatmul.f32.gmra.mxu0 %v449
  %v2471 = vpop.f32.mrf.mxu0
  %v2472 = vadd.f32 %v2263, %v2471
  %2473 = vmatmul.f32.gmra.mxu0 %v451
  %v2474 = vpop.f32.mrf.mxu0
  %v2475 = vadd.f32 %v2266, %v2474
  %2476 = vmatmul.f32.gmra.mxu0 %v452
  %v2477 = vpop.f32.mrf.mxu0
  %v2478 = vadd.f32 %v2269, %v2477
  %2479 = vmatmul.f32.gmra.mxu0 %v454
  %v2480 = vpop.f32.mrf.mxu0
  %v2481 = vadd.f32 %v2272, %v2480
  %2482 = vmatmul.f32.gmra.mxu0 %v455
  %v2483 = vpop.f32.mrf.mxu0
  %v2484 = vadd.f32 %v2275, %v2483
  %2485 = vmatmul.f32.gmra.mxu0 %v457
  %v2486 = vpop.f32.mrf.mxu0
  %v2487 = vadd.f32 %v2278, %v2486
  %2488 = vmatmul.f32.gmra.mxu0 %v458
  %v2489 = vpop.f32.mrf.mxu0
  %v2490 = vadd.f32 %v2281, %v2489
  %2491 = vmatmul.f32.gmra.mxu0 %v460
  %v2492 = vpop.f32.mrf.mxu0
  %v2493 = vadd.f32 %v2284, %v2492
  %2494 = vmatmul.f32.gmra.mxu0 %v461
  %v2495 = vpop.f32.mrf.mxu0
  %v2496 = vadd.f32 %v2287, %v2495
  %2497 = vmatmul.f32.gmra.mxu0 %v469
  %v2498 = vpop.f32.mrf.mxu0
  %v2499 = vadd.f32 %v2290, %v2498
  %2500 = vmatmul.f32.gmra.mxu0 %v470
  %v2501 = vpop.f32.mrf.mxu0
  %v2502 = vadd.f32 %v2293, %v2501
  %2503 = vmatmul.f32.gmra.mxu0 %v472
  %v2504 = vpop.f32.mrf.mxu0
  %v2505 = vadd.f32 %v2296, %v2504
  %2506 = vmatmul.f32.gmra.mxu0 %v473
  %v2507 = vpop.f32.mrf.mxu0
  %v2508 = vadd.f32 %v2299, %v2507
  %2509 = vmatmul.f32.gmra.mxu0 %v475
  %v2510 = vpop.f32.mrf.mxu0
  %v2511 = vadd.f32 %v2302, %v2510
  %2512 = vmatmul.f32.gmra.mxu0 %v476
  %v2513 = vpop.f32.mrf.mxu0
  %v2514 = vadd.f32 %v2305, %v2513
  %2515 = vmatmul.f32.gmra.mxu0 %v478
  %v2516 = vpop.f32.mrf.mxu0
  %v2517 = vadd.f32 %v2308, %v2516
  %2518 = vmatmul.f32.gmra.mxu0 %v479
  %v2519 = vpop.f32.mrf.mxu0
  %v2520 = vadd.f32 %v2311, %v2519
  %2521 = vmatmul.f32.gmra.mxu0 %v481
  %v2522 = vpop.f32.mrf.mxu0
  %v2523 = vadd.f32 %v2314, %v2522
  %2524 = vmatmul.f32.gmra.mxu0 %v482
  %v2525 = vpop.f32.mrf.mxu0
  %v2526 = vadd.f32 %v2317, %v2525
  %2527 = vmatmul.f32.gmra.mxu0 %v484
  %v2528 = vpop.f32.mrf.mxu0
  %v2529 = vadd.f32 %v2320, %v2528
  %2530 = vmatmul.f32.gmra.mxu0 %v485
  %v2531 = vpop.f32.mrf.mxu0
  %v2532 = vadd.f32 %v2323, %v2531
  %2533 = vmatmul.f32.gmra.mxu0 %v487
  %v2534 = vpop.f32.mrf.mxu0
  %v2535 = vadd.f32 %v2326, %v2534
  %2536 = vmatmul.f32.gmra.mxu0 %v488
  %v2537 = vpop.f32.mrf.mxu0
  %v2538 = vadd.f32 %v2329, %v2537
  %2539 = vmatmul.f32.gmra.mxu0 %v490
  %v2540 = vpop.f32.mrf.mxu0
  %v2541 = vadd.f32 %v2332, %v2540
  %2542 = vmatmul.f32.gmra.mxu0 %v491
  %v2543 = vpop.f32.mrf.mxu0
  %v2544 = vadd.f32 %v2335, %v2543
  %2545 = vmatmul.f32.gmra.mxu0 %v493
  %v2546 = vpop.f32.mrf.mxu0
  %v2547 = vadd.f32 %v2338, %v2546
  %2548 = vmatmul.f32.gmra.mxu0 %v494
  %v2549 = vpop.f32.mrf.mxu0
  %v2550 = vadd.f32 %v2341, %v2549
  %2551 = vmatmul.f32.gmra.mxu0 %v496
  %v2552 = vpop.f32.mrf.mxu0
  %v2553 = vadd.f32 %v2344, %v2552
  %2554 = vmatmul.f32.gmra.mxu0 %v497
  %v2555 = vpop.f32.mrf.mxu0
  %v2556 = vadd.f32 %v2347, %v2555
  %2557 = vmatmul.f32.gmra.mxu0 %v499
  %v2558 = vpop.f32.mrf.mxu0
  %v2559 = vadd.f32 %v2350, %v2558
  %2560 = vmatmul.f32.gmra.mxu0 %v500
  %v2561 = vpop.f32.mrf.mxu0
  %v2562 = vadd.f32 %v2353, %v2561
  %2563 = vmatmul.f32.gmra.mxu0 %v502
  %v2564 = vpop.f32.mrf.mxu0
  %v2565 = vadd.f32 %v2356, %v2564
  %2566 = vmatmul.f32.gmra.mxu0 %v503
  %v2567 = vpop.f32.mrf.mxu0
  %v2568 = vadd.f32 %v2359, %v2567
  %2569 = vmatmul.f32.gmra.mxu0 %v505
  %v2570 = vpop.f32.mrf.mxu0
  %v2571 = vadd.f32 %v2362, %v2570
  %2572 = vmatmul.f32.gmra.mxu0 %v506
  %v2573 = vpop.f32.mrf.mxu0
  %v2574 = vadd.f32 %v2365, %v2573
  %2575 = vmatmul.f32.gmra.mxu0 %v508
  %v2576 = vpop.f32.mrf.mxu0
  %v2577 = vadd.f32 %v2368, %v2576
  %2578 = vmatmul.f32.gmra.mxu0 %v509
  %v2579 = vpop.f32.mrf.mxu0
  %v2580 = vadd.f32 %v2371, %v2579
  %2581 = vmatmul.f32.gmra.mxu0 %v511
  %v2582 = vpop.f32.mrf.mxu0
  %v2583 = vadd.f32 %v2374, %v2582
  %2584 = vmatmul.f32.gmra.mxu0 %v512
  %v2585 = vpop.f32.mrf.mxu0
  %v2586 = vadd.f32 %v2377, %v2585
  %2587 = vmatmul.f32.gmra.mxu0 %v514
  %v2588 = vpop.f32.mrf.mxu0
  %v2589 = vadd.f32 %v2380, %v2588
  %2590 = vmatmul.f32.gmra.mxu0 %v515
  %v2591 = vpop.f32.mrf.mxu0
  %v2592 = vadd.f32 %v2383, %v2591
  %2593 = vdwg.mxu0
  %2594 = vmatpush.msra.mxu0 %v390
  %2595 = vmatpush.msra.mxu0 %v389
  %2596 = vmatpush.msra.mxu0 %v388
  %2597 = vmatpush.msra.mxu0 %v387
  %2598 = vmatpush.msra.mxu0 %v386
  %2599 = vmatpush.msra.mxu0 %v385
  %2600 = vmatpush.msra.mxu0 %v384
  %2601 = vmatpush.msra.mxu0 %v383
  %2602 = vmatpush.msra.mxu0 %v382
  %2603 = vmatpush.msra.mxu0 %v381
  %2604 = vmatpush.msra.mxu0 %v380
  %2605 = vmatpush.msra.mxu0 %v379
  %2606 = vmatpush.msra.mxu0 %v378
  %2607 = vmatpush.msra.mxu0 %v377
  %2608 = vmatpush.msra.mxu0 %v376
  %2609 = vmatpush.msra.mxu0 %v375
  %2610 = vmatmul.f32.gmra.mxu0 %v626
  %v2611 = vpop.f32.mrf.mxu0
  %v2612 = vadd.f32 %v2403, %v2611
  %2613 = vmatmul.f32.gmra.mxu0 %v628
  %v2614 = vpop.f32.mrf.mxu0
  %v2615 = vadd.f32 %v2406, %v2614
  %2616 = vmatmul.f32.gmra.mxu0 %v631
  %v2617 = vpop.f32.mrf.mxu0
  %v2618 = vadd.f32 %v2409, %v2617
  %2619 = vmatmul.f32.gmra.mxu0 %v633
  %v2620 = vpop.f32.mrf.mxu0
  %v2621 = vadd.f32 %v2412, %v2620
  %2622 = vmatmul.f32.gmra.mxu0 %v636
  %v2623 = vpop.f32.mrf.mxu0
  %v2624 = vadd.f32 %v2415, %v2623
  %2625 = vmatmul.f32.gmra.mxu0 %v638
  %v2626 = vpop.f32.mrf.mxu0
  %v2627 = vadd.f32 %v2418, %v2626
  %2628 = vmatmul.f32.gmra.mxu0 %v641
  %v2629 = vpop.f32.mrf.mxu0
  %v2630 = vadd.f32 %v2421, %v2629
  %2631 = vmatmul.f32.gmra.mxu0 %v643
  %v2632 = vpop.f32.mrf.mxu0
  %v2633 = vadd.f32 %v2424, %v2632
  %2634 = vmatmul.f32.gmra.mxu0 %v646
  %v2635 = vpop.f32.mrf.mxu0
  %v2636 = vadd.f32 %v2427, %v2635
  %2637 = vmatmul.f32.gmra.mxu0 %v648
  %v2638 = vpop.f32.mrf.mxu0
  %v2639 = vadd.f32 %v2430, %v2638
  %2640 = vmatmul.f32.gmra.mxu0 %v651
  %v2641 = vpop.f32.mrf.mxu0
  %v2642 = vadd.f32 %v2433, %v2641
  %2643 = vmatmul.f32.gmra.mxu0 %v653
  %v2644 = vpop.f32.mrf.mxu0
  %v2645 = vadd.f32 %v2436, %v2644
  %2646 = vmatmul.f32.gmra.mxu0 %v656
  %v2647 = vpop.f32.mrf.mxu0
  %v2648 = vadd.f32 %v2439, %v2647
  %2649 = vmatmul.f32.gmra.mxu0 %v658
  %v2650 = vpop.f32.mrf.mxu0
  %v2651 = vadd.f32 %v2442, %v2650
  %2652 = vmatmul.f32.gmra.mxu0 %v661
  %v2653 = vpop.f32.mrf.mxu0
  %v2654 = vadd.f32 %v2445, %v2653
  %2655 = vmatmul.f32.gmra.mxu0 %v663
  %v2656 = vpop.f32.mrf.mxu0
  %v2657 = vadd.f32 %v2448, %v2656
  %2658 = vmatmul.f32.gmra.mxu0 %v666
  %v2659 = vpop.f32.mrf.mxu0
  %v2660 = vadd.f32 %v2451, %v2659
  %2661 = vmatmul.f32.gmra.mxu0 %v668
  %v2662 = vpop.f32.mrf.mxu0
  %v2663 = vadd.f32 %v2454, %v2662
  %2664 = vmatmul.f32.gmra.mxu0 %v671
  %v2665 = vpop.f32.mrf.mxu0
  %v2666 = vadd.f32 %v2457, %v2665
  %2667 = vmatmul.f32.gmra.mxu0 %v673
  %v2668 = vpop.f32.mrf.mxu0
  %v2669 = vadd.f32 %v2460, %v2668
  %2670 = vmatmul.f32.gmra.mxu0 %v676
  %v2671 = vpop.f32.mrf.mxu0
  %v2672 = vadd.f32 %v2463, %v2671
  %2673 = vmatmul.f32.gmra.mxu0 %v678
  %v2674 = vpop.f32.mrf.mxu0
  %v2675 = vadd.f32 %v2466, %v2674
  %2676 = vmatmul.f32.gmra.mxu0 %v681
  %v2677 = vpop.f32.mrf.mxu0
  %v2678 = vadd.f32 %v2469, %v2677
  %2679 = vmatmul.f32.gmra.mxu0 %v683
  %v2680 = vpop.f32.mrf.mxu0
  %v2681 = vadd.f32 %v2472, %v2680
  %2682 = vmatmul.f32.gmra.mxu0 %v686
  %v2683 = vpop.f32.mrf.mxu0
  %v2684 = vadd.f32 %v2475, %v2683
  %2685 = vmatmul.f32.gmra.mxu0 %v688
  %v2686 = vpop.f32.mrf.mxu0
  %v2687 = vadd.f32 %v2478, %v2686
  %2688 = vmatmul.f32.gmra.mxu0 %v691
  %v2689 = vpop.f32.mrf.mxu0
  %v2690 = vadd.f32 %v2481, %v2689
  %2691 = vmatmul.f32.gmra.mxu0 %v693
  %v2692 = vpop.f32.mrf.mxu0
  %v2693 = vadd.f32 %v2484, %v2692
  %2694 = vmatmul.f32.gmra.mxu0 %v1071
  %v2695 = vpop.f32.mrf.mxu0
  %v2696 = vadd.f32 %v2487, %v2695
  %2697 = vmatmul.f32.gmra.mxu0 %v1073
  %v2698 = vpop.f32.mrf.mxu0
  %v2699 = vadd.f32 %v2490, %v2698
  %2700 = vmatmul.f32.gmra.mxu0 %v1105
  %v2701 = vpop.f32.mrf.mxu0
  %v2702 = vadd.f32 %v2493, %v2701
  %2703 = vmatmul.f32.gmra.mxu0 %v1107
  %v2704 = vpop.f32.mrf.mxu0
  %v2705 = vadd.f32 %v2496, %v2704
  %2706 = vmatmul.f32.gmra.mxu0 %v706
  %v2707 = vpop.f32.mrf.mxu0
  %v2708 = vadd.f32 %v2499, %v2707
  %2709 = vmatmul.f32.gmra.mxu0 %v708
  %v2710 = vpop.f32.mrf.mxu0
  %v2711 = vadd.f32 %v2502, %v2710
  %2712 = vmatmul.f32.gmra.mxu0 %v711
  %v2713 = vpop.f32.mrf.mxu0
  %v2714 = vadd.f32 %v2505, %v2713
  %2715 = vmatmul.f32.gmra.mxu0 %v713
  %v2716 = vpop.f32.mrf.mxu0
  %v2717 = vadd.f32 %v2508, %v2716
  %2718 = vmatmul.f32.gmra.mxu0 %v716
  %v2719 = vpop.f32.mrf.mxu0
  %v2720 = vadd.f32 %v2511, %v2719
  %2721 = vmatmul.f32.gmra.mxu0 %v718
  %v2722 = vpop.f32.mrf.mxu0
  %v2723 = vadd.f32 %v2514, %v2722
  %2724 = vmatmul.f32.gmra.mxu0 %v721
  %v2725 = vpop.f32.mrf.mxu0
  %v2726 = vadd.f32 %v2517, %v2725
  %2727 = vmatmul.f32.gmra.mxu0 %v723
  %v2728 = vpop.f32.mrf.mxu0
  %v2729 = vadd.f32 %v2520, %v2728
  %2730 = vmatmul.f32.gmra.mxu0 %v726
  %v2731 = vpop.f32.mrf.mxu0
  %v2732 = vadd.f32 %v2523, %v2731
  %2733 = vmatmul.f32.gmra.mxu0 %v728
  %v2734 = vpop.f32.mrf.mxu0
  %v2735 = vadd.f32 %v2526, %v2734
  %2736 = vmatmul.f32.gmra.mxu0 %v731
  %v2737 = vpop.f32.mrf.mxu0
  %v2738 = vadd.f32 %v2529, %v2737
  %2739 = vmatmul.f32.gmra.mxu0 %v733
  %v2740 = vpop.f32.mrf.mxu0
  %v2741 = vadd.f32 %v2532, %v2740
  %2742 = vmatmul.f32.gmra.mxu0 %v736
  %v2743 = vpop.f32.mrf.mxu0
  %v2744 = vadd.f32 %v2535, %v2743
  %2745 = vmatmul.f32.gmra.mxu0 %v738
  %v2746 = vpop.f32.mrf.mxu0
  %v2747 = vadd.f32 %v2538, %v2746
  %2748 = vmatmul.f32.gmra.mxu0 %v741
  %v2749 = vpop.f32.mrf.mxu0
  %v2750 = vadd.f32 %v2541, %v2749
  %2751 = vmatmul.f32.gmra.mxu0 %v743
  %v2752 = vpop.f32.mrf.mxu0
  %v2753 = vadd.f32 %v2544, %v2752
  %2754 = vmatmul.f32.gmra.mxu0 %v746
  %v2755 = vpop.f32.mrf.mxu0
  %v2756 = vadd.f32 %v2547, %v2755
  %2757 = vmatmul.f32.gmra.mxu0 %v748
  %v2758 = vpop.f32.mrf.mxu0
  %v2759 = vadd.f32 %v2550, %v2758
  %2760 = vmatmul.f32.gmra.mxu0 %v751
  %v2761 = vpop.f32.mrf.mxu0
  %v2762 = vadd.f32 %v2553, %v2761
  %2763 = vmatmul.f32.gmra.mxu0 %v753
  %v2764 = vpop.f32.mrf.mxu0
  %v2765 = vadd.f32 %v2556, %v2764
  %2766 = vmatmul.f32.gmra.mxu0 %v756
  %v2767 = vpop.f32.mrf.mxu0
  %v2768 = vadd.f32 %v2559, %v2767
  %2769 = vmatmul.f32.gmra.mxu0 %v758
  %v2770 = vpop.f32.mrf.mxu0
  %v2771 = vadd.f32 %v2562, %v2770
  %2772 = vmatmul.f32.gmra.mxu0 %v761
  %v2773 = vpop.f32.mrf.mxu0
  %v2774 = vadd.f32 %v2565, %v2773
  %2775 = vmatmul.f32.gmra.mxu0 %v763
  %v2776 = vpop.f32.mrf.mxu0
  %v2777 = vadd.f32 %v2568, %v2776
  %2778 = vmatmul.f32.gmra.mxu0 %v766
  %v2779 = vpop.f32.mrf.mxu0
  %v2780 = vadd.f32 %v2571, %v2779
  %2781 = vmatmul.f32.gmra.mxu0 %v768
  %v2782 = vpop.f32.mrf.mxu0
  %v2783 = vadd.f32 %v2574, %v2782
  %2784 = vmatmul.f32.gmra.mxu0 %v771
  %v2785 = vpop.f32.mrf.mxu0
  %v2786 = vadd.f32 %v2577, %v2785
  %2787 = vmatmul.f32.gmra.mxu0 %v773
  %v2788 = vpop.f32.mrf.mxu0
  %v2789 = vadd.f32 %v2580, %v2788
  %2790 = vmatmul.f32.gmra.mxu0 %v1076
  %v2791 = vpop.f32.mrf.mxu0
  %v2792 = vadd.f32 %v2583, %v2791
  %2793 = vmatmul.f32.gmra.mxu0 %v1078
  %v2794 = vpop.f32.mrf.mxu0
  %v2795 = vadd.f32 %v2586, %v2794
  %2796 = vmatmul.f32.gmra.mxu0 %v1110
  %v2797 = vpop.f32.mrf.mxu0
  %v2798 = vadd.f32 %v2589, %v2797
  %2799 = vmatmul.f32.gmra.mxu0 %v1112
  %v2800 = vpop.f32.mrf.mxu0
  %v2801 = vadd.f32 %v2592, %v2800
  %2802 = vdwg.mxu0
  %2803 = vmatpush.msra.mxu0 %v406
  %2804 = vmatpush.msra.mxu0 %v405
  %2805 = vmatpush.msra.mxu0 %v404
  %2806 = vmatpush.msra.mxu0 %v403
  %2807 = vmatpush.msra.mxu0 %v402
  %2808 = vmatpush.msra.mxu0 %v401
  %2809 = vmatpush.msra.mxu0 %v400
  %2810 = vmatpush.msra.mxu0 %v399
  %2811 = vmatpush.msra.mxu0 %v398
  %2812 = vmatpush.msra.mxu0 %v397
  %2813 = vmatpush.msra.mxu0 %v396
  %2814 = vmatpush.msra.mxu0 %v395
  %2815 = vmatpush.msra.mxu0 %v394
  %2816 = vmatpush.msra.mxu0 %v393
  %2817 = vmatpush.msra.mxu0 %v392
  %2818 = vmatpush.msra.mxu0 %v391
  %2819 = vmatmul.f32.gmra.mxu0 %v851
  %v2820 = vpop.f32.mrf.mxu0
  %v2821 = vadd.f32 %v2612, %v2820
  %2822 = vmatmul.f32.gmra.mxu0 %v853
  %v2823 = vpop.f32.mrf.mxu0
  %v2824 = vadd.f32 %v2615, %v2823
  %2825 = vmatmul.f32.gmra.mxu0 %v856
  %v2826 = vpop.f32.mrf.mxu0
  %v2827 = vadd.f32 %v2618, %v2826
  %2828 = vmatmul.f32.gmra.mxu0 %v858
  %v2829 = vpop.f32.mrf.mxu0
  %v2830 = vadd.f32 %v2621, %v2829
  %2831 = vmatmul.f32.gmra.mxu0 %v861
  %v2832 = vpop.f32.mrf.mxu0
  %v2833 = vadd.f32 %v2624, %v2832
  %2834 = vmatmul.f32.gmra.mxu0 %v863
  %v2835 = vpop.f32.mrf.mxu0
  %v2836 = vadd.f32 %v2627, %v2835
  %2837 = vmatmul.f32.gmra.mxu0 %v866
  %v2838 = vpop.f32.mrf.mxu0
  %v2839 = vadd.f32 %v2630, %v2838
  %2840 = vmatmul.f32.gmra.mxu0 %v868
  %v2841 = vpop.f32.mrf.mxu0
  %v2842 = vadd.f32 %v2633, %v2841
  %2843 = vmatmul.f32.gmra.mxu0 %v871
  %v2844 = vpop.f32.mrf.mxu0
  %v2845 = vadd.f32 %v2636, %v2844
  %2846 = vmatmul.f32.gmra.mxu0 %v873
  %v2847 = vpop.f32.mrf.mxu0
  %v2848 = vadd.f32 %v2639, %v2847
  %2849 = vmatmul.f32.gmra.mxu0 %v876
  %v2850 = vpop.f32.mrf.mxu0
  %v2851 = vadd.f32 %v2642, %v2850
  %2852 = vmatmul.f32.gmra.mxu0 %v878
  %v2853 = vpop.f32.mrf.mxu0
  %v2854 = vadd.f32 %v2645, %v2853
  %2855 = vmatmul.f32.gmra.mxu0 %v881
  %v2856 = vpop.f32.mrf.mxu0
  %v2857 = vadd.f32 %v2648, %v2856
  %2858 = vmatmul.f32.gmra.mxu0 %v883
  %v2859 = vpop.f32.mrf.mxu0
  %v2860 = vadd.f32 %v2651, %v2859
  %2861 = vmatmul.f32.gmra.mxu0 %v886
  %v2862 = vpop.f32.mrf.mxu0
  %v2863 = vadd.f32 %v2654, %v2862
  %2864 = vmatmul.f32.gmra.mxu0 %v888
  %v2865 = vpop.f32.mrf.mxu0
  %v2866 = vadd.f32 %v2657, %v2865
  %2867 = vmatmul.f32.gmra.mxu0 %v891
  %v2868 = vpop.f32.mrf.mxu0
  %v2869 = vadd.f32 %v2660, %v2868
  %2870 = vmatmul.f32.gmra.mxu0 %v893
  %v2871 = vpop.f32.mrf.mxu0
  %v2872 = vadd.f32 %v2663, %v2871
  %2873 = vmatmul.f32.gmra.mxu0 %v896
  %v2874 = vpop.f32.mrf.mxu0
  %v2875 = vadd.f32 %v2666, %v2874
  %2876 = vmatmul.f32.gmra.mxu0 %v898
  %v2877 = vpop.f32.mrf.mxu0
  %v2878 = vadd.f32 %v2669, %v2877
  %2879 = vmatmul.f32.gmra.mxu0 %v901
  %v2880 = vpop.f32.mrf.mxu0
  %v2881 = vadd.f32 %v2672, %v2880
  %2882 = vmatmul.f32.gmra.mxu0 %v903
  %v2883 = vpop.f32.mrf.mxu0
  %v2884 = vadd.f32 %v2675, %v2883
  %2885 = vmatmul.f32.gmra.mxu0 %v906
  %v2886 = vpop.f32.mrf.mxu0
  %v2887 = vadd.f32 %v2678, %v2886
  %2888 = vmatmul.f32.gmra.mxu0 %v908
  %v2889 = vpop.f32.mrf.mxu0
  %v2890 = vadd.f32 %v2681, %v2889
  %2891 = vmatmul.f32.gmra.mxu0 %v911
  %v2892 = vpop.f32.mrf.mxu0
  %v2893 = vadd.f32 %v2684, %v2892
  %2894 = vmatmul.f32.gmra.mxu0 %v913
  %v2895 = vpop.f32.mrf.mxu0
  %v2896 = vadd.f32 %v2687, %v2895
  %2897 = vmatmul.f32.gmra.mxu0 %v916
  %v2898 = vpop.f32.mrf.mxu0
  %v2899 = vadd.f32 %v2690, %v2898
  %2900 = vmatmul.f32.gmra.mxu0 %v918
  %v2901 = vpop.f32.mrf.mxu0
  %v2902 = vadd.f32 %v2693, %v2901
  %2903 = vmatmul.f32.gmra.mxu0 %v1085
  %v2904 = vpop.f32.mrf.mxu0
  %v2905 = vadd.f32 %v2696, %v2904
  %2906 = vmatmul.f32.gmra.mxu0 %v1087
  %v2907 = vpop.f32.mrf.mxu0
  %v2908 = vadd.f32 %v2699, %v2907
  %2909 = vmatmul.f32.gmra.mxu0 %v1119
  %v2910 = vpop.f32.mrf.mxu0
  %v2911 = vadd.f32 %v2702, %v2910
  %2912 = vmatmul.f32.gmra.mxu0 %v1121
  %v2913 = vpop.f32.mrf.mxu0
  %v2914 = vadd.f32 %v2705, %v2913
  %2915 = vmatmul.f32.gmra.mxu0 %v931
  %v2916 = vpop.f32.mrf.mxu0
  %v2917 = vadd.f32 %v2708, %v2916
  %2918 = vmatmul.f32.gmra.mxu0 %v933
  %v2919 = vpop.f32.mrf.mxu0
  %v2920 = vadd.f32 %v2711, %v2919
  %2921 = vmatmul.f32.gmra.mxu0 %v936
  %v2922 = vpop.f32.mrf.mxu0
  %v2923 = vadd.f32 %v2714, %v2922
  %2924 = vmatmul.f32.gmra.mxu0 %v938
  %v2925 = vpop.f32.mrf.mxu0
  %v2926 = vadd.f32 %v2717, %v2925
  %2927 = vmatmul.f32.gmra.mxu0 %v941
  %v2928 = vpop.f32.mrf.mxu0
  %v2929 = vadd.f32 %v2720, %v2928
  %2930 = vmatmul.f32.gmra.mxu0 %v943
  %v2931 = vpop.f32.mrf.mxu0
  %v2932 = vadd.f32 %v2723, %v2931
  %2933 = vmatmul.f32.gmra.mxu0 %v946
  %v2934 = vpop.f32.mrf.mxu0
  %v2935 = vadd.f32 %v2726, %v2934
  %2936 = vmatmul.f32.gmra.mxu0 %v948
  %v2937 = vpop.f32.mrf.mxu0
  %v2938 = vadd.f32 %v2729, %v2937
  %2939 = vmatmul.f32.gmra.mxu0 %v951
  %v2940 = vpop.f32.mrf.mxu0
  %v2941 = vadd.f32 %v2732, %v2940
  %2942 = vmatmul.f32.gmra.mxu0 %v953
  %v2943 = vpop.f32.mrf.mxu0
  %v2944 = vadd.f32 %v2735, %v2943
  %2945 = vmatmul.f32.gmra.mxu0 %v956
  %v2946 = vpop.f32.mrf.mxu0
  %v2947 = vadd.f32 %v2738, %v2946
  %2948 = vmatmul.f32.gmra.mxu0 %v958
  %v2949 = vpop.f32.mrf.mxu0
  %v2950 = vadd.f32 %v2741, %v2949
  %2951 = vmatmul.f32.gmra.mxu0 %v961
  %v2952 = vpop.f32.mrf.mxu0
  %v2953 = vadd.f32 %v2744, %v2952
  %2954 = vmatmul.f32.gmra.mxu0 %v963
  %v2955 = vpop.f32.mrf.mxu0
  %v2956 = vadd.f32 %v2747, %v2955
  %2957 = vmatmul.f32.gmra.mxu0 %v966
  %v2958 = vpop.f32.mrf.mxu0
  %v2959 = vadd.f32 %v2750, %v2958
  %2960 = vmatmul.f32.gmra.mxu0 %v968
  %v2961 = vpop.f32.mrf.mxu0
  %v2962 = vadd.f32 %v2753, %v2961
  %2963 = vmatmul.f32.gmra.mxu0 %v971
  %v2964 = vpop.f32.mrf.mxu0
  %v2965 = vadd.f32 %v2756, %v2964
  %2966 = vmatmul.f32.gmra.mxu0 %v973
  %v2967 = vpop.f32.mrf.mxu0
  %v2968 = vadd.f32 %v2759, %v2967
  %2969 = vmatmul.f32.gmra.mxu0 %v976
  %v2970 = vpop.f32.mrf.mxu0
  %v2971 = vadd.f32 %v2762, %v2970
  %2972 = vmatmul.f32.gmra.mxu0 %v978
  %v2973 = vpop.f32.mrf.mxu0
  %v2974 = vadd.f32 %v2765, %v2973
  %2975 = vmatmul.f32.gmra.mxu0 %v981
  %v2976 = vpop.f32.mrf.mxu0
  %v2977 = vadd.f32 %v2768, %v2976
  %2978 = vmatmul.f32.gmra.mxu0 %v983
  %v2979 = vpop.f32.mrf.mxu0
  %v2980 = vadd.f32 %v2771, %v2979
  %2981 = vmatmul.f32.gmra.mxu0 %v986
  %v2982 = vpop.f32.mrf.mxu0
  %v2983 = vadd.f32 %v2774, %v2982
  %2984 = vmatmul.f32.gmra.mxu0 %v988
  %v2985 = vpop.f32.mrf.mxu0
  %v2986 = vadd.f32 %v2777, %v2985
  %2987 = vmatmul.f32.gmra.mxu0 %v991
  %v2988 = vpop.f32.mrf.mxu0
  %v2989 = vadd.f32 %v2780, %v2988
  %2990 = vmatmul.f32.gmra.mxu0 %v993
  %v2991 = vpop.f32.mrf.mxu0
  %v2992 = vadd.f32 %v2783, %v2991
  %2993 = vmatmul.f32.gmra.mxu0 %v996
  %v2994 = vpop.f32.mrf.mxu0
  %v2995 = vadd.f32 %v2786, %v2994
  %2996 = vmatmul.f32.gmra.mxu0 %v998
  %v2997 = vpop.f32.mrf.mxu0
  %v2998 = vadd.f32 %v2789, %v2997
  %2999 = vmatmul.f32.gmra.mxu0 %v1090
  %v3000 = vpop.f32.mrf.mxu0
  %v3001 = vadd.f32 %v2792, %v3000
  %3002 = vmatmul.f32.gmra.mxu0 %v1092
  %v3003 = vpop.f32.mrf.mxu0
  %v3004 = vadd.f32 %v2795, %v3003
  %3005 = vmatmul.f32.gmra.mxu0 %v1124
  %v3006 = vpop.f32.mrf.mxu0
  %v3007 = vadd.f32 %v2798, %v3006
  %3008 = vmatmul.f32.gmra.mxu0 %v1126
  %v3009 = vpop.f32.mrf.mxu0
  %v3010 = vadd.f32 %v2801, %v3009
  %3011 = vdwg.mxu0
  %v3012 = vadd.f32 %v2821, %v2824
  %v3013 = vadd.f32 %v3012, %v2827
  %v3014 = vadd.f32 %v3013, %v2830
  %v3015 = vadd.f32 %v3014, %v2833
  %v3016 = vadd.f32 %v3015, %v2836
  %v3017 = vadd.f32 %v3016, %v2839
  %v3018 = vadd.f32 %v3017, %v2842
  %v3019 = vadd.f32 %v3018, %v2845
  %v3020 = vadd.f32 %v3019, %v2848
  %v3021 = vadd.f32 %v3020, %v2851
  %v3022 = vadd.f32 %v3021, %v2854
  %v3023 = vadd.f32 %v3022, %v2857
  %v3024 = vadd.f32 %v3023, %v2860
  %v3025 = vadd.f32 %v3024, %v2863
  %v3026 = vadd.f32 %v3025, %v2866
  %v3027 = vadd.f32 %v3026, %v2869
  %v3028 = vadd.f32 %v3027, %v2872
  %v3029 = vadd.f32 %v3028, %v2875
  %v3030 = vadd.f32 %v3029, %v2878
  %v3031 = vadd.f32 %v3030, %v2881
  %v3032 = vadd.f32 %v3031, %v2884
  %v3033 = vadd.f32 %v3032, %v2887
  %v3034 = vadd.f32 %v3033, %v2890
  %v3035 = vadd.f32 %v3034, %v2893
  %v3036 = vadd.f32 %v3035, %v2896
  %v3037 = vadd.f32 %v3036, %v2899
  %v3038 = vadd.f32 %v3037, %v2902
  %v3039 = vadd.f32 %v3038, %v2905
  %v3040 = vadd.f32 %v3039, %v2908
  %v3041 = vadd.f32 %v3040, %v2911
  %v3042 = vadd.f32 %v3041, %v2914
  %v3043 = vadd.f32 %v3042, %v2917
  %v3044 = vadd.f32 %v3043, %v2920
  %v3045 = vadd.f32 %v3044, %v2923
  %v3046 = vadd.f32 %v3045, %v2926
  %v3047 = vadd.f32 %v3046, %v2929
  %v3048 = vadd.f32 %v3047, %v2932
  %v3049 = vadd.f32 %v3048, %v2935
  %v3050 = vadd.f32 %v3049, %v2938
  %v3051 = vadd.f32 %v3050, %v2941
  %v3052 = vadd.f32 %v3051, %v2944
  %v3053 = vadd.f32 %v3052, %v2947
  %v3054 = vadd.f32 %v3053, %v2950
  %v3055 = vadd.f32 %v3054, %v2953
  %v3056 = vadd.f32 %v3055, %v2956
  %v3057 = vadd.f32 %v3056, %v2959
  %v3058 = vadd.f32 %v3057, %v2962
  %v3059 = vadd.f32 %v3058, %v2965
  %v3060 = vadd.f32 %v3059, %v2968
  %v3061 = vadd.f32 %v3060, %v2971
  %v3062 = vadd.f32 %v3061, %v2974
  %v3063 = vadd.f32 %v3062, %v2977
  %v3064 = vadd.f32 %v3063, %v2980
  %v3065 = vadd.f32 %v3064, %v2983
  %v3066 = vadd.f32 %v3065, %v2986
  %v3067 = vadd.f32 %v3066, %v2989
  %v3068 = vadd.f32 %v3067, %v2992
  %v3069 = vadd.f32 %v3068, %v2995
  %v3070 = vadd.f32 %v3069, %v2998
  %v3071 = vadd.f32 %v3070, %v3001
  %v3072 = vadd.f32 %v3071, %v3004
  %v3073 = vadd.f32 %v3072, %v3007
  %v3074 = vadd.f32 %v3073, %v3010
  %v3075 = vrot.slane %v3074, 4
  %v3076 = vadd.f32 %v3074, %v3075
  %v3077 = vrot.slane %v3076, 2
  %v3078 = vadd.f32 %v3076, %v3077
  %v3079 = vrot.slane %v3078, 1
  %v3080 = vadd.f32 %v3078, %v3079
  %v3081 = vmul.f32 %v2821, %v2821
  %v3082 = vmul.f32 %v2824, %v2824
  %v3083 = vmul.f32 %v2827, %v2827
  %v3084 = vmul.f32 %v2830, %v2830
  %v3085 = vmul.f32 %v2833, %v2833
  %v3086 = vmul.f32 %v2836, %v2836
  %v3087 = vmul.f32 %v2839, %v2839
  %v3088 = vmul.f32 %v2842, %v2842
  %v3089 = vmul.f32 %v2845, %v2845
  %v3090 = vmul.f32 %v2848, %v2848
  %v3091 = vmul.f32 %v2851, %v2851
  %v3092 = vmul.f32 %v2854, %v2854
  %v3093 = vmul.f32 %v2857, %v2857
  %v3094 = vmul.f32 %v2860, %v2860
  %v3095 = vmul.f32 %v2863, %v2863
  %v3096 = vmul.f32 %v2866, %v2866
  %v3097 = vmul.f32 %v2869, %v2869
  %v3098 = vmul.f32 %v2872, %v2872
  %v3099 = vmul.f32 %v2875, %v2875
  %v3100 = vmul.f32 %v2878, %v2878
  %v3101 = vmul.f32 %v2881, %v2881
  %v3102 = vmul.f32 %v2884, %v2884
  %v3103 = vmul.f32 %v2887, %v2887
  %v3104 = vmul.f32 %v2890, %v2890
  %v3105 = vmul.f32 %v2893, %v2893
  %v3106 = vmul.f32 %v2896, %v2896
  %v3107 = vmul.f32 %v2899, %v2899
  %v3108 = vmul.f32 %v2902, %v2902
  %v3109 = vmul.f32 %v2905, %v2905
  %v3110 = vmul.f32 %v2908, %v2908
  %v3111 = vmul.f32 %v2911, %v2911
  %v3112 = vmul.f32 %v2914, %v2914
  %v3113 = vmul.f32 %v2917, %v2917
  %v3114 = vmul.f32 %v2920, %v2920
  %v3115 = vmul.f32 %v2923, %v2923
  %v3116 = vmul.f32 %v2926, %v2926
  %v3117 = vmul.f32 %v2929, %v2929
  %v3118 = vmul.f32 %v2932, %v2932
  %v3119 = vmul.f32 %v2935, %v2935
  %v3120 = vmul.f32 %v2938, %v2938
  %v3121 = vmul.f32 %v2941, %v2941
  %v3122 = vmul.f32 %v2944, %v2944
  %v3123 = vmul.f32 %v2947, %v2947
  %v3124 = vmul.f32 %v2950, %v2950
  %v3125 = vmul.f32 %v2953, %v2953
  %v3126 = vmul.f32 %v2956, %v2956
  %v3127 = vmul.f32 %v2959, %v2959
  %v3128 = vmul.f32 %v2962, %v2962
  %v3129 = vmul.f32 %v2965, %v2965
  %v3130 = vmul.f32 %v2968, %v2968
  %v3131 = vmul.f32 %v2971, %v2971
  %v3132 = vmul.f32 %v2974, %v2974
  %v3133 = vmul.f32 %v2977, %v2977
  %v3134 = vmul.f32 %v2980, %v2980
  %v3135 = vmul.f32 %v2983, %v2983
  %v3136 = vmul.f32 %v2986, %v2986
  %v3137 = vmul.f32 %v2989, %v2989
  %v3138 = vmul.f32 %v2992, %v2992
  %v3139 = vmul.f32 %v2995, %v2995
  %v3140 = vmul.f32 %v2998, %v2998
  %v3141 = vmul.f32 %v3001, %v3001
  %v3142 = vmul.f32 %v3004, %v3004
  %v3143 = vmul.f32 %v3007, %v3007
  %v3144 = vmul.f32 %v3010, %v3010
  %v3145 = vadd.f32 %v3081, %v3082
  %v3146 = vadd.f32 %v3145, %v3083
  %v3147 = vadd.f32 %v3146, %v3084
  %v3148 = vadd.f32 %v3147, %v3085
  %v3149 = vadd.f32 %v3148, %v3086
  %v3150 = vadd.f32 %v3149, %v3087
  %v3151 = vadd.f32 %v3150, %v3088
  %v3152 = vadd.f32 %v3151, %v3089
  %v3153 = vadd.f32 %v3152, %v3090
  %v3154 = vadd.f32 %v3153, %v3091
  %v3155 = vadd.f32 %v3154, %v3092
  %v3156 = vadd.f32 %v3155, %v3093
  %v3157 = vadd.f32 %v3156, %v3094
  %v3158 = vadd.f32 %v3157, %v3095
  %v3159 = vadd.f32 %v3158, %v3096
  %v3160 = vadd.f32 %v3159, %v3097
  %v3161 = vadd.f32 %v3160, %v3098
  %v3162 = vadd.f32 %v3161, %v3099
  %v3163 = vadd.f32 %v3162, %v3100
  %v3164 = vadd.f32 %v3163, %v3101
  %v3165 = vadd.f32 %v3164, %v3102
  %v3166 = vadd.f32 %v3165, %v3103
  %v3167 = vadd.f32 %v3166, %v3104
  %v3168 = vadd.f32 %v3167, %v3105
  %v3169 = vadd.f32 %v3168, %v3106
  %v3170 = vadd.f32 %v3169, %v3107
  %v3171 = vadd.f32 %v3170, %v3108
  %v3172 = vadd.f32 %v3171, %v3109
  %v3173 = vadd.f32 %v3172, %v3110
  %v3174 = vadd.f32 %v3173, %v3111
  %v3175 = vadd.f32 %v3174, %v3112
  %v3176 = vadd.f32 %v3175, %v3113
  %v3177 = vadd.f32 %v3176, %v3114
  %v3178 = vadd.f32 %v3177, %v3115
  %v3179 = vadd.f32 %v3178, %v3116
  %v3180 = vadd.f32 %v3179, %v3117
  %v3181 = vadd.f32 %v3180, %v3118
  %v3182 = vadd.f32 %v3181, %v3119
  %v3183 = vadd.f32 %v3182, %v3120
  %v3184 = vadd.f32 %v3183, %v3121
  %v3185 = vadd.f32 %v3184, %v3122
  %v3186 = vadd.f32 %v3185, %v3123
  %v3187 = vadd.f32 %v3186, %v3124
  %v3188 = vadd.f32 %v3187, %v3125
  %v3189 = vadd.f32 %v3188, %v3126
  %v3190 = vadd.f32 %v3189, %v3127
  %v3191 = vadd.f32 %v3190, %v3128
  %v3192 = vadd.f32 %v3191, %v3129
  %v3193 = vadd.f32 %v3192, %v3130
  %v3194 = vadd.f32 %v3193, %v3131
  %v3195 = vadd.f32 %v3194, %v3132
  %v3196 = vadd.f32 %v3195, %v3133
  %v3197 = vadd.f32 %v3196, %v3134
  %v3198 = vadd.f32 %v3197, %v3135
  %v3199 = vadd.f32 %v3198, %v3136
  %v3200 = vadd.f32 %v3199, %v3137
  %v3201 = vadd.f32 %v3200, %v3138
  %v3202 = vadd.f32 %v3201, %v3139
  %v3203 = vadd.f32 %v3202, %v3140
  %v3204 = vadd.f32 %v3203, %v3141
  %v3205 = vadd.f32 %v3204, %v3142
  %v3206 = vadd.f32 %v3205, %v3143
  %v3207 = vadd.f32 %v3206, %v3144
  %v3208 = vrot.slane %v3207, 4
  %v3209 = vadd.f32 %v3207, %v3208
  %v3210 = vrot.slane %v3209, 2
  %v3211 = vadd.f32 %v3209, %v3210
  %v3212 = vrot.slane %v3211, 1
  %v3213 = vadd.f32 %v3211, %v3212
  %v3214 = vmul.f32 %v3080, 0.001953125
  %v3215 = vmul.f32 %v3213, 0.001953125
  %v3216 = vmul.f32 %v3214, %v3214
  %v3217 = vsub.f32 %v3215, %v3216
  %v3218 = vadd.f32 %v3217, 1e-05
  %v3219 = vrsqrt.pop %v3218
  %v3220 = vmul.f32 %v3219, %v3218
  %v3221 = vmul.f32 %v3220, %v3219
  %v3222 = vmul.f32 0.5, %v3221
  %v3223 = vsub.f32 1.5, %v3222
  %v3224 = vmul.f32 %v3219, %v3223
  %vm3225 = vweird.f32 %v3218
  %vm3226 = vweird.f32 %v3219
  %vm3227 = vmor %vm3225, %vm3226
  %v3228 = vsel %vm3227, %v3219, %v3224
  %v3229 = vmul.f32 %v407, %v3228
  %v3230 = vmul.f32 %v3214, %v3229
  %v3231 = vsub.f32 %v408, %v3230
  %v3233 = vperm.slane %v3229, 0
  %v3235 = vmul.f32 %v2821, %v3233
  %v3236 = vmul.f32 %v2824, %v3233
  %v3237 = vmul.f32 %v2827, %v3233
  %v3238 = vmul.f32 %v2830, %v3233
  %v3239 = vmul.f32 %v2833, %v3233
  %v3240 = vmul.f32 %v2836, %v3233
  %v3241 = vmul.f32 %v2839, %v3233
  %v3242 = vmul.f32 %v2842, %v3233
  %v3243 = vmul.f32 %v2845, %v3233
  %v3244 = vmul.f32 %v2848, %v3233
  %v3245 = vmul.f32 %v2851, %v3233
  %v3246 = vmul.f32 %v2854, %v3233
  %v3247 = vmul.f32 %v2857, %v3233
  %v3248 = vmul.f32 %v2860, %v3233
  %v3249 = vmul.f32 %v2863, %v3233
  %v3250 = vmul.f32 %v2866, %v3233
  %v3251 = vmul.f32 %v2869, %v3233
  %v3252 = vmul.f32 %v2872, %v3233
  %v3253 = vmul.f32 %v2875, %v3233
  %v3254 = vmul.f32 %v2878, %v3233
  %v3255 = vmul.f32 %v2881, %v3233
  %v3256 = vmul.f32 %v2884, %v3233
  %v3257 = vmul.f32 %v2887, %v3233
  %v3258 = vmul.f32 %v2890, %v3233
  %v3259 = vmul.f32 %v2893, %v3233
  %v3260 = vmul.f32 %v2896, %v3233
  %v3261 = vmul.f32 %v2899, %v3233
  %v3262 = vmul.f32 %v2902, %v3233
  %v3263 = vmul.f32 %v2905, %v3233
  %v3264 = vmul.f32 %v2908, %v3233
  %v3265 = vmul.f32 %v2911, %v3233
  %v3266 = vmul.f32 %v2914, %v3233
  %v3267 = vmul.f32 %v2917, %v3233
  %v3268 = vmul.f32 %v2920, %v3233
  %v3269 = vmul.f32 %v2923, %v3233
  %v3270 = vmul.f32 %v2926, %v3233
  %v3271 = vmul.f32 %v2929, %v3233
  %v3272 = vmul.f32 %v2932, %v3233
  %v3273 = vmul.f32 %v2935, %v3233
  %v3274 = vmul.f32 %v2938, %v3233
  %v3275 = vmul.f32 %v2941, %v3233
  %v3276 = vmul.f32 %v2944, %v3233
  %v3277 = vmul.f32 %v2947, %v3233
  %v3278 = vmul.f32 %v2950, %v3233
  %v3279 = vmul.f32 %v2953, %v3233
  %v3280 = vmul.f32 %v2956, %v3233
  %v3281 = vmul.f32 %v2959, %v3233
  %v3282 = vmul.f32 %v2962, %v3233
  %v3283 = vmul.f32 %v2965, %v3233
  %v3284 = vmul.f32 %v2968, %v3233
  %v3285 = vmul.f32 %v2971, %v3233
  %v3286 = vmul.f32 %v2974, %v3233
  %v3287 = vmul.f32 %v2977, %v3233
  %v3288 = vmul.f32 %v2980, %v3233
  %v3289 = vmul.f32 %v2983, %v3233
  %v3290 = vmul.f32 %v2986, %v3233
  %v3291 = vmul.f32 %v2989, %v3233
  %v3292 = vmul.f32 %v2992, %v3233
  %v3293 = vmul.f32 %v2995, %v3233
  %v3294 = vmul.f32 %v2998, %v3233
  %v3295 = vmul.f32 %v3001, %v3233
  %v3296 = vmul.f32 %v3004, %v3233
  %v3297 = vmul.f32 %v3007, %v3233
  %v3298 = vmul.f32 %v3010, %v3233
  %v3300 = vperm.slane %v3231, 0
  %v3302 = vadd.f32 %v3235, %v3300
  %v3303 = vadd.f32 %v3236, %v3300
  %v3304 = vadd.f32 %v3237, %v3300
  %v3305 = vadd.f32 %v3238, %v3300
  %v3306 = vadd.f32 %v3239, %v3300
  %v3307 = vadd.f32 %v3240, %v3300
  %v3308 = vadd.f32 %v3241, %v3300
  %v3309 = vadd.f32 %v3242, %v3300
  %v3310 = vadd.f32 %v3243, %v3300
  %v3311 = vadd.f32 %v3244, %v3300
  %v3312 = vadd.f32 %v3245, %v3300
  %v3313 = vadd.f32 %v3246, %v3300
  %v3314 = vadd.f32 %v3247, %v3300
  %v3315 = vadd.f32 %v3248, %v3300
  %v3316 = vadd.f32 %v3249, %v3300
  %v3317 = vadd.f32 %v3250, %v3300
  %v3318 = vadd.f32 %v3251, %v3300
  %v3319 = vadd.f32 %v3252, %v3300
  %v3320 = vadd.f32 %v3253, %v3300
  %v3321 = vadd.f32 %v3254, %v3300
  %v3322 = vadd.f32 %v3255, %v3300
  %v3323 = vadd.f32 %v3256, %v3300
  %v3324 = vadd.f32 %v3257, %v3300
  %v3325 = vadd.f32 %v3258, %v3300
  %v3326 = vadd.f32 %v3259, %v3300
  %v3327 = vadd.f32 %v3260, %v3300
  %v3328 = vadd.f32 %v3261, %v3300
  %v3329 = vadd.f32 %v3262, %v3300
  %v3330 = vadd.f32 %v3263, %v3300
  %v3331 = vadd.f32 %v3264, %v3300
  %v3332 = vadd.f32 %v3265, %v3300
  %v3333 = vadd.f32 %v3266, %v3300
  %v3334 = vadd.f32 %v3267, %v3300
  %v3335 = vadd.f32 %v3268, %v3300
  %v3336 = vadd.f32 %v3269, %v3300
  %v3337 = vadd.f32 %v3270, %v3300
  %v3338 = vadd.f32 %v3271, %v3300
  %v3339 = vadd.f32 %v3272, %v3300
  %v3340 = vadd.f32 %v3273, %v3300
  %v3341 = vadd.f32 %v3274, %v3300
  %v3342 = vadd.f32 %v3275, %v3300
  %v3343 = vadd.f32 %v3276, %v3300
  %v3344 = vadd.f32 %v3277, %v3300
  %v3345 = vadd.f32 %v3278, %v3300
  %v3346 = vadd.f32 %v3279, %v3300
  %v3347 = vadd.f32 %v3280, %v3300
  %v3348 = vadd.f32 %v3281, %v3300
  %v3349 = vadd.f32 %v3282, %v3300
  %v3350 = vadd.f32 %v3283, %v3300
  %v3351 = vadd.f32 %v3284, %v3300
  %v3352 = vadd.f32 %v3285, %v3300
  %v3353 = vadd.f32 %v3286, %v3300
  %v3354 = vadd.f32 %v3287, %v3300
  %v3355 = vadd.f32 %v3288, %v3300
  %v3356 = vadd.f32 %v3289, %v3300
  %v3357 = vadd.f32 %v3290, %v3300
  %v3358 = vadd.f32 %v3291, %v3300
  %v3359 = vadd.f32 %v3292, %v3300
  %v3360 = vadd.f32 %v3293, %v3300
  %v3361 = vadd.f32 %v3294, %v3300
  %v3362 = vadd.f32 %v3295, %v3300
  %v3363 = vadd.f32 %v3296, %v3300
  %v3364 = vadd.f32 %v3297, %v3300
  %v3365 = vadd.f32 %v3298, %v3300
  %v3366 = vmax.f32 %v3302, 0.0
  %v3367 = vmax.f32 %v3303, 0.0
  %v3368 = vmax.f32 %v3304, 0.0
  %v3369 = vmax.f32 %v3305, 0.0
  %v3370 = vmax.f32 %v3306, 0.0
  %v3371 = vmax.f32 %v3307, 0.0
  %v3372 = vmax.f32 %v3308, 0.0
  %v3373 = vmax.f32 %v3309, 0.0
  %v3374 = vmax.f32 %v3310, 0.0
  %v3375 = vmax.f32 %v3311, 0.0
  %v3376 = vmax.f32 %v3312, 0.0
  %v3377 = vmax.f32 %v3313, 0.0
  %v3378 = vmax.f32 %v3314, 0.0
  %v3379 = vmax.f32 %v3315, 0.0
  %v3380 = vmax.f32 %v3316, 0.0
  %v3381 = vmax.f32 %v3317, 0.0
  %v3382 = vmax.f32 %v3318, 0.0
  %v3383 = vmax.f32 %v3319, 0.0
  %v3384 = vmax.f32 %v3320, 0.0
  %v3385 = vmax.f32 %v3321, 0.0
  %v3386 = vmax.f32 %v3322, 0.0
  %v3387 = vmax.f32 %v3323, 0.0
  %v3388 = vmax.f32 %v3324, 0.0
  %v3389 = vmax.f32 %v3325, 0.0
  %v3390 = vmax.f32 %v3326, 0.0
  %v3391 = vmax.f32 %v3327, 0.0
  %v3392 = vmax.f32 %v3328, 0.0
  %v3393 = vmax.f32 %v3329, 0.0
  %v3394 = vmax.f32 %v3330, 0.0
  %v3395 = vmax.f32 %v3331, 0.0
  %v3396 = vmax.f32 %v3332, 0.0
  %v3397 = vmax.f32 %v3333, 0.0
  %v3398 = vmax.f32 %v3334, 0.0
  %v3399 = vmax.f32 %v3335, 0.0
  %v3400 = vmax.f32 %v3336, 0.0
  %v3401 = vmax.f32 %v3337, 0.0
  %v3402 = vmax.f32 %v3338, 0.0
  %v3403 = vmax.f32 %v3339, 0.0
  %v3404 = vmax.f32 %v3340, 0.0
  %v3405 = vmax.f32 %v3341, 0.0
  %v3406 = vmax.f32 %v3342, 0.0
  %v3407 = vmax.f32 %v3343, 0.0
  %v3408 = vmax.f32 %v3344, 0.0
  %v3409 = vmax.f32 %v3345, 0.0
  %v3410 = vmax.f32 %v3346, 0.0
  %v3411 = vmax.f32 %v3347, 0.0
  %v3412 = vmax.f32 %v3348, 0.0
  %v3413 = vmax.f32 %v3349, 0.0
  %v3414 = vmax.f32 %v3350, 0.0
  %v3415 = vmax.f32 %v3351, 0.0
  %v3416 = vmax.f32 %v3352, 0.0
  %v3417 = vmax.f32 %v3353, 0.0
  %v3418 = vmax.f32 %v3354, 0.0
  %v3419 = vmax.f32 %v3355, 0.0
  %v3420 = vmax.f32 %v3356, 0.0
  %v3421 = vmax.f32 %v3357, 0.0
  %v3422 = vmax.f32 %v3358, 0.0
  %v3423 = vmax.f32 %v3359, 0.0
  %v3424 = vmax.f32 %v3360, 0.0
  %v3425 = vmax.f32 %v3361, 0.0
  %v3426 = vmax.f32 %v3362, 0.0
  %v3427 = vmax.f32 %v3363, 0.0
  %v3428 = vmax.f32 %v3364, 0.0
  %v3429 = vmax.f32 %v3365, 0.0
  %3430 = vst [vmem:[#allocation3] sm:$0xff] 0.0
  %3431 = vst [vmem:[#allocation3 + $0x8] sm:$0xff] 0.0
  %3432 = vst [vmem:[#allocation3 + $0x10] sm:$0x3] 0.0
  %3433 = vst [vmem:[#allocation3 + $0x18] sm:$0xff] 0.0
  %3434 = vst [vmem:[#allocation3 + $0x20] sm:$0xff] 0.0
  %3435 = vst [vmem:[#allocation3 + $0x28] sm:$0x3] 0.0
  %3436 = vst [vmem:[#allocation3 + $0x30] sm:$0xff] 0.0
  %3437 = vst [vmem:[#allocation3 + $0x38] sm:$0xff] 0.0
  %3438 = vst [vmem:[#allocation3 + $0x40] sm:$0x3] 0.0
  %3439 = vst [vmem:[#allocation3 + $0x48] sm:$0xff] 0.0
  %3440 = vst [vmem:[#allocation3 + $0x50] sm:$0xff] 0.0
  %3441 = vst [vmem:[#allocation3 + $0x58] sm:$0x3] 0.0
  %3442 = vst [vmem:[#allocation3 + $0x60] sm:$0xff] 0.0
  %3443 = vst [vmem:[#allocation3 + $0x68] sm:$0xff] 0.0
  %3444 = vst [vmem:[#allocation3 + $0x70] sm:$0x3] 0.0
  %3445 = vst [vmem:[#allocation3 + $0x78] sm:$0xff] 0.0
  %3446 = vst [vmem:[#allocation3 + $0x80] sm:$0xff] 0.0
  %3447 = vst [vmem:[#allocation3 + $0x88] sm:$0x3] 0.0
  %3448 = vst [vmem:[#allocation3 + $0x90] sm:$0xff] 0.0
  %3449 = vst [vmem:[#allocation3 + $0x98] sm:$0xff] 0.0
  %3450 = vst [vmem:[#allocation3 + $0xa0] sm:$0x3] 0.0
  %3451 = vst [vmem:[#allocation3 + $0xa8] sm:$0xff] 0.0
  %3452 = vst [vmem:[#allocation3 + $0xb0] sm:$0xff] 0.0
  %3453 = vst [vmem:[#allocation3 + $0xb8] sm:$0x3] 0.0
  %3454 = vst [vmem:[#allocation3 + $0xc0] sm:$0xff] 0.0
  %3455 = vst [vmem:[#allocation3 + $0xc8] sm:$0xff] 0.0
  %3456 = vst [vmem:[#allocation3 + $0xd0] sm:$0x3] 0.0
  %3457 = vst [vmem:[#allocation3 + $0xd8] sm:$0xff] 0.0
  %3458 = vst [vmem:[#allocation3 + $0xe0] sm:$0xff] 0.0
  %3459 = vst [vmem:[#allocation3 + $0xe8] sm:$0x3] 0.0
  %3460 = vst [vmem:[#allocation3 + $0xf0] sm:$0xff] 0.0
  %3461 = vst [vmem:[#allocation3 + $0xf8] sm:$0xff] 0.0
  %3462 = vst [vmem:[#allocation3 + $0x100] sm:$0x3] 0.0
  %3463 = vst [vmem:[#allocation3 + $0x108] sm:$0xff] 0.0
  %3464 = vst [vmem:[#allocation3 + $0x110] sm:$0xff] 0.0
  %3465 = vst [vmem:[#allocation3 + $0x118] sm:$0x3] 0.0
  %3466 = vst [vmem:[#allocation3 + $0x120] sm:$0xff] 0.0
  %3467 = vst [vmem:[#allocation3 + $0x128] sm:$0xff] 0.0
  %3468 = vst [vmem:[#allocation3 + $0x130] sm:$0x3] 0.0
  %3469 = vst [vmem:[#allocation3 + $0x138] sm:$0xff] 0.0
  %3470 = vst [vmem:[#allocation3 + $0x140] sm:$0xff] 0.0
  %3471 = vst [vmem:[#allocation3 + $0x148] sm:$0x3] 0.0
  %3472 = vst [vmem:[#allocation3 + $0x150] sm:$0xff] 0.0
  %3473 = vst [vmem:[#allocation3 + $0x158] sm:$0xff] 0.0
  %3474 = vst [vmem:[#allocation3 + $0x160] sm:$0x3] 0.0
  %3475 = vst [vmem:[#allocation3 + $0x168] sm:$0xff] 0.0
  %3476 = vst [vmem:[#allocation3 + $0x170] sm:$0xff] 0.0
  %3477 = vst [vmem:[#allocation3 + $0x178] sm:$0x3] 0.0
  %3478 = vst [vmem:[#allocation3 + $0x180] sm:$0xff] 0.0
  %3479 = vst [vmem:[#allocation3 + $0x188] sm:$0xff] 0.0
  %3480 = vst [vmem:[#allocation3 + $0x190] sm:$0x3] 0.0
  %3481 = vst [vmem:[#allocation3 + $0x198] sm:$0xff] 0.0
  %3482 = vst [vmem:[#allocation3 + $0x1a0] sm:$0xff] 0.0
  %3483 = vst [vmem:[#allocation3 + $0x1a8] sm:$0x3] 0.0
  %3484 = vst [vmem:[#allocation3 + $0x1b0] sm:$0xff] 0.0
  %3485 = vst [vmem:[#allocation3 + $0x1b8] sm:$0xff] 0.0
  %3486 = vst [vmem:[#allocation3 + $0x1c0] sm:$0x3] 0.0
  %3487 = vst [vmem:[#allocation3 + $0x1c8] sm:$0xff] 0.0
  %3488 = vst [vmem:[#allocation3 + $0x1d0] sm:$0xff] 0.0
  %3489 = vst [vmem:[#allocation3 + $0x1d8] sm:$0x3] 0.0
  %3490 = vst [vmem:[#allocation3 + $0x1e0] sm:$0xff] 0.0
  %3491 = vst [vmem:[#allocation3 + $0x1e8] sm:$0xff] 0.0
  %3492 = vst [vmem:[#allocation3 + $0x1f0] sm:$0x3] 0.0
  %3493 = vst [vmem:[#allocation3 + $0x1f8] sm:$0xff] 0.0
  %3494 = vst [vmem:[#allocation3 + $0x200] sm:$0xff] 0.0
  %3495 = vst [vmem:[#allocation3 + $0x208] sm:$0x3] 0.0
  %3496 = vst [vmem:[#allocation3 + $0x210] sm:$0xff] 0.0
  %3497 = vst [vmem:[#allocation3 + $0x218] sm:$0xff] 0.0
  %3498 = vst [vmem:[#allocation3 + $0x220] sm:$0x3] 0.0
  %3499 = vst [vmem:[#allocation3 + $0x228] sm:$0xff] 0.0
  %3500 = vst [vmem:[#allocation3 + $0x230] sm:$0xff] 0.0
  %3501 = vst [vmem:[#allocation3 + $0x238] sm:$0x3] 0.0
  %3502 = vst [vmem:[#allocation3 + $0x240] sm:$0xff] 0.0
  %3503 = vst [vmem:[#allocation3 + $0x248] sm:$0xff] 0.0
  %3504 = vst [vmem:[#allocation3 + $0x250] sm:$0x3] 0.0
  %3505 = vst [vmem:[#allocation3 + $0x258] sm:$0xff] 0.0
  %3506 = vst [vmem:[#allocation3 + $0x260] sm:$0xff] 0.0
  %3507 = vst [vmem:[#allocation3 + $0x268] sm:$0x3] 0.0
  %3508 = vst [vmem:[#allocation3 + $0x270] sm:$0xff] 0.0
  %3509 = vst [vmem:[#allocation3 + $0x278] sm:$0xff] 0.0
  %3510 = vst [vmem:[#allocation3 + $0x280] sm:$0x3] 0.0
  %3511 = vst [vmem:[#allocation3 + $0x288] sm:$0xff] 0.0
  %3512 = vst [vmem:[#allocation3 + $0x290] sm:$0xff] 0.0
  %3513 = vst [vmem:[#allocation3 + $0x298] sm:$0x3] 0.0
  %3514 = vst [vmem:[#allocation3 + $0x2a0] sm:$0xff] 0.0
  %3515 = vst [vmem:[#allocation3 + $0x2a8] sm:$0xff] 0.0
  %3516 = vst [vmem:[#allocation3 + $0x2b0] sm:$0x3] 0.0
  %3517 = vst [vmem:[#allocation3 + $0x2b8] sm:$0xff] 0.0
  %3518 = vst [vmem:[#allocation3 + $0x2c0] sm:$0xff] 0.0
  %3519 = vst [vmem:[#allocation3 + $0x2c8] sm:$0x3] 0.0
  %3520 = vst [vmem:[#allocation3 + $0x2d0] sm:$0xff] 0.0
  %3521 = vst [vmem:[#allocation3 + $0x2d8] sm:$0xff] 0.0
  %3522 = vst [vmem:[#allocation3 + $0x2e0] sm:$0x3] 0.0
  %3523 = vst [vmem:[#allocation3 + $0x2e8] sm:$0xff] 0.0
  %3524 = vst [vmem:[#allocation3 + $0x2f0] sm:$0xff] 0.0
  %3525 = vst [vmem:[#allocation3 + $0x2f8] sm:$0x3] 0.0
  %3526 = vst [vmem:[#allocation3 + $0x300] sm:$0xff] 0.0
  %3527 = vst [vmem:[#allocation3 + $0x308] sm:$0xff] 0.0
  %3528 = vst [vmem:[#allocation3 + $0x310] sm:$0x3] 0.0
  %3529 = vst [vmem:[#allocation3 + $0x318] sm:$0xff] 0.0
  %3530 = vst [vmem:[#allocation3 + $0x320] sm:$0xff] 0.0
  %3531 = vst [vmem:[#allocation3 + $0x328] sm:$0x3] 0.0
  %3532 = vst [vmem:[#allocation3 + $0x330] sm:$0xff] 0.0
  %3533 = vst [vmem:[#allocation3 + $0x338] sm:$0xff] 0.0
  %3534 = vst [vmem:[#allocation3 + $0x340] sm:$0x3] 0.0
  %3535 = vst [vmem:[#allocation3 + $0x348] sm:$0xff] 0.0
  %3536 = vst [vmem:[#allocation3 + $0x350] sm:$0xff] 0.0
  %3537 = vst [vmem:[#allocation3 + $0x358] sm:$0x3] 0.0
  %s3538 = scalar_lea.vmem [#allocation3], 24
  %3539 = vst [vmem:[%s3538 + $0x1] sm:$0xff] %v3366
  %3540 = vst [vmem:[%s3538 + $0x9] sm:$0xff] %v3367
  %3541 = vst [vmem:[%s3538 + $0x19] sm:$0xff] %v3368
  %3542 = vst [vmem:[%s3538 + $0x21] sm:$0xff] %v3369
  %3543 = vst [vmem:[%s3538 + $0x31] sm:$0xff] %v3370
  %3544 = vst [vmem:[%s3538 + $0x39] sm:$0xff] %v3371
  %3545 = vst [vmem:[%s3538 + $0x49] sm:$0xff] %v3372
  %3546 = vst [vmem:[%s3538 + $0x51] sm:$0xff] %v3373
  %3547 = vst [vmem:[%s3538 + $0x61] sm:$0xff] %v3374
  %3548 = vst [vmem:[%s3538 + $0x69] sm:$0xff] %v3375
  %3549 = vst [vmem:[%s3538 + $0x79] sm:$0xff] %v3376
  %3550 = vst [vmem:[%s3538 + $0x81] sm:$0xff] %v3377
  %3551 = vst [vmem:[%s3538 + $0x91] sm:$0xff] %v3378
  %3552 = vst [vmem:[%s3538 + $0x99] sm:$0xff] %v3379
  %3553 = vst [vmem:[%s3538 + $0xa9] sm:$0xff] %v3380
  %3554 = vst [vmem:[%s3538 + $0xb1] sm:$0xff] %v3381
  %3555 = vst [vmem:[%s3538 + $0xc1] sm:$0xff] %v3382
  %3556 = vst [vmem:[%s3538 + $0xc9] sm:$0xff] %v3383
  %3557 = vst [vmem:[%s3538 + $0xd9] sm:$0xff] %v3384
  %3558 = vst [vmem:[%s3538 + $0xe1] sm:$0xff] %v3385
  %3559 = vst [vmem:[%s3538 + $0xf1] sm:$0xff] %v3386
  %3560 = vst [vmem:[%s3538 + $0xf9] sm:$0xff] %v3387
  %3561 = vst [vmem:[%s3538 + $0x109] sm:$0xff] %v3388
  %3562 = vst [vmem:[%s3538 + $0x111] sm:$0xff] %v3389
  %3563 = vst [vmem:[%s3538 + $0x121] sm:$0xff] %v3390
  %3564 = vst [vmem:[%s3538 + $0x129] sm:$0xff] %v3391
  %3565 = vst [vmem:[%s3538 + $0x139] sm:$0xff] %v3392
  %3566 = vst [vmem:[%s3538 + $0x141] sm:$0xff] %v3393
  %3567 = vst [vmem:[%s3538 + $0x151] sm:$0xff] %v3394
  %3568 = vst [vmem:[%s3538 + $0x159] sm:$0xff] %v3395
  %3569 = vst [vmem:[%s3538 + $0x169] sm:$0xff] %v3396
  %3570 = vst [vmem:[%s3538 + $0x171] sm:$0xff] %v3397
  %3571 = vst [vmem:[%s3538 + $0x1b1] sm:$0xff] %v3398
  %3572 = vst [vmem:[%s3538 + $0x1b9] sm:$0xff] %v3399
  %3573 = vst [vmem:[%s3538 + $0x1c9] sm:$0xff] %v3400
  %3574 = vst [vmem:[%s3538 + $0x1d1] sm:$0xff] %v3401
  %3575 = vst [vmem:[%s3538 + $0x1e1] sm:$0xff] %v3402
  %3576 = vst [vmem:[%s3538 + $0x1e9] sm:$0xff] %v3403
  %3577 = vst [vmem:[%s3538 + $0x1f9] sm:$0xff] %v3404
  %3578 = vst [vmem:[%s3538 + $0x201] sm:$0xff] %v3405
  %3579 = vst [vmem:[%s3538 + $0x211] sm:$0xff] %v3406
  %3580 = vst [vmem:[%s3538 + $0x219] sm:$0xff] %v3407
  %3581 = vst [vmem:[%s3538 + $0x229] sm:$0xff] %v3408
  %3582 = vst [vmem:[%s3538 + $0x231] sm:$0xff] %v3409
  %3583 = vst [vmem:[%s3538 + $0x241] sm:$0xff] %v3410
  %3584 = vst [vmem:[%s3538 + $0x249] sm:$0xff] %v3411
  %3585 = vst [vmem:[%s3538 + $0x259] sm:$0xff] %v3412
  %3586 = vst [vmem:[%s3538 + $0x261] sm:$0xff] %v3413
  %3587 = vst [vmem:[%s3538 + $0x271] sm:$0xff] %v3414
  %3588 = vst [vmem:[%s3538 + $0x279] sm:$0xff] %v3415
  %3589 = vst [vmem:[%s3538 + $0x289] sm:$0xff] %v3416
  %3590 = vst [vmem:[%s3538 + $0x291] sm:$0xff] %v3417
  %3591 = vst [vmem:[%s3538 + $0x2a1] sm:$0xff] %v3418
  %3592 = vst [vmem:[%s3538 + $0x2a9] sm:$0xff] %v3419
  %3593 = vst [vmem:[%s3538 + $0x2b9] sm:$0xff] %v3420
  %3594 = vst [vmem:[%s3538 + $0x2c1] sm:$0xff] %v3421
  %3595 = vst [vmem:[%s3538 + $0x2d1] sm:$0xff] %v3422
  %3596 = vst [vmem:[%s3538 + $0x2d9] sm:$0xff] %v3423
  %3597 = vst [vmem:[%s3538 + $0x2e9] sm:$0xff] %v3424
  %3598 = vst [vmem:[%s3538 + $0x2f1] sm:$0xff] %v3425
  %3599 = vst [vmem:[%s3538 + $0x301] sm:$0xff] %v3426
  %3600 = vst [vmem:[%s3538 + $0x309] sm:$0xff] %v3427
  %3601 = vst [vmem:[%s3538 + $0x319] sm:$0xff] %v3428
  %3602 = vst [vmem:[%s3538 + $0x321] sm:$0xff] %v3429
  %v3603 = vld [vmem:[%s4] sm:$0xff]
  %v3604 = vld [vmem:[%s4 + $0x8] sm:$0xff]
  %v3605 = vld [vmem:[%s4 + $0x10] sm:$0xff]
  %v3606 = vld [vmem:[%s4 + $0x18] sm:$0xff]
  %v3607 = vld [vmem:[%s4 + $0x20] sm:$0xff]
  %v3608 = vld [vmem:[%s4 + $0x28] sm:$0xff]
  %v3609 = vld [vmem:[%s4 + $0x30] sm:$0xff]
  %v3610 = vld [vmem:[%s4 + $0x38] sm:$0xff]
  %v3611 = vld [vmem:[%s4 + $0x40] sm:$0xff]
  %v3612 = vld [vmem:[%s4 + $0x48] sm:$0xff]
  %v3613 = vld [vmem:[%s4 + $0x50] sm:$0xff]
  %v3614 = vld [vmem:[%s4 + $0x58] sm:$0xff]
  %v3615 = vld [vmem:[%s4 + $0x60] sm:$0xff]
  %v3616 = vld [vmem:[%s4 + $0x68] sm:$0xff]
  %v3617 = vld [vmem:[%s4 + $0x70] sm:$0xff]
  %v3618 = vld [vmem:[%s4 + $0x78] sm:$0xff]
  %v3619 = vld [vmem:[%s4 + $0x80] sm:$0xff]
  %v3620 = vld [vmem:[%s4 + $0x88] sm:$0xff]
  %v3621 = vld [vmem:[%s4 + $0x90] sm:$0xff]
  %v3622 = vld [vmem:[%s4 + $0x98] sm:$0xff]
  %v3623 = vld [vmem:[%s4 + $0xa0] sm:$0xff]
  %v3624 = vld [vmem:[%s4 + $0xa8] sm:$0xff]
  %v3625 = vld [vmem:[%s4 + $0xb0] sm:$0xff]
  %v3626 = vld [vmem:[%s4 + $0xb8] sm:$0xff]
  %v3627 = vld [vmem:[%s4 + $0xc0] sm:$0xff]
  %v3628 = vld [vmem:[%s4 + $0xc8] sm:$0xff]
  %v3629 = vld [vmem:[%s4 + $0xd0] sm:$0xff]
  %v3630 = vld [vmem:[%s4 + $0xd8] sm:$0xff]
  %v3631 = vld [vmem:[%s4 + $0xe0] sm:$0xff]
  %v3632 = vld [vmem:[%s4 + $0xe8] sm:$0xff]
  %v3633 = vld [vmem:[%s4 + $0xf0] sm:$0xff]
  %v3634 = vld [vmem:[%s4 + $0xf8] sm:$0xff]
  %v3635 = vld [vmem:[%s4 + $0x100] sm:$0xff]
  %v3636 = vld [vmem:[%s4 + $0x108] sm:$0xff]
  %v3637 = vld [vmem:[%s4 + $0x110] sm:$0xff]
  %v3638 = vld [vmem:[%s4 + $0x118] sm:$0xff]
  %v3639 = vld [vmem:[%s4 + $0x120] sm:$0xff]
  %v3640 = vld [vmem:[%s4 + $0x128] sm:$0xff]
  %v3641 = vld [vmem:[%s4 + $0x130] sm:$0xff]
  %v3642 = vld [vmem:[%s4 + $0x138] sm:$0xff]
  %v3643 = vld [vmem:[%s4 + $0x140] sm:$0xff]
  %v3644 = vld [vmem:[%s4 + $0x148] sm:$0xff]
  %v3645 = vld [vmem:[%s4 + $0x150] sm:$0xff]
  %v3646 = vld [vmem:[%s4 + $0x158] sm:$0xff]
  %v3647 = vld [vmem:[%s4 + $0x160] sm:$0xff]
  %v3648 = vld [vmem:[%s4 + $0x168] sm:$0xff]
  %v3649 = vld [vmem:[%s4 + $0x170] sm:$0xff]
  %v3650 = vld [vmem:[%s4 + $0x178] sm:$0xff]
  %v3651 = vld [vmem:[%s4 + $0x180] sm:$0xff]
  %v3652 = vld [vmem:[%s4 + $0x188] sm:$0xff]
  %v3653 = vld [vmem:[%s4 + $0x190] sm:$0xff]
  %v3654 = vld [vmem:[%s4 + $0x198] sm:$0xff]
  %v3655 = vld [vmem:[%s4 + $0x1a0] sm:$0xff]
  %v3656 = vld [vmem:[%s4 + $0x1a8] sm:$0xff]
  %v3657 = vld [vmem:[%s4 + $0x1b0] sm:$0xff]
  %v3658 = vld [vmem:[%s4 + $0x1b8] sm:$0xff]
  %v3659 = vld [vmem:[%s4 + $0x1c0] sm:$0xff]
  %v3660 = vld [vmem:[%s4 + $0x1c8] sm:$0xff]
  %v3661 = vld [vmem:[%s4 + $0x1d0] sm:$0xff]
  %v3662 = vld [vmem:[%s4 + $0x1d8] sm:$0xff]
  %v3663 = vld [vmem:[%s4 + $0x1e0] sm:$0xff]
  %v3664 = vld [vmem:[%s4 + $0x1e8] sm:$0xff]
  %v3665 = vld [vmem:[%s4 + $0x1f0] sm:$0xff]
  %v3666 = vld [vmem:[%s4 + $0x1f8] sm:$0xff]
  %v3667 = vld [vmem:[%s4 + $0x200] sm:$0xff]
  %v3668 = vld [vmem:[%s4 + $0x208] sm:$0xff]
  %v3669 = vld [vmem:[%s4 + $0x210] sm:$0xff]
  %v3670 = vld [vmem:[%s4 + $0x218] sm:$0xff]
  %v3671 = vld [vmem:[%s4 + $0x220] sm:$0xff]
  %v3672 = vld [vmem:[%s4 + $0x228] sm:$0xff]
  %v3673 = vld [vmem:[%s4 + $0x230] sm:$0xff]
  %v3674 = vld [vmem:[%s4 + $0x238] sm:$0xff]
  %v3675 = vld [vmem:[%s4 + $0x240] sm:$0xff]
  %v3676 = vld [vmem:[%s4 + $0x248] sm:$0xff]
  %v3677 = vld [vmem:[%s4 + $0x250] sm:$0xff]
  %v3678 = vld [vmem:[%s4 + $0x258] sm:$0xff]
  %v3679 = vld [vmem:[%s4 + $0x260] sm:$0xff]
  %v3680 = vld [vmem:[%s4 + $0x268] sm:$0xff]
  %v3681 = vld [vmem:[%s4 + $0x270] sm:$0xff]
  %v3682 = vld [vmem:[%s4 + $0x278] sm:$0xff]
  %v3683 = vld [vmem:[%s4 + $0x280] sm:$0xff]
  %v3684 = vld [vmem:[%s4 + $0x288] sm:$0xff]
  %v3685 = vld [vmem:[%s4 + $0x290] sm:$0xff]
  %v3686 = vld [vmem:[%s4 + $0x298] sm:$0xff]
  %v3687 = vld [vmem:[%s4 + $0x2a0] sm:$0xff]
  %v3688 = vld [vmem:[%s4 + $0x2a8] sm:$0xff]
  %v3689 = vld [vmem:[%s4 + $0x2b0] sm:$0xff]
  %v3690 = vld [vmem:[%s4 + $0x2b8] sm:$0xff]
  %v3691 = vld [vmem:[%s4 + $0x2c0] sm:$0xff]
  %v3692 = vld [vmem:[%s4 + $0x2c8] sm:$0xff]
  %v3693 = vld [vmem:[%s4 + $0x2d0] sm:$0xff]
  %v3694 = vld [vmem:[%s4 + $0x2d8] sm:$0xff]
  %v3695 = vld [vmem:[%s4 + $0x2e0] sm:$0xff]
  %v3696 = vld [vmem:[%s4 + $0x2e8] sm:$0xff]
  %v3697 = vld [vmem:[%s4 + $0x2f0] sm:$0xff]
  %v3698 = vld [vmem:[%s4 + $0x2f8] sm:$0xff]
  %v3699 = vld [vmem:[%s4 + $0x300] sm:$0xff]
  %v3700 = vld [vmem:[%s4 + $0x308] sm:$0xff]
  %v3701 = vld [vmem:[%s4 + $0x310] sm:$0xff]
  %v3702 = vld [vmem:[%s4 + $0x318] sm:$0xff]
  %v3703 = vld [vmem:[%s4 + $0x320] sm:$0xff]
  %v3704 = vld [vmem:[%s4 + $0x328] sm:$0xff]
  %v3705 = vld [vmem:[%s4 + $0x330] sm:$0xff]
  %v3706 = vld [vmem:[%s4 + $0x338] sm:$0xff]
  %v3707 = vld [vmem:[%s4 + $0x340] sm:$0xff]
  %v3708 = vld [vmem:[%s4 + $0x348] sm:$0xff]
  %v3709 = vld [vmem:[%s4 + $0x350] sm:$0xff]
  %v3710 = vld [vmem:[%s4 + $0x358] sm:$0xff]
  %v3711 = vld [vmem:[%s4 + $0x360] sm:$0xff]
  %v3712 = vld [vmem:[%s4 + $0x368] sm:$0xff]
  %v3713 = vld [vmem:[%s4 + $0x370] sm:$0xff]
  %v3714 = vld [vmem:[%s4 + $0x378] sm:$0xff]
  %v3715 = vld [vmem:[%s4 + $0x380] sm:$0xff]
  %v3716 = vld [vmem:[%s4 + $0x388] sm:$0xff]
  %v3717 = vld [vmem:[%s4 + $0x390] sm:$0xff]
  %v3718 = vld [vmem:[%s4 + $0x398] sm:$0xff]
  %v3719 = vld [vmem:[%s4 + $0x3a0] sm:$0xff]
  %v3720 = vld [vmem:[%s4 + $0x3a8] sm:$0xff]
  %v3721 = vld [vmem:[%s4 + $0x3b0] sm:$0xff]
  %v3722 = vld [vmem:[%s4 + $0x3b8] sm:$0xff]
  %v3723 = vld [vmem:[%s4 + $0x3c0] sm:$0xff]
  %v3724 = vld [vmem:[%s4 + $0x3c8] sm:$0xff]
  %v3725 = vld [vmem:[%s4 + $0x3d0] sm:$0xff]
  %v3726 = vld [vmem:[%s4 + $0x3d8] sm:$0xff]
  %v3727 = vld [vmem:[%s4 + $0x3e0] sm:$0xff]
  %v3728 = vld [vmem:[%s4 + $0x3e8] sm:$0xff]
  %v3729 = vld [vmem:[%s4 + $0x3f0] sm:$0xff]
  %v3730 = vld [vmem:[%s4 + $0x3f8] sm:$0xff]
  %v3731 = vld [vmem:[%s4 + $0x400] sm:$0xff]
  %v3732 = vld [vmem:[%s4 + $0x408] sm:$0xff]
  %v3733 = vld [vmem:[%s4 + $0x410] sm:$0xff]
  %v3734 = vld [vmem:[%s4 + $0x418] sm:$0xff]
  %v3735 = vld [vmem:[%s4 + $0x420] sm:$0xff]
  %v3736 = vld [vmem:[%s4 + $0x428] sm:$0xff]
  %v3737 = vld [vmem:[%s4 + $0x430] sm:$0xff]
  %v3738 = vld [vmem:[%s4 + $0x438] sm:$0xff]
  %v3739 = vld [vmem:[%s4 + $0x440] sm:$0xff]
  %v3740 = vld [vmem:[%s4 + $0x448] sm:$0xff]
  %v3741 = vld [vmem:[%s4 + $0x450] sm:$0xff]
  %v3742 = vld [vmem:[%s4 + $0x458] sm:$0xff]
  %v3743 = vld [vmem:[%s4 + $0x460] sm:$0xff]
  %v3744 = vld [vmem:[%s4 + $0x468] sm:$0xff]
  %v3745 = vld [vmem:[%s4 + $0x470] sm:$0xff]
  %v3746 = vld [vmem:[%s4 + $0x478] sm:$0xff]
  %v3747 = vld [vmem:[%s5] sm:$0x1]
  %v3748 = vld [vmem:[%s6] sm:$0x1]
  %v3749 = vld [vmem:[#allocation3] sm:$0xff]
  %v3750 = vld [vmem:[#allocation3 + $0x8] sm:$0xff]
  %v3751 = vld [vmem:[#allocation3 + $0x10] sm:$0x3]
  %v3752 = vld [vmem:[#allocation3 + $0x18] sm:$0xff]
  %v3753 = vld [vmem:[#allocation3 + $0x20] sm:$0xff]
  %v3754 = vld [vmem:[#allocation3 + $0x28] sm:$0x3]
  %v3755 = vld [vmem:[#allocation3 + $0x30] sm:$0xff]
  %v3756 = vld [vmem:[#allocation3 + $0x38] sm:$0xff]
  %v3757 = vld [vmem:[#allocation3 + $0x40] sm:$0x3]
  %v3758 = vld [vmem:[#allocation3 + $0x48] sm:$0xff]
  %v3759 = vld [vmem:[#allocation3 + $0x50] sm:$0xff]
  %v3760 = vld [vmem:[#allocation3 + $0x58] sm:$0x3]
  %v3761 = vld [vmem:[#allocation3 + $0x60] sm:$0xff]
  %v3762 = vld [vmem:[#allocation3 + $0x68] sm:$0xff]
  %v3763 = vld [vmem:[#allocation3 + $0x70] sm:$0x3]
  %v3764 = vld [vmem:[#allocation3 + $0x78] sm:$0xff]
  %v3765 = vld [vmem:[#allocation3 + $0x80] sm:$0xff]
  %v3766 = vld [vmem:[#allocation3 + $0x88] sm:$0x3]
  %v3767 = vld [vmem:[#allocation3 + $0x90] sm:$0xff]
  %v3768 = vld [vmem:[#allocation3 + $0x98] sm:$0xff]
  %v3769 = vld [vmem:[#allocation3 + $0xa0] sm:$0x3]
  %v3770 = vld [vmem:[#allocation3 + $0xa8] sm:$0xff]
  %v3771 = vld [vmem:[#allocation3 + $0xb0] sm:$0xff]
  %v3772 = vld [vmem:[#allocation3 + $0xb8] sm:$0x3]
  %v3773 = vld [vmem:[#allocation3 + $0xc0] sm:$0xff]
  %v3774 = vld [vmem:[#allocation3 + $0xc8] sm:$0xff]
  %v3775 = vld [vmem:[#allocation3 + $0xd0] sm:$0x3]
  %v3776 = vld [vmem:[#allocation3 + $0xd8] sm:$0xff]
  %v3777 = vld [vmem:[#allocation3 + $0xe0] sm:$0xff]
  %v3778 = vld [vmem:[#allocation3 + $0xe8] sm:$0x3]
  %v3779 = vld [vmem:[#allocation3 + $0xf0] sm:$0xff]
  %v3780 = vld [vmem:[#allocation3 + $0xf8] sm:$0xff]
  %v3781 = vld [vmem:[#allocation3 + $0x100] sm:$0x3]
  %v3782 = vld [vmem:[#allocation3 + $0x108] sm:$0xff]
  %v3783 = vld [vmem:[#allocation3 + $0x110] sm:$0xff]
  %v3784 = vld [vmem:[#allocation3 + $0x118] sm:$0x3]
  %v3785 = vld [vmem:[#allocation3 + $0x120] sm:$0xff]
  %v3786 = vld [vmem:[#allocation3 + $0x128] sm:$0xff]
  %v3787 = vld [vmem:[#allocation3 + $0x130] sm:$0x3]
  %v3788 = vld [vmem:[#allocation3 + $0x138] sm:$0xff]
  %v3789 = vld [vmem:[#allocation3 + $0x140] sm:$0xff]
  %v3790 = vld [vmem:[#allocation3 + $0x148] sm:$0x3]
  %v3791 = vld [vmem:[#allocation3 + $0x150] sm:$0xff]
  %v3792 = vld [vmem:[#allocation3 + $0x158] sm:$0xff]
  %v3793 = vld [vmem:[#allocation3 + $0x160] sm:$0x3]
  %v3794 = vld [vmem:[#allocation3 + $0x168] sm:$0xff]
  %v3795 = vld [vmem:[#allocation3 + $0x170] sm:$0xff]
  %v3796 = vld [vmem:[#allocation3 + $0x178] sm:$0x3]
  %v3797 = vld [vmem:[#allocation3 + $0x180] sm:$0xff]
  %v3798 = vld [vmem:[#allocation3 + $0x188] sm:$0xff]
  %v3799 = vld [vmem:[#allocation3 + $0x190] sm:$0x3]
  %v3800 = vld [vmem:[#allocation3 + $0x198] sm:$0xff]
  %v3801 = vld [vmem:[#allocation3 + $0x1a0] sm:$0xff]
  %v3802 = vld [vmem:[#allocation3 + $0x1a8] sm:$0x3]
  %v3803 = vld [vmem:[#allocation3 + $0x1b0] sm:$0xff]
  %v3804 = vld [vmem:[#allocation3 + $0x1b8] sm:$0xff]
  %v3805 = vld [vmem:[#allocation3 + $0x1c0] sm:$0x3]
  %v3806 = vld [vmem:[#allocation3 + $0x1c8] sm:$0xff]
  %v3807 = vld [vmem:[#allocation3 + $0x1d0] sm:$0xff]
  %v3808 = vld [vmem:[#allocation3 + $0x1d8] sm:$0x3]
  %v3809 = vld [vmem:[#allocation3 + $0x1e0] sm:$0xff]
  %v3810 = vld [vmem:[#allocation3 + $0x1e8] sm:$0xff]
  %v3811 = vld [vmem:[#allocation3 + $0x1f0] sm:$0x3]
  %v3812 = vld [vmem:[#allocation3 + $0x1f8] sm:$0xff]
  %v3813 = vld [vmem:[#allocation3 + $0x200] sm:$0xff]
  %v3814 = vld [vmem:[#allocation3 + $0x208] sm:$0x3]
  %v3815 = vld [vmem:[#allocation3 + $0x210] sm:$0xff]
  %v3816 = vld [vmem:[#allocation3 + $0x218] sm:$0xff]
  %v3817 = vld [vmem:[#allocation3 + $0x220] sm:$0x3]
  %v3818 = vld [vmem:[#allocation3 + $0x228] sm:$0xff]
  %v3819 = vld [vmem:[#allocation3 + $0x230] sm:$0xff]
  %v3820 = vld [vmem:[#allocation3 + $0x238] sm:$0x3]
  %v3821 = vld [vmem:[#allocation3 + $0x240] sm:$0xff]
  %v3822 = vld [vmem:[#allocation3 + $0x248] sm:$0xff]
  %v3823 = vld [vmem:[#allocation3 + $0x250] sm:$0x3]
  %v3824 = vld [vmem:[#allocation3 + $0x258] sm:$0xff]
  %v3825 = vld [vmem:[#allocation3 + $0x260] sm:$0xff]
  %v3826 = vld [vmem:[#allocation3 + $0x268] sm:$0x3]
  %v3827 = vld [vmem:[#allocation3 + $0x270] sm:$0xff]
  %v3828 = vld [vmem:[#allocation3 + $0x278] sm:$0xff]
  %v3829 = vld [vmem:[#allocation3 + $0x280] sm:$0x3]
  %v3830 = vld [vmem:[#allocation3 + $0x288] sm:$0xff]
  %v3831 = vld [vmem:[#allocation3 + $0x290] sm:$0xff]
  %v3832 = vld [vmem:[#allocation3 + $0x298] sm:$0x3]
  %v3833 = vld [vmem:[#allocation3 + $0x2a0] sm:$0xff]
  %v3834 = vld [vmem:[#allocation3 + $0x2a8] sm:$0xff]
  %v3835 = vld [vmem:[#allocation3 + $0x2b0] sm:$0x3]
  %v3836 = vld [vmem:[#allocation3 + $0x2b8] sm:$0xff]
  %v3837 = vld [vmem:[#allocation3 + $0x2c0] sm:$0xff]
  %v3838 = vld [vmem:[#allocation3 + $0x2c8] sm:$0x3]
  %v3839 = vld [vmem:[#allocation3 + $0x2d0] sm:$0xff]
  %v3840 = vld [vmem:[#allocation3 + $0x2d8] sm:$0xff]
  %v3841 = vld [vmem:[#allocation3 + $0x2e0] sm:$0x3]
  %v3842 = vld [vmem:[#allocation3 + $0x2e8] sm:$0xff]
  %v3843 = vld [vmem:[#allocation3 + $0x2f0] sm:$0xff]
  %v3844 = vld [vmem:[#allocation3 + $0x2f8] sm:$0x3]
  %v3845 = vld [vmem:[#allocation3 + $0x300] sm:$0xff]
  %v3846 = vld [vmem:[#allocation3 + $0x308] sm:$0xff]
  %v3847 = vld [vmem:[#allocation3 + $0x310] sm:$0x3]
  %v3848 = vld [vmem:[#allocation3 + $0x318] sm:$0xff]
  %v3849 = vld [vmem:[#allocation3 + $0x320] sm:$0xff]
  %v3850 = vld [vmem:[#allocation3 + $0x328] sm:$0x3]
  %v3851 = vld [vmem:[#allocation3 + $0x330] sm:$0xff]
  %v3852 = vld [vmem:[#allocation3 + $0x338] sm:$0xff]
  %v3853 = vld [vmem:[#allocation3 + $0x340] sm:$0x3]
  %v3854 = vld [vmem:[#allocation3 + $0x348] sm:$0xff]
  %v3855 = vld [vmem:[#allocation3 + $0x350] sm:$0xff]
  %v3856 = vld [vmem:[#allocation3 + $0x358] sm:$0x3]
  %v3953 = vrot.slane %v3749, 1
  %v3954 = vrot.slane %v3750, 1
  %v3955 = vsel %vm613, %v3953, %v3954
  %v3956 = vrot.slane %v3751, 1
  %v3957 = vsel %vm613, %v3954, %v3956
  %v3958 = vrot.slane %v3752, 1
  %v3959 = vrot.slane %v3753, 1
  %v3960 = vsel %vm613, %v3958, %v3959
  %v3961 = vrot.slane %v3754, 1
  %v3962 = vsel %vm613, %v3959, %v3961
  %v3963 = vrot.slane %v3755, 1
  %v3964 = vrot.slane %v3756, 1
  %v3965 = vsel %vm613, %v3963, %v3964
  %v3966 = vrot.slane %v3757, 1
  %v3967 = vsel %vm613, %v3964, %v3966
  %v3968 = vrot.slane %v3758, 1
  %v3969 = vrot.slane %v3759, 1
  %v3970 = vsel %vm613, %v3968, %v3969
  %v3971 = vrot.slane %v3760, 1
  %v3972 = vsel %vm613, %v3969, %v3971
  %v3973 = vrot.slane %v3761, 1
  %v3974 = vrot.slane %v3762, 1
  %v3975 = vsel %vm613, %v3973, %v3974
  %v3976 = vrot.slane %v3763, 1
  %v3977 = vsel %vm613, %v3974, %v3976
  %v3978 = vrot.slane %v3764, 1
  %v3979 = vrot.slane %v3765, 1
  %v3980 = vsel %vm613, %v3978, %v3979
  %v3981 = vrot.slane %v3766, 1
  %v3982 = vsel %vm613, %v3979, %v3981
  %v3983 = vrot.slane %v3767, 1
  %v3984 = vrot.slane %v3768, 1
  %v3985 = vsel %vm613, %v3983, %v3984
  %v3986 = vrot.slane %v3769, 1
  %v3987 = vsel %vm613, %v3984, %v3986
  %v3988 = vrot.slane %v3770, 1
  %v3989 = vrot.slane %v3771, 1
  %v3990 = vsel %vm613, %v3988, %v3989
  %v3991 = vrot.slane %v3772, 1
  %v3992 = vsel %vm613, %v3989, %v3991
  %v3993 = vrot.slane %v3773, 1
  %v3994 = vrot.slane %v3774, 1
  %v3995 = vsel %vm613, %v3993, %v3994
  %v3996 = vrot.slane %v3775, 1
  %v3997 = vsel %vm613, %v3994, %v3996
  %v3998 = vrot.slane %v3776, 1
  %v3999 = vrot.slane %v3777, 1
  %v4000 = vsel %vm613, %v3998, %v3999
  %v4001 = vrot.slane %v3778, 1
  %v4002 = vsel %vm613, %v3999, %v4001
  %v4003 = vrot.slane %v3779, 1
  %v4004 = vrot.slane %v3780, 1
  %v4005 = vsel %vm613, %v4003, %v4004
  %v4006 = vrot.slane %v3781, 1
  %v4007 = vsel %vm613, %v4004, %v4006
  %v4008 = vrot.slane %v3782, 1
  %v4009 = vrot.slane %v3783, 1
  %v4010 = vsel %vm613, %v4008, %v4009
  %v4011 = vrot.slane %v3784, 1
  %v4012 = vsel %vm613, %v4009, %v4011
  %v4013 = vrot.slane %v3785, 1
  %v4014 = vrot.slane %v3786, 1
  %v4015 = vsel %vm613, %v4013, %v4014
  %v4016 = vrot.slane %v3787, 1
  %v4017 = vsel %vm613, %v4014, %v4016
  %v4018 = vrot.slane %v3788, 1
  %v4019 = vrot.slane %v3789, 1
  %v4020 = vsel %vm613, %v4018, %v4019
  %v4021 = vrot.slane %v3790, 1
  %v4022 = vsel %vm613, %v4019, %v4021
  %v4023 = vrot.slane %v3791, 1
  %v4024 = vrot.slane %v3792, 1
  %v4025 = vsel %vm613, %v4023, %v4024
  %v4026 = vrot.slane %v3793, 1
  %v4027 = vsel %vm613, %v4024, %v4026
  %v4028 = vrot.slane %v3794, 1
  %v4029 = vrot.slane %v3795, 1
  %v4030 = vsel %vm613, %v4028, %v4029
  %v4031 = vrot.slane %v3796, 1
  %v4032 = vsel %vm613, %v4029, %v4031
  %v4033 = vrot.slane %v3803, 1
  %v4034 = vrot.slane %v3804, 1
  %v4035 = vsel %vm613, %v4033, %v4034
  %v4036 = vrot.slane %v3805, 1
  %v4037 = vsel %vm613, %v4034, %v4036
  %v4038 = vrot.slane %v3806, 1
  %v4039 = vrot.slane %v3807, 1
  %v4040 = vsel %vm613, %v4038, %v4039
  %v4041 = vrot.slane %v3808, 1
  %v4042 = vsel %vm613, %v4039, %v4041
  %v4043 = vrot.slane %v3809, 1
  %v4044 = vrot.slane %v3810, 1
  %v4045 = vsel %vm613, %v4043, %v4044
  %v4046 = vrot.slane %v3811, 1
  %v4047 = vsel %vm613, %v4044, %v4046
  %v4048 = vrot.slane %v3812, 1
  %v4049 = vrot.slane %v3813, 1
  %v4050 = vsel %vm613, %v4048, %v4049
  %v4051 = vrot.slane %v3814, 1
  %v4052 = vsel %vm613, %v4049, %v4051
  %v4053 = vrot.slane %v3815, 1
  %v4054 = vrot.slane %v3816, 1
  %v4055 = vsel %vm613, %v4053, %v4054
  %v4056 = vrot.slane %v3817, 1
  %v4057 = vsel %vm613, %v4054, %v4056
  %v4058 = vrot.slane %v3818, 1
  %v4059 = vrot.slane %v3819, 1
  %v4060 = vsel %vm613, %v4058, %v4059
  %v4061 = vrot.slane %v3820, 1
  %v4062 = vsel %vm613, %v4059, %v4061
  %v4063 = vrot.slane %v3821, 1
  %v4064 = vrot.slane %v3822, 1
  %v4065 = vsel %vm613, %v4063, %v4064
  %v4066 = vrot.slane %v3823, 1
  %v4067 = vsel %vm613, %v4064, %v4066
  %v4068 = vrot.slane %v3824, 1
  %v4069 = vrot.slane %v3825, 1
  %v4070 = vsel %vm613, %v4068, %v4069
  %v4071 = vrot.slane %v3826, 1
  %v4072 = vsel %vm613, %v4069, %v4071
  %v4073 = vrot.slane %v3827, 1
  %v4074 = vrot.slane %v3828, 1
  %v4075 = vsel %vm613, %v4073, %v4074
  %v4076 = vrot.slane %v3829, 1
  %v4077 = vsel %vm613, %v4074, %v4076
  %v4078 = vrot.slane %v3830, 1
  %v4079 = vrot.slane %v3831, 1
  %v4080 = vsel %vm613, %v4078, %v4079
  %v4081 = vrot.slane %v3832, 1
  %v4082 = vsel %vm613, %v4079, %v4081
  %v4083 = vrot.slane %v3833, 1
  %v4084 = vrot.slane %v3834, 1
  %v4085 = vsel %vm613, %v4083, %v4084
  %v4086 = vrot.slane %v3835, 1
  %v4087 = vsel %vm613, %v4084, %v4086
  %v4088 = vrot.slane %v3836, 1
  %v4089 = vrot.slane %v3837, 1
  %v4090 = vsel %vm613, %v4088, %v4089
  %v4091 = vrot.slane %v3838, 1
  %v4092 = vsel %vm613, %v4089, %v4091
  %v4093 = vrot.slane %v3839, 1
  %v4094 = vrot.slane %v3840, 1
  %v4095 = vsel %vm613, %v4093, %v4094
  %v4096 = vrot.slane %v3841, 1
  %v4097 = vsel %vm613, %v4094, %v4096
  %v4098 = vrot.slane %v3842, 1
  %v4099 = vrot.slane %v3843, 1
  %v4100 = vsel %vm613, %v4098, %v4099
  %v4101 = vrot.slane %v3844, 1
  %v4102 = vsel %vm613, %v4099, %v4101
  %v4103 = vrot.slane %v3845, 1
  %v4104 = vrot.slane %v3846, 1
  %v4105 = vsel %vm613, %v4103, %v4104
  %v4106 = vrot.slane %v3847, 1
  %v4107 = vsel %vm613, %v4104, %v4106
  %v4108 = vrot.slane %v3848, 1
  %v4109 = vrot.slane %v3849, 1
  %v4110 = vsel %vm613, %v4108, %v4109
  %v4111 = vrot.slane %v3850, 1
  %v4112 = vsel %vm613, %v4109, %v4111
  %v4177 = vrot.slane %v3749, 2
  %v4178 = vrot.slane %v3750, 2
  %v4179 = vsel %vm838, %v4177, %v4178
  %v4180 = vrot.slane %v3751, 2
  %v4181 = vsel %vm838, %v4178, %v4180
  %v4182 = vrot.slane %v3752, 2
  %v4183 = vrot.slane %v3753, 2
  %v4184 = vsel %vm838, %v4182, %v4183
  %v4185 = vrot.slane %v3754, 2
  %v4186 = vsel %vm838, %v4183, %v4185
  %v4187 = vrot.slane %v3755, 2
  %v4188 = vrot.slane %v3756, 2
  %v4189 = vsel %vm838, %v4187, %v4188
  %v4190 = vrot.slane %v3757, 2
  %v4191 = vsel %vm838, %v4188, %v4190
  %v4192 = vrot.slane %v3758, 2
  %v4193 = vrot.slane %v3759, 2
  %v4194 = vsel %vm838, %v4192, %v4193
  %v4195 = vrot.slane %v3760, 2
  %v4196 = vsel %vm838, %v4193, %v4195
  %v4197 = vrot.slane %v3761, 2
  %v4198 = vrot.slane %v3762, 2
  %v4199 = vsel %vm838, %v4197, %v4198
  %v4200 = vrot.slane %v3763, 2
  %v4201 = vsel %vm838, %v4198, %v4200
  %v4202 = vrot.slane %v3764, 2
  %v4203 = vrot.slane %v3765, 2
  %v4204 = vsel %vm838, %v4202, %v4203
  %v4205 = vrot.slane %v3766, 2
  %v4206 = vsel %vm838, %v4203, %v4205
  %v4207 = vrot.slane %v3767, 2
  %v4208 = vrot.slane %v3768, 2
  %v4209 = vsel %vm838, %v4207, %v4208
  %v4210 = vrot.slane %v3769, 2
  %v4211 = vsel %vm838, %v4208, %v4210
  %v4212 = vrot.slane %v3770, 2
  %v4213 = vrot.slane %v3771, 2
  %v4214 = vsel %vm838, %v4212, %v4213
  %v4215 = vrot.slane %v3772, 2
  %v4216 = vsel %vm838, %v4213, %v4215
  %v4217 = vrot.slane %v3773, 2
  %v4218 = vrot.slane %v3774, 2
  %v4219 = vsel %vm838, %v4217, %v4218
  %v4220 = vrot.slane %v3775, 2
  %v4221 = vsel %vm838, %v4218, %v4220
  %v4222 = vrot.slane %v3776, 2
  %v4223 = vrot.slane %v3777, 2
  %v4224 = vsel %vm838, %v4222, %v4223
  %v4225 = vrot.slane %v3778, 2
  %v4226 = vsel %vm838, %v4223, %v4225
  %v4227 = vrot.slane %v3779, 2
  %v4228 = vrot.slane %v3780, 2
  %v4229 = vsel %vm838, %v4227, %v4228
  %v4230 = vrot.slane %v3781, 2
  %v4231 = vsel %vm838, %v4228, %v4230
  %v4232 = vrot.slane %v3782, 2
  %v4233 = vrot.slane %v3783, 2
  %v4234 = vsel %vm838, %v4232, %v4233
  %v4235 = vrot.slane %v3784, 2
  %v4236 = vsel %vm838, %v4233, %v4235
  %v4237 = vrot.slane %v3785, 2
  %v4238 = vrot.slane %v3786, 2
  %v4239 = vsel %vm838, %v4237, %v4238
  %v4240 = vrot.slane %v3787, 2
  %v4241 = vsel %vm838, %v4238, %v4240
  %v4242 = vrot.slane %v3788, 2
  %v4243 = vrot.slane %v3789, 2
  %v4244 = vsel %vm838, %v4242, %v4243
  %v4245 = vrot.slane %v3790, 2
  %v4246 = vsel %vm838, %v4243, %v4245
  %v4247 = vrot.slane %v3791, 2
  %v4248 = vrot.slane %v3792, 2
  %v4249 = vsel %vm838, %v4247, %v4248
  %v4250 = vrot.slane %v3793, 2
  %v4251 = vsel %vm838, %v4248, %v4250
  %v4252 = vrot.slane %v3794, 2
  %v4253 = vrot.slane %v3795, 2
  %v4254 = vsel %vm838, %v4252, %v4253
  %v4255 = vrot.slane %v3796, 2
  %v4256 = vsel %vm838, %v4253, %v4255
  %v4257 = vrot.slane %v3803, 2
  %v4258 = vrot.slane %v3804, 2
  %v4259 = vsel %vm838, %v4257, %v4258
  %v4260 = vrot.slane %v3805, 2
  %v4261 = vsel %vm838, %v4258, %v4260
  %v4262 = vrot.slane %v3806, 2
  %v4263 = vrot.slane %v3807, 2
  %v4264 = vsel %vm838, %v4262, %v4263
  %v4265 = vrot.slane %v3808, 2
  %v4266 = vsel %vm838, %v4263, %v4265
  %v4267 = vrot.slane %v3809, 2
  %v4268 = vrot.slane %v3810, 2
  %v4269 = vsel %vm838, %v4267, %v4268
  %v4270 = vrot.slane %v3811, 2
  %v4271 = vsel %vm838, %v4268, %v4270
  %v4272 = vrot.slane %v3812, 2
  %v4273 = vrot.slane %v3813, 2
  %v4274 = vsel %vm838, %v4272, %v4273
  %v4275 = vrot.slane %v3814, 2
  %v4276 = vsel %vm838, %v4273, %v4275
  %v4277 = vrot.slane %v3815, 2
  %v4278 = vrot.slane %v3816, 2
  %v4279 = vsel %vm838, %v4277, %v4278
  %v4280 = vrot.slane %v3817, 2
  %v4281 = vsel %vm838, %v4278, %v4280
  %v4282 = vrot.slane %v3818, 2
  %v4283 = vrot.slane %v3819, 2
  %v4284 = vsel %vm838, %v4282, %v4283
  %v4285 = vrot.slane %v3820, 2
  %v4286 = vsel %vm838, %v4283, %v4285
  %v4287 = vrot.slane %v3821, 2
  %v4288 = vrot.slane %v3822, 2
  %v4289 = vsel %vm838, %v4287, %v4288
  %v4290 = vrot.slane %v3823, 2
  %v4291 = vsel %vm838, %v4288, %v4290
  %v4292 = vrot.slane %v3824, 2
  %v4293 = vrot.slane %v3825, 2
  %v4294 = vsel %vm838, %v4292, %v4293
  %v4295 = vrot.slane %v3826, 2
  %v4296 = vsel %vm838, %v4293, %v4295
  %v4297 = vrot.slane %v3827, 2
  %v4298 = vrot.slane %v3828, 2
  %v4299 = vsel %vm838, %v4297, %v4298
  %v4300 = vrot.slane %v3829, 2
  %v4301 = vsel %vm838, %v4298, %v4300
  %v4302 = vrot.slane %v3830, 2
  %v4303 = vrot.slane %v3831, 2
  %v4304 = vsel %vm838, %v4302, %v4303
  %v4305 = vrot.slane %v3832, 2
  %v4306 = vsel %vm838, %v4303, %v4305
  %v4307 = vrot.slane %v3833, 2
  %v4308 = vrot.slane %v3834, 2
  %v4309 = vsel %vm838, %v4307, %v4308
  %v4310 = vrot.slane %v3835, 2
  %v4311 = vsel %vm838, %v4308, %v4310
  %v4312 = vrot.slane %v3836, 2
  %v4313 = vrot.slane %v3837, 2
  %v4314 = vsel %vm838, %v4312, %v4313
  %v4315 = vrot.slane %v3838, 2
  %v4316 = vsel %vm838, %v4313, %v4315
  %v4317 = vrot.slane %v3839, 2
  %v4318 = vrot.slane %v3840, 2
  %v4319 = vsel %vm838, %v4317, %v4318
  %v4320 = vrot.slane %v3841, 2
  %v4321 = vsel %vm838, %v4318, %v4320
  %v4322 = vrot.slane %v3842, 2
  %v4323 = vrot.slane %v3843, 2
  %v4324 = vsel %vm838, %v4322, %v4323
  %v4325 = vrot.slane %v3844, 2
  %v4326 = vsel %vm838, %v4323, %v4325
  %v4327 = vrot.slane %v3845, 2
  %v4328 = vrot.slane %v3846, 2
  %v4329 = vsel %vm838, %v4327, %v4328
  %v4330 = vrot.slane %v3847, 2
  %v4331 = vsel %vm838, %v4328, %v4330
  %v4332 = vrot.slane %v3848, 2
  %v4333 = vrot.slane %v3849, 2
  %v4334 = vsel %vm838, %v4332, %v4333
  %v4335 = vrot.slane %v3850, 2
  %v4336 = vsel %vm838, %v4333, %v4335
  %v4407 = vrot.slane %v3797, 1
  %v4408 = vrot.slane %v3798, 1
  %v4409 = vsel %vm613, %v4407, %v4408
  %v4410 = vrot.slane %v3799, 1
  %v4411 = vsel %vm613, %v4408, %v4410
  %v4412 = vrot.slane %v3851, 1
  %v4413 = vrot.slane %v3852, 1
  %v4414 = vsel %vm613, %v4412, %v4413
  %v4415 = vrot.slane %v3853, 1
  %v4416 = vsel %vm613, %v4413, %v4415
  %v4421 = vrot.slane %v3797, 2
  %v4422 = vrot.slane %v3798, 2
  %v4423 = vsel %vm838, %v4421, %v4422
  %v4424 = vrot.slane %v3799, 2
  %v4425 = vsel %vm838, %v4422, %v4424
  %v4426 = vrot.slane %v3851, 2
  %v4427 = vrot.slane %v3852, 2
  %v4428 = vsel %vm838, %v4426, %v4427
  %v4429 = vrot.slane %v3853, 2
  %v4430 = vsel %vm838, %v4427, %v4429
  %v4441 = vrot.slane %v3800, 1
  %v4442 = vrot.slane %v3801, 1
  %v4443 = vsel %vm613, %v4441, %v4442
  %v4444 = vrot.slane %v3802, 1
  %v4445 = vsel %vm613, %v4442, %v4444
  %v4446 = vrot.slane %v3854, 1
  %v4447 = vrot.slane %v3855, 1
  %v4448 = vsel %vm613, %v4446, %v4447
  %v4449 = vrot.slane %v3856, 1
  %v4450 = vsel %vm613, %v4447, %v4449
  %v4455 = vrot.slane %v3800, 2
  %v4456 = vrot.slane %v3801, 2
  %v4457 = vsel %vm838, %v4455, %v4456
  %v4458 = vrot.slane %v3802, 2
  %v4459 = vsel %vm838, %v4456, %v4458
  %v4460 = vrot.slane %v3854, 2
  %v4461 = vrot.slane %v3855, 2
  %v4462 = vsel %vm838, %v4460, %v4461
  %v4463 = vrot.slane %v3856, 2
  %v4464 = vsel %vm838, %v4461, %v4463
  %4469 = vmatpush.msra.mxu0 %v3618
  %4470 = vmatpush.msra.mxu0 %v3617
  %4471 = vmatpush.msra.mxu0 %v3616
  %4472 = vmatpush.msra.mxu0 %v3615
  %4473 = vmatpush.msra.mxu0 %v3614
  %4474 = vmatpush.msra.mxu0 %v3613
  %4475 = vmatpush.msra.mxu0 %v3612
  %4476 = vmatpush.msra.mxu0 %v3611
  %4477 = vmatpush.msra.mxu0 %v3610
  %4478 = vmatpush.msra.mxu0 %v3609
  %4479 = vmatpush.msra.mxu0 %v3608
  %4480 = vmatpush.msra.mxu0 %v3607
  %4481 = vmatpush.msra.mxu0 %v3606
  %4482 = vmatpush.msra.mxu0 %v3605
  %4483 = vmatpush.msra.mxu0 %v3604
  %4484 = vmatpush.msra.mxu0 %v3603
  %4485 = vmatmul.f32.gmra.mxu0 %v3749
  %v4486 = vpop.f32.mrf.mxu0
  %v4487 = vadd.f32 0.0, %v4486
  %4488 = vmatmul.f32.gmra.mxu0 %v3750
  %v4489 = vpop.f32.mrf.mxu0
  %v4490 = vadd.f32 0.0, %v4489
  %4491 = vmatmul.f32.gmra.mxu0 %v3752
  %v4492 = vpop.f32.mrf.mxu0
  %v4493 = vadd.f32 0.0, %v4492
  %4494 = vmatmul.f32.gmra.mxu0 %v3753
  %v4495 = vpop.f32.mrf.mxu0
  %v4496 = vadd.f32 0.0, %v4495
  %4497 = vmatmul.f32.gmra.mxu0 %v3755
  %v4498 = vpop.f32.mrf.mxu0
  %v4499 = vadd.f32 0.0, %v4498
  %4500 = vmatmul.f32.gmra.mxu0 %v3756
  %v4501 = vpop.f32.mrf.mxu0
  %v4502 = vadd.f32 0.0, %v4501
  %4503 = vmatmul.f32.gmra.mxu0 %v3758
  %v4504 = vpop.f32.mrf.mxu0
  %v4505 = vadd.f32 0.0, %v4504
  %4506 = vmatmul.f32.gmra.mxu0 %v3759
  %v4507 = vpop.f32.mrf.mxu0
  %v4508 = vadd.f32 0.0, %v4507
  %4509 = vmatmul.f32.gmra.mxu0 %v3761
  %v4510 = vpop.f32.mrf.mxu0
  %v4511 = vadd.f32 0.0, %v4510
  %4512 = vmatmul.f32.gmra.mxu0 %v3762
  %v4513 = vpop.f32.mrf.mxu0
  %v4514 = vadd.f32 0.0, %v4513
  %4515 = vmatmul.f32.gmra.mxu0 %v3764
  %v4516 = vpop.f32.mrf.mxu0
  %v4517 = vadd.f32 0.0, %v4516
  %4518 = vmatmul.f32.gmra.mxu0 %v3765
  %v4519 = vpop.f32.mrf.mxu0
  %v4520 = vadd.f32 0.0, %v4519
  %4521 = vmatmul.f32.gmra.mxu0 %v3767
  %v4522 = vpop.f32.mrf.mxu0
  %v4523 = vadd.f32 0.0, %v4522
  %4524 = vmatmul.f32.gmra.mxu0 %v3768
  %v4525 = vpop.f32.mrf.mxu0
  %v4526 = vadd.f32 0.0, %v4525
  %4527 = vmatmul.f32.gmra.mxu0 %v3770
  %v4528 = vpop.f32.mrf.mxu0
  %v4529 = vadd.f32 0.0, %v4528
  %4530 = vmatmul.f32.gmra.mxu0 %v3771
  %v4531 = vpop.f32.mrf.mxu0
  %v4532 = vadd.f32 0.0, %v4531
  %4533 = vmatmul.f32.gmra.mxu0 %v3773
  %v4534 = vpop.f32.mrf.mxu0
  %v4535 = vadd.f32 0.0, %v4534
  %4536 = vmatmul.f32.gmra.mxu0 %v3774
  %v4537 = vpop.f32.mrf.mxu0
  %v4538 = vadd.f32 0.0, %v4537
  %4539 = vmatmul.f32.gmra.mxu0 %v3776
  %v4540 = vpop.f32.mrf.mxu0
  %v4541 = vadd.f32 0.0, %v4540
  %4542 = vmatmul.f32.gmra.mxu0 %v3777
  %v4543 = vpop.f32.mrf.mxu0
  %v4544 = vadd.f32 0.0, %v4543
  %4545 = vmatmul.f32.gmra.mxu0 %v3779
  %v4546 = vpop.f32.mrf.mxu0
  %v4547 = vadd.f32 0.0, %v4546
  %4548 = vmatmul.f32.gmra.mxu0 %v3780
  %v4549 = vpop.f32.mrf.mxu0
  %v4550 = vadd.f32 0.0, %v4549
  %4551 = vmatmul.f32.gmra.mxu0 %v3782
  %v4552 = vpop.f32.mrf.mxu0
  %v4553 = vadd.f32 0.0, %v4552
  %4554 = vmatmul.f32.gmra.mxu0 %v3783
  %v4555 = vpop.f32.mrf.mxu0
  %v4556 = vadd.f32 0.0, %v4555
  %4557 = vmatmul.f32.gmra.mxu0 %v3785
  %v4558 = vpop.f32.mrf.mxu0
  %v4559 = vadd.f32 0.0, %v4558
  %4560 = vmatmul.f32.gmra.mxu0 %v3786
  %v4561 = vpop.f32.mrf.mxu0
  %v4562 = vadd.f32 0.0, %v4561
  %4563 = vmatmul.f32.gmra.mxu0 %v3788
  %v4564 = vpop.f32.mrf.mxu0
  %v4565 = vadd.f32 0.0, %v4564
  %4566 = vmatmul.f32.gmra.mxu0 %v3789
  %v4567 = vpop.f32.mrf.mxu0
  %v4568 = vadd.f32 0.0, %v4567
  %4569 = vmatmul.f32.gmra.mxu0 %v3791
  %v4570 = vpop.f32.mrf.mxu0
  %v4571 = vadd.f32 0.0, %v4570
  %4572 = vmatmul.f32.gmra.mxu0 %v3792
  %v4573 = vpop.f32.mrf.mxu0
  %v4574 = vadd.f32 0.0, %v4573
  %4575 = vmatmul.f32.gmra.mxu0 %v3794
  %v4576 = vpop.f32.mrf.mxu0
  %v4577 = vadd.f32 0.0, %v4576
  %4578 = vmatmul.f32.gmra.mxu0 %v3795
  %v4579 = vpop.f32.mrf.mxu0
  %v4580 = vadd.f32 0.0, %v4579
  %4581 = vmatmul.f32.gmra.mxu0 %v3803
  %v4582 = vpop.f32.mrf.mxu0
  %v4583 = vadd.f32 0.0, %v4582
  %4584 = vmatmul.f32.gmra.mxu0 %v3804
  %v4585 = vpop.f32.mrf.mxu0
  %v4586 = vadd.f32 0.0, %v4585
  %4587 = vmatmul.f32.gmra.mxu0 %v3806
  %v4588 = vpop.f32.mrf.mxu0
  %v4589 = vadd.f32 0.0, %v4588
  %4590 = vmatmul.f32.gmra.mxu0 %v3807
  %v4591 = vpop.f32.mrf.mxu0
  %v4592 = vadd.f32 0.0, %v4591
  %4593 = vmatmul.f32.gmra.mxu0 %v3809
  %v4594 = vpop.f32.mrf.mxu0
  %v4595 = vadd.f32 0.0, %v4594
  %4596 = vmatmul.f32.gmra.mxu0 %v3810
  %v4597 = vpop.f32.mrf.mxu0
  %v4598 = vadd.f32 0.0, %v4597
  %4599 = vmatmul.f32.gmra.mxu0 %v3812
  %v4600 = vpop.f32.mrf.mxu0
  %v4601 = vadd.f32 0.0, %v4600
  %4602 = vmatmul.f32.gmra.mxu0 %v3813
  %v4603 = vpop.f32.mrf.mxu0
  %v4604 = vadd.f32 0.0, %v4603
  %4605 = vmatmul.f32.gmra.mxu0 %v3815
  %v4606 = vpop.f32.mrf.mxu0
  %v4607 = vadd.f32 0.0, %v4606
  %4608 = vmatmul.f32.gmra.mxu0 %v3816
  %v4609 = vpop.f32.mrf.mxu0
  %v4610 = vadd.f32 0.0, %v4609
  %4611 = vmatmul.f32.gmra.mxu0 %v3818
  %v4612 = vpop.f32.mrf.mxu0
  %v4613 = vadd.f32 0.0, %v4612
  %4614 = vmatmul.f32.gmra.mxu0 %v3819
  %v4615 = vpop.f32.mrf.mxu0
  %v4616 = vadd.f32 0.0, %v4615
  %4617 = vmatmul.f32.gmra.mxu0 %v3821
  %v4618 = vpop.f32.mrf.mxu0
  %v4619 = vadd.f32 0.0, %v4618
  %4620 = vmatmul.f32.gmra.mxu0 %v3822
  %v4621 = vpop.f32.mrf.mxu0
  %v4622 = vadd.f32 0.0, %v4621
  %4623 = vmatmul.f32.gmra.mxu0 %v3824
  %v4624 = vpop.f32.mrf.mxu0
  %v4625 = vadd.f32 0.0, %v4624
  %4626 = vmatmul.f32.gmra.mxu0 %v3825
  %v4627 = vpop.f32.mrf.mxu0
  %v4628 = vadd.f32 0.0, %v4627
  %4629 = vmatmul.f32.gmra.mxu0 %v3827
  %v4630 = vpop.f32.mrf.mxu0
  %v4631 = vadd.f32 0.0, %v4630
  %4632 = vmatmul.f32.gmra.mxu0 %v3828
  %v4633 = vpop.f32.mrf.mxu0
  %v4634 = vadd.f32 0.0, %v4633
  %4635 = vmatmul.f32.gmra.mxu0 %v3830
  %v4636 = vpop.f32.mrf.mxu0
  %v4637 = vadd.f32 0.0, %v4636
  %4638 = vmatmul.f32.gmra.mxu0 %v3831
  %v4639 = vpop.f32.mrf.mxu0
  %v4640 = vadd.f32 0.0, %v4639
  %4641 = vmatmul.f32.gmra.mxu0 %v3833
  %v4642 = vpop.f32.mrf.mxu0
  %v4643 = vadd.f32 0.0, %v4642
  %4644 = vmatmul.f32.gmra.mxu0 %v3834
  %v4645 = vpop.f32.mrf.mxu0
  %v4646 = vadd.f32 0.0, %v4645
  %4647 = vmatmul.f32.gmra.mxu0 %v3836
  %v4648 = vpop.f32.mrf.mxu0
  %v4649 = vadd.f32 0.0, %v4648
  %4650 = vmatmul.f32.gmra.mxu0 %v3837
  %v4651 = vpop.f32.mrf.mxu0
  %v4652 = vadd.f32 0.0, %v4651
  %4653 = vmatmul.f32.gmra.mxu0 %v3839
  %v4654 = vpop.f32.mrf.mxu0
  %v4655 = vadd.f32 0.0, %v4654
  %4656 = vmatmul.f32.gmra.mxu0 %v3840
  %v4657 = vpop.f32.mrf.mxu0
  %v4658 = vadd.f32 0.0, %v4657
  %4659 = vmatmul.f32.gmra.mxu0 %v3842
  %v4660 = vpop.f32.mrf.mxu0
  %v4661 = vadd.f32 0.0, %v4660
  %4662 = vmatmul.f32.gmra.mxu0 %v3843
  %v4663 = vpop.f32.mrf.mxu0
  %v4664 = vadd.f32 0.0, %v4663
  %4665 = vmatmul.f32.gmra.mxu0 %v3845
  %v4666 = vpop.f32.mrf.mxu0
  %v4667 = vadd.f32 0.0, %v4666
  %4668 = vmatmul.f32.gmra.mxu0 %v3846
  %v4669 = vpop.f32.mrf.mxu0
  %v4670 = vadd.f32 0.0, %v4669
  %4671 = vmatmul.f32.gmra.mxu0 %v3848
  %v4672 = vpop.f32.mrf.mxu0
  %v4673 = vadd.f32 0.0, %v4672
  %4674 = vmatmul.f32.gmra.mxu0 %v3849
  %v4675 = vpop.f32.mrf.mxu0
  %v4676 = vadd.f32 0.0, %v4675
  %4677 = vdwg.mxu0
  %4678 = vmatpush.msra.mxu0 %v3634
  %4679 = vmatpush.msra.mxu0 %v3633
  %4680 = vmatpush.msra.mxu0 %v3632
  %4681 = vmatpush.msra.mxu0 %v3631
  %4682 = vmatpush.msra.mxu0 %v3630
  %4683 = vmatpush.msra.mxu0 %v3629
  %4684 = vmatpush.msra.mxu0 %v3628
  %4685 = vmatpush.msra.mxu0 %v3627
  %4686 = vmatpush.msra.mxu0 %v3626
  %4687 = vmatpush.msra.mxu0 %v3625
  %4688 = vmatpush.msra.mxu0 %v3624
  %4689 = vmatpush.msra.mxu0 %v3623
  %4690 = vmatpush.msra.mxu0 %v3622
  %4691 = vmatpush.msra.mxu0 %v3621
  %4692 = vmatpush.msra.mxu0 %v3620
  %4693 = vmatpush.msra.mxu0 %v3619
  %4694 = vmatmul.f32.gmra.mxu0 %v3955
  %v4695 = vpop.f32.mrf.mxu0
  %v4696 = vadd.f32 %v4487, %v4695
  %4697 = vmatmul.f32.gmra.mxu0 %v3957
  %v4698 = vpop.f32.mrf.mxu0
  %v4699 = vadd.f32 %v4490, %v4698
  %4700 = vmatmul.f32.gmra.mxu0 %v3960
  %v4701 = vpop.f32.mrf.mxu0
  %v4702 = vadd.f32 %v4493, %v4701
  %4703 = vmatmul.f32.gmra.mxu0 %v3962
  %v4704 = vpop.f32.mrf.mxu0
  %v4705 = vadd.f32 %v4496, %v4704
  %4706 = vmatmul.f32.gmra.mxu0 %v3965
  %v4707 = vpop.f32.mrf.mxu0
  %v4708 = vadd.f32 %v4499, %v4707
  %4709 = vmatmul.f32.gmra.mxu0 %v3967
  %v4710 = vpop.f32.mrf.mxu0
  %v4711 = vadd.f32 %v4502, %v4710
  %4712 = vmatmul.f32.gmra.mxu0 %v3970
  %v4713 = vpop.f32.mrf.mxu0
  %v4714 = vadd.f32 %v4505, %v4713
  %4715 = vmatmul.f32.gmra.mxu0 %v3972
  %v4716 = vpop.f32.mrf.mxu0
  %v4717 = vadd.f32 %v4508, %v4716
  %4718 = vmatmul.f32.gmra.mxu0 %v3975
  %v4719 = vpop.f32.mrf.mxu0
  %v4720 = vadd.f32 %v4511, %v4719
  %4721 = vmatmul.f32.gmra.mxu0 %v3977
  %v4722 = vpop.f32.mrf.mxu0
  %v4723 = vadd.f32 %v4514, %v4722
  %4724 = vmatmul.f32.gmra.mxu0 %v3980
  %v4725 = vpop.f32.mrf.mxu0
  %v4726 = vadd.f32 %v4517, %v4725
  %4727 = vmatmul.f32.gmra.mxu0 %v3982
  %v4728 = vpop.f32.mrf.mxu0
  %v4729 = vadd.f32 %v4520, %v4728
  %4730 = vmatmul.f32.gmra.mxu0 %v3985
  %v4731 = vpop.f32.mrf.mxu0
  %v4732 = vadd.f32 %v4523, %v4731
  %4733 = vmatmul.f32.gmra.mxu0 %v3987
  %v4734 = vpop.f32.mrf.mxu0
  %v4735 = vadd.f32 %v4526, %v4734
  %4736 = vmatmul.f32.gmra.mxu0 %v3990
  %v4737 = vpop.f32.mrf.mxu0
  %v4738 = vadd.f32 %v4529, %v4737
  %4739 = vmatmul.f32.gmra.mxu0 %v3992
  %v4740 = vpop.f32.mrf.mxu0
  %v4741 = vadd.f32 %v4532, %v4740
  %4742 = vmatmul.f32.gmra.mxu0 %v3995
  %v4743 = vpop.f32.mrf.mxu0
  %v4744 = vadd.f32 %v4535, %v4743
  %4745 = vmatmul.f32.gmra.mxu0 %v3997
  %v4746 = vpop.f32.mrf.mxu0
  %v4747 = vadd.f32 %v4538, %v4746
  %4748 = vmatmul.f32.gmra.mxu0 %v4000
  %v4749 = vpop.f32.mrf.mxu0
  %v4750 = vadd.f32 %v4541, %v4749
  %4751 = vmatmul.f32.gmra.mxu0 %v4002
  %v4752 = vpop.f32.mrf.mxu0
  %v4753 = vadd.f32 %v4544, %v4752
  %4754 = vmatmul.f32.gmra.mxu0 %v4005
  %v4755 = vpop.f32.mrf.mxu0
  %v4756 = vadd.f32 %v4547, %v4755
  %4757 = vmatmul.f32.gmra.mxu0 %v4007
  %v4758 = vpop.f32.mrf.mxu0
  %v4759 = vadd.f32 %v4550, %v4758
  %4760 = vmatmul.f32.gmra.mxu0 %v4010
  %v4761 = vpop.f32.mrf.mxu0
  %v4762 = vadd.f32 %v4553, %v4761
  %4763 = vmatmul.f32.gmra.mxu0 %v4012
  %v4764 = vpop.f32.mrf.mxu0
  %v4765 = vadd.f32 %v4556, %v4764
  %4766 = vmatmul.f32.gmra.mxu0 %v4015
  %v4767 = vpop.f32.mrf.mxu0
  %v4768 = vadd.f32 %v4559, %v4767
  %4769 = vmatmul.f32.gmra.mxu0 %v4017
  %v4770 = vpop.f32.mrf.mxu0
  %v4771 = vadd.f32 %v4562, %v4770
  %4772 = vmatmul.f32.gmra.mxu0 %v4020
  %v4773 = vpop.f32.mrf.mxu0
  %v4774 = vadd.f32 %v4565, %v4773
  %4775 = vmatmul.f32.gmra.mxu0 %v4022
  %v4776 = vpop.f32.mrf.mxu0
  %v4777 = vadd.f32 %v4568, %v4776
  %4778 = vmatmul.f32.gmra.mxu0 %v4025
  %v4779 = vpop.f32.mrf.mxu0
  %v4780 = vadd.f32 %v4571, %v4779
  %4781 = vmatmul.f32.gmra.mxu0 %v4027
  %v4782 = vpop.f32.mrf.mxu0
  %v4783 = vadd.f32 %v4574, %v4782
  %4784 = vmatmul.f32.gmra.mxu0 %v4030
  %v4785 = vpop.f32.mrf.mxu0
  %v4786 = vadd.f32 %v4577, %v4785
  %4787 = vmatmul.f32.gmra.mxu0 %v4032
  %v4788 = vpop.f32.mrf.mxu0
  %v4789 = vadd.f32 %v4580, %v4788
  %4790 = vmatmul.f32.gmra.mxu0 %v4035
  %v4791 = vpop.f32.mrf.mxu0
  %v4792 = vadd.f32 %v4583, %v4791
  %4793 = vmatmul.f32.gmra.mxu0 %v4037
  %v4794 = vpop.f32.mrf.mxu0
  %v4795 = vadd.f32 %v4586, %v4794
  %4796 = vmatmul.f32.gmra.mxu0 %v4040
  %v4797 = vpop.f32.mrf.mxu0
  %v4798 = vadd.f32 %v4589, %v4797
  %4799 = vmatmul.f32.gmra.mxu0 %v4042
  %v4800 = vpop.f32.mrf.mxu0
  %v4801 = vadd.f32 %v4592, %v4800
  %4802 = vmatmul.f32.gmra.mxu0 %v4045
  %v4803 = vpop.f32.mrf.mxu0
  %v4804 = vadd.f32 %v4595, %v4803
  %4805 = vmatmul.f32.gmra.mxu0 %v4047
  %v4806 = vpop.f32.mrf.mxu0
  %v4807 = vadd.f32 %v4598, %v4806
  %4808 = vmatmul.f32.gmra.mxu0 %v4050
  %v4809 = vpop.f32.mrf.mxu0
  %v4810 = vadd.f32 %v4601, %v4809
  %4811 = vmatmul.f32.gmra.mxu0 %v4052
  %v4812 = vpop.f32.mrf.mxu0
  %v4813 = vadd.f32 %v4604, %v4812
  %4814 = vmatmul.f32.gmra.mxu0 %v4055
  %v4815 = vpop.f32.mrf.mxu0
  %v4816 = vadd.f32 %v4607, %v4815
  %4817 = vmatmul.f32.gmra.mxu0 %v4057
  %v4818 = vpop.f32.mrf.mxu0
  %v4819 = vadd.f32 %v4610, %v4818
  %4820 = vmatmul.f32.gmra.mxu0 %v4060
  %v4821 = vpop.f32.mrf.mxu0
  %v4822 = vadd.f32 %v4613, %v4821
  %4823 = vmatmul.f32.gmra.mxu0 %v4062
  %v4824 = vpop.f32.mrf.mxu0
  %v4825 = vadd.f32 %v4616, %v4824
  %4826 = vmatmul.f32.gmra.mxu0 %v4065
  %v4827 = vpop.f32.mrf.mxu0
  %v4828 = vadd.f32 %v4619, %v4827
  %4829 = vmatmul.f32.gmra.mxu0 %v4067
  %v4830 = vpop.f32.mrf.mxu0
  %v4831 = vadd.f32 %v4622, %v4830
  %4832 = vmatmul.f32.gmra.mxu0 %v4070
  %v4833 = vpop.f32.mrf.mxu0
  %v4834 = vadd.f32 %v4625, %v4833
  %4835 = vmatmul.f32.gmra.mxu0 %v4072
  %v4836 = vpop.f32.mrf.mxu0
  %v4837 = vadd.f32 %v4628, %v4836
  %4838 = vmatmul.f32.gmra.mxu0 %v4075
  %v4839 = vpop.f32.mrf.mxu0
  %v4840 = vadd.f32 %v4631, %v4839
  %4841 = vmatmul.f32.gmra.mxu0 %v4077
  %v4842 = vpop.f32.mrf.mxu0
  %v4843 = vadd.f32 %v4634, %v4842
  %4844 = vmatmul.f32.gmra.mxu0 %v4080
  %v4845 = vpop.f32.mrf.mxu0
  %v4846 = vadd.f32 %v4637, %v4845
  %4847 = vmatmul.f32.gmra.mxu0 %v4082
  %v4848 = vpop.f32.mrf.mxu0
  %v4849 = vadd.f32 %v4640, %v4848
  %4850 = vmatmul.f32.gmra.mxu0 %v4085
  %v4851 = vpop.f32.mrf.mxu0
  %v4852 = vadd.f32 %v4643, %v4851
  %4853 = vmatmul.f32.gmra.mxu0 %v4087
  %v4854 = vpop.f32.mrf.mxu0
  %v4855 = vadd.f32 %v4646, %v4854
  %4856 = vmatmul.f32.gmra.mxu0 %v4090
  %v4857 = vpop.f32.mrf.mxu0
  %v4858 = vadd.f32 %v4649, %v4857
  %4859 = vmatmul.f32.gmra.mxu0 %v4092
  %v4860 = vpop.f32.mrf.mxu0
  %v4861 = vadd.f32 %v4652, %v4860
  %4862 = vmatmul.f32.gmra.mxu0 %v4095
  %v4863 = vpop.f32.mrf.mxu0
  %v4864 = vadd.f32 %v4655, %v4863
  %4865 = vmatmul.f32.gmra.mxu0 %v4097
  %v4866 = vpop.f32.mrf.mxu0
  %v4867 = vadd.f32 %v4658, %v4866
  %4868 = vmatmul.f32.gmra.mxu0 %v4100
  %v4869 = vpop.f32.mrf.mxu0
  %v4870 = vadd.f32 %v4661, %v4869
  %4871 = vmatmul.f32.gmra.mxu0 %v4102
  %v4872 = vpop.f32.mrf.mxu0
  %v4873 = vadd.f32 %v4664, %v4872
  %4874 = vmatmul.f32.gmra.mxu0 %v4105
  %v4875 = vpop.f32.mrf.mxu0
  %v4876 = vadd.f32 %v4667, %v4875
  %4877 = vmatmul.f32.gmra.mxu0 %v4107
  %v4878 = vpop.f32.mrf.mxu0
  %v4879 = vadd.f32 %v4670, %v4878
  %4880 = vmatmul.f32.gmra.mxu0 %v4110
  %v4881 = vpop.f32.mrf.mxu0
  %v4882 = vadd.f32 %v4673, %v4881
  %4883 = vmatmul.f32.gmra.mxu0 %v4112
  %v4884 = vpop.f32.mrf.mxu0
  %v4885 = vadd.f32 %v4676, %v4884
  %4886 = vdwg.mxu0
  %4887 = vmatpush.msra.mxu0 %v3650
  %4888 = vmatpush.msra.mxu0 %v3649
  %4889 = vmatpush.msra.mxu0 %v3648
  %4890 = vmatpush.msra.mxu0 %v3647
  %4891 = vmatpush.msra.mxu0 %v3646
  %4892 = vmatpush.msra.mxu0 %v3645
  %4893 = vmatpush.msra.mxu0 %v3644
  %4894 = vmatpush.msra.mxu0 %v3643
  %4895 = vmatpush.msra.mxu0 %v3642
  %4896 = vmatpush.msra.mxu0 %v3641
  %4897 = vmatpush.msra.mxu0 %v3640
  %4898 = vmatpush.msra.mxu0 %v3639
  %4899 = vmatpush.msra.mxu0 %v3638
  %4900 = vmatpush.msra.mxu0 %v3637
  %4901 = vmatpush.msra.mxu0 %v3636
  %4902 = vmatpush.msra.mxu0 %v3635
  %4903 = vmatmul.f32.gmra.mxu0 %v4179
  %v4904 = vpop.f32.mrf.mxu0
  %v4905 = vadd.f32 %v4696, %v4904
  %4906 = vmatmul.f32.gmra.mxu0 %v4181
  %v4907 = vpop.f32.mrf.mxu0
  %v4908 = vadd.f32 %v4699, %v4907
  %4909 = vmatmul.f32.gmra.mxu0 %v4184
  %v4910 = vpop.f32.mrf.mxu0
  %v4911 = vadd.f32 %v4702, %v4910
  %4912 = vmatmul.f32.gmra.mxu0 %v4186
  %v4913 = vpop.f32.mrf.mxu0
  %v4914 = vadd.f32 %v4705, %v4913
  %4915 = vmatmul.f32.gmra.mxu0 %v4189
  %v4916 = vpop.f32.mrf.mxu0
  %v4917 = vadd.f32 %v4708, %v4916
  %4918 = vmatmul.f32.gmra.mxu0 %v4191
  %v4919 = vpop.f32.mrf.mxu0
  %v4920 = vadd.f32 %v4711, %v4919
  %4921 = vmatmul.f32.gmra.mxu0 %v4194
  %v4922 = vpop.f32.mrf.mxu0
  %v4923 = vadd.f32 %v4714, %v4922
  %4924 = vmatmul.f32.gmra.mxu0 %v4196
  %v4925 = vpop.f32.mrf.mxu0
  %v4926 = vadd.f32 %v4717, %v4925
  %4927 = vmatmul.f32.gmra.mxu0 %v4199
  %v4928 = vpop.f32.mrf.mxu0
  %v4929 = vadd.f32 %v4720, %v4928
  %4930 = vmatmul.f32.gmra.mxu0 %v4201
  %v4931 = vpop.f32.mrf.mxu0
  %v4932 = vadd.f32 %v4723, %v4931
  %4933 = vmatmul.f32.gmra.mxu0 %v4204
  %v4934 = vpop.f32.mrf.mxu0
  %v4935 = vadd.f32 %v4726, %v4934
  %4936 = vmatmul.f32.gmra.mxu0 %v4206
  %v4937 = vpop.f32.mrf.mxu0
  %v4938 = vadd.f32 %v4729, %v4937
  %4939 = vmatmul.f32.gmra.mxu0 %v4209
  %v4940 = vpop.f32.mrf.mxu0
  %v4941 = vadd.f32 %v4732, %v4940
  %4942 = vmatmul.f32.gmra.mxu0 %v4211
  %v4943 = vpop.f32.mrf.mxu0
  %v4944 = vadd.f32 %v4735, %v4943
  %4945 = vmatmul.f32.gmra.mxu0 %v4214
  %v4946 = vpop.f32.mrf.mxu0
  %v4947 = vadd.f32 %v4738, %v4946
  %4948 = vmatmul.f32.gmra.mxu0 %v4216
  %v4949 = vpop.f32.mrf.mxu0
  %v4950 = vadd.f32 %v4741, %v4949
  %4951 = vmatmul.f32.gmra.mxu0 %v4219
  %v4952 = vpop.f32.mrf.mxu0
  %v4953 = vadd.f32 %v4744, %v4952
  %4954 = vmatmul.f32.gmra.mxu0 %v4221
  %v4955 = vpop.f32.mrf.mxu0
  %v4956 = vadd.f32 %v4747, %v4955
  %4957 = vmatmul.f32.gmra.mxu0 %v4224
  %v4958 = vpop.f32.mrf.mxu0
  %v4959 = vadd.f32 %v4750, %v4958
  %4960 = vmatmul.f32.gmra.mxu0 %v4226
  %v4961 = vpop.f32.mrf.mxu0
  %v4962 = vadd.f32 %v4753, %v4961
  %4963 = vmatmul.f32.gmra.mxu0 %v4229
  %v4964 = vpop.f32.mrf.mxu0
  %v4965 = vadd.f32 %v4756, %v4964
  %4966 = vmatmul.f32.gmra.mxu0 %v4231
  %v4967 = vpop.f32.mrf.mxu0
  %v4968 = vadd.f32 %v4759, %v4967
  %4969 = vmatmul.f32.gmra.mxu0 %v4234
  %v4970 = vpop.f32.mrf.mxu0
  %v4971 = vadd.f32 %v4762, %v4970
  %4972 = vmatmul.f32.gmra.mxu0 %v4236
  %v4973 = vpop.f32.mrf.mxu0
  %v4974 = vadd.f32 %v4765, %v4973
  %4975 = vmatmul.f32.gmra.mxu0 %v4239
  %v4976 = vpop.f32.mrf.mxu0
  %v4977 = vadd.f32 %v4768, %v4976
  %4978 = vmatmul.f32.gmra.mxu0 %v4241
  %v4979 = vpop.f32.mrf.mxu0
  %v4980 = vadd.f32 %v4771, %v4979
  %4981 = vmatmul.f32.gmra.mxu0 %v4244
  %v4982 = vpop.f32.mrf.mxu0
  %v4983 = vadd.f32 %v4774, %v4982
  %4984 = vmatmul.f32.gmra.mxu0 %v4246
  %v4985 = vpop.f32.mrf.mxu0
  %v4986 = vadd.f32 %v4777, %v4985
  %4987 = vmatmul.f32.gmra.mxu0 %v4249
  %v4988 = vpop.f32.mrf.mxu0
  %v4989 = vadd.f32 %v4780, %v4988
  %4990 = vmatmul.f32.gmra.mxu0 %v4251
  %v4991 = vpop.f32.mrf.mxu0
  %v4992 = vadd.f32 %v4783, %v4991
  %4993 = vmatmul.f32.gmra.mxu0 %v4254
  %v4994 = vpop.f32.mrf.mxu0
  %v4995 = vadd.f32 %v4786, %v4994
  %4996 = vmatmul.f32.gmra.mxu0 %v4256
  %v4997 = vpop.f32.mrf.mxu0
  %v4998 = vadd.f32 %v4789, %v4997
  %4999 = vmatmul.f32.gmra.mxu0 %v4259
  %v5000 = vpop.f32.mrf.mxu0
  %v5001 = vadd.f32 %v4792, %v5000
  %5002 = vmatmul.f32.gmra.mxu0 %v4261
  %v5003 = vpop.f32.mrf.mxu0
  %v5004 = vadd.f32 %v4795, %v5003
  %5005 = vmatmul.f32.gmra.mxu0 %v4264
  %v5006 = vpop.f32.mrf.mxu0
  %v5007 = vadd.f32 %v4798, %v5006
  %5008 = vmatmul.f32.gmra.mxu0 %v4266
  %v5009 = vpop.f32.mrf.mxu0
  %v5010 = vadd.f32 %v4801, %v5009
  %5011 = vmatmul.f32.gmra.mxu0 %v4269
  %v5012 = vpop.f32.mrf.mxu0
  %v5013 = vadd.f32 %v4804, %v5012
  %5014 = vmatmul.f32.gmra.mxu0 %v4271
  %v5015 = vpop.f32.mrf.mxu0
  %v5016 = vadd.f32 %v4807, %v5015
  %5017 = vmatmul.f32.gmra.mxu0 %v4274
  %v5018 = vpop.f32.mrf.mxu0
  %v5019 = vadd.f32 %v4810, %v5018
  %5020 = vmatmul.f32.gmra.mxu0 %v4276
  %v5021 = vpop.f32.mrf.mxu0
  %v5022 = vadd.f32 %v4813, %v5021
  %5023 = vmatmul.f32.gmra.mxu0 %v4279
  %v5024 = vpop.f32.mrf.mxu0
  %v5025 = vadd.f32 %v4816, %v5024
  %5026 = vmatmul.f32.gmra.mxu0 %v4281
  %v5027 = vpop.f32.mrf.mxu0
  %v5028 = vadd.f32 %v4819, %v5027
  %5029 = vmatmul.f32.gmra.mxu0 %v4284
  %v5030 = vpop.f32.mrf.mxu0
  %v5031 = vadd.f32 %v4822, %v5030
  %5032 = vmatmul.f32.gmra.mxu0 %v4286
  %v5033 = vpop.f32.mrf.mxu0
  %v5034 = vadd.f32 %v4825, %v5033
  %5035 = vmatmul.f32.gmra.mxu0 %v4289
  %v5036 = vpop.f32.mrf.mxu0
  %v5037 = vadd.f32 %v4828, %v5036
  %5038 = vmatmul.f32.gmra.mxu0 %v4291
  %v5039 = vpop.f32.mrf.mxu0
  %v5040 = vadd.f32 %v4831, %v5039
  %5041 = vmatmul.f32.gmra.mxu0 %v4294
  %v5042 = vpop.f32.mrf.mxu0
  %v5043 = vadd.f32 %v4834, %v5042
  %5044 = vmatmul.f32.gmra.mxu0 %v4296
  %v5045 = vpop.f32.mrf.mxu0
  %v5046 = vadd.f32 %v4837, %v5045
  %5047 = vmatmul.f32.gmra.mxu0 %v4299
  %v5048 = vpop.f32.mrf.mxu0
  %v5049 = vadd.f32 %v4840, %v5048
  %5050 = vmatmul.f32.gmra.mxu0 %v4301
  %v5051 = vpop.f32.mrf.mxu0
  %v5052 = vadd.f32 %v4843, %v5051
  %5053 = vmatmul.f32.gmra.mxu0 %v4304
  %v5054 = vpop.f32.mrf.mxu0
  %v5055 = vadd.f32 %v4846, %v5054
  %5056 = vmatmul.f32.gmra.mxu0 %v4306
  %v5057 = vpop.f32.mrf.mxu0
  %v5058 = vadd.f32 %v4849, %v5057
  %5059 = vmatmul.f32.gmra.mxu0 %v4309
  %v5060 = vpop.f32.mrf.mxu0
  %v5061 = vadd.f32 %v4852, %v5060
  %5062 = vmatmul.f32.gmra.mxu0 %v4311
  %v5063 = vpop.f32.mrf.mxu0
  %v5064 = vadd.f32 %v4855, %v5063
  %5065 = vmatmul.f32.gmra.mxu0 %v4314
  %v5066 = vpop.f32.mrf.mxu0
  %v5067 = vadd.f32 %v4858, %v5066
  %5068 = vmatmul.f32.gmra.mxu0 %v4316
  %v5069 = vpop.f32.mrf.mxu0
  %v5070 = vadd.f32 %v4861, %v5069
  %5071 = vmatmul.f32.gmra.mxu0 %v4319
  %v5072 = vpop.f32.mrf.mxu0
  %v5073 = vadd.f32 %v4864, %v5072
  %5074 = vmatmul.f32.gmra.mxu0 %v4321
  %v5075 = vpop.f32.mrf.mxu0
  %v5076 = vadd.f32 %v4867, %v5075
  %5077 = vmatmul.f32.gmra.mxu0 %v4324
  %v5078 = vpop.f32.mrf.mxu0
  %v5079 = vadd.f32 %v4870, %v5078
  %5080 = vmatmul.f32.gmra.mxu0 %v4326
  %v5081 = vpop.f32.mrf.mxu0
  %v5082 = vadd.f32 %v4873, %v5081
  %5083 = vmatmul.f32.gmra.mxu0 %v4329
  %v5084 = vpop.f32.mrf.mxu0
  %v5085 = vadd.f32 %v4876, %v5084
  %5086 = vmatmul.f32.gmra.mxu0 %v4331
  %v5087 = vpop.f32.mrf.mxu0
  %v5088 = vadd.f32 %v4879, %v5087
  %5089 = vmatmul.f32.gmra.mxu0 %v4334
  %v5090 = vpop.f32.mrf.mxu0
  %v5091 = vadd.f32 %v4882, %v5090
  %5092 = vmatmul.f32.gmra.mxu0 %v4336
  %v5093 = vpop.f32.mrf.mxu0
  %v5094 = vadd.f32 %v4885, %v5093
  %5095 = vdwg.mxu0
  %5096 = vmatpush.msra.mxu0 %v3666
  %5097 = vmatpush.msra.mxu0 %v3665
  %5098 = vmatpush.msra.mxu0 %v3664
  %5099 = vmatpush.msra.mxu0 %v3663
  %5100 = vmatpush.msra.mxu0 %v3662
  %5101 = vmatpush.msra.mxu0 %v3661
  %5102 = vmatpush.msra.mxu0 %v3660
  %5103 = vmatpush.msra.mxu0 %v3659
  %5104 = vmatpush.msra.mxu0 %v3658
  %5105 = vmatpush.msra.mxu0 %v3657
  %5106 = vmatpush.msra.mxu0 %v3656
  %5107 = vmatpush.msra.mxu0 %v3655
  %5108 = vmatpush.msra.mxu0 %v3654
  %5109 = vmatpush.msra.mxu0 %v3653
  %5110 = vmatpush.msra.mxu0 %v3652
  %5111 = vmatpush.msra.mxu0 %v3651
  %5112 = vmatmul.f32.gmra.mxu0 %v3752
  %v5113 = vpop.f32.mrf.mxu0
  %v5114 = vadd.f32 %v4905, %v5113
  %5115 = vmatmul.f32.gmra.mxu0 %v3753
  %v5116 = vpop.f32.mrf.mxu0
  %v5117 = vadd.f32 %v4908, %v5116
  %5118 = vmatmul.f32.gmra.mxu0 %v3755
  %v5119 = vpop.f32.mrf.mxu0
  %v5120 = vadd.f32 %v4911, %v5119
  %5121 = vmatmul.f32.gmra.mxu0 %v3756
  %v5122 = vpop.f32.mrf.mxu0
  %v5123 = vadd.f32 %v4914, %v5122
  %5124 = vmatmul.f32.gmra.mxu0 %v3758
  %v5125 = vpop.f32.mrf.mxu0
  %v5126 = vadd.f32 %v4917, %v5125
  %5127 = vmatmul.f32.gmra.mxu0 %v3759
  %v5128 = vpop.f32.mrf.mxu0
  %v5129 = vadd.f32 %v4920, %v5128
  %5130 = vmatmul.f32.gmra.mxu0 %v3761
  %v5131 = vpop.f32.mrf.mxu0
  %v5132 = vadd.f32 %v4923, %v5131
  %5133 = vmatmul.f32.gmra.mxu0 %v3762
  %v5134 = vpop.f32.mrf.mxu0
  %v5135 = vadd.f32 %v4926, %v5134
  %5136 = vmatmul.f32.gmra.mxu0 %v3764
  %v5137 = vpop.f32.mrf.mxu0
  %v5138 = vadd.f32 %v4929, %v5137
  %5139 = vmatmul.f32.gmra.mxu0 %v3765
  %v5140 = vpop.f32.mrf.mxu0
  %v5141 = vadd.f32 %v4932, %v5140
  %5142 = vmatmul.f32.gmra.mxu0 %v3767
  %v5143 = vpop.f32.mrf.mxu0
  %v5144 = vadd.f32 %v4935, %v5143
  %5145 = vmatmul.f32.gmra.mxu0 %v3768
  %v5146 = vpop.f32.mrf.mxu0
  %v5147 = vadd.f32 %v4938, %v5146
  %5148 = vmatmul.f32.gmra.mxu0 %v3770
  %v5149 = vpop.f32.mrf.mxu0
  %v5150 = vadd.f32 %v4941, %v5149
  %5151 = vmatmul.f32.gmra.mxu0 %v3771
  %v5152 = vpop.f32.mrf.mxu0
  %v5153 = vadd.f32 %v4944, %v5152
  %5154 = vmatmul.f32.gmra.mxu0 %v3773
  %v5155 = vpop.f32.mrf.mxu0
  %v5156 = vadd.f32 %v4947, %v5155
  %5157 = vmatmul.f32.gmra.mxu0 %v3774
  %v5158 = vpop.f32.mrf.mxu0
  %v5159 = vadd.f32 %v4950, %v5158
  %5160 = vmatmul.f32.gmra.mxu0 %v3776
  %v5161 = vpop.f32.mrf.mxu0
  %v5162 = vadd.f32 %v4953, %v5161
  %5163 = vmatmul.f32.gmra.mxu0 %v3777
  %v5164 = vpop.f32.mrf.mxu0
  %v5165 = vadd.f32 %v4956, %v5164
  %5166 = vmatmul.f32.gmra.mxu0 %v3779
  %v5167 = vpop.f32.mrf.mxu0
  %v5168 = vadd.f32 %v4959, %v5167
  %5169 = vmatmul.f32.gmra.mxu0 %v3780
  %v5170 = vpop.f32.mrf.mxu0
  %v5171 = vadd.f32 %v4962, %v5170
  %5172 = vmatmul.f32.gmra.mxu0 %v3782
  %v5173 = vpop.f32.mrf.mxu0
  %v5174 = vadd.f32 %v4965, %v5173
  %5175 = vmatmul.f32.gmra.mxu0 %v3783
  %v5176 = vpop.f32.mrf.mxu0
  %v5177 = vadd.f32 %v4968, %v5176
  %5178 = vmatmul.f32.gmra.mxu0 %v3785
  %v5179 = vpop.f32.mrf.mxu0
  %v5180 = vadd.f32 %v4971, %v5179
  %5181 = vmatmul.f32.gmra.mxu0 %v3786
  %v5182 = vpop.f32.mrf.mxu0
  %v5183 = vadd.f32 %v4974, %v5182
  %5184 = vmatmul.f32.gmra.mxu0 %v3788
  %v5185 = vpop.f32.mrf.mxu0
  %v5186 = vadd.f32 %v4977, %v5185
  %5187 = vmatmul.f32.gmra.mxu0 %v3789
  %v5188 = vpop.f32.mrf.mxu0
  %v5189 = vadd.f32 %v4980, %v5188
  %5190 = vmatmul.f32.gmra.mxu0 %v3791
  %v5191 = vpop.f32.mrf.mxu0
  %v5192 = vadd.f32 %v4983, %v5191
  %5193 = vmatmul.f32.gmra.mxu0 %v3792
  %v5194 = vpop.f32.mrf.mxu0
  %v5195 = vadd.f32 %v4986, %v5194
  %5196 = vmatmul.f32.gmra.mxu0 %v3794
  %v5197 = vpop.f32.mrf.mxu0
  %v5198 = vadd.f32 %v4989, %v5197
  %5199 = vmatmul.f32.gmra.mxu0 %v3795
  %v5200 = vpop.f32.mrf.mxu0
  %v5201 = vadd.f32 %v4992, %v5200
  %5202 = vmatmul.f32.gmra.mxu0 %v3797
  %v5203 = vpop.f32.mrf.mxu0
  %v5204 = vadd.f32 %v4995, %v5203
  %5205 = vmatmul.f32.gmra.mxu0 %v3798
  %v5206 = vpop.f32.mrf.mxu0
  %v5207 = vadd.f32 %v4998, %v5206
  %5208 = vmatmul.f32.gmra.mxu0 %v3806
  %v5209 = vpop.f32.mrf.mxu0
  %v5210 = vadd.f32 %v5001, %v5209
  %5211 = vmatmul.f32.gmra.mxu0 %v3807
  %v5212 = vpop.f32.mrf.mxu0
  %v5213 = vadd.f32 %v5004, %v5212
  %5214 = vmatmul.f32.gmra.mxu0 %v3809
  %v5215 = vpop.f32.mrf.mxu0
  %v5216 = vadd.f32 %v5007, %v5215
  %5217 = vmatmul.f32.gmra.mxu0 %v3810
  %v5218 = vpop.f32.mrf.mxu0
  %v5219 = vadd.f32 %v5010, %v5218
  %5220 = vmatmul.f32.gmra.mxu0 %v3812
  %v5221 = vpop.f32.mrf.mxu0
  %v5222 = vadd.f32 %v5013, %v5221
  %5223 = vmatmul.f32.gmra.mxu0 %v3813
  %v5224 = vpop.f32.mrf.mxu0
  %v5225 = vadd.f32 %v5016, %v5224
  %5226 = vmatmul.f32.gmra.mxu0 %v3815
  %v5227 = vpop.f32.mrf.mxu0
  %v5228 = vadd.f32 %v5019, %v5227
  %5229 = vmatmul.f32.gmra.mxu0 %v3816
  %v5230 = vpop.f32.mrf.mxu0
  %v5231 = vadd.f32 %v5022, %v5230
  %5232 = vmatmul.f32.gmra.mxu0 %v3818
  %v5233 = vpop.f32.mrf.mxu0
  %v5234 = vadd.f32 %v5025, %v5233
  %5235 = vmatmul.f32.gmra.mxu0 %v3819
  %v5236 = vpop.f32.mrf.mxu0
  %v5237 = vadd.f32 %v5028, %v5236
  %5238 = vmatmul.f32.gmra.mxu0 %v3821
  %v5239 = vpop.f32.mrf.mxu0
  %v5240 = vadd.f32 %v5031, %v5239
  %5241 = vmatmul.f32.gmra.mxu0 %v3822
  %v5242 = vpop.f32.mrf.mxu0
  %v5243 = vadd.f32 %v5034, %v5242
  %5244 = vmatmul.f32.gmra.mxu0 %v3824
  %v5245 = vpop.f32.mrf.mxu0
  %v5246 = vadd.f32 %v5037, %v5245
  %5247 = vmatmul.f32.gmra.mxu0 %v3825
  %v5248 = vpop.f32.mrf.mxu0
  %v5249 = vadd.f32 %v5040, %v5248
  %5250 = vmatmul.f32.gmra.mxu0 %v3827
  %v5251 = vpop.f32.mrf.mxu0
  %v5252 = vadd.f32 %v5043, %v5251
  %5253 = vmatmul.f32.gmra.mxu0 %v3828
  %v5254 = vpop.f32.mrf.mxu0
  %v5255 = vadd.f32 %v5046, %v5254
  %5256 = vmatmul.f32.gmra.mxu0 %v3830
  %v5257 = vpop.f32.mrf.mxu0
  %v5258 = vadd.f32 %v5049, %v5257
  %5259 = vmatmul.f32.gmra.mxu0 %v3831
  %v5260 = vpop.f32.mrf.mxu0
  %v5261 = vadd.f32 %v5052, %v5260
  %5262 = vmatmul.f32.gmra.mxu0 %v3833
  %v5263 = vpop.f32.mrf.mxu0
  %v5264 = vadd.f32 %v5055, %v5263
  %5265 = vmatmul.f32.gmra.mxu0 %v3834
  %v5266 = vpop.f32.mrf.mxu0
  %v5267 = vadd.f32 %v5058, %v5266
  %5268 = vmatmul.f32.gmra.mxu0 %v3836
  %v5269 = vpop.f32.mrf.mxu0
  %v5270 = vadd.f32 %v5061, %v5269
  %5271 = vmatmul.f32.gmra.mxu0 %v3837
  %v5272 = vpop.f32.mrf.mxu0
  %v5273 = vadd.f32 %v5064, %v5272
  %5274 = vmatmul.f32.gmra.mxu0 %v3839
  %v5275 = vpop.f32.mrf.mxu0
  %v5276 = vadd.f32 %v5067, %v5275
  %5277 = vmatmul.f32.gmra.mxu0 %v3840
  %v5278 = vpop.f32.mrf.mxu0
  %v5279 = vadd.f32 %v5070, %v5278
  %5280 = vmatmul.f32.gmra.mxu0 %v3842
  %v5281 = vpop.f32.mrf.mxu0
  %v5282 = vadd.f32 %v5073, %v5281
  %5283 = vmatmul.f32.gmra.mxu0 %v3843
  %v5284 = vpop.f32.mrf.mxu0
  %v5285 = vadd.f32 %v5076, %v5284
  %5286 = vmatmul.f32.gmra.mxu0 %v3845
  %v5287 = vpop.f32.mrf.mxu0
  %v5288 = vadd.f32 %v5079, %v5287
  %5289 = vmatmul.f32.gmra.mxu0 %v3846
  %v5290 = vpop.f32.mrf.mxu0
  %v5291 = vadd.f32 %v5082, %v5290
  %5292 = vmatmul.f32.gmra.mxu0 %v3848
  %v5293 = vpop.f32.mrf.mxu0
  %v5294 = vadd.f32 %v5085, %v5293
  %5295 = vmatmul.f32.gmra.mxu0 %v3849
  %v5296 = vpop.f32.mrf.mxu0
  %v5297 = vadd.f32 %v5088, %v5296
  %5298 = vmatmul.f32.gmra.mxu0 %v3851
  %v5299 = vpop.f32.mrf.mxu0
  %v5300 = vadd.f32 %v5091, %v5299
  %5301 = vmatmul.f32.gmra.mxu0 %v3852
  %v5302 = vpop.f32.mrf.mxu0
  %v5303 = vadd.f32 %v5094, %v5302
  %5304 = vdwg.mxu0
  %5305 = vmatpush.msra.mxu0 %v3682
  %5306 = vmatpush.msra.mxu0 %v3681
  %5307 = vmatpush.msra.mxu0 %v3680
  %5308 = vmatpush.msra.mxu0 %v3679
  %5309 = vmatpush.msra.mxu0 %v3678
  %5310 = vmatpush.msra.mxu0 %v3677
  %5311 = vmatpush.msra.mxu0 %v3676
  %5312 = vmatpush.msra.mxu0 %v3675
  %5313 = vmatpush.msra.mxu0 %v3674
  %5314 = vmatpush.msra.mxu0 %v3673
  %5315 = vmatpush.msra.mxu0 %v3672
  %5316 = vmatpush.msra.mxu0 %v3671
  %5317 = vmatpush.msra.mxu0 %v3670
  %5318 = vmatpush.msra.mxu0 %v3669
  %5319 = vmatpush.msra.mxu0 %v3668
  %5320 = vmatpush.msra.mxu0 %v3667
  %5321 = vmatmul.f32.gmra.mxu0 %v3960
  %v5322 = vpop.f32.mrf.mxu0
  %v5323 = vadd.f32 %v5114, %v5322
  %5324 = vmatmul.f32.gmra.mxu0 %v3962
  %v5325 = vpop.f32.mrf.mxu0
  %v5326 = vadd.f32 %v5117, %v5325
  %5327 = vmatmul.f32.gmra.mxu0 %v3965
  %v5328 = vpop.f32.mrf.mxu0
  %v5329 = vadd.f32 %v5120, %v5328
  %5330 = vmatmul.f32.gmra.mxu0 %v3967
  %v5331 = vpop.f32.mrf.mxu0
  %v5332 = vadd.f32 %v5123, %v5331
  %5333 = vmatmul.f32.gmra.mxu0 %v3970
  %v5334 = vpop.f32.mrf.mxu0
  %v5335 = vadd.f32 %v5126, %v5334
  %5336 = vmatmul.f32.gmra.mxu0 %v3972
  %v5337 = vpop.f32.mrf.mxu0
  %v5338 = vadd.f32 %v5129, %v5337
  %5339 = vmatmul.f32.gmra.mxu0 %v3975
  %v5340 = vpop.f32.mrf.mxu0
  %v5341 = vadd.f32 %v5132, %v5340
  %5342 = vmatmul.f32.gmra.mxu0 %v3977
  %v5343 = vpop.f32.mrf.mxu0
  %v5344 = vadd.f32 %v5135, %v5343
  %5345 = vmatmul.f32.gmra.mxu0 %v3980
  %v5346 = vpop.f32.mrf.mxu0
  %v5347 = vadd.f32 %v5138, %v5346
  %5348 = vmatmul.f32.gmra.mxu0 %v3982
  %v5349 = vpop.f32.mrf.mxu0
  %v5350 = vadd.f32 %v5141, %v5349
  %5351 = vmatmul.f32.gmra.mxu0 %v3985
  %v5352 = vpop.f32.mrf.mxu0
  %v5353 = vadd.f32 %v5144, %v5352
  %5354 = vmatmul.f32.gmra.mxu0 %v3987
  %v5355 = vpop.f32.mrf.mxu0
  %v5356 = vadd.f32 %v5147, %v5355
  %5357 = vmatmul.f32.gmra.mxu0 %v3990
  %v5358 = vpop.f32.mrf.mxu0
  %v5359 = vadd.f32 %v5150, %v5358
  %5360 = vmatmul.f32.gmra.mxu0 %v3992
  %v5361 = vpop.f32.mrf.mxu0
  %v5362 = vadd.f32 %v5153, %v5361
  %5363 = vmatmul.f32.gmra.mxu0 %v3995
  %v5364 = vpop.f32.mrf.mxu0
  %v5365 = vadd.f32 %v5156, %v5364
  %5366 = vmatmul.f32.gmra.mxu0 %v3997
  %v5367 = vpop.f32.mrf.mxu0
  %v5368 = vadd.f32 %v5159, %v5367
  %5369 = vmatmul.f32.gmra.mxu0 %v4000
  %v5370 = vpop.f32.mrf.mxu0
  %v5371 = vadd.f32 %v5162, %v5370
  %5372 = vmatmul.f32.gmra.mxu0 %v4002
  %v5373 = vpop.f32.mrf.mxu0
  %v5374 = vadd.f32 %v5165, %v5373
  %5375 = vmatmul.f32.gmra.mxu0 %v4005
  %v5376 = vpop.f32.mrf.mxu0
  %v5377 = vadd.f32 %v5168, %v5376
  %5378 = vmatmul.f32.gmra.mxu0 %v4007
  %v5379 = vpop.f32.mrf.mxu0
  %v5380 = vadd.f32 %v5171, %v5379
  %5381 = vmatmul.f32.gmra.mxu0 %v4010
  %v5382 = vpop.f32.mrf.mxu0
  %v5383 = vadd.f32 %v5174, %v5382
  %5384 = vmatmul.f32.gmra.mxu0 %v4012
  %v5385 = vpop.f32.mrf.mxu0
  %v5386 = vadd.f32 %v5177, %v5385
  %5387 = vmatmul.f32.gmra.mxu0 %v4015
  %v5388 = vpop.f32.mrf.mxu0
  %v5389 = vadd.f32 %v5180, %v5388
  %5390 = vmatmul.f32.gmra.mxu0 %v4017
  %v5391 = vpop.f32.mrf.mxu0
  %v5392 = vadd.f32 %v5183, %v5391
  %5393 = vmatmul.f32.gmra.mxu0 %v4020
  %v5394 = vpop.f32.mrf.mxu0
  %v5395 = vadd.f32 %v5186, %v5394
  %5396 = vmatmul.f32.gmra.mxu0 %v4022
  %v5397 = vpop.f32.mrf.mxu0
  %v5398 = vadd.f32 %v5189, %v5397
  %5399 = vmatmul.f32.gmra.mxu0 %v4025
  %v5400 = vpop.f32.mrf.mxu0
  %v5401 = vadd.f32 %v5192, %v5400
  %5402 = vmatmul.f32.gmra.mxu0 %v4027
  %v5403 = vpop.f32.mrf.mxu0
  %v5404 = vadd.f32 %v5195, %v5403
  %5405 = vmatmul.f32.gmra.mxu0 %v4030
  %v5406 = vpop.f32.mrf.mxu0
  %v5407 = vadd.f32 %v5198, %v5406
  %5408 = vmatmul.f32.gmra.mxu0 %v4032
  %v5409 = vpop.f32.mrf.mxu0
  %v5410 = vadd.f32 %v5201, %v5409
  %5411 = vmatmul.f32.gmra.mxu0 %v4409
  %v5412 = vpop.f32.mrf.mxu0
  %v5413 = vadd.f32 %v5204, %v5412
  %5414 = vmatmul.f32.gmra.mxu0 %v4411
  %v5415 = vpop.f32.mrf.mxu0
  %v5416 = vadd.f32 %v5207, %v5415
  %5417 = vmatmul.f32.gmra.mxu0 %v4040
  %v5418 = vpop.f32.mrf.mxu0
  %v5419 = vadd.f32 %v5210, %v5418
  %5420 = vmatmul.f32.gmra.mxu0 %v4042
  %v5421 = vpop.f32.mrf.mxu0
  %v5422 = vadd.f32 %v5213, %v5421
  %5423 = vmatmul.f32.gmra.mxu0 %v4045
  %v5424 = vpop.f32.mrf.mxu0
  %v5425 = vadd.f32 %v5216, %v5424
  %5426 = vmatmul.f32.gmra.mxu0 %v4047
  %v5427 = vpop.f32.mrf.mxu0
  %v5428 = vadd.f32 %v5219, %v5427
  %5429 = vmatmul.f32.gmra.mxu0 %v4050
  %v5430 = vpop.f32.mrf.mxu0
  %v5431 = vadd.f32 %v5222, %v5430
  %5432 = vmatmul.f32.gmra.mxu0 %v4052
  %v5433 = vpop.f32.mrf.mxu0
  %v5434 = vadd.f32 %v5225, %v5433
  %5435 = vmatmul.f32.gmra.mxu0 %v4055
  %v5436 = vpop.f32.mrf.mxu0
  %v5437 = vadd.f32 %v5228, %v5436
  %5438 = vmatmul.f32.gmra.mxu0 %v4057
  %v5439 = vpop.f32.mrf.mxu0
  %v5440 = vadd.f32 %v5231, %v5439
  %5441 = vmatmul.f32.gmra.mxu0 %v4060
  %v5442 = vpop.f32.mrf.mxu0
  %v5443 = vadd.f32 %v5234, %v5442
  %5444 = vmatmul.f32.gmra.mxu0 %v4062
  %v5445 = vpop.f32.mrf.mxu0
  %v5446 = vadd.f32 %v5237, %v5445
  %5447 = vmatmul.f32.gmra.mxu0 %v4065
  %v5448 = vpop.f32.mrf.mxu0
  %v5449 = vadd.f32 %v5240, %v5448
  %5450 = vmatmul.f32.gmra.mxu0 %v4067
  %v5451 = vpop.f32.mrf.mxu0
  %v5452 = vadd.f32 %v5243, %v5451
  %5453 = vmatmul.f32.gmra.mxu0 %v4070
  %v5454 = vpop.f32.mrf.mxu0
  %v5455 = vadd.f32 %v5246, %v5454
  %5456 = vmatmul.f32.gmra.mxu0 %v4072
  %v5457 = vpop.f32.mrf.mxu0
  %v5458 = vadd.f32 %v5249, %v5457
  %5459 = vmatmul.f32.gmra.mxu0 %v4075
  %v5460 = vpop.f32.mrf.mxu0
  %v5461 = vadd.f32 %v5252, %v5460
  %5462 = vmatmul.f32.gmra.mxu0 %v4077
  %v5463 = vpop.f32.mrf.mxu0
  %v5464 = vadd.f32 %v5255, %v5463
  %5465 = vmatmul.f32.gmra.mxu0 %v4080
  %v5466 = vpop.f32.mrf.mxu0
  %v5467 = vadd.f32 %v5258, %v5466
  %5468 = vmatmul.f32.gmra.mxu0 %v4082
  %v5469 = vpop.f32.mrf.mxu0
  %v5470 = vadd.f32 %v5261, %v5469
  %5471 = vmatmul.f32.gmra.mxu0 %v4085
  %v5472 = vpop.f32.mrf.mxu0
  %v5473 = vadd.f32 %v5264, %v5472
  %5474 = vmatmul.f32.gmra.mxu0 %v4087
  %v5475 = vpop.f32.mrf.mxu0
  %v5476 = vadd.f32 %v5267, %v5475
  %5477 = vmatmul.f32.gmra.mxu0 %v4090
  %v5478 = vpop.f32.mrf.mxu0
  %v5479 = vadd.f32 %v5270, %v5478
  %5480 = vmatmul.f32.gmra.mxu0 %v4092
  %v5481 = vpop.f32.mrf.mxu0
  %v5482 = vadd.f32 %v5273, %v5481
  %5483 = vmatmul.f32.gmra.mxu0 %v4095
  %v5484 = vpop.f32.mrf.mxu0
  %v5485 = vadd.f32 %v5276, %v5484
  %5486 = vmatmul.f32.gmra.mxu0 %v4097
  %v5487 = vpop.f32.mrf.mxu0
  %v5488 = vadd.f32 %v5279, %v5487
  %5489 = vmatmul.f32.gmra.mxu0 %v4100
  %v5490 = vpop.f32.mrf.mxu0
  %v5491 = vadd.f32 %v5282, %v5490
  %5492 = vmatmul.f32.gmra.mxu0 %v4102
  %v5493 = vpop.f32.mrf.mxu0
  %v5494 = vadd.f32 %v5285, %v5493
  %5495 = vmatmul.f32.gmra.mxu0 %v4105
  %v5496 = vpop.f32.mrf.mxu0
  %v5497 = vadd.f32 %v5288, %v5496
  %5498 = vmatmul.f32.gmra.mxu0 %v4107
  %v5499 = vpop.f32.mrf.mxu0
  %v5500 = vadd.f32 %v5291, %v5499
  %5501 = vmatmul.f32.gmra.mxu0 %v4110
  %v5502 = vpop.f32.mrf.mxu0
  %v5503 = vadd.f32 %v5294, %v5502
  %5504 = vmatmul.f32.gmra.mxu0 %v4112
  %v5505 = vpop.f32.mrf.mxu0
  %v5506 = vadd.f32 %v5297, %v5505
  %5507 = vmatmul.f32.gmra.mxu0 %v4414
  %v5508 = vpop.f32.mrf.mxu0
  %v5509 = vadd.f32 %v5300, %v5508
  %5510 = vmatmul.f32.gmra.mxu0 %v4416
  %v5511 = vpop.f32.mrf.mxu0
  %v5512 = vadd.f32 %v5303, %v5511
  %5513 = vdwg.mxu0
  %5514 = vmatpush.msra.mxu0 %v3698
  %5515 = vmatpush.msra.mxu0 %v3697
  %5516 = vmatpush.msra.mxu0 %v3696
  %5517 = vmatpush.msra.mxu0 %v3695
  %5518 = vmatpush.msra.mxu0 %v3694
  %5519 = vmatpush.msra.mxu0 %v3693
  %5520 = vmatpush.msra.mxu0 %v3692
  %5521 = vmatpush.msra.mxu0 %v3691
  %5522 = vmatpush.msra.mxu0 %v3690
  %5523 = vmatpush.msra.mxu0 %v3689
  %5524 = vmatpush.msra.mxu0 %v3688
  %5525 = vmatpush.msra.mxu0 %v3687
  %5526 = vmatpush.msra.mxu0 %v3686
  %5527 = vmatpush.msra.mxu0 %v3685
  %5528 = vmatpush.msra.mxu0 %v3684
  %5529 = vmatpush.msra.mxu0 %v3683
  %5530 = vmatmul.f32.gmra.mxu0 %v4184
  %v5531 = vpop.f32.mrf.mxu0
  %v5532 = vadd.f32 %v5323, %v5531
  %5533 = vmatmul.f32.gmra.mxu0 %v4186
  %v5534 = vpop.f32.mrf.mxu0
  %v5535 = vadd.f32 %v5326, %v5534
  %5536 = vmatmul.f32.gmra.mxu0 %v4189
  %v5537 = vpop.f32.mrf.mxu0
  %v5538 = vadd.f32 %v5329, %v5537
  %5539 = vmatmul.f32.gmra.mxu0 %v4191
  %v5540 = vpop.f32.mrf.mxu0
  %v5541 = vadd.f32 %v5332, %v5540
  %5542 = vmatmul.f32.gmra.mxu0 %v4194
  %v5543 = vpop.f32.mrf.mxu0
  %v5544 = vadd.f32 %v5335, %v5543
  %5545 = vmatmul.f32.gmra.mxu0 %v4196
  %v5546 = vpop.f32.mrf.mxu0
  %v5547 = vadd.f32 %v5338, %v5546
  %5548 = vmatmul.f32.gmra.mxu0 %v4199
  %v5549 = vpop.f32.mrf.mxu0
  %v5550 = vadd.f32 %v5341, %v5549
  %5551 = vmatmul.f32.gmra.mxu0 %v4201
  %v5552 = vpop.f32.mrf.mxu0
  %v5553 = vadd.f32 %v5344, %v5552
  %5554 = vmatmul.f32.gmra.mxu0 %v4204
  %v5555 = vpop.f32.mrf.mxu0
  %v5556 = vadd.f32 %v5347, %v5555
  %5557 = vmatmul.f32.gmra.mxu0 %v4206
  %v5558 = vpop.f32.mrf.mxu0
  %v5559 = vadd.f32 %v5350, %v5558
  %5560 = vmatmul.f32.gmra.mxu0 %v4209
  %v5561 = vpop.f32.mrf.mxu0
  %v5562 = vadd.f32 %v5353, %v5561
  %5563 = vmatmul.f32.gmra.mxu0 %v4211
  %v5564 = vpop.f32.mrf.mxu0
  %v5565 = vadd.f32 %v5356, %v5564
  %5566 = vmatmul.f32.gmra.mxu0 %v4214
  %v5567 = vpop.f32.mrf.mxu0
  %v5568 = vadd.f32 %v5359, %v5567
  %5569 = vmatmul.f32.gmra.mxu0 %v4216
  %v5570 = vpop.f32.mrf.mxu0
  %v5571 = vadd.f32 %v5362, %v5570
  %5572 = vmatmul.f32.gmra.mxu0 %v4219
  %v5573 = vpop.f32.mrf.mxu0
  %v5574 = vadd.f32 %v5365, %v5573
  %5575 = vmatmul.f32.gmra.mxu0 %v4221
  %v5576 = vpop.f32.mrf.mxu0
  %v5577 = vadd.f32 %v5368, %v5576
  %5578 = vmatmul.f32.gmra.mxu0 %v4224
  %v5579 = vpop.f32.mrf.mxu0
  %v5580 = vadd.f32 %v5371, %v5579
  %5581 = vmatmul.f32.gmra.mxu0 %v4226
  %v5582 = vpop.f32.mrf.mxu0
  %v5583 = vadd.f32 %v5374, %v5582
  %5584 = vmatmul.f32.gmra.mxu0 %v4229
  %v5585 = vpop.f32.mrf.mxu0
  %v5586 = vadd.f32 %v5377, %v5585
  %5587 = vmatmul.f32.gmra.mxu0 %v4231
  %v5588 = vpop.f32.mrf.mxu0
  %v5589 = vadd.f32 %v5380, %v5588
  %5590 = vmatmul.f32.gmra.mxu0 %v4234
  %v5591 = vpop.f32.mrf.mxu0
  %v5592 = vadd.f32 %v5383, %v5591
  %5593 = vmatmul.f32.gmra.mxu0 %v4236
  %v5594 = vpop.f32.mrf.mxu0
  %v5595 = vadd.f32 %v5386, %v5594
  %5596 = vmatmul.f32.gmra.mxu0 %v4239
  %v5597 = vpop.f32.mrf.mxu0
  %v5598 = vadd.f32 %v5389, %v5597
  %5599 = vmatmul.f32.gmra.mxu0 %v4241
  %v5600 = vpop.f32.mrf.mxu0
  %v5601 = vadd.f32 %v5392, %v5600
  %5602 = vmatmul.f32.gmra.mxu0 %v4244
  %v5603 = vpop.f32.mrf.mxu0
  %v5604 = vadd.f32 %v5395, %v5603
  %5605 = vmatmul.f32.gmra.mxu0 %v4246
  %v5606 = vpop.f32.mrf.mxu0
  %v5607 = vadd.f32 %v5398, %v5606
  %5608 = vmatmul.f32.gmra.mxu0 %v4249
  %v5609 = vpop.f32.mrf.mxu0
  %v5610 = vadd.f32 %v5401, %v5609
  %5611 = vmatmul.f32.gmra.mxu0 %v4251
  %v5612 = vpop.f32.mrf.mxu0
  %v5613 = vadd.f32 %v5404, %v5612
  %5614 = vmatmul.f32.gmra.mxu0 %v4254
  %v5615 = vpop.f32.mrf.mxu0
  %v5616 = vadd.f32 %v5407, %v5615
  %5617 = vmatmul.f32.gmra.mxu0 %v4256
  %v5618 = vpop.f32.mrf.mxu0
  %v5619 = vadd.f32 %v5410, %v5618
  %5620 = vmatmul.f32.gmra.mxu0 %v4423
  %v5621 = vpop.f32.mrf.mxu0
  %v5622 = vadd.f32 %v5413, %v5621
  %5623 = vmatmul.f32.gmra.mxu0 %v4425
  %v5624 = vpop.f32.mrf.mxu0
  %v5625 = vadd.f32 %v5416, %v5624
  %5626 = vmatmul.f32.gmra.mxu0 %v4264
  %v5627 = vpop.f32.mrf.mxu0
  %v5628 = vadd.f32 %v5419, %v5627
  %5629 = vmatmul.f32.gmra.mxu0 %v4266
  %v5630 = vpop.f32.mrf.mxu0
  %v5631 = vadd.f32 %v5422, %v5630
  %5632 = vmatmul.f32.gmra.mxu0 %v4269
  %v5633 = vpop.f32.mrf.mxu0
  %v5634 = vadd.f32 %v5425, %v5633
  %5635 = vmatmul.f32.gmra.mxu0 %v4271
  %v5636 = vpop.f32.mrf.mxu0
  %v5637 = vadd.f32 %v5428, %v5636
  %5638 = vmatmul.f32.gmra.mxu0 %v4274
  %v5639 = vpop.f32.mrf.mxu0
  %v5640 = vadd.f32 %v5431, %v5639
  %5641 = vmatmul.f32.gmra.mxu0 %v4276
  %v5642 = vpop.f32.mrf.mxu0
  %v5643 = vadd.f32 %v5434, %v5642
  %5644 = vmatmul.f32.gmra.mxu0 %v4279
  %v5645 = vpop.f32.mrf.mxu0
  %v5646 = vadd.f32 %v5437, %v5645
  %5647 = vmatmul.f32.gmra.mxu0 %v4281
  %v5648 = vpop.f32.mrf.mxu0
  %v5649 = vadd.f32 %v5440, %v5648
  %5650 = vmatmul.f32.gmra.mxu0 %v4284
  %v5651 = vpop.f32.mrf.mxu0
  %v5652 = vadd.f32 %v5443, %v5651
  %5653 = vmatmul.f32.gmra.mxu0 %v4286
  %v5654 = vpop.f32.mrf.mxu0
  %v5655 = vadd.f32 %v5446, %v5654
  %5656 = vmatmul.f32.gmra.mxu0 %v4289
  %v5657 = vpop.f32.mrf.mxu0
  %v5658 = vadd.f32 %v5449, %v5657
  %5659 = vmatmul.f32.gmra.mxu0 %v4291
  %v5660 = vpop.f32.mrf.mxu0
  %v5661 = vadd.f32 %v5452, %v5660
  %5662 = vmatmul.f32.gmra.mxu0 %v4294
  %v5663 = vpop.f32.mrf.mxu0
  %v5664 = vadd.f32 %v5455, %v5663
  %5665 = vmatmul.f32.gmra.mxu0 %v4296
  %v5666 = vpop.f32.mrf.mxu0
  %v5667 = vadd.f32 %v5458, %v5666
  %5668 = vmatmul.f32.gmra.mxu0 %v4299
  %v5669 = vpop.f32.mrf.mxu0
  %v5670 = vadd.f32 %v5461, %v5669
  %5671 = vmatmul.f32.gmra.mxu0 %v4301
  %v5672 = vpop.f32.mrf.mxu0
  %v5673 = vadd.f32 %v5464, %v5672
  %5674 = vmatmul.f32.gmra.mxu0 %v4304
  %v5675 = vpop.f32.mrf.mxu0
  %v5676 = vadd.f32 %v5467, %v5675
  %5677 = vmatmul.f32.gmra.mxu0 %v4306
  %v5678 = vpop.f32.mrf.mxu0
  %v5679 = vadd.f32 %v5470, %v5678
  %5680 = vmatmul.f32.gmra.mxu0 %v4309
  %v5681 = vpop.f32.mrf.mxu0
  %v5682 = vadd.f32 %v5473, %v5681
  %5683 = vmatmul.f32.gmra.mxu0 %v4311
  %v5684 = vpop.f32.mrf.mxu0
  %v5685 = vadd.f32 %v5476, %v5684
  %5686 = vmatmul.f32.gmra.mxu0 %v4314
  %v5687 = vpop.f32.mrf.mxu0
  %v5688 = vadd.f32 %v5479, %v5687
  %5689 = vmatmul.f32.gmra.mxu0 %v4316
  %v5690 = vpop.f32.mrf.mxu0
  %v5691 = vadd.f32 %v5482, %v5690
  %5692 = vmatmul.f32.gmra.mxu0 %v4319
  %v5693 = vpop.f32.mrf.mxu0
  %v5694 = vadd.f32 %v5485, %v5693
  %5695 = vmatmul.f32.gmra.mxu0 %v4321
  %v5696 = vpop.f32.mrf.mxu0
  %v5697 = vadd.f32 %v5488, %v5696
  %5698 = vmatmul.f32.gmra.mxu0 %v4324
  %v5699 = vpop.f32.mrf.mxu0
  %v5700 = vadd.f32 %v5491, %v5699
  %5701 = vmatmul.f32.gmra.mxu0 %v4326
  %v5702 = vpop.f32.mrf.mxu0
  %v5703 = vadd.f32 %v5494, %v5702
  %5704 = vmatmul.f32.gmra.mxu0 %v4329
  %v5705 = vpop.f32.mrf.mxu0
  %v5706 = vadd.f32 %v5497, %v5705
  %5707 = vmatmul.f32.gmra.mxu0 %v4331
  %v5708 = vpop.f32.mrf.mxu0
  %v5709 = vadd.f32 %v5500, %v5708
  %5710 = vmatmul.f32.gmra.mxu0 %v4334
  %v5711 = vpop.f32.mrf.mxu0
  %v5712 = vadd.f32 %v5503, %v5711
  %5713 = vmatmul.f32.gmra.mxu0 %v4336
  %v5714 = vpop.f32.mrf.mxu0
  %v5715 = vadd.f32 %v5506, %v5714
  %5716 = vmatmul.f32.gmra.mxu0 %v4428
  %v5717 = vpop.f32.mrf.mxu0
  %v5718 = vadd.f32 %v5509, %v5717
  %5719 = vmatmul.f32.gmra.mxu0 %v4430
  %v5720 = vpop.f32.mrf.mxu0
  %v5721 = vadd.f32 %v5512, %v5720
  %5722 = vdwg.mxu0
  %5723 = vmatpush.msra.mxu0 %v3714
  %5724 = vmatpush.msra.mxu0 %v3713
  %5725 = vmatpush.msra.mxu0 %v3712
  %5726 = vmatpush.msra.mxu0 %v3711
  %5727 = vmatpush.msra.mxu0 %v3710
  %5728 = vmatpush.msra.mxu0 %v3709
  %5729 = vmatpush.msra.mxu0 %v3708
  %5730 = vmatpush.msra.mxu0 %v3707
  %5731 = vmatpush.msra.mxu0 %v3706
  %5732 = vmatpush.msra.mxu0 %v3705
  %5733 = vmatpush.msra.mxu0 %v3704
  %5734 = vmatpush.msra.mxu0 %v3703
  %5735 = vmatpush.msra.mxu0 %v3702
  %5736 = vmatpush.msra.mxu0 %v3701
  %5737 = vmatpush.msra.mxu0 %v3700
  %5738 = vmatpush.msra.mxu0 %v3699
  %5739 = vmatmul.f32.gmra.mxu0 %v3755
  %v5740 = vpop.f32.mrf.mxu0
  %v5741 = vadd.f32 %v5532, %v5740
  %5742 = vmatmul.f32.gmra.mxu0 %v3756
  %v5743 = vpop.f32.mrf.mxu0
  %v5744 = vadd.f32 %v5535, %v5743
  %5745 = vmatmul.f32.gmra.mxu0 %v3758
  %v5746 = vpop.f32.mrf.mxu0
  %v5747 = vadd.f32 %v5538, %v5746
  %5748 = vmatmul.f32.gmra.mxu0 %v3759
  %v5749 = vpop.f32.mrf.mxu0
  %v5750 = vadd.f32 %v5541, %v5749
  %5751 = vmatmul.f32.gmra.mxu0 %v3761
  %v5752 = vpop.f32.mrf.mxu0
  %v5753 = vadd.f32 %v5544, %v5752
  %5754 = vmatmul.f32.gmra.mxu0 %v3762
  %v5755 = vpop.f32.mrf.mxu0
  %v5756 = vadd.f32 %v5547, %v5755
  %5757 = vmatmul.f32.gmra.mxu0 %v3764
  %v5758 = vpop.f32.mrf.mxu0
  %v5759 = vadd.f32 %v5550, %v5758
  %5760 = vmatmul.f32.gmra.mxu0 %v3765
  %v5761 = vpop.f32.mrf.mxu0
  %v5762 = vadd.f32 %v5553, %v5761
  %5763 = vmatmul.f32.gmra.mxu0 %v3767
  %v5764 = vpop.f32.mrf.mxu0
  %v5765 = vadd.f32 %v5556, %v5764
  %5766 = vmatmul.f32.gmra.mxu0 %v3768
  %v5767 = vpop.f32.mrf.mxu0
  %v5768 = vadd.f32 %v5559, %v5767
  %5769 = vmatmul.f32.gmra.mxu0 %v3770
  %v5770 = vpop.f32.mrf.mxu0
  %v5771 = vadd.f32 %v5562, %v5770
  %5772 = vmatmul.f32.gmra.mxu0 %v3771
  %v5773 = vpop.f32.mrf.mxu0
  %v5774 = vadd.f32 %v5565, %v5773
  %5775 = vmatmul.f32.gmra.mxu0 %v3773
  %v5776 = vpop.f32.mrf.mxu0
  %v5777 = vadd.f32 %v5568, %v5776
  %5778 = vmatmul.f32.gmra.mxu0 %v3774
  %v5779 = vpop.f32.mrf.mxu0
  %v5780 = vadd.f32 %v5571, %v5779
  %5781 = vmatmul.f32.gmra.mxu0 %v3776
  %v5782 = vpop.f32.mrf.mxu0
  %v5783 = vadd.f32 %v5574, %v5782
  %5784 = vmatmul.f32.gmra.mxu0 %v3777
  %v5785 = vpop.f32.mrf.mxu0
  %v5786 = vadd.f32 %v5577, %v5785
  %5787 = vmatmul.f32.gmra.mxu0 %v3779
  %v5788 = vpop.f32.mrf.mxu0
  %v5789 = vadd.f32 %v5580, %v5788
  %5790 = vmatmul.f32.gmra.mxu0 %v3780
  %v5791 = vpop.f32.mrf.mxu0
  %v5792 = vadd.f32 %v5583, %v5791
  %5793 = vmatmul.f32.gmra.mxu0 %v3782
  %v5794 = vpop.f32.mrf.mxu0
  %v5795 = vadd.f32 %v5586, %v5794
  %5796 = vmatmul.f32.gmra.mxu0 %v3783
  %v5797 = vpop.f32.mrf.mxu0
  %v5798 = vadd.f32 %v5589, %v5797
  %5799 = vmatmul.f32.gmra.mxu0 %v3785
  %v5800 = vpop.f32.mrf.mxu0
  %v5801 = vadd.f32 %v5592, %v5800
  %5802 = vmatmul.f32.gmra.mxu0 %v3786
  %v5803 = vpop.f32.mrf.mxu0
  %v5804 = vadd.f32 %v5595, %v5803
  %5805 = vmatmul.f32.gmra.mxu0 %v3788
  %v5806 = vpop.f32.mrf.mxu0
  %v5807 = vadd.f32 %v5598, %v5806
  %5808 = vmatmul.f32.gmra.mxu0 %v3789
  %v5809 = vpop.f32.mrf.mxu0
  %v5810 = vadd.f32 %v5601, %v5809
  %5811 = vmatmul.f32.gmra.mxu0 %v3791
  %v5812 = vpop.f32.mrf.mxu0
  %v5813 = vadd.f32 %v5604, %v5812
  %5814 = vmatmul.f32.gmra.mxu0 %v3792
  %v5815 = vpop.f32.mrf.mxu0
  %v5816 = vadd.f32 %v5607, %v5815
  %5817 = vmatmul.f32.gmra.mxu0 %v3794
  %v5818 = vpop.f32.mrf.mxu0
  %v5819 = vadd.f32 %v5610, %v5818
  %5820 = vmatmul.f32.gmra.mxu0 %v3795
  %v5821 = vpop.f32.mrf.mxu0
  %v5822 = vadd.f32 %v5613, %v5821
  %5823 = vmatmul.f32.gmra.mxu0 %v3797
  %v5824 = vpop.f32.mrf.mxu0
  %v5825 = vadd.f32 %v5616, %v5824
  %5826 = vmatmul.f32.gmra.mxu0 %v3798
  %v5827 = vpop.f32.mrf.mxu0
  %v5828 = vadd.f32 %v5619, %v5827
  %5829 = vmatmul.f32.gmra.mxu0 %v3800
  %v5830 = vpop.f32.mrf.mxu0
  %v5831 = vadd.f32 %v5622, %v5830
  %5832 = vmatmul.f32.gmra.mxu0 %v3801
  %v5833 = vpop.f32.mrf.mxu0
  %v5834 = vadd.f32 %v5625, %v5833
  %5835 = vmatmul.f32.gmra.mxu0 %v3809
  %v5836 = vpop.f32.mrf.mxu0
  %v5837 = vadd.f32 %v5628, %v5836
  %5838 = vmatmul.f32.gmra.mxu0 %v3810
  %v5839 = vpop.f32.mrf.mxu0
  %v5840 = vadd.f32 %v5631, %v5839
  %5841 = vmatmul.f32.gmra.mxu0 %v3812
  %v5842 = vpop.f32.mrf.mxu0
  %v5843 = vadd.f32 %v5634, %v5842
  %5844 = vmatmul.f32.gmra.mxu0 %v3813
  %v5845 = vpop.f32.mrf.mxu0
  %v5846 = vadd.f32 %v5637, %v5845
  %5847 = vmatmul.f32.gmra.mxu0 %v3815
  %v5848 = vpop.f32.mrf.mxu0
  %v5849 = vadd.f32 %v5640, %v5848
  %5850 = vmatmul.f32.gmra.mxu0 %v3816
  %v5851 = vpop.f32.mrf.mxu0
  %v5852 = vadd.f32 %v5643, %v5851
  %5853 = vmatmul.f32.gmra.mxu0 %v3818
  %v5854 = vpop.f32.mrf.mxu0
  %v5855 = vadd.f32 %v5646, %v5854
  %5856 = vmatmul.f32.gmra.mxu0 %v3819
  %v5857 = vpop.f32.mrf.mxu0
  %v5858 = vadd.f32 %v5649, %v5857
  %5859 = vmatmul.f32.gmra.mxu0 %v3821
  %v5860 = vpop.f32.mrf.mxu0
  %v5861 = vadd.f32 %v5652, %v5860
  %5862 = vmatmul.f32.gmra.mxu0 %v3822
  %v5863 = vpop.f32.mrf.mxu0
  %v5864 = vadd.f32 %v5655, %v5863
  %5865 = vmatmul.f32.gmra.mxu0 %v3824
  %v5866 = vpop.f32.mrf.mxu0
  %v5867 = vadd.f32 %v5658, %v5866
  %5868 = vmatmul.f32.gmra.mxu0 %v3825
  %v5869 = vpop.f32.mrf.mxu0
  %v5870 = vadd.f32 %v5661, %v5869
  %5871 = vmatmul.f32.gmra.mxu0 %v3827
  %v5872 = vpop.f32.mrf.mxu0
  %v5873 = vadd.f32 %v5664, %v5872
  %5874 = vmatmul.f32.gmra.mxu0 %v3828
  %v5875 = vpop.f32.mrf.mxu0
  %v5876 = vadd.f32 %v5667, %v5875
  %5877 = vmatmul.f32.gmra.mxu0 %v3830
  %v5878 = vpop.f32.mrf.mxu0
  %v5879 = vadd.f32 %v5670, %v5878
  %5880 = vmatmul.f32.gmra.mxu0 %v3831
  %v5881 = vpop.f32.mrf.mxu0
  %v5882 = vadd.f32 %v5673, %v5881
  %5883 = vmatmul.f32.gmra.mxu0 %v3833
  %v5884 = vpop.f32.mrf.mxu0
  %v5885 = vadd.f32 %v5676, %v5884
  %5886 = vmatmul.f32.gmra.mxu0 %v3834
  %v5887 = vpop.f32.mrf.mxu0
  %v5888 = vadd.f32 %v5679, %v5887
  %5889 = vmatmul.f32.gmra.mxu0 %v3836
  %v5890 = vpop.f32.mrf.mxu0
  %v5891 = vadd.f32 %v5682, %v5890
  %5892 = vmatmul.f32.gmra.mxu0 %v3837
  %v5893 = vpop.f32.mrf.mxu0
  %v5894 = vadd.f32 %v5685, %v5893
  %5895 = vmatmul.f32.gmra.mxu0 %v3839
  %v5896 = vpop.f32.mrf.mxu0
  %v5897 = vadd.f32 %v5688, %v5896
  %5898 = vmatmul.f32.gmra.mxu0 %v3840
  %v5899 = vpop.f32.mrf.mxu0
  %v5900 = vadd.f32 %v5691, %v5899
  %5901 = vmatmul.f32.gmra.mxu0 %v3842
  %v5902 = vpop.f32.mrf.mxu0
  %v5903 = vadd.f32 %v5694, %v5902
  %5904 = vmatmul.f32.gmra.mxu0 %v3843
  %v5905 = vpop.f32.mrf.mxu0
  %v5906 = vadd.f32 %v5697, %v5905
  %5907 = vmatmul.f32.gmra.mxu0 %v3845
  %v5908 = vpop.f32.mrf.mxu0
  %v5909 = vadd.f32 %v5700, %v5908
  %5910 = vmatmul.f32.gmra.mxu0 %v3846
  %v5911 = vpop.f32.mrf.mxu0
  %v5912 = vadd.f32 %v5703, %v5911
  %5913 = vmatmul.f32.gmra.mxu0 %v3848
  %v5914 = vpop.f32.mrf.mxu0
  %v5915 = vadd.f32 %v5706, %v5914
  %5916 = vmatmul.f32.gmra.mxu0 %v3849
  %v5917 = vpop.f32.mrf.mxu0
  %v5918 = vadd.f32 %v5709, %v5917
  %5919 = vmatmul.f32.gmra.mxu0 %v3851
  %v5920 = vpop.f32.mrf.mxu0
  %v5921 = vadd.f32 %v5712, %v5920
  %5922 = vmatmul.f32.gmra.mxu0 %v3852
  %v5923 = vpop.f32.mrf.mxu0
  %v5924 = vadd.f32 %v5715, %v5923
  %5925 = vmatmul.f32.gmra.mxu0 %v3854
  %v5926 = vpop.f32.mrf.mxu0
  %v5927 = vadd.f32 %v5718, %v5926
  %5928 = vmatmul.f32.gmra.mxu0 %v3855
  %v5929 = vpop.f32.mrf.mxu0
  %v5930 = vadd.f32 %v5721, %v5929
  %5931 = vdwg.mxu0
  %5932 = vmatpush.msra.mxu0 %v3730
  %5933 = vmatpush.msra.mxu0 %v3729
  %5934 = vmatpush.msra.mxu0 %v3728
  %5935 = vmatpush.msra.mxu0 %v3727
  %5936 = vmatpush.msra.mxu0 %v3726
  %5937 = vmatpush.msra.mxu0 %v3725
  %5938 = vmatpush.msra.mxu0 %v3724
  %5939 = vmatpush.msra.mxu0 %v3723
  %5940 = vmatpush.msra.mxu0 %v3722
  %5941 = vmatpush.msra.mxu0 %v3721
  %5942 = vmatpush.msra.mxu0 %v3720
  %5943 = vmatpush.msra.mxu0 %v3719
  %5944 = vmatpush.msra.mxu0 %v3718
  %5945 = vmatpush.msra.mxu0 %v3717
  %5946 = vmatpush.msra.mxu0 %v3716
  %5947 = vmatpush.msra.mxu0 %v3715
  %5948 = vmatmul.f32.gmra.mxu0 %v3965
  %v5949 = vpop.f32.mrf.mxu0
  %v5950 = vadd.f32 %v5741, %v5949
  %5951 = vmatmul.f32.gmra.mxu0 %v3967
  %v5952 = vpop.f32.mrf.mxu0
  %v5953 = vadd.f32 %v5744, %v5952
  %5954 = vmatmul.f32.gmra.mxu0 %v3970
  %v5955 = vpop.f32.mrf.mxu0
  %v5956 = vadd.f32 %v5747, %v5955
  %5957 = vmatmul.f32.gmra.mxu0 %v3972
  %v5958 = vpop.f32.mrf.mxu0
  %v5959 = vadd.f32 %v5750, %v5958
  %5960 = vmatmul.f32.gmra.mxu0 %v3975
  %v5961 = vpop.f32.mrf.mxu0
  %v5962 = vadd.f32 %v5753, %v5961
  %5963 = vmatmul.f32.gmra.mxu0 %v3977
  %v5964 = vpop.f32.mrf.mxu0
  %v5965 = vadd.f32 %v5756, %v5964
  %5966 = vmatmul.f32.gmra.mxu0 %v3980
  %v5967 = vpop.f32.mrf.mxu0
  %v5968 = vadd.f32 %v5759, %v5967
  %5969 = vmatmul.f32.gmra.mxu0 %v3982
  %v5970 = vpop.f32.mrf.mxu0
  %v5971 = vadd.f32 %v5762, %v5970
  %5972 = vmatmul.f32.gmra.mxu0 %v3985
  %v5973 = vpop.f32.mrf.mxu0
  %v5974 = vadd.f32 %v5765, %v5973
  %5975 = vmatmul.f32.gmra.mxu0 %v3987
  %v5976 = vpop.f32.mrf.mxu0
  %v5977 = vadd.f32 %v5768, %v5976
  %5978 = vmatmul.f32.gmra.mxu0 %v3990
  %v5979 = vpop.f32.mrf.mxu0
  %v5980 = vadd.f32 %v5771, %v5979
  %5981 = vmatmul.f32.gmra.mxu0 %v3992
  %v5982 = vpop.f32.mrf.mxu0
  %v5983 = vadd.f32 %v5774, %v5982
  %5984 = vmatmul.f32.gmra.mxu0 %v3995
  %v5985 = vpop.f32.mrf.mxu0
  %v5986 = vadd.f32 %v5777, %v5985
  %5987 = vmatmul.f32.gmra.mxu0 %v3997
  %v5988 = vpop.f32.mrf.mxu0
  %v5989 = vadd.f32 %v5780, %v5988
  %5990 = vmatmul.f32.gmra.mxu0 %v4000
  %v5991 = vpop.f32.mrf.mxu0
  %v5992 = vadd.f32 %v5783, %v5991
  %5993 = vmatmul.f32.gmra.mxu0 %v4002
  %v5994 = vpop.f32.mrf.mxu0
  %v5995 = vadd.f32 %v5786, %v5994
  %5996 = vmatmul.f32.gmra.mxu0 %v4005
  %v5997 = vpop.f32.mrf.mxu0
  %v5998 = vadd.f32 %v5789, %v5997
  %5999 = vmatmul.f32.gmra.mxu0 %v4007
  %v6000 = vpop.f32.mrf.mxu0
  %v6001 = vadd.f32 %v5792, %v6000
  %6002 = vmatmul.f32.gmra.mxu0 %v4010
  %v6003 = vpop.f32.mrf.mxu0
  %v6004 = vadd.f32 %v5795, %v6003
  %6005 = vmatmul.f32.gmra.mxu0 %v4012
  %v6006 = vpop.f32.mrf.mxu0
  %v6007 = vadd.f32 %v5798, %v6006
  %6008 = vmatmul.f32.gmra.mxu0 %v4015
  %v6009 = vpop.f32.mrf.mxu0
  %v6010 = vadd.f32 %v5801, %v6009
  %6011 = vmatmul.f32.gmra.mxu0 %v4017
  %v6012 = vpop.f32.mrf.mxu0
  %v6013 = vadd.f32 %v5804, %v6012
  %6014 = vmatmul.f32.gmra.mxu0 %v4020
  %v6015 = vpop.f32.mrf.mxu0
  %v6016 = vadd.f32 %v5807, %v6015
  %6017 = vmatmul.f32.gmra.mxu0 %v4022
  %v6018 = vpop.f32.mrf.mxu0
  %v6019 = vadd.f32 %v5810, %v6018
  %6020 = vmatmul.f32.gmra.mxu0 %v4025
  %v6021 = vpop.f32.mrf.mxu0
  %v6022 = vadd.f32 %v5813, %v6021
  %6023 = vmatmul.f32.gmra.mxu0 %v4027
  %v6024 = vpop.f32.mrf.mxu0
  %v6025 = vadd.f32 %v5816, %v6024
  %6026 = vmatmul.f32.gmra.mxu0 %v4030
  %v6027 = vpop.f32.mrf.mxu0
  %v6028 = vadd.f32 %v5819, %v6027
  %6029 = vmatmul.f32.gmra.mxu0 %v4032
  %v6030 = vpop.f32.mrf.mxu0
  %v6031 = vadd.f32 %v5822, %v6030
  %6032 = vmatmul.f32.gmra.mxu0 %v4409
  %v6033 = vpop.f32.mrf.mxu0
  %v6034 = vadd.f32 %v5825, %v6033
  %6035 = vmatmul.f32.gmra.mxu0 %v4411
  %v6036 = vpop.f32.mrf.mxu0
  %v6037 = vadd.f32 %v5828, %v6036
  %6038 = vmatmul.f32.gmra.mxu0 %v4443
  %v6039 = vpop.f32.mrf.mxu0
  %v6040 = vadd.f32 %v5831, %v6039
  %6041 = vmatmul.f32.gmra.mxu0 %v4445
  %v6042 = vpop.f32.mrf.mxu0
  %v6043 = vadd.f32 %v5834, %v6042
  %6044 = vmatmul.f32.gmra.mxu0 %v4045
  %v6045 = vpop.f32.mrf.mxu0
  %v6046 = vadd.f32 %v5837, %v6045
  %6047 = vmatmul.f32.gmra.mxu0 %v4047
  %v6048 = vpop.f32.mrf.mxu0
  %v6049 = vadd.f32 %v5840, %v6048
  %6050 = vmatmul.f32.gmra.mxu0 %v4050
  %v6051 = vpop.f32.mrf.mxu0
  %v6052 = vadd.f32 %v5843, %v6051
  %6053 = vmatmul.f32.gmra.mxu0 %v4052
  %v6054 = vpop.f32.mrf.mxu0
  %v6055 = vadd.f32 %v5846, %v6054
  %6056 = vmatmul.f32.gmra.mxu0 %v4055
  %v6057 = vpop.f32.mrf.mxu0
  %v6058 = vadd.f32 %v5849, %v6057
  %6059 = vmatmul.f32.gmra.mxu0 %v4057
  %v6060 = vpop.f32.mrf.mxu0
  %v6061 = vadd.f32 %v5852, %v6060
  %6062 = vmatmul.f32.gmra.mxu0 %v4060
  %v6063 = vpop.f32.mrf.mxu0
  %v6064 = vadd.f32 %v5855, %v6063
  %6065 = vmatmul.f32.gmra.mxu0 %v4062
  %v6066 = vpop.f32.mrf.mxu0
  %v6067 = vadd.f32 %v5858, %v6066
  %6068 = vmatmul.f32.gmra.mxu0 %v4065
  %v6069 = vpop.f32.mrf.mxu0
  %v6070 = vadd.f32 %v5861, %v6069
  %6071 = vmatmul.f32.gmra.mxu0 %v4067
  %v6072 = vpop.f32.mrf.mxu0
  %v6073 = vadd.f32 %v5864, %v6072
  %6074 = vmatmul.f32.gmra.mxu0 %v4070
  %v6075 = vpop.f32.mrf.mxu0
  %v6076 = vadd.f32 %v5867, %v6075
  %6077 = vmatmul.f32.gmra.mxu0 %v4072
  %v6078 = vpop.f32.mrf.mxu0
  %v6079 = vadd.f32 %v5870, %v6078
  %6080 = vmatmul.f32.gmra.mxu0 %v4075
  %v6081 = vpop.f32.mrf.mxu0
  %v6082 = vadd.f32 %v5873, %v6081
  %6083 = vmatmul.f32.gmra.mxu0 %v4077
  %v6084 = vpop.f32.mrf.mxu0
  %v6085 = vadd.f32 %v5876, %v6084
  %6086 = vmatmul.f32.gmra.mxu0 %v4080
  %v6087 = vpop.f32.mrf.mxu0
  %v6088 = vadd.f32 %v5879, %v6087
  %6089 = vmatmul.f32.gmra.mxu0 %v4082
  %v6090 = vpop.f32.mrf.mxu0
  %v6091 = vadd.f32 %v5882, %v6090
  %6092 = vmatmul.f32.gmra.mxu0 %v4085
  %v6093 = vpop.f32.mrf.mxu0
  %v6094 = vadd.f32 %v5885, %v6093
  %6095 = vmatmul.f32.gmra.mxu0 %v4087
  %v6096 = vpop.f32.mrf.mxu0
  %v6097 = vadd.f32 %v5888, %v6096
  %6098 = vmatmul.f32.gmra.mxu0 %v4090
  %v6099 = vpop.f32.mrf.mxu0
  %v6100 = vadd.f32 %v5891, %v6099
  %6101 = vmatmul.f32.gmra.mxu0 %v4092
  %v6102 = vpop.f32.mrf.mxu0
  %v6103 = vadd.f32 %v5894, %v6102
  %6104 = vmatmul.f32.gmra.mxu0 %v4095
  %v6105 = vpop.f32.mrf.mxu0
  %v6106 = vadd.f32 %v5897, %v6105
  %6107 = vmatmul.f32.gmra.mxu0 %v4097
  %v6108 = vpop.f32.mrf.mxu0
  %v6109 = vadd.f32 %v5900, %v6108
  %6110 = vmatmul.f32.gmra.mxu0 %v4100
  %v6111 = vpop.f32.mrf.mxu0
  %v6112 = vadd.f32 %v5903, %v6111
  %6113 = vmatmul.f32.gmra.mxu0 %v4102
  %v6114 = vpop.f32.mrf.mxu0
  %v6115 = vadd.f32 %v5906, %v6114
  %6116 = vmatmul.f32.gmra.mxu0 %v4105
  %v6117 = vpop.f32.mrf.mxu0
  %v6118 = vadd.f32 %v5909, %v6117
  %6119 = vmatmul.f32.gmra.mxu0 %v4107
  %v6120 = vpop.f32.mrf.mxu0
  %v6121 = vadd.f32 %v5912, %v6120
  %6122 = vmatmul.f32.gmra.mxu0 %v4110
  %v6123 = vpop.f32.mrf.mxu0
  %v6124 = vadd.f32 %v5915, %v6123
  %6125 = vmatmul.f32.gmra.mxu0 %v4112
  %v6126 = vpop.f32.mrf.mxu0
  %v6127 = vadd.f32 %v5918, %v6126
  %6128 = vmatmul.f32.gmra.mxu0 %v4414
  %v6129 = vpop.f32.mrf.mxu0
  %v6130 = vadd.f32 %v5921, %v6129
  %6131 = vmatmul.f32.gmra.mxu0 %v4416
  %v6132 = vpop.f32.mrf.mxu0
  %v6133 = vadd.f32 %v5924, %v6132
  %6134 = vmatmul.f32.gmra.mxu0 %v4448
  %v6135 = vpop.f32.mrf.mxu0
  %v6136 = vadd.f32 %v5927, %v6135
  %6137 = vmatmul.f32.gmra.mxu0 %v4450
  %v6138 = vpop.f32.mrf.mxu0
  %v6139 = vadd.f32 %v5930, %v6138
  %6140 = vdwg.mxu0
  %6141 = vmatpush.msra.mxu0 %v3746
  %6142 = vmatpush.msra.mxu0 %v3745
  %6143 = vmatpush.msra.mxu0 %v3744
  %6144 = vmatpush.msra.mxu0 %v3743
  %6145 = vmatpush.msra.mxu0 %v3742
  %6146 = vmatpush.msra.mxu0 %v3741
  %6147 = vmatpush.msra.mxu0 %v3740
  %6148 = vmatpush.msra.mxu0 %v3739
  %6149 = vmatpush.msra.mxu0 %v3738
  %6150 = vmatpush.msra.mxu0 %v3737
  %6151 = vmatpush.msra.mxu0 %v3736
  %6152 = vmatpush.msra.mxu0 %v3735
  %6153 = vmatpush.msra.mxu0 %v3734
  %6154 = vmatpush.msra.mxu0 %v3733
  %6155 = vmatpush.msra.mxu0 %v3732
  %6156 = vmatpush.msra.mxu0 %v3731
  %6157 = vmatmul.f32.gmra.mxu0 %v4189
  %v6158 = vpop.f32.mrf.mxu0
  %v6159 = vadd.f32 %v5950, %v6158
  %6160 = vmatmul.f32.gmra.mxu0 %v4191
  %v6161 = vpop.f32.mrf.mxu0
  %v6162 = vadd.f32 %v5953, %v6161
  %6163 = vmatmul.f32.gmra.mxu0 %v4194
  %v6164 = vpop.f32.mrf.mxu0
  %v6165 = vadd.f32 %v5956, %v6164
  %6166 = vmatmul.f32.gmra.mxu0 %v4196
  %v6167 = vpop.f32.mrf.mxu0
  %v6168 = vadd.f32 %v5959, %v6167
  %6169 = vmatmul.f32.gmra.mxu0 %v4199
  %v6170 = vpop.f32.mrf.mxu0
  %v6171 = vadd.f32 %v5962, %v6170
  %6172 = vmatmul.f32.gmra.mxu0 %v4201
  %v6173 = vpop.f32.mrf.mxu0
  %v6174 = vadd.f32 %v5965, %v6173
  %6175 = vmatmul.f32.gmra.mxu0 %v4204
  %v6176 = vpop.f32.mrf.mxu0
  %v6177 = vadd.f32 %v5968, %v6176
  %6178 = vmatmul.f32.gmra.mxu0 %v4206
  %v6179 = vpop.f32.mrf.mxu0
  %v6180 = vadd.f32 %v5971, %v6179
  %6181 = vmatmul.f32.gmra.mxu0 %v4209
  %v6182 = vpop.f32.mrf.mxu0
  %v6183 = vadd.f32 %v5974, %v6182
  %6184 = vmatmul.f32.gmra.mxu0 %v4211
  %v6185 = vpop.f32.mrf.mxu0
  %v6186 = vadd.f32 %v5977, %v6185
  %6187 = vmatmul.f32.gmra.mxu0 %v4214
  %v6188 = vpop.f32.mrf.mxu0
  %v6189 = vadd.f32 %v5980, %v6188
  %6190 = vmatmul.f32.gmra.mxu0 %v4216
  %v6191 = vpop.f32.mrf.mxu0
  %v6192 = vadd.f32 %v5983, %v6191
  %6193 = vmatmul.f32.gmra.mxu0 %v4219
  %v6194 = vpop.f32.mrf.mxu0
  %v6195 = vadd.f32 %v5986, %v6194
  %6196 = vmatmul.f32.gmra.mxu0 %v4221
  %v6197 = vpop.f32.mrf.mxu0
  %v6198 = vadd.f32 %v5989, %v6197
  %6199 = vmatmul.f32.gmra.mxu0 %v4224
  %v6200 = vpop.f32.mrf.mxu0
  %v6201 = vadd.f32 %v5992, %v6200
  %6202 = vmatmul.f32.gmra.mxu0 %v4226
  %v6203 = vpop.f32.mrf.mxu0
  %v6204 = vadd.f32 %v5995, %v6203
  %6205 = vmatmul.f32.gmra.mxu0 %v4229
  %v6206 = vpop.f32.mrf.mxu0
  %v6207 = vadd.f32 %v5998, %v6206
  %6208 = vmatmul.f32.gmra.mxu0 %v4231
  %v6209 = vpop.f32.mrf.mxu0
  %v6210 = vadd.f32 %v6001, %v6209
  %6211 = vmatmul.f32.gmra.mxu0 %v4234
  %v6212 = vpop.f32.mrf.mxu0
  %v6213 = vadd.f32 %v6004, %v6212
  %6214 = vmatmul.f32.gmra.mxu0 %v4236
  %v6215 = vpop.f32.mrf.mxu0
  %v6216 = vadd.f32 %v6007, %v6215
  %6217 = vmatmul.f32.gmra.mxu0 %v4239
  %v6218 = vpop.f32.mrf.mxu0
  %v6219 = vadd.f32 %v6010, %v6218
  %6220 = vmatmul.f32.gmra.mxu0 %v4241
  %v6221 = vpop.f32.mrf.mxu0
  %v6222 = vadd.f32 %v6013, %v6221
  %6223 = vmatmul.f32.gmra.mxu0 %v4244
  %v6224 = vpop.f32.mrf.mxu0
  %v6225 = vadd.f32 %v6016, %v6224
  %6226 = vmatmul.f32.gmra.mxu0 %v4246
  %v6227 = vpop.f32.mrf.mxu0
  %v6228 = vadd.f32 %v6019, %v6227
  %6229 = vmatmul.f32.gmra.mxu0 %v4249
  %v6230 = vpop.f32.mrf.mxu0
  %v6231 = vadd.f32 %v6022, %v6230
  %6232 = vmatmul.f32.gmra.mxu0 %v4251
  %v6233 = vpop.f32.mrf.mxu0
  %v6234 = vadd.f32 %v6025, %v6233
  %6235 = vmatmul.f32.gmra.mxu0 %v4254
  %v6236 = vpop.f32.mrf.mxu0
  %v6237 = vadd.f32 %v6028, %v6236
  %6238 = vmatmul.f32.gmra.mxu0 %v4256
  %v6239 = vpop.f32.mrf.mxu0
  %v6240 = vadd.f32 %v6031, %v6239
  %6241 = vmatmul.f32.gmra.mxu0 %v4423
  %v6242 = vpop.f32.mrf.mxu0
  %v6243 = vadd.f32 %v6034, %v6242
  %6244 = vmatmul.f32.gmra.mxu0 %v4425
  %v6245 = vpop.f32.mrf.mxu0
  %v6246 = vadd.f32 %v6037, %v6245
  %6247 = vmatmul.f32.gmra.mxu0 %v4457
  %v6248 = vpop.f32.mrf.mxu0
  %v6249 = vadd.f32 %v6040, %v6248
  %6250 = vmatmul.f32.gmra.mxu0 %v4459
  %v6251 = vpop.f32.mrf.mxu0
  %v6252 = vadd.f32 %v6043, %v6251
  %6253 = vmatmul.f32.gmra.mxu0 %v4269
  %v6254 = vpop.f32.mrf.mxu0
  %v6255 = vadd.f32 %v6046, %v6254
  %6256 = vmatmul.f32.gmra.mxu0 %v4271
  %v6257 = vpop.f32.mrf.mxu0
  %v6258 = vadd.f32 %v6049, %v6257
  %6259 = vmatmul.f32.gmra.mxu0 %v4274
  %v6260 = vpop.f32.mrf.mxu0
  %v6261 = vadd.f32 %v6052, %v6260
  %6262 = vmatmul.f32.gmra.mxu0 %v4276
  %v6263 = vpop.f32.mrf.mxu0
  %v6264 = vadd.f32 %v6055, %v6263
  %6265 = vmatmul.f32.gmra.mxu0 %v4279
  %v6266 = vpop.f32.mrf.mxu0
  %v6267 = vadd.f32 %v6058, %v6266
  %6268 = vmatmul.f32.gmra.mxu0 %v4281
  %v6269 = vpop.f32.mrf.mxu0
  %v6270 = vadd.f32 %v6061, %v6269
  %6271 = vmatmul.f32.gmra.mxu0 %v4284
  %v6272 = vpop.f32.mrf.mxu0
  %v6273 = vadd.f32 %v6064, %v6272
  %6274 = vmatmul.f32.gmra.mxu0 %v4286
  %v6275 = vpop.f32.mrf.mxu0
  %v6276 = vadd.f32 %v6067, %v6275
  %6277 = vmatmul.f32.gmra.mxu0 %v4289
  %v6278 = vpop.f32.mrf.mxu0
  %v6279 = vadd.f32 %v6070, %v6278
  %6280 = vmatmul.f32.gmra.mxu0 %v4291
  %v6281 = vpop.f32.mrf.mxu0
  %v6282 = vadd.f32 %v6073, %v6281
  %6283 = vmatmul.f32.gmra.mxu0 %v4294
  %v6284 = vpop.f32.mrf.mxu0
  %v6285 = vadd.f32 %v6076, %v6284
  %6286 = vmatmul.f32.gmra.mxu0 %v4296
  %v6287 = vpop.f32.mrf.mxu0
  %v6288 = vadd.f32 %v6079, %v6287
  %6289 = vmatmul.f32.gmra.mxu0 %v4299
  %v6290 = vpop.f32.mrf.mxu0
  %v6291 = vadd.f32 %v6082, %v6290
  %6292 = vmatmul.f32.gmra.mxu0 %v4301
  %v6293 = vpop.f32.mrf.mxu0
  %v6294 = vadd.f32 %v6085, %v6293
  %6295 = vmatmul.f32.gmra.mxu0 %v4304
  %v6296 = vpop.f32.mrf.mxu0
  %v6297 = vadd.f32 %v6088, %v6296
  %6298 = vmatmul.f32.gmra.mxu0 %v4306
  %v6299 = vpop.f32.mrf.mxu0
  %v6300 = vadd.f32 %v6091, %v6299
  %6301 = vmatmul.f32.gmra.mxu0 %v4309
  %v6302 = vpop.f32.mrf.mxu0
  %v6303 = vadd.f32 %v6094, %v6302
  %6304 = vmatmul.f32.gmra.mxu0 %v4311
  %v6305 = vpop.f32.mrf.mxu0
  %v6306 = vadd.f32 %v6097, %v6305
  %6307 = vmatmul.f32.gmra.mxu0 %v4314
  %v6308 = vpop.f32.mrf.mxu0
  %v6309 = vadd.f32 %v6100, %v6308
  %6310 = vmatmul.f32.gmra.mxu0 %v4316
  %v6311 = vpop.f32.mrf.mxu0
  %v6312 = vadd.f32 %v6103, %v6311
  %6313 = vmatmul.f32.gmra.mxu0 %v4319
  %v6314 = vpop.f32.mrf.mxu0
  %v6315 = vadd.f32 %v6106, %v6314
  %6316 = vmatmul.f32.gmra.mxu0 %v4321
  %v6317 = vpop.f32.mrf.mxu0
  %v6318 = vadd.f32 %v6109, %v6317
  %6319 = vmatmul.f32.gmra.mxu0 %v4324
  %v6320 = vpop.f32.mrf.mxu0
  %v6321 = vadd.f32 %v6112, %v6320
  %6322 = vmatmul.f32.gmra.mxu0 %v4326
  %v6323 = vpop.f32.mrf.mxu0
  %v6324 = vadd.f32 %v6115, %v6323
  %6325 = vmatmul.f32.gmra.mxu0 %v4329
  %v6326 = vpop.f32.mrf.mxu0
  %v6327 = vadd.f32 %v6118, %v6326
  %6328 = vmatmul.f32.gmra.mxu0 %v4331
  %v6329 = vpop.f32.mrf.mxu0
  %v6330 = vadd.f32 %v6121, %v6329
  %6331 = vmatmul.f32.gmra.mxu0 %v4334
  %v6332 = vpop.f32.mrf.mxu0
  %v6333 = vadd.f32 %v6124, %v6332
  %6334 = vmatmul.f32.gmra.mxu0 %v4336
  %v6335 = vpop.f32.mrf.mxu0
  %v6336 = vadd.f32 %v6127, %v6335
  %6337 = vmatmul.f32.gmra.mxu0 %v4428
  %v6338 = vpop.f32.mrf.mxu0
  %v6339 = vadd.f32 %v6130, %v6338
  %6340 = vmatmul.f32.gmra.mxu0 %v4430
  %v6341 = vpop.f32.mrf.mxu0
  %v6342 = vadd.f32 %v6133, %v6341
  %6343 = vmatmul.f32.gmra.mxu0 %v4462
  %v6344 = vpop.f32.mrf.mxu0
  %v6345 = vadd.f32 %v6136, %v6344
  %6346 = vmatmul.f32.gmra.mxu0 %v4464
  %v6347 = vpop.f32.mrf.mxu0
  %v6348 = vadd.f32 %v6139, %v6347
  %6349 = vdwg.mxu0
  %v6350 = vadd.f32 %v6159, %v6162
  %v6351 = vadd.f32 %v6350, %v6165
  %v6352 = vadd.f32 %v6351, %v6168
  %v6353 = vadd.f32 %v6352, %v6171
  %v6354 = vadd.f32 %v6353, %v6174
  %v6355 = vadd.f32 %v6354, %v6177
  %v6356 = vadd.f32 %v6355, %v6180
  %v6357 = vadd.f32 %v6356, %v6183
  %v6358 = vadd.f32 %v6357, %v6186
  %v6359 = vadd.f32 %v6358, %v6189
  %v6360 = vadd.f32 %v6359, %v6192
  %v6361 = vadd.f32 %v6360, %v6195
  %v6362 = vadd.f32 %v6361, %v6198
  %v6363 = vadd.f32 %v6362, %v6201
  %v6364 = vadd.f32 %v6363, %v6204
  %v6365 = vadd.f32 %v6364, %v6207
  %v6366 = vadd.f32 %v6365, %v6210
  %v6367 = vadd.f32 %v6366, %v6213
  %v6368 = vadd.f32 %v6367, %v6216
  %v6369 = vadd.f32 %v6368, %v6219
  %v6370 = vadd.f32 %v6369, %v6222
  %v6371 = vadd.f32 %v6370, %v6225
  %v6372 = vadd.f32 %v6371, %v6228
  %v6373 = vadd.f32 %v6372, %v6231
  %v6374 = vadd.f32 %v6373, %v6234
  %v6375 = vadd.f32 %v6374, %v6237
  %v6376 = vadd.f32 %v6375, %v6240
  %v6377 = vadd.f32 %v6376, %v6243
  %v6378 = vadd.f32 %v6377, %v6246
  %v6379 = vadd.f32 %v6378, %v6249
  %v6380 = vadd.f32 %v6379, %v6252
  %v6381 = vadd.f32 %v6380, %v6255
  %v6382 = vadd.f32 %v6381, %v6258
  %v6383 = vadd.f32 %v6382, %v6261
  %v6384 = vadd.f32 %v6383, %v6264
  %v6385 = vadd.f32 %v6384, %v6267
  %v6386 = vadd.f32 %v6385, %v6270
  %v6387 = vadd.f32 %v6386, %v6273
  %v6388 = vadd.f32 %v6387, %v6276
  %v6389 = vadd.f32 %v6388, %v6279
  %v6390 = vadd.f32 %v6389, %v6282
  %v6391 = vadd.f32 %v6390, %v6285
  %v6392 = vadd.f32 %v6391, %v6288
  %v6393 = vadd.f32 %v6392, %v6291
  %v6394 = vadd.f32 %v6393, %v6294
  %v6395 = vadd.f32 %v6394, %v6297
  %v6396 = vadd.f32 %v6395, %v6300
  %v6397 = vadd.f32 %v6396, %v6303
  %v6398 = vadd.f32 %v6397, %v6306
  %v6399 = vadd.f32 %v6398, %v6309
  %v6400 = vadd.f32 %v6399, %v6312
  %v6401 = vadd.f32 %v6400, %v6315
  %v6402 = vadd.f32 %v6401, %v6318
  %v6403 = vadd.f32 %v6402, %v6321
  %v6404 = vadd.f32 %v6403, %v6324
  %v6405 = vadd.f32 %v6404, %v6327
  %v6406 = vadd.f32 %v6405, %v6330
  %v6407 = vadd.f32 %v6406, %v6333
  %v6408 = vadd.f32 %v6407, %v6336
  %v6409 = vadd.f32 %v6408, %v6339
  %v6410 = vadd.f32 %v6409, %v6342
  %v6411 = vadd.f32 %v6410, %v6345
  %v6412 = vadd.f32 %v6411, %v6348
  %v6413 = vrot.slane %v6412, 4
  %v6414 = vadd.f32 %v6412, %v6413
  %v6415 = vrot.slane %v6414, 2
  %v6416 = vadd.f32 %v6414, %v6415
  %v6417 = vrot.slane %v6416, 1
  %v6418 = vadd.f32 %v6416, %v6417
  %v6419 = vmul.f32 %v6159, %v6159
  %v6420 = vmul.f32 %v6162, %v6162
  %v6421 = vmul.f32 %v6165, %v6165
  %v6422 = vmul.f32 %v6168, %v6168
  %v6423 = vmul.f32 %v6171, %v6171
  %v6424 = vmul.f32 %v6174, %v6174
  %v6425 = vmul.f32 %v6177, %v6177
  %v6426 = vmul.f32 %v6180, %v6180
  %v6427 = vmul.f32 %v6183, %v6183
  %v6428 = vmul.f32 %v6186, %v6186
  %v6429 = vmul.f32 %v6189, %v6189
  %v6430 = vmul.f32 %v6192, %v6192
  %v6431 = vmul.f32 %v6195, %v6195
  %v6432 = vmul.f32 %v6198, %v6198
  %v6433 = vmul.f32 %v6201, %v6201
  %v6434 = vmul.f32 %v6204, %v6204
  %v6435 = vmul.f32 %v6207, %v6207
  %v6436 = vmul.f32 %v6210, %v6210
  %v6437 = vmul.f32 %v6213, %v6213
  %v6438 = vmul.f32 %v6216, %v6216
  %v6439 = vmul.f32 %v6219, %v6219
  %v6440 = vmul.f32 %v6222, %v6222
  %v6441 = vmul.f32 %v6225, %v6225
  %v6442 = vmul.f32 %v6228, %v6228
  %v6443 = vmul.f32 %v6231, %v6231
  %v6444 = vmul.f32 %v6234, %v6234
  %v6445 = vmul.f32 %v6237, %v6237
  %v6446 = vmul.f32 %v6240, %v6240
  %v6447 = vmul.f32 %v6243, %v6243
  %v6448 = vmul.f32 %v6246, %v6246
  %v6449 = vmul.f32 %v6249, %v6249
  %v6450 = vmul.f32 %v6252, %v6252
  %v6451 = vmul.f32 %v6255, %v6255
  %v6452 = vmul.f32 %v6258, %v6258
  %v6453 = vmul.f32 %v6261, %v6261
  %v6454 = vmul.f32 %v6264, %v6264
  %v6455 = vmul.f32 %v6267, %v6267
  %v6456 = vmul.f32 %v6270, %v6270
  %v6457 = vmul.f32 %v6273, %v6273
  %v6458 = vmul.f32 %v6276, %v6276
  %v6459 = vmul.f32 %v6279, %v6279
  %v6460 = vmul.f32 %v6282, %v6282
  %v6461 = vmul.f32 %v6285, %v6285
  %v6462 = vmul.f32 %v6288, %v6288
  %v6463 = vmul.f32 %v6291, %v6291
  %v6464 = vmul.f32 %v6294, %v6294
  %v6465 = vmul.f32 %v6297, %v6297
  %v6466 = vmul.f32 %v6300, %v6300
  %v6467 = vmul.f32 %v6303, %v6303
  %v6468 = vmul.f32 %v6306, %v6306
  %v6469 = vmul.f32 %v6309, %v6309
  %v6470 = vmul.f32 %v6312, %v6312
  %v6471 = vmul.f32 %v6315, %v6315
  %v6472 = vmul.f32 %v6318, %v6318
  %v6473 = vmul.f32 %v6321, %v6321
  %v6474 = vmul.f32 %v6324, %v6324
  %v6475 = vmul.f32 %v6327, %v6327
  %v6476 = vmul.f32 %v6330, %v6330
  %v6477 = vmul.f32 %v6333, %v6333
  %v6478 = vmul.f32 %v6336, %v6336
  %v6479 = vmul.f32 %v6339, %v6339
  %v6480 = vmul.f32 %v6342, %v6342
  %v6481 = vmul.f32 %v6345, %v6345
  %v6482 = vmul.f32 %v6348, %v6348
  %v6483 = vadd.f32 %v6419, %v6420
  %v6484 = vadd.f32 %v6483, %v6421
  %v6485 = vadd.f32 %v6484, %v6422
  %v6486 = vadd.f32 %v6485, %v6423
  %v6487 = vadd.f32 %v6486, %v6424
  %v6488 = vadd.f32 %v6487, %v6425
  %v6489 = vadd.f32 %v6488, %v6426
  %v6490 = vadd.f32 %v6489, %v6427
  %v6491 = vadd.f32 %v6490, %v6428
  %v6492 = vadd.f32 %v6491, %v6429
  %v6493 = vadd.f32 %v6492, %v6430
  %v6494 = vadd.f32 %v6493, %v6431
  %v6495 = vadd.f32 %v6494, %v6432
  %v6496 = vadd.f32 %v6495, %v6433
  %v6497 = vadd.f32 %v6496, %v6434
  %v6498 = vadd.f32 %v6497, %v6435
  %v6499 = vadd.f32 %v6498, %v6436
  %v6500 = vadd.f32 %v6499, %v6437
  %v6501 = vadd.f32 %v6500, %v6438
  %v6502 = vadd.f32 %v6501, %v6439
  %v6503 = vadd.f32 %v6502, %v6440
  %v6504 = vadd.f32 %v6503, %v6441
  %v6505 = vadd.f32 %v6504, %v6442
  %v6506 = vadd.f32 %v6505, %v6443
  %v6507 = vadd.f32 %v6506, %v6444
  %v6508 = vadd.f32 %v6507, %v6445
  %v6509 = vadd.f32 %v6508, %v6446
  %v6510 = vadd.f32 %v6509, %v6447
  %v6511 = vadd.f32 %v6510, %v6448
  %v6512 = vadd.f32 %v6511, %v6449
  %v6513 = vadd.f32 %v6512, %v6450
  %v6514 = vadd.f32 %v6513, %v6451
  %v6515 = vadd.f32 %v6514, %v6452
  %v6516 = vadd.f32 %v6515, %v6453
  %v6517 = vadd.f32 %v6516, %v6454
  %v6518 = vadd.f32 %v6517, %v6455
  %v6519 = vadd.f32 %v6518, %v6456
  %v6520 = vadd.f32 %v6519, %v6457
  %v6521 = vadd.f32 %v6520, %v6458
  %v6522 = vadd.f32 %v6521, %v6459
  %v6523 = vadd.f32 %v6522, %v6460
  %v6524 = vadd.f32 %v6523, %v6461
  %v6525 = vadd.f32 %v6524, %v6462
  %v6526 = vadd.f32 %v6525, %v6463
  %v6527 = vadd.f32 %v6526, %v6464
  %v6528 = vadd.f32 %v6527, %v6465
  %v6529 = vadd.f32 %v6528, %v6466
  %v6530 = vadd.f32 %v6529, %v6467
  %v6531 = vadd.f32 %v6530, %v6468
  %v6532 = vadd.f32 %v6531, %v6469
  %v6533 = vadd.f32 %v6532, %v6470
  %v6534 = vadd.f32 %v6533, %v6471
  %v6535 = vadd.f32 %v6534, %v6472
  %v6536 = vadd.f32 %v6535, %v6473
  %v6537 = vadd.f32 %v6536, %v6474
  %v6538 = vadd.f32 %v6537, %v6475
  %v6539 = vadd.f32 %v6538, %v6476
  %v6540 = vadd.f32 %v6539, %v6477
  %v6541 = vadd.f32 %v6540, %v6478
  %v6542 = vadd.f32 %v6541, %v6479
  %v6543 = vadd.f32 %v6542, %v6480
  %v6544 = vadd.f32 %v6543, %v6481
  %v6545 = vadd.f32 %v6544, %v6482
  %v6546 = vrot.slane %v6545, 4
  %v6547 = vadd.f32 %v6545, %v6546
  %v6548 = vrot.slane %v6547, 2
  %v6549 = vadd.f32 %v6547, %v6548
  %v6550 = vrot.slane %v6549, 1
  %v6551 = vadd.f32 %v6549, %v6550
  %v6552 = vmul.f32 %v6418, 0.001953125
  %v6553 = vmul.f32 %v6551, 0.001953125
  %v6554 = vmul.f32 %v6552, %v6552
  %v6555 = vsub.f32 %v6553, %v6554
  %v6556 = vadd.f32 %v6555, 1e-05
  %v6557 = vrsqrt.pop %v6556
  %v6558 = vmul.f32 %v6557, %v6556
  %v6559 = vmul.f32 %v6558, %v6557
  %v6560 = vmul.f32 0.5, %v6559
  %v6561 = vsub.f32 1.5, %v6560
  %v6562 = vmul.f32 %v6557, %v6561
  %vm6563 = vweird.f32 %v6556
  %vm6564 = vweird.f32 %v6557
  %vm6565 = vmor %vm6563, %vm6564
  %v6566 = vsel %vm6565, %v6557, %v6562
  %v6567 = vmul.f32 %v3747, %v6566
  %v6568 = vmul.f32 %v6552, %v6567
  %v6569 = vsub.f32 %v3748, %v6568
  %v6571 = vperm.slane %v6567, 0
  %v6573 = vmul.f32 %v6159, %v6571
  %v6574 = vmul.f32 %v6162, %v6571
  %v6575 = vmul.f32 %v6165, %v6571
  %v6576 = vmul.f32 %v6168, %v6571
  %v6577 = vmul.f32 %v6171, %v6571
  %v6578 = vmul.f32 %v6174, %v6571
  %v6579 = vmul.f32 %v6177, %v6571
  %v6580 = vmul.f32 %v6180, %v6571
  %v6581 = vmul.f32 %v6183, %v6571
  %v6582 = vmul.f32 %v6186, %v6571
  %v6583 = vmul.f32 %v6189, %v6571
  %v6584 = vmul.f32 %v6192, %v6571
  %v6585 = vmul.f32 %v6195, %v6571
  %v6586 = vmul.f32 %v6198, %v6571
  %v6587 = vmul.f32 %v6201, %v6571
  %v6588 = vmul.f32 %v6204, %v6571
  %v6589 = vmul.f32 %v6207, %v6571
  %v6590 = vmul.f32 %v6210, %v6571
  %v6591 = vmul.f32 %v6213, %v6571
  %v6592 = vmul.f32 %v6216, %v6571
  %v6593 = vmul.f32 %v6219, %v6571
  %v6594 = vmul.f32 %v6222, %v6571
  %v6595 = vmul.f32 %v6225, %v6571
  %v6596 = vmul.f32 %v6228, %v6571
  %v6597 = vmul.f32 %v6231, %v6571
  %v6598 = vmul.f32 %v6234, %v6571
  %v6599 = vmul.f32 %v6237, %v6571
  %v6600 = vmul.f32 %v6240, %v6571
  %v6601 = vmul.f32 %v6243, %v6571
  %v6602 = vmul.f32 %v6246, %v6571
  %v6603 = vmul.f32 %v6249, %v6571
  %v6604 = vmul.f32 %v6252, %v6571
  %v6605 = vmul.f32 %v6255, %v6571
  %v6606 = vmul.f32 %v6258, %v6571
  %v6607 = vmul.f32 %v6261, %v6571
  %v6608 = vmul.f32 %v6264, %v6571
  %v6609 = vmul.f32 %v6267, %v6571
  %v6610 = vmul.f32 %v6270, %v6571
  %v6611 = vmul.f32 %v6273, %v6571
  %v6612 = vmul.f32 %v6276, %v6571
  %v6613 = vmul.f32 %v6279, %v6571
  %v6614 = vmul.f32 %v6282, %v6571
  %v6615 = vmul.f32 %v6285, %v6571
  %v6616 = vmul.f32 %v6288, %v6571
  %v6617 = vmul.f32 %v6291, %v6571
  %v6618 = vmul.f32 %v6294, %v6571
  %v6619 = vmul.f32 %v6297, %v6571
  %v6620 = vmul.f32 %v6300, %v6571
  %v6621 = vmul.f32 %v6303, %v6571
  %v6622 = vmul.f32 %v6306, %v6571
  %v6623 = vmul.f32 %v6309, %v6571
  %v6624 = vmul.f32 %v6312, %v6571
  %v6625 = vmul.f32 %v6315, %v6571
  %v6626 = vmul.f32 %v6318, %v6571
  %v6627 = vmul.f32 %v6321, %v6571
  %v6628 = vmul.f32 %v6324, %v6571
  %v6629 = vmul.f32 %v6327, %v6571
  %v6630 = vmul.f32 %v6330, %v6571
  %v6631 = vmul.f32 %v6333, %v6571
  %v6632 = vmul.f32 %v6336, %v6571
  %v6633 = vmul.f32 %v6339, %v6571
  %v6634 = vmul.f32 %v6342, %v6571
  %v6635 = vmul.f32 %v6345, %v6571
  %v6636 = vmul.f32 %v6348, %v6571
  %v6638 = vperm.slane %v6569, 0
  %v6640 = vadd.f32 %v6573, %v6638
  %v6641 = vadd.f32 %v6574, %v6638
  %v6642 = vadd.f32 %v6575, %v6638
  %v6643 = vadd.f32 %v6576, %v6638
  %v6644 = vadd.f32 %v6577, %v6638
  %v6645 = vadd.f32 %v6578, %v6638
  %v6646 = vadd.f32 %v6579, %v6638
  %v6647 = vadd.f32 %v6580, %v6638
  %v6648 = vadd.f32 %v6581, %v6638
  %v6649 = vadd.f32 %v6582, %v6638
  %v6650 = vadd.f32 %v6583, %v6638
  %v6651 = vadd.f32 %v6584, %v6638
  %v6652 = vadd.f32 %v6585, %v6638
  %v6653 = vadd.f32 %v6586, %v6638
  %v6654 = vadd.f32 %v6587, %v6638
  %v6655 = vadd.f32 %v6588, %v6638
  %v6656 = vadd.f32 %v6589, %v6638
  %v6657 = vadd.f32 %v6590, %v6638
  %v6658 = vadd.f32 %v6591, %v6638
  %v6659 = vadd.f32 %v6592, %v6638
  %v6660 = vadd.f32 %v6593, %v6638
  %v6661 = vadd.f32 %v6594, %v6638
  %v6662 = vadd.f32 %v6595, %v6638
  %v6663 = vadd.f32 %v6596, %v6638
  %v6664 = vadd.f32 %v6597, %v6638
  %v6665 = vadd.f32 %v6598, %v6638
  %v6666 = vadd.f32 %v6599, %v6638
  %v6667 = vadd.f32 %v6600, %v6638
  %v6668 = vadd.f32 %v6601, %v6638
  %v6669 = vadd.f32 %v6602, %v6638
  %v6670 = vadd.f32 %v6603, %v6638
  %v6671 = vadd.f32 %v6604, %v6638
  %v6672 = vadd.f32 %v6605, %v6638
  %v6673 = vadd.f32 %v6606, %v6638
  %v6674 = vadd.f32 %v6607, %v6638
  %v6675 = vadd.f32 %v6608, %v6638
  %v6676 = vadd.f32 %v6609, %v6638
  %v6677 = vadd.f32 %v6610, %v6638
  %v6678 = vadd.f32 %v6611, %v6638
  %v6679 = vadd.f32 %v6612, %v6638
  %v6680 = vadd.f32 %v6613, %v6638
  %v6681 = vadd.f32 %v6614, %v6638
  %v6682 = vadd.f32 %v6615, %v6638
  %v6683 = vadd.f32 %v6616, %v6638
  %v6684 = vadd.f32 %v6617, %v6638
  %v6685 = vadd.f32 %v6618, %v6638
  %v6686 = vadd.f32 %v6619, %v6638
  %v6687 = vadd.f32 %v6620, %v6638
  %v6688 = vadd.f32 %v6621, %v6638
  %v6689 = vadd.f32 %v6622, %v6638
  %v6690 = vadd.f32 %v6623, %v6638
  %v6691 = vadd.f32 %v6624, %v6638
  %v6692 = vadd.f32 %v6625, %v6638
  %v6693 = vadd.f32 %v6626, %v6638
  %v6694 = vadd.f32 %v6627, %v6638
  %v6695 = vadd.f32 %v6628, %v6638
  %v6696 = vadd.f32 %v6629, %v6638
  %v6697 = vadd.f32 %v6630, %v6638
  %v6698 = vadd.f32 %v6631, %v6638
  %v6699 = vadd.f32 %v6632, %v6638
  %v6700 = vadd.f32 %v6633, %v6638
  %v6701 = vadd.f32 %v6634, %v6638
  %v6702 = vadd.f32 %v6635, %v6638
  %v6703 = vadd.f32 %v6636, %v6638
  %v6704 = vmax.f32 %v6640, 0.0
  %v6705 = vmax.f32 %v6641, 0.0
  %v6706 = vmax.f32 %v6642, 0.0
  %v6707 = vmax.f32 %v6643, 0.0
  %v6708 = vmax.f32 %v6644, 0.0
  %v6709 = vmax.f32 %v6645, 0.0
  %v6710 = vmax.f32 %v6646, 0.0
  %v6711 = vmax.f32 %v6647, 0.0
  %v6712 = vmax.f32 %v6648, 0.0
  %v6713 = vmax.f32 %v6649, 0.0
  %v6714 = vmax.f32 %v6650, 0.0
  %v6715 = vmax.f32 %v6651, 0.0
  %v6716 = vmax.f32 %v6652, 0.0
  %v6717 = vmax.f32 %v6653, 0.0
  %v6718 = vmax.f32 %v6654, 0.0
  %v6719 = vmax.f32 %v6655, 0.0
  %v6720 = vmax.f32 %v6656, 0.0
  %v6721 = vmax.f32 %v6657, 0.0
  %v6722 = vmax.f32 %v6658, 0.0
  %v6723 = vmax.f32 %v6659, 0.0
  %v6724 = vmax.f32 %v6660, 0.0
  %v6725 = vmax.f32 %v6661, 0.0
  %v6726 = vmax.f32 %v6662, 0.0
  %v6727 = vmax.f32 %v6663, 0.0
  %v6728 = vmax.f32 %v6664, 0.0
  %v6729 = vmax.f32 %v6665, 0.0
  %v6730 = vmax.f32 %v6666, 0.0
  %v6731 = vmax.f32 %v6667, 0.0
  %v6732 = vmax.f32 %v6668, 0.0
  %v6733 = vmax.f32 %v6669, 0.0
  %v6734 = vmax.f32 %v6670, 0.0
  %v6735 = vmax.f32 %v6671, 0.0
  %v6736 = vmax.f32 %v6672, 0.0
  %v6737 = vmax.f32 %v6673, 0.0
  %v6738 = vmax.f32 %v6674, 0.0
  %v6739 = vmax.f32 %v6675, 0.0
  %v6740 = vmax.f32 %v6676, 0.0
  %v6741 = vmax.f32 %v6677, 0.0
  %v6742 = vmax.f32 %v6678, 0.0
  %v6743 = vmax.f32 %v6679, 0.0
  %v6744 = vmax.f32 %v6680, 0.0
  %v6745 = vmax.f32 %v6681, 0.0
  %v6746 = vmax.f32 %v6682, 0.0
  %v6747 = vmax.f32 %v6683, 0.0
  %v6748 = vmax.f32 %v6684, 0.0
  %v6749 = vmax.f32 %v6685, 0.0
  %v6750 = vmax.f32 %v6686, 0.0
  %v6751 = vmax.f32 %v6687, 0.0
  %v6752 = vmax.f32 %v6688, 0.0
  %v6753 = vmax.f32 %v6689, 0.0
  %v6754 = vmax.f32 %v6690, 0.0
  %v6755 = vmax.f32 %v6691, 0.0
  %v6756 = vmax.f32 %v6692, 0.0
  %v6757 = vmax.f32 %v6693, 0.0
  %v6758 = vmax.f32 %v6694, 0.0
  %v6759 = vmax.f32 %v6695, 0.0
  %v6760 = vmax.f32 %v6696, 0.0
  %v6761 = vmax.f32 %v6697, 0.0
  %v6762 = vmax.f32 %v6698, 0.0
  %v6763 = vmax.f32 %v6699, 0.0
  %v6764 = vmax.f32 %v6700, 0.0
  %v6765 = vmax.f32 %v6701, 0.0
  %v6766 = vmax.f32 %v6702, 0.0
  %v6767 = vmax.f32 %v6703, 0.0
  %6768 = vst [vmem:[%s7] sm:$0xff] %v6704
  %6769 = vst [vmem:[%s7 + $0x8] sm:$0xff] %v6705
  %6770 = vst [vmem:[%s7 + $0x10] sm:$0xff] %v6706
  %6771 = vst [vmem:[%s7 + $0x18] sm:$0xff] %v6707
  %6772 = vst [vmem:[%s7 + $0x20] sm:$0xff] %v6708
  %6773 = vst [vmem:[%s7 + $0x28] sm:$0xff] %v6709
  %6774 = vst [vmem:[%s7 + $0x30] sm:$0xff] %v6710
  %6775 = vst [vmem:[%s7 + $0x38] sm:$0xff] %v6711
  %6776 = vst [vmem:[%s7 + $0x40] sm:$0xff] %v6712
  %6777 = vst [vmem:[%s7 + $0x48] sm:$0xff] %v6713
  %6778 = vst [vmem:[%s7 + $0x50] sm:$0xff] %v6714
  %6779 = vst [vmem:[%s7 + $0x58] sm:$0xff] %v6715
  %6780 = vst [vmem:[%s7 + $0x60] sm:$0xff] %v6716
  %6781 = vst [vmem:[%s7 + $0x68] sm:$0xff] %v6717
  %6782 = vst [vmem:[%s7 + $0x70] sm:$0xff] %v6718
  %6783 = vst [vmem:[%s7 + $0x78] sm:$0xff] %v6719
  %6784 = vst [vmem:[%s7 + $0x80] sm:$0xff] %v6720
  %6785 = vst [vmem:[%s7 + $0x88] sm:$0xff] %v6721
  %6786 = vst [vmem:[%s7 + $0x90] sm:$0xff] %v6722
  %6787 = vst [vmem:[%s7 + $0x98] sm:$0xff] %v6723
  %6788 = vst [vmem:[%s7 + $0xa0] sm:$0xff] %v6724
  %6789 = vst [vmem:[%s7 + $0xa8] sm:$0xff] %v6725
  %6790 = vst [vmem:[%s7 + $0xb0] sm:$0xff] %v6726
  %6791 = vst [vmem:[%s7 + $0xb8] sm:$0xff] %v6727
  %6792 = vst [vmem:[%s7 + $0xc0] sm:$0xff] %v6728
  %6793 = vst [vmem:[%s7 + $0xc8] sm:$0xff] %v6729
  %6794 = vst [vmem:[%s7 + $0xd0] sm:$0xff] %v6730
  %6795 = vst [vmem:[%s7 + $0xd8] sm:$0xff] %v6731
  %6796 = vst [vmem:[%s7 + $0xe0] sm:$0xff] %v6732
  %6797 = vst [vmem:[%s7 + $0xe8] sm:$0xff] %v6733
  %6798 = vst [vmem:[%s7 + $0xf0] sm:$0xff] %v6734
  %6799 = vst [vmem:[%s7 + $0xf8] sm:$0xff] %v6735
  %6800 = vst [vmem:[%s7 + $0x100] sm:$0xff] %v6736
  %6801 = vst [vmem:[%s7 + $0x108] sm:$0xff] %v6737
  %6802 = vst [vmem:[%s7 + $0x110] sm:$0xff] %v6738
  %6803 = vst [vmem:[%s7 + $0x118] sm:$0xff] %v6739
  %6804 = vst [vmem:[%s7 + $0x120] sm:$0xff] %v6740
  %6805 = vst [vmem:[%s7 + $0x128] sm:$0xff] %v6741
  %6806 = vst [vmem:[%s7 + $0x130] sm:$0xff] %v6742
  %6807 = vst [vmem:[%s7 + $0x138] sm:$0xff] %v6743
  %6808 = vst [vmem:[%s7 + $0x140] sm:$0xff] %v6744
  %6809 = vst [vmem:[%s7 + $0x148] sm:$0xff] %v6745
  %6810 = vst [vmem:[%s7 + $0x150] sm:$0xff] %v6746
  %6811 = vst [vmem:[%s7 + $0x158] sm:$0xff] %v6747
  %6812 = vst [vmem:[%s7 + $0x160] sm:$0xff] %v6748
  %6813 = vst [vmem:[%s7 + $0x168] sm:$0xff] %v6749
  %6814 = vst [vmem:[%s7 + $0x170] sm:$0xff] %v6750
  %6815 = vst [vmem:[%s7 + $0x178] sm:$0xff] %v6751
  %6816 = vst [vmem:[%s7 + $0x180] sm:$0xff] %v6752
  %6817 = vst [vmem:[%s7 + $0x188] sm:$0xff] %v6753
  %6818 = vst [vmem:[%s7 + $0x190] sm:$0xff] %v6754
  %6819 = vst [vmem:[%s7 + $0x198] sm:$0xff] %v6755
  %6820 = vst [vmem:[%s7 + $0x1a0] sm:$0xff] %v6756
  %6821 = vst [vmem:[%s7 + $0x1a8] sm:$0xff] %v6757
  %6822 = vst [vmem:[%s7 + $0x1b0] sm:$0xff] %v6758
  %6823 = vst [vmem:[%s7 + $0x1b8] sm:$0xff] %v6759
  %6824 = vst [vmem:[%s7 + $0x1c0] sm:$0xff] %v6760
  %6825 = vst [vmem:[%s7 + $0x1c8] sm:$0xff] %v6761
  %6826 = vst [vmem:[%s7 + $0x1d0] sm:$0xff] %v6762
  %6827 = vst [vmem:[%s7 + $0x1d8] sm:$0xff] %v6763
  %6828 = vst [vmem:[%s7 + $0x1e0] sm:$0xff] %v6764
  %6829 = vst [vmem:[%s7 + $0x1e8] sm:$0xff] %v6765
  %6830 = vst [vmem:[%s7 + $0x1f0] sm:$0xff] %v6766
  %6831 = vst [vmem:[%s7 + $0x1f8] sm:$0xff] %v6767
  // Predicated region
  $region30: #{bridge_forward.1} parent=0 // pred_check
    _
  $region31: #{bridge_forward.1} parent=0 // pred_check_branch
    %6833 = sbr.rel (0) target = $region33
  $region32: #{bridge_forward.1} parent=0 // pred_region
    _
  $region33: #{bridge_forward.1} parent=0 // pred_fallthru
    _
  // Predicated region
  $region34: #{bridge_forward.1} parent=0 // pred_check
    _
  $region35: #{bridge_forward.1} parent=0 // pred_check_branch
    %6835 = sbr.rel (0) target = $region37
  $region36: #{bridge_forward.1} parent=0 // pred_region
    _
  $region37: #{bridge_forward.1} parent=0 // pred_fallthru
    _

</llo_original>
